<compile_context>
chip_gen: v7x
topology: tpu7x:2x2x1
jax: 0.10.0
libtpu: 0.0.40
codegen_flags: <defaults>
</compile_context>

<pallas_src>
import functools

import jax
import jax.numpy as jnp
from jax import lax
from jax.experimental import pallas as pl
from jax.experimental.pallas import tpu as pltpu


def _round_up(x, m):
    return (x + m - 1) // m * m


def _basic_block_kernel(x_ref, w1p_ref, w1s_ref, b1_ref, w2p_ref, w2s_ref, b2_ref,
                        o_ref, buf_ref, *, H, W, Cp, base):
    # x_ref   : (1, Sbuf, Cp)  f32  -- flattened spatially-padded input (+ alignment slack rows)
    # w*p_ref : (3, 2*Cp, Cp)  bf16 -- paired taps (dy, [dx=0 ; dx=1]), BN scale folded in
    # w*s_ref : (3,   Cp, Cp)  bf16 -- single taps (dy, dx=2), BN scale folded in
    # b*_ref  : (1, Cp)        f32  -- folded BN bias
    # o_ref   : (1, L, Cp)     f32  -- lane-dense output slab (junk cols + pad channels kept)
    # buf_ref : (Sbuf, 2*Cp)   bf16 -- staging: lanes [0:Cp] = row r, lanes [Cp:2Cp] = row r+1
    f32 = jnp.float32
    Wp2 = W + 2
    L = H * Wp2                       # conv-output rows: W valid + 2 junk columns per image row
    interior = base + Wp2 + 1         # flat row of image pixel (0,0); 8-aligned by construction
    Sbuf = buf_ref.shape[0]

    # ---- stage x: two f32->bf16 passes total (vs 9 per-tap casts before); the "row r+1"
    #      lanes read x_ref with a +1 row shift; halo/slack rows of x are already zero.
    buf_ref[:, :Cp] = x_ref[0].astype(jnp.bfloat16)
    buf_ref[:Sbuf - 1, Cp:] = x_ref[0, 1:, :].astype(jnp.bfloat16)
    # (row Sbuf-1's upper lanes are never read: the last paired window stops short of it)

    def conv(wp_ref, ws_ref, b_ref):
        # Folded BN bias seeds the accumulator (BN scale lives in the bf16 weights).
        acc = b_ref[...]                                             # (1, Cp), broadcasts
        for dy in range(3):
            off = base + dy * Wp2
            acc = acc + jnp.dot(buf_ref[off:off + L, :], wp_ref[dy],
                                preferred_element_type=f32)          # taps (dy,0)+(dy,1), K=2*Cp
            acc = acc + jnp.dot(buf_ref[off + 2:off + 2 + L, :Cp], ws_ref[dy],
                                preferred_element_type=f32)          # tap  (dy,2),       K=Cp
        return acc

    # ---- conv1 + bn1 + relu; zero the 2 junk columns per image row (= conv2's SAME padding) ----
    acc = conv(w1p_ref, w1s_ref, b1_ref)
    j = lax.broadcasted_iota(jnp.int32, (L, 1), 0).astype(f32)
    col = j - jnp.floor((j + 0.5) * (1.0 / Wp2)) * Wp2               # exact j % Wp2 (f32 trick)
    mask = (col < W).astype(f32)                                     # 1.0 real col, 0.0 junk col
    act1 = (jnp.maximum(acc, 0.0) * mask).astype(jnp.bfloat16)

    # ---- re-stage for conv2; halo rows stay zero courtesy of x's spatial zero padding ----
    buf_ref[interior:interior + L, :Cp] = act1
    buf_ref[interior - 1:interior + L - 1, Cp:] = act1

    # ---- conv2 + bn2 + identity residual + relu: fused epilogue, single lane-dense store ----
    # TODO(synk): downsample branch (stride != 1 or Cin != Cout) not implemented; this module
    # instance uses stride=1, downsample=None, so residual = x.
    acc = conv(w2p_ref, w2s_ref, b2_ref)
    residual = x_ref[0, interior:interior + L, :]
    o_ref[0] = jnp.maximum(acc + residual, 0.0).astype(o_ref.dtype)


@jax.jit
def basic_block_pallas(x_nhwc, w1_hwio, w2_hwio, scale1, bias1, scale2, bias2):
    N, H, W, Cin = x_nhwc.shape
    Cout = w1_hwio.shape[-1]
    assert Cin == Cout, "identity residual requires Cin == Cout (downsample=None)"

    LANE = 128
    Cp = _round_up(max(Cin, LANE), LANE)           # lane-dense channel count
    # TODO(synk): Cin < 128 wastes (Cin/128)^2 of MXU peak; early ResNet stages deserve a
    # packed small-C layout (two pixels' channels per 128-lane row) or a dedicated path.
    Hp2, Wp2 = H + 2, W + 2
    L = H * Wp2                                    # rows of each conv-output slab
    base = _round_up(Wp2 + 1, 8) - (Wp2 + 1)       # head slack so the interior row is 8-aligned
    Sbuf = _round_up(base + Hp2 * Wp2 + 2, 8)      # flattened buffer rows (+2: last-tap slack)

    f32 = jnp.float32
    # Channel pad + 1px spatial pad + flatten (H+2, W+2) -> rows; add head/tail slack rows.
    # TODO(synk): when chaining BasicBlocks, keep the (N, L, Cp) lane-dense slab as the
    # inter-block format to avoid these wrapper-side pad/reshape/crop HBM passes.
    xp = jnp.pad(x_nhwc.astype(f32), ((0, 0), (1, 1), (1, 1), (0, Cp - Cin)))
    x_flat = jnp.pad(xp.reshape(N, Hp2 * Wp2, Cp),
                     ((0, 0), (base, Sbuf - base - Hp2 * Wp2), (0, 0)))

    def prep_w(w, scale):
        # Fold BN scale into the weights (conv(x,w)*s == conv(x,w*s)), pad channels, cast to
        # bf16, split into paired taps (dx=0,1 stacked along Cin) and single taps (dx=2).
        w = w.astype(f32) * scale.astype(f32)[None, None, None, :]
        w = jnp.pad(w, ((0, 0), (0, 0), (0, Cp - Cin), (0, Cp - Cout))).astype(jnp.bfloat16)
        w_pair = jnp.concatenate([w[:, 0], w[:, 1]], axis=1)   # (3, 2*Cp, Cp)
        w_single = w[:, 2]                                     # (3,   Cp, Cp)
        return w_pair, w_single

    def prep_b(b):
        return jnp.pad(b.astype(f32), (0, Cp - Cout)).reshape(1, Cp)

    w1p, w1s = prep_w(w1_hwio, scale1)
    w2p, w2s = prep_w(w2_hwio, scale2)
    b1, b2 = prep_b(bias1), prep_b(bias2)

    kernel = functools.partial(_basic_block_kernel, H=H, W=W, Cp=Cp, base=base)

    # Per-step VMEM footprint estimate (double-buffered x/out slabs, both convs' weights,
    # bf16 staging scratch, live f32 accumulator/activation temporaries) -> explicit limit
    # with headroom; v5e's default scoped limit is only 16 MiB.
    est = (2 * Sbuf * Cp * 4 + 2 * L * Cp * 4 + 2 * 2 * 9 * Cp * Cp * 2
           + Sbuf * 2 * Cp * 2 + 4 * L * Cp * 4)
    vmem_limit = int(min(max(2 * est, 32 * 1024 * 1024), 64 * 1024 * 1024))

    # TODO(synk): for large spatial sizes / v7x (64 MiB VMEM, 2 TCs) add a halo-overlapped
    # row-tile grid axis so per-step VMEM is bounded and the pipeline has depth > N.
    # TODO(synk): single-buffer the grid-invariant weight/bias blocks (pipeline_mode =
    # pl.Buffered(1)) once verified on this deployment; saves ~half the weight VMEM.
    out_flat = pl.pallas_call(
        kernel,
        out_shape=jax.ShapeDtypeStruct((N, L, Cp), f32),
        grid_spec=pltpu.PrefetchScalarGridSpec(
            num_scalar_prefetch=0,
            grid=(N,),
            in_specs=[
                pl.BlockSpec((1, Sbuf, Cp), lambda n: (n, 0, 0)),     # x (flattened, padded)
                pl.BlockSpec((3, 2 * Cp, Cp), lambda n: (0, 0, 0)),   # conv1 paired taps
                pl.BlockSpec((3, Cp, Cp), lambda n: (0, 0, 0)),       # conv1 single taps
                pl.BlockSpec((1, Cp), lambda n: (0, 0)),              # bn1 bias (scale folded)
                pl.BlockSpec((3, 2 * Cp, Cp), lambda n: (0, 0, 0)),   # conv2 paired taps
                pl.BlockSpec((3, Cp, Cp), lambda n: (0, 0, 0)),       # conv2 single taps
                pl.BlockSpec((1, Cp), lambda n: (0, 0)),              # bn2 bias (scale folded)
            ],
            out_specs=pl.BlockSpec((1, L, Cp), lambda n: (n, 0, 0)),
            scratch_shapes=[pltpu.VMEM((Sbuf, 2 * Cp), jnp.bfloat16)],  # bf16 staging buffer
        ),
        compiler_params=pltpu.CompilerParams(
            dimension_semantics=("parallel",),
            vmem_limit_bytes=vmem_limit),
    )(x_flat, w1p, w1s, b1, w2p, w2s, b2)

    # Drop the junk columns and the channel padding; back to NHWC.
    return out_flat.reshape(N, H, Wp2, Cp)[:, :, :W, :Cout]


def basic_block_reference(x, w1, w2, s1, b1, s2, b2, conv_dtype=jnp.float32):
    """Plain-JAX reference. conv_dtype=bf16 mirrors the kernel's rounding points exactly:
    BN scale folded into the weights *before* the bf16 cast, f32 accumulation, f32 bias/residual."""
    dn = ("NHWC", "HWIO", "NHWC")

    def conv_bn(a, w, s, b):
        wf = (w.astype(jnp.float32) * s.astype(jnp.float32)).astype(conv_dtype)
        y = lax.conv_general_dilated(a.astype(conv_dtype), wf, (1, 1), "SAME",
                                     dimension_numbers=dn, preferred_element_type=jnp.float32)
        return y + b

    o = jnp.maximum(conv_bn(x, w1, s1, b1), 0.0)
    o = conv_bn(o, w2, s2, b2)
    return jnp.maximum(o + x, 0.0)


if __name__ == "__main__":
    # Small shapes: batch=2, inplanes=planes=4, spatial 16x16 (stride=1, downsample=None).
    N, C, H, W = 2, 4, 16, 16
    key = jax.random.PRNGKey(0)
    kx, kw1, kw2, kg1, kb1, kg2, kb2, km1, kv1, km2, kv2 = jax.random.split(key, 11)

    x_nchw = jax.random.normal(kx, (N, C, H, W), jnp.float32)          # PyTorch layout
    x_nhwc = jnp.transpose(x_nchw, (0, 2, 3, 1))                        # kernel layout

    # conv weights (PyTorch conv2d weight is (Cout, Cin, kh, kw); store as HWIO for NHWC conv)
    fan_in = C * 3 * 3
    w1_oihw = jax.random.normal(kw1, (C, C, 3, 3), jnp.float32) * (2.0 / fan_in) ** 0.5
    w2_oihw = jax.random.normal(kw2, (C, C, 3, 3), jnp.float32) * (2.0 / fan_in) ** 0.5
    w1_hwio = jnp.transpose(w1_oihw, (2, 3, 1, 0))
    w2_hwio = jnp.transpose(w2_oihw, (2, 3, 1, 0))

    # BatchNorm params (inference form), folded into per-channel scale/bias
    eps = 1e-5
    gamma1 = 1.0 + 0.1 * jax.random.normal(kg1, (C,), jnp.float32)
    beta1 = 0.1 * jax.random.normal(kb1, (C,), jnp.float32)
    mean1 = 0.1 * jax.random.normal(km1, (C,), jnp.float32)
    var1 = jnp.abs(1.0 + 0.1 * jax.random.normal(kv1, (C,), jnp.float32))
    gamma2 = 1.0 + 0.1 * jax.random.normal(kg2, (C,), jnp.float32)
    beta2 = 0.1 * jax.random.normal(kb2, (C,), jnp.float32)
    mean2 = 0.1 * jax.random.normal(km2, (C,), jnp.float32)
    var2 = jnp.abs(1.0 + 0.1 * jax.random.normal(kv2, (C,), jnp.float32))

    scale1 = gamma1 / jnp.sqrt(var1 + eps)
    bias1 = beta1 - mean1 * scale1
    scale2 = gamma2 / jnp.sqrt(var2 + eps)
    bias2 = beta2 - mean2 * scale2

    out = basic_block_pallas(x_nhwc, w1_hwio, w2_hwio, scale1, bias1, scale2, bias2)
    out = jax.block_until_ready(out)
    assert out.shape == (N, H, W, C)

    # Tight check vs a reference that folds BN scale and quantizes to bf16 exactly like the kernel.
    ref_bf16 = basic_block_reference(x_nhwc, w1_hwio, w2_hwio, scale1, bias1, scale2, bias2,
                                     conv_dtype=jnp.bfloat16)
    assert jnp.allclose(out, ref_bf16, atol=5e-3, rtol=5e-3), "mismatch vs bf16-matmul reference"

    # Loose sanity check vs the full-precision reference (bf16 MXU operands => looser tolerance).
    ref_f32 = basic_block_reference(x_nhwc, w1_hwio, w2_hwio, scale1, bias1, scale2, bias2,
                                    conv_dtype=jnp.float32)
    assert jnp.allclose(out, ref_f32, atol=2e-1, rtol=1e-1), "mismatch vs f32 reference"

    # back to PyTorch NCHW layout if needed downstream
    _ = jnp.transpose(out, (0, 3, 1, 2))

    print("KERNEL_OK")
</pallas_src>

<mosaic_0001>
module attributes {stable_mosaic.version = 11 : i64} {
  func.func @_basic_block_kernel(%arg0: i32, %arg1: memref<1x336x128xf32, #tpu.memory_space<vmem>>, %arg2: memref<3x256x128xbf16, #tpu.memory_space<vmem>>, %arg3: memref<3x128x128xbf16, #tpu.memory_space<vmem>>, %arg4: memref<1x128xf32, #tpu.memory_space<vmem>>, %arg5: memref<3x256x128xbf16, #tpu.memory_space<vmem>>, %arg6: memref<3x128x128xbf16, #tpu.memory_space<vmem>>, %arg7: memref<1x128xf32, #tpu.memory_space<vmem>>, %arg8: memref<1x288x128xf32, #tpu.memory_space<vmem>>, %arg9: memref<336x256xbf16, #tpu.memory_space<vmem>>) attributes {dimension_semantics = [#tpu.dimension_semantics<parallel>], iteration_bounds = array<i64: 2>, scalar_prefetch = 0 : i64, scratch_operands = 1 : i64, tpu.core_type = #tpu.core_type<tc>, window_params = [{transform_indices = @transform_0, window_bounds = array<i64: 1, 336, 128>}, {pipeline_mode = #tpu.pipeline_mode<synchronous>, transform_indices = @transform_1, window_bounds = array<i64: 3, 256, 128>}, {pipeline_mode = #tpu.pipeline_mode<synchronous>, transform_indices = @transform_2, window_bounds = array<i64: 3, 128, 128>}, {pipeline_mode = #tpu.pipeline_mode<synchronous>, transform_indices = @transform_3, window_bounds = array<i64: 1, 128>}, {pipeline_mode = #tpu.pipeline_mode<synchronous>, transform_indices = @transform_4, window_bounds = array<i64: 3, 256, 128>}, {pipeline_mode = #tpu.pipeline_mode<synchronous>, transform_indices = @transform_5, window_bounds = array<i64: 3, 128, 128>}, {pipeline_mode = #tpu.pipeline_mode<synchronous>, transform_indices = @transform_6, window_bounds = array<i64: 1, 128>}, {transform_indices = @transform_7, window_bounds = array<i64: 1, 288, 128>}]} {
    %c0 = arith.constant 0 : index
    %c0_0 = arith.constant 0 : index
    %c0_1 = arith.constant 0 : index
    %0 = vector.load %arg1[%c0, %c0_0, %c0_1] : memref<1x336x128xf32, #tpu.memory_space<vmem>>, vector<1x336x128xf32>
    %1 = vector.shape_cast %0 : vector<1x336x128xf32> to vector<336x128xf32>
    %2 = arith.truncf %1 : vector<336x128xf32> to vector<336x128xbf16>
    %c0_2 = arith.constant 0 : index
    %c0_3 = arith.constant 0 : index
    %3 = vector.load %arg9[%c0_2, %c0_3] : memref<336x256xbf16, #tpu.memory_space<vmem>>, vector<336x128xbf16>
    tpu.vector_store %arg9[%c0_2, %c0_3], %2 {strides = array<i32>} : memref<336x256xbf16, #tpu.memory_space<vmem>>, vector<336x128xbf16>,
    %c0_4 = arith.constant 0 : index
    %c1 = arith.constant 1 : index
    %c0_5 = arith.constant 0 : index
    %4 = vector.load %arg1[%c0_4, %c1, %c0_5] : memref<1x336x128xf32, #tpu.memory_space<vmem>>, vector<1x335x128xf32>
    %5 = vector.shape_cast %4 : vector<1x335x128xf32> to vector<335x128xf32>
    %6 = arith.truncf %5 : vector<335x128xf32> to vector<335x128xbf16>
    %c0_6 = arith.constant 0 : index
    %c128 = arith.constant 128 : index
    %7 = vector.load %arg9[%c0_6, %c128] : memref<336x256xbf16, #tpu.memory_space<vmem>>, vector<335x128xbf16>
    tpu.vector_store %arg9[%c0_6, %c128], %6 {strides = array<i32>} : memref<336x256xbf16, #tpu.memory_space<vmem>>, vector<335x128xbf16>,
    %c0_7 = arith.constant 0 : index
    %c0_8 = arith.constant 0 : index
    %8 = vector.load %arg4[%c0_7, %c0_8] : memref<1x128xf32, #tpu.memory_space<vmem>>, vector<1x128xf32>
    %c5 = arith.constant 5 : index
    %c0_9 = arith.constant 0 : index
    %9 = vector.load %arg9[%c5, %c0_9] : memref<336x256xbf16, #tpu.memory_space<vmem>>, vector<288x256xbf16>
    %c0_10 = arith.constant 0 : index
    %c0_11 = arith.constant 0 : index
    %c0_12 = arith.constant 0 : index
    %10 = vector.load %arg2[%c0_10, %c0_11, %c0_12] : memref<3x256x128xbf16, #tpu.memory_space<vmem>>, vector<1x256x128xbf16>
    %11 = vector.shape_cast %10 : vector<1x256x128xbf16> to vector<256x128xbf16>
    %cst = arith.constant dense<0.000000e+00> : vector<288x128xf32>
    %12 = tpu.matmul %9, %11, %cst {dimension_numbers = #tpu.dot_dimension_numbers<[1], [0], [0], [1], [0, 0, 1, 1], [], []>} : vector<288x256xbf16>, vector<256x128xbf16>, vector<288x128xf32> -> vector<288x128xf32>
    %13 = vector.broadcast %8 : vector<1x128xf32> to vector<288x128xf32>
    %14 = arith.addf %13, %12 : vector<288x128xf32>
    %c7 = arith.constant 7 : index
    %c0_13 = arith.constant 0 : index
    %15 = vector.load %arg9[%c7, %c0_13] : memref<336x256xbf16, #tpu.memory_space<vmem>>, vector<288x128xbf16>
    %c0_14 = arith.constant 0 : index
    %c0_15 = arith.constant 0 : index
    %c0_16 = arith.constant 0 : index
    %16 = vector.load %arg3[%c0_14, %c0_15, %c0_16] : memref<3x128x128xbf16, #tpu.memory_space<vmem>>, vector<1x128x128xbf16>
    %17 = vector.shape_cast %16 : vector<1x128x128xbf16> to vector<128x128xbf16>
    %cst_17 = arith.constant dense<0.000000e+00> : vector<288x128xf32>
    %18 = tpu.matmul %15, %17, %cst_17 {dimension_numbers = #tpu.dot_dimension_numbers<[1], [0], [0], [1], [0, 0, 1, 1], [], []>} : vector<288x128xbf16>, vector<128x128xbf16>, vector<288x128xf32> -> vector<288x128xf32>
    %19 = arith.addf %14, %18 : vector<288x128xf32>
    %c23 = arith.constant 23 : index
    %c0_18 = arith.constant 0 : index
    %20 = vector.load %arg9[%c23, %c0_18] : memref<336x256xbf16, #tpu.memory_space<vmem>>, vector<288x256xbf16>
    %c1_19 = arith.constant 1 : index
    %c0_20 = arith.constant 0 : index
    %c0_21 = arith.constant 0 : index
    %21 = vector.load %arg2[%c1_19, %c0_20, %c0_21] : memref<3x256x128xbf16, #tpu.memory_space<vmem>>, vector<1x256x128xbf16>
    %22 = vector.shape_cast %21 : vector<1x256x128xbf16> to vector<256x128xbf16>
    %cst_22 = arith.constant dense<0.000000e+00> : vector<288x128xf32>
    %23 = tpu.matmul %20, %22, %cst_22 {dimension_numbers = #tpu.dot_dimension_numbers<[1], [0], [0], [1], [0, 0, 1, 1], [], []>} : vector<288x256xbf16>, vector<256x128xbf16>, vector<288x128xf32> -> vector<288x128xf32>
    %24 = arith.addf %19, %23 : vector<288x128xf32>
    %c25 = arith.constant 25 : index
    %c0_23 = arith.constant 0 : index
    %25 = vector.load %arg9[%c25, %c0_23] : memref<336x256xbf16, #tpu.memory_space<vmem>>, vector<288x128xbf16>
    %c1_24 = arith.constant 1 : index
    %c0_25 = arith.constant 0 : index
    %c0_26 = arith.constant 0 : index
    %26 = vector.load %arg3[%c1_24, %c0_25, %c0_26] : memref<3x128x128xbf16, #tpu.memory_space<vmem>>, vector<1x128x128xbf16>
    %27 = vector.shape_cast %26 : vector<1x128x128xbf16> to vector<128x128xbf16>
    %cst_27 = arith.constant dense<0.000000e+00> : vector<288x128xf32>
    %28 = tpu.matmul %25, %27, %cst_27 {dimension_numbers = #tpu.dot_dimension_numbers<[1], [0], [0], [1], [0, 0, 1, 1], [], []>} : vector<288x128xbf16>, vector<128x128xbf16>, vector<288x128xf32> -> vector<288x128xf32>
    %29 = arith.addf %24, %28 : vector<288x128xf32>
    %c41 = arith.constant 41 : index
    %c0_28 = arith.constant 0 : index
    %30 = vector.load %arg9[%c41, %c0_28] : memref<336x256xbf16, #tpu.memory_space<vmem>>, vector<288x256xbf16>
    %c2 = arith.constant 2 : index
    %c0_29 = arith.constant 0 : index
    %c0_30 = arith.constant 0 : index
    %31 = vector.load %arg2[%c2, %c0_29, %c0_30] : memref<3x256x128xbf16, #tpu.memory_space<vmem>>, vector<1x256x128xbf16>
    %32 = vector.shape_cast %31 : vector<1x256x128xbf16> to vector<256x128xbf16>
    %cst_31 = arith.constant dense<0.000000e+00> : vector<288x128xf32>
    %33 = tpu.matmul %30, %32, %cst_31 {dimension_numbers = #tpu.dot_dimension_numbers<[1], [0], [0], [1], [0, 0, 1, 1], [], []>} : vector<288x256xbf16>, vector<256x128xbf16>, vector<288x128xf32> -> vector<288x128xf32>
    %34 = arith.addf %29, %33 : vector<288x128xf32>
    %c43 = arith.constant 43 : index
    %c0_32 = arith.constant 0 : index
    %35 = vector.load %arg9[%c43, %c0_32] : memref<336x256xbf16, #tpu.memory_space<vmem>>, vector<288x128xbf16>
    %c2_33 = arith.constant 2 : index
    %c0_34 = arith.constant 0 : index
    %c0_35 = arith.constant 0 : index
    %36 = vector.load %arg3[%c2_33, %c0_34, %c0_35] : memref<3x128x128xbf16, #tpu.memory_space<vmem>>, vector<1x128x128xbf16>
    %37 = vector.shape_cast %36 : vector<1x128x128xbf16> to vector<128x128xbf16>
    %cst_36 = arith.constant dense<0.000000e+00> : vector<288x128xf32>
    %38 = tpu.matmul %35, %37, %cst_36 {dimension_numbers = #tpu.dot_dimension_numbers<[1], [0], [0], [1], [0, 0, 1, 1], [], []>} : vector<288x128xbf16>, vector<128x128xbf16>, vector<288x128xf32> -> vector<288x128xf32>
    %39 = arith.addf %34, %38 : vector<288x128xf32>
    %40 = tpu.iota {dimensions = array<i32: 0>} : vector<288x1xi32>
    %41 = arith.sitofp %40 : vector<288x1xi32> to vector<288x1xf32>
    %cst_37 = arith.constant 5.000000e-01 : f32
    %42 = vector.broadcast %cst_37 : f32 to vector<288x1xf32>
    %43 = arith.addf %41, %42 : vector<288x1xf32>
    %cst_38 = arith.constant 0.055555556 : f32
    %44 = vector.broadcast %cst_38 : f32 to vector<288x1xf32>
    %45 = arith.mulf %43, %44 : vector<288x1xf32>
    %46 = math.floor %45 : vector<288x1xf32>
    %cst_39 = arith.constant 1.800000e+01 : f32
    %47 = vector.broadcast %cst_39 : f32 to vector<288x1xf32>
    %48 = arith.mulf %46, %47 : vector<288x1xf32>
    %49 = arith.subf %41, %48 : vector<288x1xf32>
    %cst_40 = arith.constant 1.600000e+01 : f32
    %50 = vector.broadcast %cst_40 : f32 to vector<288x1xf32>
    %51 = arith.cmpf olt, %49, %50 : vector<288x1xf32>
    %52 = arith.extui %51 : vector<288x1xi1> to vector<288x1xi32>
    %53 = arith.sitofp %52 : vector<288x1xi32> to vector<288x1xf32>
    %cst_41 = arith.constant 0.000000e+00 : f32
    %54 = vector.broadcast %cst_41 : f32 to vector<288x128xf32>
    %55 = arith.maximumf %39, %54 : vector<288x128xf32>
    %56 = vector.broadcast %53 : vector<288x1xf32> to vector<288x128xf32>
    %57 = arith.mulf %55, %56 : vector<288x128xf32>
    %58 = arith.truncf %57 : vector<288x128xf32> to vector<288x128xbf16>
    %c24 = arith.constant 24 : index
    %c0_42 = arith.constant 0 : index
    %59 = vector.load %arg9[%c24, %c0_42] : memref<336x256xbf16, #tpu.memory_space<vmem>>, vector<288x128xbf16>
    tpu.vector_store %arg9[%c24, %c0_42], %58 {strides = array<i32>} : memref<336x256xbf16, #tpu.memory_space<vmem>>, vector<288x128xbf16>,
    %c23_43 = arith.constant 23 : index
    %c128_44 = arith.constant 128 : index
    %60 = vector.load %arg9[%c23_43, %c128_44] : memref<336x256xbf16, #tpu.memory_space<vmem>>, vector<288x128xbf16>
    tpu.vector_store %arg9[%c23_43, %c128_44], %58 {strides = array<i32>} : memref<336x256xbf16, #tpu.memory_space<vmem>>, vector<288x128xbf16>,
    %c0_45 = arith.constant 0 : index
    %c0_46 = arith.constant 0 : index
    %61 = vector.load %arg7[%c0_45, %c0_46] : memref<1x128xf32, #tpu.memory_space<vmem>>, vector<1x128xf32>
    %c5_47 = arith.constant 5 : index
    %c0_48 = arith.constant 0 : index
    %62 = vector.load %arg9[%c5_47, %c0_48] : memref<336x256xbf16, #tpu.memory_space<vmem>>, vector<288x256xbf16>
    %c0_49 = arith.constant 0 : index
    %c0_50 = arith.constant 0 : index
    %c0_51 = arith.constant 0 : index
    %63 = vector.load %arg5[%c0_49, %c0_50, %c0_51] : memref<3x256x128xbf16, #tpu.memory_space<vmem>>, vector<1x256x128xbf16>
    %64 = vector.shape_cast %63 : vector<1x256x128xbf16> to vector<256x128xbf16>
    %cst_52 = arith.constant dense<0.000000e+00> : vector<288x128xf32>
    %65 = tpu.matmul %62, %64, %cst_52 {dimension_numbers = #tpu.dot_dimension_numbers<[1], [0], [0], [1], [0, 0, 1, 1], [], []>} : vector<288x256xbf16>, vector<256x128xbf16>, vector<288x128xf32> -> vector<288x128xf32>
    %66 = vector.broadcast %61 : vector<1x128xf32> to vector<288x128xf32>
    %67 = arith.addf %66, %65 : vector<288x128xf32>
    %c7_53 = arith.constant 7 : index
    %c0_54 = arith.constant 0 : index
    %68 = vector.load %arg9[%c7_53, %c0_54] : memref<336x256xbf16, #tpu.memory_space<vmem>>, vector<288x128xbf16>
    %c0_55 = arith.constant 0 : index
    %c0_56 = arith.constant 0 : index
    %c0_57 = arith.constant 0 : index
    %69 = vector.load %arg6[%c0_55, %c0_56, %c0_57] : memref<3x128x128xbf16, #tpu.memory_space<vmem>>, vector<1x128x128xbf16>
    %70 = vector.shape_cast %69 : vector<1x128x128xbf16> to vector<128x128xbf16>
    %cst_58 = arith.constant dense<0.000000e+00> : vector<288x128xf32>
    %71 = tpu.matmul %68, %70, %cst_58 {dimension_numbers = #tpu.dot_dimension_numbers<[1], [0], [0], [1], [0, 0, 1, 1], [], []>} : vector<288x128xbf16>, vector<128x128xbf16>, vector<288x128xf32> -> vector<288x128xf32>
    %72 = arith.addf %67, %71 : vector<288x128xf32>
    %c23_59 = arith.constant 23 : index
    %c0_60 = arith.constant 0 : index
    %73 = vector.load %arg9[%c23_59, %c0_60] : memref<336x256xbf16, #tpu.memory_space<vmem>>, vector<288x256xbf16>
    %c1_61 = arith.constant 1 : index
    %c0_62 = arith.constant 0 : index
    %c0_63 = arith.constant 0 : index
    %74 = vector.load %arg5[%c1_61, %c0_62, %c0_63] : memref<3x256x128xbf16, #tpu.memory_space<vmem>>, vector<1x256x128xbf16>
    %75 = vector.shape_cast %74 : vector<1x256x128xbf16> to vector<256x128xbf16>
    %cst_64 = arith.constant dense<0.000000e+00> : vector<288x128xf32>
    %76 = tpu.matmul %73, %75, %cst_64 {dimension_numbers = #tpu.dot_dimension_numbers<[1], [0], [0], [1], [0, 0, 1, 1], [], []>} : vector<288x256xbf16>, vector<256x128xbf16>, vector<288x128xf32> -> vector<288x128xf32>
    %77 = arith.addf %72, %76 : vector<288x128xf32>
    %c25_65 = arith.constant 25 : index
    %c0_66 = arith.constant 0 : index
    %78 = vector.load %arg9[%c25_65, %c0_66] : memref<336x256xbf16, #tpu.memory_space<vmem>>, vector<288x128xbf16>
    %c1_67 = arith.constant 1 : index
    %c0_68 = arith.constant 0 : index
    %c0_69 = arith.constant 0 : index
    %79 = vector.load %arg6[%c1_67, %c0_68, %c0_69] : memref<3x128x128xbf16, #tpu.memory_space<vmem>>, vector<1x128x128xbf16>
    %80 = vector.shape_cast %79 : vector<1x128x128xbf16> to vector<128x128xbf16>
    %cst_70 = arith.constant dense<0.000000e+00> : vector<288x128xf32>
    %81 = tpu.matmul %78, %80, %cst_70 {dimension_numbers = #tpu.dot_dimension_numbers<[1], [0], [0], [1], [0, 0, 1, 1], [], []>} : vector<288x128xbf16>, vector<128x128xbf16>, vector<288x128xf32> -> vector<288x128xf32>
    %82 = arith.addf %77, %81 : vector<288x128xf32>
    %c41_71 = arith.constant 41 : index
    %c0_72 = arith.constant 0 : index
    %83 = vector.load %arg9[%c41_71, %c0_72] : memref<336x256xbf16, #tpu.memory_space<vmem>>, vector<288x256xbf16>
    %c2_73 = arith.constant 2 : index
    %c0_74 = arith.constant 0 : index
    %c0_75 = arith.constant 0 : index
    %84 = vector.load %arg5[%c2_73, %c0_74, %c0_75] : memref<3x256x128xbf16, #tpu.memory_space<vmem>>, vector<1x256x128xbf16>
    %85 = vector.shape_cast %84 : vector<1x256x128xbf16> to vector<256x128xbf16>
    %cst_76 = arith.constant dense<0.000000e+00> : vector<288x128xf32>
    %86 = tpu.matmul %83, %85, %cst_76 {dimension_numbers = #tpu.dot_dimension_numbers<[1], [0], [0], [1], [0, 0, 1, 1], [], []>} : vector<288x256xbf16>, vector<256x128xbf16>, vector<288x128xf32> -> vector<288x128xf32>
    %87 = arith.addf %82, %86 : vector<288x128xf32>
    %c43_77 = arith.constant 43 : index
    %c0_78 = arith.constant 0 : index
    %88 = vector.load %arg9[%c43_77, %c0_78] : memref<336x256xbf16, #tpu.memory_space<vmem>>, vector<288x128xbf16>
    %c2_79 = arith.constant 2 : index
    %c0_80 = arith.constant 0 : index
    %c0_81 = arith.constant 0 : index
    %89 = vector.load %arg6[%c2_79, %c0_80, %c0_81] : memref<3x128x128xbf16, #tpu.memory_space<vmem>>, vector<1x128x128xbf16>
    %90 = vector.shape_cast %89 : vector<1x128x128xbf16> to vector<128x128xbf16>
    %cst_82 = arith.constant dense<0.000000e+00> : vector<288x128xf32>
    %91 = tpu.matmul %88, %90, %cst_82 {dimension_numbers = #tpu.dot_dimension_numbers<[1], [0], [0], [1], [0, 0, 1, 1], [], []>} : vector<288x128xbf16>, vector<128x128xbf16>, vector<288x128xf32> -> vector<288x128xf32>
    %92 = arith.addf %87, %91 : vector<288x128xf32>
    %c0_83 = arith.constant 0 : index
    %c24_84 = arith.constant 24 : index
    %c0_85 = arith.constant 0 : index
    %93 = vector.load %arg1[%c0_83, %c24_84, %c0_85] : memref<1x336x128xf32, #tpu.memory_space<vmem>>, vector<1x288x128xf32>
    %94 = vector.shape_cast %93 : vector<1x288x128xf32> to vector<288x128xf32>
    %95 = arith.addf %92, %94 : vector<288x128xf32>
    %cst_86 = arith.constant 0.000000e+00 : f32
    %96 = vector.broadcast %cst_86 : f32 to vector<288x128xf32>
    %97 = arith.maximumf %95, %96 : vector<288x128xf32>
    %c0_87 = arith.constant 0 : index
    %c0_88 = arith.constant 0 : index
    %c0_89 = arith.constant 0 : index
    %98 = vector.load %arg8[%c0_87, %c0_88, %c0_89] : memref<1x288x128xf32, #tpu.memory_space<vmem>>, vector<1x288x128xf32>
    %99 = vector.shape_cast %98 : vector<1x288x128xf32> to vector<288x128xf32>
    %100 = vector.shape_cast %97 : vector<288x128xf32> to vector<1x288x128xf32>
    tpu.vector_store %arg8[%c0_87, %c0_88, %c0_89], %100 {strides = array<i32>} : memref<1x288x128xf32, #tpu.memory_space<vmem>>, vector<1x288x128xf32>,
    return
  }
  func.func @transform_0(%arg0: i32) -> (i32, i32, i32) {
    %c0_i32 = arith.constant 0 : i32
    %c0_i32_0 = arith.constant 0 : i32
    %c0_i32_1 = arith.constant 0 : i32
    return %arg0, %c0_i32, %c0_i32_0 : i32, i32, i32
  }
  func.func @transform_1(%arg0: i32) -> (i32, i32, i32) {
    %c0_i32 = arith.constant 0 : i32
    %c0_i32_0 = arith.constant 0 : i32
    %c0_i32_1 = arith.constant 0 : i32
    %c0_i32_2 = arith.constant 0 : i32
    return %c0_i32, %c0_i32_0, %c0_i32_1 : i32, i32, i32
  }
  func.func @transform_2(%arg0: i32) -> (i32, i32, i32) {
    %c0_i32 = arith.constant 0 : i32
    %c0_i32_0 = arith.constant 0 : i32
    %c0_i32_1 = arith.constant 0 : i32
    %c0_i32_2 = arith.constant 0 : i32
    return %c0_i32, %c0_i32_0, %c0_i32_1 : i32, i32, i32
  }
  func.func @transform_3(%arg0: i32) -> (i32, i32) {
    %c0_i32 = arith.constant 0 : i32
    %c0_i32_0 = arith.constant 0 : i32
    %c0_i32_1 = arith.constant 0 : i32
    return %c0_i32, %c0_i32_0 : i32, i32
  }
  func.func @transform_4(%arg0: i32) -> (i32, i32, i32) {
    %c0_i32 = arith.constant 0 : i32
    %c0_i32_0 = arith.constant 0 : i32
    %c0_i32_1 = arith.constant 0 : i32
    %c0_i32_2 = arith.constant 0 : i32
    return %c0_i32, %c0_i32_0, %c0_i32_1 : i32, i32, i32
  }
  func.func @transform_5(%arg0: i32) -> (i32, i32, i32) {
    %c0_i32 = arith.constant 0 : i32
    %c0_i32_0 = arith.constant 0 : i32
    %c0_i32_1 = arith.constant 0 : i32
    %c0_i32_2 = arith.constant 0 : i32
    return %c0_i32, %c0_i32_0, %c0_i32_1 : i32, i32, i32
  }
  func.func @transform_6(%arg0: i32) -> (i32, i32) {
    %c0_i32 = arith.constant 0 : i32
    %c0_i32_0 = arith.constant 0 : i32
    %c0_i32_1 = arith.constant 0 : i32
    return %c0_i32, %c0_i32_0 : i32, i32
  }
  func.func @transform_7(%arg0: i32) -> (i32, i32, i32) {
    %c0_i32 = arith.constant 0 : i32
    %c0_i32_0 = arith.constant 0 : i32
    %c0_i32_1 = arith.constant 0 : i32
    return %arg0, %c0_i32, %c0_i32_0 : i32, i32, i32
  }
}

</mosaic_0001>

<llo_original>
// kernel: basic_block_pallas.1
$region0: #{basic_block_pallas.1}
  #allocation0 [shape = 'u32[]', space=smem, size = 0x4, offset = 0x4, fixed_abs, tag = 'smem constant byte address 0x4 - core index']
  #allocation1 [shape = 'u32[144,128]{1,0:T(1,128)}', space=vmem, size = 0x12000, scoped, tag = 'internal scratch']
  #allocation2 [shape = 'bf16[336,256]{1,0:T(16,128)(2,1)}', space=vmem, size = 0x2a000, scoped, tag = 'scratch operand']
  %s0 = inlined_call_operand.vmem [shape: f32[2,336,128], index: 0, kind: input, shape index: {}]
  %s1 = inlined_call_operand.vmem [shape: bf16[3,256,128], index: 1, kind: input, shape index: {}]
  %s2 = inlined_call_operand.vmem [shape: bf16[3,128,128], index: 2, kind: input, shape index: {}]
  %s3 = inlined_call_operand.vmem [shape: f32[1,128], index: 3, kind: input, shape index: {}]
  %s4 = inlined_call_operand.vmem [shape: bf16[3,256,128], index: 4, kind: input, shape index: {}]
  %s5 = inlined_call_operand.vmem [shape: bf16[3,128,128], index: 5, kind: input, shape index: {}]
  %s6 = inlined_call_operand.vmem [shape: f32[1,128], index: 6, kind: input, shape index: {}]
  %s7 = inlined_call_operand.vmem [shape: f32[2,288,128], index: 7, kind: output, shape index: {}]
  %s8 = sld [smem:[#allocation0]]
  $region61: #{basic_block_pallas.1} parent=0
    _
  %s10 = ssub.s32 1, %s8
  %s11 = scalar_select 0, %s10, %s8
  loop: start=0, step=1, limit=4
  $region2: #{basic_block_pallas.1} parent=0 // loop_pre_header
    _
  $region3: #{basic_block_pallas.1} parent=0 // loop_header
    %s13 = sphi 0, %s17
    %p14 = scmp.ge.s32.totalorder %s13, 4
    %s23 = sphi 0, %s25
    %s26 = sphi 0, %s23
    %s27 = sphi 0, %s26
    %s43 = sphi 0, %s27
    %s47 = sphi 0, %s47
    %s49 = sphi 0, %s47
    %s50 = sphi 0, %s49
    %s64 = sphi 0, %s50
    %s68 = sphi 0, %s68
    %s70 = sphi 0, %s68
    %s71 = sphi 0, %s70
    %s85 = sphi 0, %s71
    %s89 = sphi 0, %s89
    %s91 = sphi 0, %s89
    %s92 = sphi 0, %s91
    %s106 = sphi 0, %s92
    %s110 = sphi 0, %s110
    %s112 = sphi 0, %s110
    %s113 = sphi 0, %s112
    %s127 = sphi 0, %s113
    %s131 = sphi 0, %s131
    %s133 = sphi 0, %s131
    %s134 = sphi 0, %s133
    %s148 = sphi 0, %s134
    %s152 = sphi 0, %s152
    %s154 = sphi 0, %s152
    %s155 = sphi 0, %s154
    %s169 = sphi 0, %s155
    %s175 = sphi 0, %s177
    %s178 = sphi 0, %s175
    %s179 = sphi 0, %s178
    %s195 = sphi 0, %s179
  $region4: #{basic_block_pallas.1} parent=0 // loop_header_branch
    %16 = sbr.rel (%p14) target = $region8
  $region5: #{basic_block_pallas.1} parent=0 // loop_body
    %s18 = ssub.s32 %s13, 1
    %s19 = ssub.s32 %s13, 2
    %s20 = sadd.s32 %s13, 1
    %s21 = ssub.s32 %s13, %s20
    %p22 = scmp.eq.s32.totalorder %s21, 0
    %s24 = sadd.s32 %s23, 1
    %s25 = scalar_select %p22, %s23, %s24
    %p28 = pneg %p22
    %p29 = scmp.eq.s32.totalorder %s13, 1
    %p30 = por %p28, %p29
    %p31 = scmp.ne.s32.totalorder %s23, %s26
    %p32 = scmp.eq.s32.totalorder %s13, 0
    %p33 = por %p31, %p32
    %p34 = scmp.ne.s32.totalorder %s23, %s26
    %p35 = scmp.eq.s32.totalorder %s18, 1
    %p36 = por %p34, %p35
    %p37 = scmp.ne.s32.totalorder %s26, %s27
    %p38 = scmp.eq.s32.totalorder %s18, 0
    %p39 = por %p37, %p38
    %p40 = scmp.ne.s32.totalorder %s26, %s27
    %p41 = scmp.eq.s32.totalorder %s19, 1
    %p42 = por %p40, %p41
    %p44 = scmp.ne.s32.totalorder %s27, %s43
    %p45 = scmp.eq.s32.totalorder %s19, 0
    %p46 = por %p44, %p45
    %s48 = sadd.s32 %s47, 1
    %p51 = scmp.eq.s32.totalorder %s13, 1
    %p52 = scmp.ne.s32.totalorder %s47, %s49
    %p53 = scmp.eq.s32.totalorder %s13, 0
    %p54 = por %p52, %p53
    %p55 = scmp.ne.s32.totalorder %s47, %s49
    %p56 = scmp.eq.s32.totalorder %s18, 1
    %p57 = por %p55, %p56
    %p58 = scmp.ne.s32.totalorder %s49, %s50
    %p59 = scmp.eq.s32.totalorder %s18, 0
    %p60 = por %p58, %p59
    %p61 = scmp.ne.s32.totalorder %s49, %s50
    %p62 = scmp.eq.s32.totalorder %s19, 1
    %p63 = por %p61, %p62
    %p65 = scmp.ne.s32.totalorder %s50, %s64
    %p66 = scmp.eq.s32.totalorder %s19, 0
    %p67 = por %p65, %p66
    %s69 = sadd.s32 %s68, 1
    %p72 = scmp.eq.s32.totalorder %s13, 1
    %p73 = scmp.ne.s32.totalorder %s68, %s70
    %p74 = scmp.eq.s32.totalorder %s13, 0
    %p75 = por %p73, %p74
    %p76 = scmp.ne.s32.totalorder %s68, %s70
    %p77 = scmp.eq.s32.totalorder %s18, 1
    %p78 = por %p76, %p77
    %p79 = scmp.ne.s32.totalorder %s70, %s71
    %p80 = scmp.eq.s32.totalorder %s18, 0
    %p81 = por %p79, %p80
    %p82 = scmp.ne.s32.totalorder %s70, %s71
    %p83 = scmp.eq.s32.totalorder %s19, 1
    %p84 = por %p82, %p83
    %p86 = scmp.ne.s32.totalorder %s71, %s85
    %p87 = scmp.eq.s32.totalorder %s19, 0
    %p88 = por %p86, %p87
    %s90 = sadd.s32 %s89, 1
    %p93 = scmp.eq.s32.totalorder %s13, 1
    %p94 = scmp.ne.s32.totalorder %s89, %s91
    %p95 = scmp.eq.s32.totalorder %s13, 0
    %p96 = por %p94, %p95
    %p97 = scmp.ne.s32.totalorder %s89, %s91
    %p98 = scmp.eq.s32.totalorder %s18, 1
    %p99 = por %p97, %p98
    %p100 = scmp.ne.s32.totalorder %s91, %s92
    %p101 = scmp.eq.s32.totalorder %s18, 0
    %p102 = por %p100, %p101
    %p103 = scmp.ne.s32.totalorder %s91, %s92
    %p104 = scmp.eq.s32.totalorder %s19, 1
    %p105 = por %p103, %p104
    %p107 = scmp.ne.s32.totalorder %s92, %s106
    %p108 = scmp.eq.s32.totalorder %s19, 0
    %p109 = por %p107, %p108
    %s111 = sadd.s32 %s110, 1
    %p114 = scmp.eq.s32.totalorder %s13, 1
    %p115 = scmp.ne.s32.totalorder %s110, %s112
    %p116 = scmp.eq.s32.totalorder %s13, 0
    %p117 = por %p115, %p116
    %p118 = scmp.ne.s32.totalorder %s110, %s112
    %p119 = scmp.eq.s32.totalorder %s18, 1
    %p120 = por %p118, %p119
    %p121 = scmp.ne.s32.totalorder %s112, %s113
    %p122 = scmp.eq.s32.totalorder %s18, 0
    %p123 = por %p121, %p122
    %p124 = scmp.ne.s32.totalorder %s112, %s113
    %p125 = scmp.eq.s32.totalorder %s19, 1
    %p126 = por %p124, %p125
    %p128 = scmp.ne.s32.totalorder %s113, %s127
    %p129 = scmp.eq.s32.totalorder %s19, 0
    %p130 = por %p128, %p129
    %s132 = sadd.s32 %s131, 1
    %p135 = scmp.eq.s32.totalorder %s13, 1
    %p136 = scmp.ne.s32.totalorder %s131, %s133
    %p137 = scmp.eq.s32.totalorder %s13, 0
    %p138 = por %p136, %p137
    %p139 = scmp.ne.s32.totalorder %s131, %s133
    %p140 = scmp.eq.s32.totalorder %s18, 1
    %p141 = por %p139, %p140
    %p142 = scmp.ne.s32.totalorder %s133, %s134
    %p143 = scmp.eq.s32.totalorder %s18, 0
    %p144 = por %p142, %p143
    %p145 = scmp.ne.s32.totalorder %s133, %s134
    %p146 = scmp.eq.s32.totalorder %s19, 1
    %p147 = por %p145, %p146
    %p149 = scmp.ne.s32.totalorder %s134, %s148
    %p150 = scmp.eq.s32.totalorder %s19, 0
    %p151 = por %p149, %p150
    %s153 = sadd.s32 %s152, 1
    %p156 = scmp.eq.s32.totalorder %s13, 1
    %p157 = scmp.ne.s32.totalorder %s152, %s154
    %p158 = scmp.eq.s32.totalorder %s13, 0
    %p159 = por %p157, %p158
    %p160 = scmp.ne.s32.totalorder %s152, %s154
    %p161 = scmp.eq.s32.totalorder %s18, 1
    %p162 = por %p160, %p161
    %p163 = scmp.ne.s32.totalorder %s154, %s155
    %p164 = scmp.eq.s32.totalorder %s18, 0
    %p165 = por %p163, %p164
    %p166 = scmp.ne.s32.totalorder %s154, %s155
    %p167 = scmp.eq.s32.totalorder %s19, 1
    %p168 = por %p166, %p167
    %p170 = scmp.ne.s32.totalorder %s155, %s169
    %p171 = scmp.eq.s32.totalorder %s19, 0
    %p172 = por %p170, %p171
    %s173 = ssub.s32 %s13, %s20
    %p174 = scmp.eq.s32.totalorder %s173, 0
    %s176 = sadd.s32 %s175, 1
    %s177 = scalar_select %p174, %s175, %s176
    %p180 = pneg %p174
    %p181 = scmp.eq.s32.totalorder %s13, 1
    %p182 = por %p180, %p181
    %p183 = scmp.ne.s32.totalorder %s175, %s178
    %p184 = scmp.eq.s32.totalorder %s13, 0
    %p185 = por %p183, %p184
    %p186 = scmp.ne.s32.totalorder %s175, %s178
    %p187 = scmp.eq.s32.totalorder %s18, 1
    %p188 = por %p186, %p187
    %p189 = scmp.ne.s32.totalorder %s178, %s179
    %p190 = scmp.eq.s32.totalorder %s18, 0
    %p191 = por %p189, %p190
    %p192 = scmp.ne.s32.totalorder %s178, %s179
    %p193 = scmp.eq.s32.totalorder %s19, 1
    %p194 = por %p192, %p193
    %p196 = scmp.ne.s32.totalorder %s179, %s195
    %p197 = scmp.eq.s32.totalorder %s19, 0
    %p198 = por %p196, %p197
    %p199 = scmp.le.s32.totalorder 1, %s13
    %p200 = scmp.lt.s32.totalorder %s13, 3
    %p201 = pnand %p199, %p200
    %p202 = pneg %p201
    // Predicated region
    $region9: #{basic_block_pallas.1} parent=5 // pred_check
      _
    $region10: #{basic_block_pallas.1} parent=5 // pred_check_branch
      %204 = sbr.rel (%p201) target = $region12
    $region11: #{basic_block_pallas.1} parent=5 // pred_region
      %s205 = ssub.s32 %s13, 1
      // Predicated region
      $region13: #{basic_block_pallas.1} parent=11 // pred_check
        %p206 = pneg %p60
      $region14: #{basic_block_pallas.1} parent=11 // pred_check_branch
        %208 = sbr.rel (%p206) target = $region16
      $region15: #{basic_block_pallas.1} parent=11 // pred_region
        _
      $region16: #{basic_block_pallas.1} parent=11 // pred_fallthru
        _
      // Predicated region
      $region17: #{basic_block_pallas.1} parent=11 // pred_check
        %p209 = pneg %p81
      $region18: #{basic_block_pallas.1} parent=11 // pred_check_branch
        %211 = sbr.rel (%p209) target = $region20
      $region19: #{basic_block_pallas.1} parent=11 // pred_region
        _
      $region20: #{basic_block_pallas.1} parent=11 // pred_fallthru
        _
      // Predicated region
      $region21: #{basic_block_pallas.1} parent=11 // pred_check
        %p212 = pneg %p102
      $region22: #{basic_block_pallas.1} parent=11 // pred_check_branch
        %214 = sbr.rel (%p212) target = $region24
      $region23: #{basic_block_pallas.1} parent=11 // pred_region
        _
      $region24: #{basic_block_pallas.1} parent=11 // pred_fallthru
        _
      // Predicated region
      $region25: #{basic_block_pallas.1} parent=11 // pred_check
        %p215 = pneg %p123
      $region26: #{basic_block_pallas.1} parent=11 // pred_check_branch
        %217 = sbr.rel (%p215) target = $region28
      $region27: #{basic_block_pallas.1} parent=11 // pred_region
        _
      $region28: #{basic_block_pallas.1} parent=11 // pred_fallthru
        _
      // Predicated region
      $region29: #{basic_block_pallas.1} parent=11 // pred_check
        %p218 = pneg %p144
      $region30: #{basic_block_pallas.1} parent=11 // pred_check_branch
        %220 = sbr.rel (%p218) target = $region32
      $region31: #{basic_block_pallas.1} parent=11 // pred_region
        _
      $region32: #{basic_block_pallas.1} parent=11 // pred_fallthru
        _
      // Predicated region
      $region33: #{basic_block_pallas.1} parent=11 // pred_check
        %p221 = pneg %p165
      $region34: #{basic_block_pallas.1} parent=11 // pred_check_branch
        %223 = sbr.rel (%p221) target = $region36
      $region35: #{basic_block_pallas.1} parent=11 // pred_region
        _
      $region36: #{basic_block_pallas.1} parent=11 // pred_fallthru
        _
    $region12: #{basic_block_pallas.1} parent=5 // pred_fallthru
      _
    %p224 = scmp.lt.s32.totalorder %s13, 2
    // Predicated region
    $region37: #{basic_block_pallas.1} parent=5 // pred_check
      %p225 = pneg %p224
    $region38: #{basic_block_pallas.1} parent=5 // pred_check_branch
      %227 = sbr.rel (%p225) target = $region40
    $region39: #{basic_block_pallas.1} parent=5 // pred_region
      // Predicated region
      $region41: #{basic_block_pallas.1} parent=39 // pred_check
        %p228 = pneg %p33
      $region42: #{basic_block_pallas.1} parent=39 // pred_check_branch
        %230 = sbr.rel (%p228) target = $region44
      $region43: #{basic_block_pallas.1} parent=39 // pred_region
        %p231 = scmp.lt.s32.totalorder %s13, 1
        %s232 = scalar_select %p231, %s13, 1
        %s233 = smul.addr %s232, 42
        %s234 = smul.addr %s233, 8
        %s235 = scalar_lea.vmem %s0, %s234
      $region44: #{basic_block_pallas.1} parent=39 // pred_fallthru
        _
    $region40: #{basic_block_pallas.1} parent=5 // pred_fallthru
      _
    %p236 = scmp.le.s32.totalorder 1, %s13
    %p237 = scmp.lt.s32.totalorder %s13, 3
    %p238 = pnand %p236, %p237
    %p239 = pneg %p238
    // Predicated region
    $region45: #{basic_block_pallas.1} parent=5 // pred_check
      _
    $region46: #{basic_block_pallas.1} parent=5 // pred_check_branch
      %241 = sbr.rel (%p238) target = $region48
    $region47: #{basic_block_pallas.1} parent=5 // pred_region
      %s242 = ssub.s32 %s13, 1
      %p243 = scmp.lt.s32.totalorder %s18, 1
      %s244 = scalar_select %p243, %s18, 1
      %s245 = smul.addr %s244, 42
      %s246 = smul.addr %s245, 8
      %s247 = scalar_lea.vmem %s0, %s246
      %p248 = pneg %p39
      %p249 = pneg %p36
      %p250 = pneg %p60
      %p251 = pneg %p57
      %p252 = pneg %p81
      %p253 = pneg %p78
      %p254 = pneg %p102
      %p255 = pneg %p99
      %p256 = pneg %p123
      %p257 = pneg %p120
      %p258 = pneg %p144
      %p259 = pneg %p141
      %p260 = pneg %p165
      %p261 = pneg %p162
      %p262 = pneg %p191
      %p263 = pneg %p188
      %p264 = scmp.lt.s32.totalorder %s18, 1
      %s265 = scalar_select %p264, %s18, 1
      %s266 = smul.addr %s265, 36
      %s267 = smul.addr %s266, 8
      %s268 = scalar_lea.vmem %s7, %s267
      %p269 = scmp.lt.s32.totalorder %s18, 1
      %s270 = scalar_select %p269, %s18, 1
      %s271 = smul.addr %s270, 42
      %s272 = smul.addr %s271, 8
      %s273 = scalar_lea.vmem %s0, %s272
      %p274 = scmp.lt.s32.totalorder %s18, 1
      %s275 = scalar_select %p274, %s18, 1
      %s276 = smul.addr %s275, 36
      %s277 = smul.addr %s276, 8
      %s278 = scalar_lea.vmem %s7, %s277
      %v280 = vld [vmem:[%s273] sm:$0xff]
      %v281 = vld [vmem:[%s273 + $0x8] sm:$0xff]
      %v282 = vld [vmem:[%s273 + $0x10] sm:$0xff]
      %v283 = vld [vmem:[%s273 + $0x18] sm:$0xff]
      %v284 = vld [vmem:[%s273 + $0x20] sm:$0xff]
      %v285 = vld [vmem:[%s273 + $0x28] sm:$0xff]
      %v286 = vld [vmem:[%s273 + $0x30] sm:$0xff]
      %v287 = vld [vmem:[%s273 + $0x38] sm:$0xff]
      %v288 = vld [vmem:[%s273 + $0x40] sm:$0xff]
      %v289 = vld [vmem:[%s273 + $0x48] sm:$0xff]
      %v290 = vld [vmem:[%s273 + $0x50] sm:$0xff]
      %v291 = vld [vmem:[%s273 + $0x58] sm:$0xff]
      %v292 = vld [vmem:[%s273 + $0x60] sm:$0xff]
      %v293 = vld [vmem:[%s273 + $0x68] sm:$0xff]
      %v294 = vld [vmem:[%s273 + $0x70] sm:$0xff]
      %v295 = vld [vmem:[%s273 + $0x78] sm:$0xff]
      %v296 = vld [vmem:[%s273 + $0x80] sm:$0xff]
      %v297 = vld [vmem:[%s273 + $0x88] sm:$0xff]
      %v298 = vld [vmem:[%s273 + $0x90] sm:$0xff]
      %v299 = vld [vmem:[%s273 + $0x98] sm:$0xff]
      %v300 = vld [vmem:[%s273 + $0xa0] sm:$0xff]
      %v301 = vld [vmem:[%s273 + $0xa8] sm:$0xff]
      %v302 = vld [vmem:[%s273 + $0xb0] sm:$0xff]
      %v303 = vld [vmem:[%s273 + $0xb8] sm:$0xff]
      %v304 = vld [vmem:[%s273 + $0xc0] sm:$0xff]
      %v305 = vld [vmem:[%s273 + $0xc8] sm:$0xff]
      %v306 = vld [vmem:[%s273 + $0xd0] sm:$0xff]
      %v307 = vld [vmem:[%s273 + $0xd8] sm:$0xff]
      %v308 = vld [vmem:[%s273 + $0xe0] sm:$0xff]
      %v309 = vld [vmem:[%s273 + $0xe8] sm:$0xff]
      %v310 = vld [vmem:[%s273 + $0xf0] sm:$0xff]
      %v311 = vld [vmem:[%s273 + $0xf8] sm:$0xff]
      %v312 = vld [vmem:[%s273 + $0x100] sm:$0xff]
      %v313 = vld [vmem:[%s273 + $0x108] sm:$0xff]
      %v314 = vld [vmem:[%s273 + $0x110] sm:$0xff]
      %v315 = vld [vmem:[%s273 + $0x118] sm:$0xff]
      %v316 = vld [vmem:[%s273 + $0x120] sm:$0xff]
      %v317 = vld [vmem:[%s273 + $0x128] sm:$0xff]
      %v318 = vld [vmem:[%s273 + $0x130] sm:$0xff]
      %v319 = vld [vmem:[%s273 + $0x138] sm:$0xff]
      %v320 = vld [vmem:[%s273 + $0x140] sm:$0xff]
      %v321 = vld [vmem:[%s273 + $0x148] sm:$0xff]
      %v322 = vpack.c.bf16 %v281, %v280
      %v323 = vpack.c.bf16 %v283, %v282
      %v324 = vpack.c.bf16 %v285, %v284
      %v325 = vpack.c.bf16 %v287, %v286
      %v326 = vpack.c.bf16 %v289, %v288
      %v327 = vpack.c.bf16 %v291, %v290
      %v328 = vpack.c.bf16 %v293, %v292
      %v329 = vpack.c.bf16 %v295, %v294
      %v330 = vpack.c.bf16 %v297, %v296
      %v331 = vpack.c.bf16 %v299, %v298
      %v332 = vpack.c.bf16 %v301, %v300
      %v333 = vpack.c.bf16 %v303, %v302
      %v334 = vpack.c.bf16 %v305, %v304
      %v335 = vpack.c.bf16 %v307, %v306
      %v336 = vpack.c.bf16 %v309, %v308
      %v337 = vpack.c.bf16 %v311, %v310
      %v338 = vpack.c.bf16 %v313, %v312
      %v339 = vpack.c.bf16 %v315, %v314
      %v340 = vpack.c.bf16 %v317, %v316
      %v341 = vpack.c.bf16 %v319, %v318
      %v342 = vpack.c.bf16 %v321, %v320
      %343 = vst [vmem:[#allocation2] sm:$0xff] %v322
      %344 = vst [vmem:[#allocation2 + $0x10] sm:$0xff] %v323
      %345 = vst [vmem:[#allocation2 + $0x20] sm:$0xff] %v324
      %346 = vst [vmem:[#allocation2 + $0x30] sm:$0xff] %v325
      %347 = vst [vmem:[#allocation2 + $0x40] sm:$0xff] %v326
      %348 = vst [vmem:[#allocation2 + $0x50] sm:$0xff] %v327
      %349 = vst [vmem:[#allocation2 + $0x60] sm:$0xff] %v328
      %350 = vst [vmem:[#allocation2 + $0x70] sm:$0xff] %v329
      %351 = vst [vmem:[#allocation2 + $0x80] sm:$0xff] %v330
      %352 = vst [vmem:[#allocation2 + $0x90] sm:$0xff] %v331
      %353 = vst [vmem:[#allocation2 + $0xa0] sm:$0xff] %v332
      %354 = vst [vmem:[#allocation2 + $0xb0] sm:$0xff] %v333
      %355 = vst [vmem:[#allocation2 + $0xc0] sm:$0xff] %v334
      %356 = vst [vmem:[#allocation2 + $0xd0] sm:$0xff] %v335
      %357 = vst [vmem:[#allocation2 + $0xe0] sm:$0xff] %v336
      %358 = vst [vmem:[#allocation2 + $0xf0] sm:$0xff] %v337
      %359 = vst [vmem:[#allocation2 + $0x100] sm:$0xff] %v338
      %360 = vst [vmem:[#allocation2 + $0x110] sm:$0xff] %v339
      %361 = vst [vmem:[#allocation2 + $0x120] sm:$0xff] %v340
      %362 = vst [vmem:[#allocation2 + $0x130] sm:$0xff] %v341
      %363 = vst [vmem:[#allocation2 + $0x140] sm:$0xff] %v342
      %v364 = vld [vmem:[%s273 + $0x1] sm:$0xff]
      %v365 = vld [vmem:[%s273 + $0x9] sm:$0xff]
      %v366 = vld [vmem:[%s273 + $0x11] sm:$0xff]
      %v367 = vld [vmem:[%s273 + $0x19] sm:$0xff]
      %v368 = vld [vmem:[%s273 + $0x21] sm:$0xff]
      %v369 = vld [vmem:[%s273 + $0x29] sm:$0xff]
      %v370 = vld [vmem:[%s273 + $0x31] sm:$0xff]
      %v371 = vld [vmem:[%s273 + $0x39] sm:$0xff]
      %v372 = vld [vmem:[%s273 + $0x41] sm:$0xff]
      %v373 = vld [vmem:[%s273 + $0x49] sm:$0xff]
      %v374 = vld [vmem:[%s273 + $0x51] sm:$0xff]
      %v375 = vld [vmem:[%s273 + $0x59] sm:$0xff]
      %v376 = vld [vmem:[%s273 + $0x61] sm:$0xff]
      %v377 = vld [vmem:[%s273 + $0x69] sm:$0xff]
      %v378 = vld [vmem:[%s273 + $0x71] sm:$0xff]
      %v379 = vld [vmem:[%s273 + $0x79] sm:$0xff]
      %v380 = vld [vmem:[%s273 + $0x81] sm:$0xff]
      %v381 = vld [vmem:[%s273 + $0x89] sm:$0xff]
      %v382 = vld [vmem:[%s273 + $0x91] sm:$0xff]
      %v383 = vld [vmem:[%s273 + $0x99] sm:$0xff]
      %v384 = vld [vmem:[%s273 + $0xa1] sm:$0xff]
      %v385 = vld [vmem:[%s273 + $0xa9] sm:$0xff]
      %v386 = vld [vmem:[%s273 + $0xb1] sm:$0xff]
      %v387 = vld [vmem:[%s273 + $0xb9] sm:$0xff]
      %v388 = vld [vmem:[%s273 + $0xc1] sm:$0xff]
      %v389 = vld [vmem:[%s273 + $0xc9] sm:$0xff]
      %v390 = vld [vmem:[%s273 + $0xd1] sm:$0xff]
      %v391 = vld [vmem:[%s273 + $0xd9] sm:$0xff]
      %v392 = vld [vmem:[%s273 + $0xe1] sm:$0xff]
      %v393 = vld [vmem:[%s273 + $0xe9] sm:$0xff]
      %v394 = vld [vmem:[%s273 + $0xf1] sm:$0xff]
      %v395 = vld [vmem:[%s273 + $0xf9] sm:$0xff]
      %v396 = vld [vmem:[%s273 + $0x101] sm:$0xff]
      %v397 = vld [vmem:[%s273 + $0x109] sm:$0xff]
      %v398 = vld [vmem:[%s273 + $0x111] sm:$0xff]
      %v399 = vld [vmem:[%s273 + $0x119] sm:$0xff]
      %v400 = vld [vmem:[%s273 + $0x121] sm:$0xff]
      %v401 = vld [vmem:[%s273 + $0x129] sm:$0xff]
      %v402 = vld [vmem:[%s273 + $0x131] sm:$0xff]
      %v403 = vld [vmem:[%s273 + $0x139] sm:$0xff]
      %v404 = vld [vmem:[%s273 + $0x141] sm:$0xff]
      %v405 = vld [vmem:[%s273 + $0x149] sm:$0x7f]
      %v406 = vpack.c.bf16 %v365, %v364
      %v407 = vpack.c.bf16 %v367, %v366
      %v408 = vpack.c.bf16 %v369, %v368
      %v409 = vpack.c.bf16 %v371, %v370
      %v410 = vpack.c.bf16 %v373, %v372
      %v411 = vpack.c.bf16 %v375, %v374
      %v412 = vpack.c.bf16 %v377, %v376
      %v413 = vpack.c.bf16 %v379, %v378
      %v414 = vpack.c.bf16 %v381, %v380
      %v415 = vpack.c.bf16 %v383, %v382
      %v416 = vpack.c.bf16 %v385, %v384
      %v417 = vpack.c.bf16 %v387, %v386
      %v418 = vpack.c.bf16 %v389, %v388
      %v419 = vpack.c.bf16 %v391, %v390
      %v420 = vpack.c.bf16 %v393, %v392
      %v421 = vpack.c.bf16 %v395, %v394
      %v422 = vpack.c.bf16 %v397, %v396
      %v423 = vpack.c.bf16 %v399, %v398
      %v424 = vpack.c.bf16 %v401, %v400
      %v425 = vpack.c.bf16 %v403, %v402
      %v426 = vpack.c.bf16 %v405, %v404
      %427 = vst [vmem:[#allocation2 + $0x8] sm:$0xff] %v406
      %428 = vst [vmem:[#allocation2 + $0x18] sm:$0xff] %v407
      %429 = vst [vmem:[#allocation2 + $0x28] sm:$0xff] %v408
      %430 = vst [vmem:[#allocation2 + $0x38] sm:$0xff] %v409
      %431 = vst [vmem:[#allocation2 + $0x48] sm:$0xff] %v410
      %432 = vst [vmem:[#allocation2 + $0x58] sm:$0xff] %v411
      %433 = vst [vmem:[#allocation2 + $0x68] sm:$0xff] %v412
      %434 = vst [vmem:[#allocation2 + $0x78] sm:$0xff] %v413
      %435 = vst [vmem:[#allocation2 + $0x88] sm:$0xff] %v414
      %436 = vst [vmem:[#allocation2 + $0x98] sm:$0xff] %v415
      %437 = vst [vmem:[#allocation2 + $0xa8] sm:$0xff] %v416
      %438 = vst [vmem:[#allocation2 + $0xb8] sm:$0xff] %v417
      %439 = vst [vmem:[#allocation2 + $0xc8] sm:$0xff] %v418
      %440 = vst [vmem:[#allocation2 + $0xd8] sm:$0xff] %v419
      %441 = vst [vmem:[#allocation2 + $0xe8] sm:$0xff] %v420
      %442 = vst [vmem:[#allocation2 + $0xf8] sm:$0xff] %v421
      %443 = vst [vmem:[#allocation2 + $0x108] sm:$0xff] %v422
      %444 = vst [vmem:[#allocation2 + $0x118] sm:$0xff] %v423
      %445 = vst [vmem:[#allocation2 + $0x128] sm:$0xff] %v424
      %446 = vst [vmem:[#allocation2 + $0x138] sm:$0xff] %v425
      %vm447 = vcmask 1047552
      %vm448 = vsmask.f32 7424
      %vm449 = vmand %vm447, %vm448
      %v450 = vld [vmem:[#allocation2 + $0x148] sm:$0xff]
      %v451 = vsel %vm449, %v426, %v450
      %452 = vst [vmem:[#allocation2 + $0x148] sm:$0xff] %v451
      %v453 = vld [vmem:[%s3] sm:$0x1]
      %v454 = vld [vmem:[#allocation2] sm:$0xfc]
      %v455 = vld [vmem:[#allocation2 + $0x8] sm:$0xfc]
      %v456 = vld [vmem:[#allocation2 + $0x10] sm:$0xff]
      %v457 = vld [vmem:[#allocation2 + $0x18] sm:$0xff]
      %v458 = vld [vmem:[#allocation2 + $0x20] sm:$0xff]
      %v459 = vld [vmem:[#allocation2 + $0x28] sm:$0xff]
      %v460 = vld [vmem:[#allocation2 + $0x30] sm:$0xff]
      %v461 = vld [vmem:[#allocation2 + $0x38] sm:$0xff]
      %v462 = vld [vmem:[#allocation2 + $0x40] sm:$0xff]
      %v463 = vld [vmem:[#allocation2 + $0x48] sm:$0xff]
      %v464 = vld [vmem:[#allocation2 + $0x50] sm:$0xff]
      %v465 = vld [vmem:[#allocation2 + $0x58] sm:$0xff]
      %v466 = vld [vmem:[#allocation2 + $0x60] sm:$0xff]
      %v467 = vld [vmem:[#allocation2 + $0x68] sm:$0xff]
      %v468 = vld [vmem:[#allocation2 + $0x70] sm:$0xff]
      %v469 = vld [vmem:[#allocation2 + $0x78] sm:$0xff]
      %v470 = vld [vmem:[#allocation2 + $0x80] sm:$0xff]
      %v471 = vld [vmem:[#allocation2 + $0x88] sm:$0xff]
      %v472 = vld [vmem:[#allocation2 + $0x90] sm:$0xff]
      %v473 = vld [vmem:[#allocation2 + $0x98] sm:$0xff]
      %v474 = vld [vmem:[#allocation2 + $0xa0] sm:$0xff]
      %v475 = vld [vmem:[#allocation2 + $0xa8] sm:$0xff]
      %v476 = vld [vmem:[#allocation2 + $0xb0] sm:$0xff]
      %v477 = vld [vmem:[#allocation2 + $0xb8] sm:$0xff]
      %v478 = vld [vmem:[#allocation2 + $0xc0] sm:$0xff]
      %v479 = vld [vmem:[#allocation2 + $0xc8] sm:$0xff]
      %v480 = vld [vmem:[#allocation2 + $0xd0] sm:$0xff]
      %v481 = vld [vmem:[#allocation2 + $0xd8] sm:$0xff]
      %v482 = vld [vmem:[#allocation2 + $0xe0] sm:$0xff]
      %v483 = vld [vmem:[#allocation2 + $0xe8] sm:$0xff]
      %v484 = vld [vmem:[#allocation2 + $0xf0] sm:$0xff]
      %v485 = vld [vmem:[#allocation2 + $0xf8] sm:$0xff]
      %v486 = vld [vmem:[#allocation2 + $0x100] sm:$0xff]
      %v487 = vld [vmem:[#allocation2 + $0x108] sm:$0xff]
      %v488 = vld [vmem:[#allocation2 + $0x110] sm:$0xff]
      %v489 = vld [vmem:[#allocation2 + $0x118] sm:$0xff]
      %v490 = vld [vmem:[#allocation2 + $0x120] sm:$0x7]
      %v491 = vld [vmem:[#allocation2 + $0x128] sm:$0x7]
      %v492 = vld [vmem:[%s1] sm:$0xf]
      %v493 = vld [vmem:[%s1 + $0x4] sm:$0xf]
      %v494 = vld [vmem:[%s1 + $0x8] sm:$0xf]
      %v495 = vld [vmem:[%s1 + $0xc] sm:$0xf]
      %v496 = vld [vmem:[%s1 + $0x10] sm:$0xf]
      %v497 = vld [vmem:[%s1 + $0x14] sm:$0xf]
      %v498 = vld [vmem:[%s1 + $0x18] sm:$0xf]
      %v499 = vld [vmem:[%s1 + $0x1c] sm:$0xf]
      %v500 = vld [vmem:[%s1 + $0x20] sm:$0xf]
      %v501 = vld [vmem:[%s1 + $0x24] sm:$0xf]
      %v502 = vld [vmem:[%s1 + $0x28] sm:$0xf]
      %v503 = vld [vmem:[%s1 + $0x2c] sm:$0xf]
      %v504 = vld [vmem:[%s1 + $0x30] sm:$0xf]
      %v505 = vld [vmem:[%s1 + $0x34] sm:$0xf]
      %v506 = vld [vmem:[%s1 + $0x38] sm:$0xf]
      %v507 = vld [vmem:[%s1 + $0x3c] sm:$0xf]
      %v508 = vld [vmem:[%s1 + $0x40] sm:$0xf]
      %v509 = vld [vmem:[%s1 + $0x44] sm:$0xf]
      %v510 = vld [vmem:[%s1 + $0x48] sm:$0xf]
      %v511 = vld [vmem:[%s1 + $0x4c] sm:$0xf]
      %v512 = vld [vmem:[%s1 + $0x50] sm:$0xf]
      %v513 = vld [vmem:[%s1 + $0x54] sm:$0xf]
      %v514 = vld [vmem:[%s1 + $0x58] sm:$0xf]
      %v515 = vld [vmem:[%s1 + $0x5c] sm:$0xf]
      %v516 = vld [vmem:[%s1 + $0x60] sm:$0xf]
      %v517 = vld [vmem:[%s1 + $0x64] sm:$0xf]
      %v518 = vld [vmem:[%s1 + $0x68] sm:$0xf]
      %v519 = vld [vmem:[%s1 + $0x6c] sm:$0xf]
      %v520 = vld [vmem:[%s1 + $0x70] sm:$0xf]
      %v521 = vld [vmem:[%s1 + $0x74] sm:$0xf]
      %v522 = vld [vmem:[%s1 + $0x78] sm:$0xf]
      %v523 = vld [vmem:[%s1 + $0x7c] sm:$0xf]
      %vm524 = vsmask.f32 5376
      %v526 = vshrl.u32 %v454, 16
      %v528 = vrot.slane %v526, 2
      %v529 = vshll.u32 %v454, 16
      %v531 = vrot.slane %v529, 3
      %v532 = vor.u32 %v528, %v531
      %v534 = vshrl.u32 %v456, 16
      %v536 = vrot.slane %v534, 2
      %v537 = vshll.u32 %v456, 16
      %v539 = vrot.slane %v537, 3
      %v540 = vor.u32 %v536, %v539
      %v541 = vsel %vm524, %v532, %v540
      %v543 = vshrl.u32 %v455, 16
      %v545 = vrot.slane %v543, 2
      %v546 = vshll.u32 %v455, 16
      %v548 = vrot.slane %v546, 3
      %v549 = vor.u32 %v545, %v548
      %v551 = vshrl.u32 %v457, 16
      %v553 = vrot.slane %v551, 2
      %v554 = vshll.u32 %v457, 16
      %v556 = vrot.slane %v554, 3
      %v557 = vor.u32 %v553, %v556
      %v558 = vsel %vm524, %v549, %v557
      %v560 = vshrl.u32 %v458, 16
      %v562 = vrot.slane %v560, 2
      %v563 = vshll.u32 %v458, 16
      %v565 = vrot.slane %v563, 3
      %v566 = vor.u32 %v562, %v565
      %v567 = vsel %vm524, %v540, %v566
      %v569 = vshrl.u32 %v459, 16
      %v571 = vrot.slane %v569, 2
      %v572 = vshll.u32 %v459, 16
      %v574 = vrot.slane %v572, 3
      %v575 = vor.u32 %v571, %v574
      %v576 = vsel %vm524, %v557, %v575
      %v578 = vshrl.u32 %v460, 16
      %v580 = vrot.slane %v578, 2
      %v581 = vshll.u32 %v460, 16
      %v583 = vrot.slane %v581, 3
      %v584 = vor.u32 %v580, %v583
      %v585 = vsel %vm524, %v566, %v584
      %v587 = vshrl.u32 %v461, 16
      %v589 = vrot.slane %v587, 2
      %v590 = vshll.u32 %v461, 16
      %v592 = vrot.slane %v590, 3
      %v593 = vor.u32 %v589, %v592
      %v594 = vsel %vm524, %v575, %v593
      %v596 = vshrl.u32 %v462, 16
      %v598 = vrot.slane %v596, 2
      %v599 = vshll.u32 %v462, 16
      %v601 = vrot.slane %v599, 3
      %v602 = vor.u32 %v598, %v601
      %v603 = vsel %vm524, %v584, %v602
      %v605 = vshrl.u32 %v463, 16
      %v607 = vrot.slane %v605, 2
      %v608 = vshll.u32 %v463, 16
      %v610 = vrot.slane %v608, 3
      %v611 = vor.u32 %v607, %v610
      %v612 = vsel %vm524, %v593, %v611
      %v614 = vshrl.u32 %v464, 16
      %v616 = vrot.slane %v614, 2
      %v617 = vshll.u32 %v464, 16
      %v619 = vrot.slane %v617, 3
      %v620 = vor.u32 %v616, %v619
      %v621 = vsel %vm524, %v602, %v620
      %v623 = vshrl.u32 %v465, 16
      %v625 = vrot.slane %v623, 2
      %v626 = vshll.u32 %v465, 16
      %v628 = vrot.slane %v626, 3
      %v629 = vor.u32 %v625, %v628
      %v630 = vsel %vm524, %v611, %v629
      %v632 = vshrl.u32 %v466, 16
      %v634 = vrot.slane %v632, 2
      %v635 = vshll.u32 %v466, 16
      %v637 = vrot.slane %v635, 3
      %v638 = vor.u32 %v634, %v637
      %v639 = vsel %vm524, %v620, %v638
      %v641 = vshrl.u32 %v467, 16
      %v643 = vrot.slane %v641, 2
      %v644 = vshll.u32 %v467, 16
      %v646 = vrot.slane %v644, 3
      %v647 = vor.u32 %v643, %v646
      %v648 = vsel %vm524, %v629, %v647
      %v650 = vshrl.u32 %v468, 16
      %v652 = vrot.slane %v650, 2
      %v653 = vshll.u32 %v468, 16
      %v655 = vrot.slane %v653, 3
      %v656 = vor.u32 %v652, %v655
      %v657 = vsel %vm524, %v638, %v656
      %v659 = vshrl.u32 %v469, 16
      %v661 = vrot.slane %v659, 2
      %v662 = vshll.u32 %v469, 16
      %v664 = vrot.slane %v662, 3
      %v665 = vor.u32 %v661, %v664
      %v666 = vsel %vm524, %v647, %v665
      %v668 = vshrl.u32 %v470, 16
      %v670 = vrot.slane %v668, 2
      %v671 = vshll.u32 %v470, 16
      %v673 = vrot.slane %v671, 3
      %v674 = vor.u32 %v670, %v673
      %v675 = vsel %vm524, %v656, %v674
      %v677 = vshrl.u32 %v471, 16
      %v679 = vrot.slane %v677, 2
      %v680 = vshll.u32 %v471, 16
      %v682 = vrot.slane %v680, 3
      %v683 = vor.u32 %v679, %v682
      %v684 = vsel %vm524, %v665, %v683
      %v686 = vshrl.u32 %v472, 16
      %v688 = vrot.slane %v686, 2
      %v689 = vshll.u32 %v472, 16
      %v691 = vrot.slane %v689, 3
      %v692 = vor.u32 %v688, %v691
      %v693 = vsel %vm524, %v674, %v692
      %v695 = vshrl.u32 %v473, 16
      %v697 = vrot.slane %v695, 2
      %v698 = vshll.u32 %v473, 16
      %v700 = vrot.slane %v698, 3
      %v701 = vor.u32 %v697, %v700
      %v702 = vsel %vm524, %v683, %v701
      %v704 = vshrl.u32 %v474, 16
      %v706 = vrot.slane %v704, 2
      %v707 = vshll.u32 %v474, 16
      %v709 = vrot.slane %v707, 3
      %v710 = vor.u32 %v706, %v709
      %v711 = vsel %vm524, %v692, %v710
      %v713 = vshrl.u32 %v475, 16
      %v715 = vrot.slane %v713, 2
      %v716 = vshll.u32 %v475, 16
      %v718 = vrot.slane %v716, 3
      %v719 = vor.u32 %v715, %v718
      %v720 = vsel %vm524, %v701, %v719
      %v722 = vshrl.u32 %v476, 16
      %v724 = vrot.slane %v722, 2
      %v725 = vshll.u32 %v476, 16
      %v727 = vrot.slane %v725, 3
      %v728 = vor.u32 %v724, %v727
      %v729 = vsel %vm524, %v710, %v728
      %v731 = vshrl.u32 %v477, 16
      %v733 = vrot.slane %v731, 2
      %v734 = vshll.u32 %v477, 16
      %v736 = vrot.slane %v734, 3
      %v737 = vor.u32 %v733, %v736
      %v738 = vsel %vm524, %v719, %v737
      %v740 = vshrl.u32 %v478, 16
      %v742 = vrot.slane %v740, 2
      %v743 = vshll.u32 %v478, 16
      %v745 = vrot.slane %v743, 3
      %v746 = vor.u32 %v742, %v745
      %v747 = vsel %vm524, %v728, %v746
      %v749 = vshrl.u32 %v479, 16
      %v751 = vrot.slane %v749, 2
      %v752 = vshll.u32 %v479, 16
      %v754 = vrot.slane %v752, 3
      %v755 = vor.u32 %v751, %v754
      %v756 = vsel %vm524, %v737, %v755
      %v758 = vshrl.u32 %v480, 16
      %v760 = vrot.slane %v758, 2
      %v761 = vshll.u32 %v480, 16
      %v763 = vrot.slane %v761, 3
      %v764 = vor.u32 %v760, %v763
      %v765 = vsel %vm524, %v746, %v764
      %v767 = vshrl.u32 %v481, 16
      %v769 = vrot.slane %v767, 2
      %v770 = vshll.u32 %v481, 16
      %v772 = vrot.slane %v770, 3
      %v773 = vor.u32 %v769, %v772
      %v774 = vsel %vm524, %v755, %v773
      %v776 = vshrl.u32 %v482, 16
      %v778 = vrot.slane %v776, 2
      %v779 = vshll.u32 %v482, 16
      %v781 = vrot.slane %v779, 3
      %v782 = vor.u32 %v778, %v781
      %v783 = vsel %vm524, %v764, %v782
      %v785 = vshrl.u32 %v483, 16
      %v787 = vrot.slane %v785, 2
      %v788 = vshll.u32 %v483, 16
      %v790 = vrot.slane %v788, 3
      %v791 = vor.u32 %v787, %v790
      %v792 = vsel %vm524, %v773, %v791
      %v794 = vshrl.u32 %v484, 16
      %v796 = vrot.slane %v794, 2
      %v797 = vshll.u32 %v484, 16
      %v799 = vrot.slane %v797, 3
      %v800 = vor.u32 %v796, %v799
      %v801 = vsel %vm524, %v782, %v800
      %v803 = vshrl.u32 %v485, 16
      %v805 = vrot.slane %v803, 2
      %v806 = vshll.u32 %v485, 16
      %v808 = vrot.slane %v806, 3
      %v809 = vor.u32 %v805, %v808
      %v810 = vsel %vm524, %v791, %v809
      %v812 = vshrl.u32 %v486, 16
      %v814 = vrot.slane %v812, 2
      %v815 = vshll.u32 %v486, 16
      %v817 = vrot.slane %v815, 3
      %v818 = vor.u32 %v814, %v817
      %v819 = vsel %vm524, %v800, %v818
      %v821 = vshrl.u32 %v487, 16
      %v823 = vrot.slane %v821, 2
      %v824 = vshll.u32 %v487, 16
      %v826 = vrot.slane %v824, 3
      %v827 = vor.u32 %v823, %v826
      %v828 = vsel %vm524, %v809, %v827
      %v830 = vshrl.u32 %v488, 16
      %v832 = vrot.slane %v830, 2
      %v833 = vshll.u32 %v488, 16
      %v835 = vrot.slane %v833, 3
      %v836 = vor.u32 %v832, %v835
      %v837 = vsel %vm524, %v818, %v836
      %v839 = vshrl.u32 %v489, 16
      %v841 = vrot.slane %v839, 2
      %v842 = vshll.u32 %v489, 16
      %v844 = vrot.slane %v842, 3
      %v845 = vor.u32 %v841, %v844
      %v846 = vsel %vm524, %v827, %v845
      %v848 = vshrl.u32 %v490, 16
      %v850 = vrot.slane %v848, 2
      %v851 = vshll.u32 %v490, 16
      %v853 = vrot.slane %v851, 3
      %v854 = vor.u32 %v850, %v853
      %v855 = vsel %vm524, %v836, %v854
      %v857 = vshrl.u32 %v491, 16
      %v859 = vrot.slane %v857, 2
      %v860 = vshll.u32 %v491, 16
      %v862 = vrot.slane %v860, 3
      %v863 = vor.u32 %v859, %v862
      %v864 = vsel %vm524, %v845, %v863
      %v933 = vunpack.c.l.b16 %v492
      %v934 = vunpack.c.l.b16 %v493
      %v935 = vunpack.c.l.b16 %v494
      %v936 = vunpack.c.l.b16 %v495
      %v937 = vunpack.c.l.b16 %v496
      %v938 = vunpack.c.l.b16 %v497
      %v939 = vunpack.c.l.b16 %v498
      %v940 = vunpack.c.l.b16 %v499
      %v941 = vunpack.c.l.b16 %v500
      %v942 = vunpack.c.l.b16 %v501
      %v943 = vunpack.c.l.b16 %v502
      %v944 = vunpack.c.l.b16 %v503
      %v945 = vunpack.c.l.b16 %v504
      %v946 = vunpack.c.l.b16 %v505
      %v947 = vunpack.c.l.b16 %v506
      %v948 = vunpack.c.l.b16 %v507
      %v949 = vunpack.c.l.b16 %v508
      %v950 = vunpack.c.l.b16 %v509
      %v951 = vunpack.c.l.b16 %v510
      %v952 = vunpack.c.l.b16 %v511
      %v953 = vunpack.c.l.b16 %v512
      %v954 = vunpack.c.l.b16 %v513
      %v955 = vunpack.c.l.b16 %v514
      %v956 = vunpack.c.l.b16 %v515
      %v957 = vunpack.c.l.b16 %v516
      %v958 = vunpack.c.l.b16 %v517
      %v959 = vunpack.c.l.b16 %v518
      %v960 = vunpack.c.l.b16 %v519
      %v961 = vunpack.c.l.b16 %v520
      %v962 = vunpack.c.l.b16 %v521
      %v963 = vunpack.c.l.b16 %v522
      %v964 = vunpack.c.l.b16 %v523
      %v965 = vpack.c.b16 %v934, %v933
      %v966 = vpack.c.b16 %v936, %v935
      %v967 = vpack.c.b16 %v938, %v937
      %v968 = vpack.c.b16 %v940, %v939
      %v969 = vpack.c.b16 %v942, %v941
      %v970 = vpack.c.b16 %v944, %v943
      %v971 = vpack.c.b16 %v946, %v945
      %v972 = vpack.c.b16 %v948, %v947
      %v973 = vpack.c.b16 %v950, %v949
      %v974 = vpack.c.b16 %v952, %v951
      %v975 = vpack.c.b16 %v954, %v953
      %v976 = vpack.c.b16 %v956, %v955
      %v977 = vpack.c.b16 %v958, %v957
      %v978 = vpack.c.b16 %v960, %v959
      %v979 = vpack.c.b16 %v962, %v961
      %v980 = vpack.c.b16 %v964, %v963
      %997 = vmatprep.subr.bf16.mxu0 0
      %998 = vmatpush1.bf16.msra.mxu0 %v965
      %999 = vmatprep.subr.bf16.mxu0 0
      %1000 = vmatpush1.bf16.msra.mxu0 %v966
      %1001 = vmatprep.subr.bf16.mxu0 0
      %1002 = vmatpush1.bf16.msra.mxu0 %v967
      %1003 = vmatprep.subr.bf16.mxu0 0
      %1004 = vmatpush1.bf16.msra.mxu0 %v968
      %1005 = vmatprep.subr.bf16.mxu0 0
      %1006 = vmatpush1.bf16.msra.mxu0 %v969
      %1007 = vmatprep.subr.bf16.mxu0 0
      %1008 = vmatpush1.bf16.msra.mxu0 %v970
      %1009 = vmatprep.subr.bf16.mxu0 0
      %1010 = vmatpush1.bf16.msra.mxu0 %v971
      %1011 = vmatprep.subr.bf16.mxu0 0
      %1012 = vmatpush1.bf16.msra.mxu0 %v972
      %1013 = vmatprep.subr.bf16.mxu0 0
      %1014 = vmatpush1.bf16.msra.mxu0 %v973
      %1015 = vmatprep.subr.bf16.mxu0 0
      %1016 = vmatpush1.bf16.msra.mxu0 %v974
      %1017 = vmatprep.subr.bf16.mxu0 0
      %1018 = vmatpush1.bf16.msra.mxu0 %v975
      %1019 = vmatprep.subr.bf16.mxu0 0
      %1020 = vmatpush1.bf16.msra.mxu0 %v976
      %1021 = vmatprep.subr.bf16.mxu0 0
      %1022 = vmatpush1.bf16.msra.mxu0 %v977
      %1023 = vmatprep.subr.bf16.mxu0 0
      %1024 = vmatpush1.bf16.msra.mxu0 %v978
      %1025 = vmatprep.subr.bf16.mxu0 0
      %1026 = vmatpush1.bf16.msra.mxu0 %v979
      %1027 = vmatprep.subr.bf16.mxu0 0
      %1028 = vmatpush1.bf16.msra.mxu0 %v980
      %1029 = vmatprep.mubr.bf16.mxu0 %v558
      %1030 = vmatmul.mubr.bf16.gmra.mrb[0].mxu0 %v541
      %v1031 = vpop.f32.mrb[0].mxu0
      %v1032 = vadd.f32 0.0, %v1031
      %v1033 = vpop.f32.mrb[0].mxu0
      %v1034 = vpop.f32.mrb[0].mxu0
      %v1035 = vadd.f32 0.0, %v1034
      %v1036 = vpop.f32.mrb[0].mxu0
      %1037 = vmatprep.mubr.bf16.mxu0 %v576
      %1038 = vmatmul.mubr.bf16.gmra.mrb[0].mxu0 %v567
      %v1039 = vpop.f32.mrb[0].mxu0
      %v1040 = vadd.f32 0.0, %v1039
      %v1041 = vpop.f32.mrb[0].mxu0
      %v1042 = vpop.f32.mrb[0].mxu0
      %v1043 = vadd.f32 0.0, %v1042
      %v1044 = vpop.f32.mrb[0].mxu0
      %1045 = vmatprep.mubr.bf16.mxu0 %v594
      %1046 = vmatmul.mubr.bf16.gmra.mrb[0].mxu0 %v585
      %v1047 = vpop.f32.mrb[0].mxu0
      %v1048 = vadd.f32 0.0, %v1047
      %v1049 = vpop.f32.mrb[0].mxu0
      %v1050 = vpop.f32.mrb[0].mxu0
      %v1051 = vadd.f32 0.0, %v1050
      %v1052 = vpop.f32.mrb[0].mxu0
      %1053 = vmatprep.mubr.bf16.mxu0 %v612
      %1054 = vmatmul.mubr.bf16.gmra.mrb[0].mxu0 %v603
      %v1055 = vpop.f32.mrb[0].mxu0
      %v1056 = vadd.f32 0.0, %v1055
      %v1057 = vpop.f32.mrb[0].mxu0
      %v1058 = vpop.f32.mrb[0].mxu0
      %v1059 = vadd.f32 0.0, %v1058
      %v1060 = vpop.f32.mrb[0].mxu0
      %1061 = vmatprep.mubr.bf16.mxu0 %v630
      %1062 = vmatmul.mubr.bf16.gmra.mrb[0].mxu0 %v621
      %v1063 = vpop.f32.mrb[0].mxu0
      %v1064 = vadd.f32 0.0, %v1063
      %v1065 = vpop.f32.mrb[0].mxu0
      %v1066 = vpop.f32.mrb[0].mxu0
      %v1067 = vadd.f32 0.0, %v1066
      %v1068 = vpop.f32.mrb[0].mxu0
      %1069 = vmatprep.mubr.bf16.mxu0 %v648
      %1070 = vmatmul.mubr.bf16.gmra.mrb[0].mxu0 %v639
      %v1071 = vpop.f32.mrb[0].mxu0
      %v1072 = vadd.f32 0.0, %v1071
      %v1073 = vpop.f32.mrb[0].mxu0
      %v1074 = vpop.f32.mrb[0].mxu0
      %v1075 = vadd.f32 0.0, %v1074
      %v1076 = vpop.f32.mrb[0].mxu0
      %1077 = vmatprep.mubr.bf16.mxu0 %v666
      %1078 = vmatmul.mubr.bf16.gmra.mrb[0].mxu0 %v657
      %v1079 = vpop.f32.mrb[0].mxu0
      %v1080 = vadd.f32 0.0, %v1079
      %v1081 = vpop.f32.mrb[0].mxu0
      %v1082 = vpop.f32.mrb[0].mxu0
      %v1083 = vadd.f32 0.0, %v1082
      %v1084 = vpop.f32.mrb[0].mxu0
      %1085 = vmatprep.mubr.bf16.mxu0 %v684
      %1086 = vmatmul.mubr.bf16.gmra.mrb[0].mxu0 %v675
      %v1087 = vpop.f32.mrb[0].mxu0
      %v1088 = vadd.f32 0.0, %v1087
      %v1089 = vpop.f32.mrb[0].mxu0
      %v1090 = vpop.f32.mrb[0].mxu0
      %v1091 = vadd.f32 0.0, %v1090
      %v1092 = vpop.f32.mrb[0].mxu0
      %1093 = vmatprep.mubr.bf16.mxu0 %v702
      %1094 = vmatmul.mubr.bf16.gmra.mrb[0].mxu0 %v693
      %v1095 = vpop.f32.mrb[0].mxu0
      %v1096 = vadd.f32 0.0, %v1095
      %v1097 = vpop.f32.mrb[0].mxu0
      %v1098 = vpop.f32.mrb[0].mxu0
      %v1099 = vadd.f32 0.0, %v1098
      %v1100 = vpop.f32.mrb[0].mxu0
      %1101 = vmatprep.mubr.bf16.mxu0 %v720
      %1102 = vmatmul.mubr.bf16.gmra.mrb[0].mxu0 %v711
      %v1103 = vpop.f32.mrb[0].mxu0
      %v1104 = vadd.f32 0.0, %v1103
      %v1105 = vpop.f32.mrb[0].mxu0
      %v1106 = vpop.f32.mrb[0].mxu0
      %v1107 = vadd.f32 0.0, %v1106
      %v1108 = vpop.f32.mrb[0].mxu0
      %1109 = vmatprep.mubr.bf16.mxu0 %v738
      %1110 = vmatmul.mubr.bf16.gmra.mrb[0].mxu0 %v729
      %v1111 = vpop.f32.mrb[0].mxu0
      %v1112 = vadd.f32 0.0, %v1111
      %v1113 = vpop.f32.mrb[0].mxu0
      %v1114 = vpop.f32.mrb[0].mxu0
      %v1115 = vadd.f32 0.0, %v1114
      %v1116 = vpop.f32.mrb[0].mxu0
      %1117 = vmatprep.mubr.bf16.mxu0 %v756
      %1118 = vmatmul.mubr.bf16.gmra.mrb[0].mxu0 %v747
      %v1119 = vpop.f32.mrb[0].mxu0
      %v1120 = vadd.f32 0.0, %v1119
      %v1121 = vpop.f32.mrb[0].mxu0
      %v1122 = vpop.f32.mrb[0].mxu0
      %v1123 = vadd.f32 0.0, %v1122
      %v1124 = vpop.f32.mrb[0].mxu0
      %1125 = vmatprep.mubr.bf16.mxu0 %v774
      %1126 = vmatmul.mubr.bf16.gmra.mrb[0].mxu0 %v765
      %v1127 = vpop.f32.mrb[0].mxu0
      %v1128 = vadd.f32 0.0, %v1127
      %v1129 = vpop.f32.mrb[0].mxu0
      %v1130 = vpop.f32.mrb[0].mxu0
      %v1131 = vadd.f32 0.0, %v1130
      %v1132 = vpop.f32.mrb[0].mxu0
      %1133 = vmatprep.mubr.bf16.mxu0 %v792
      %1134 = vmatmul.mubr.bf16.gmra.mrb[0].mxu0 %v783
      %v1135 = vpop.f32.mrb[0].mxu0
      %v1136 = vadd.f32 0.0, %v1135
      %v1137 = vpop.f32.mrb[0].mxu0
      %v1138 = vpop.f32.mrb[0].mxu0
      %v1139 = vadd.f32 0.0, %v1138
      %v1140 = vpop.f32.mrb[0].mxu0
      %1141 = vmatprep.mubr.bf16.mxu0 %v810
      %1142 = vmatmul.mubr.bf16.gmra.mrb[0].mxu0 %v801
      %v1143 = vpop.f32.mrb[0].mxu0
      %v1144 = vadd.f32 0.0, %v1143
      %v1145 = vpop.f32.mrb[0].mxu0
      %v1146 = vpop.f32.mrb[0].mxu0
      %v1147 = vadd.f32 0.0, %v1146
      %v1148 = vpop.f32.mrb[0].mxu0
      %1149 = vmatprep.mubr.bf16.mxu0 %v828
      %1150 = vmatmul.mubr.bf16.gmra.mrb[0].mxu0 %v819
      %v1151 = vpop.f32.mrb[0].mxu0
      %v1152 = vadd.f32 0.0, %v1151
      %v1153 = vpop.f32.mrb[0].mxu0
      %v1154 = vpop.f32.mrb[0].mxu0
      %v1155 = vadd.f32 0.0, %v1154
      %v1156 = vpop.f32.mrb[0].mxu0
      %1157 = vmatprep.mubr.bf16.mxu0 %v846
      %1158 = vmatmul.mubr.bf16.gmra.mrb[0].mxu0 %v837
      %v1159 = vpop.f32.mrb[0].mxu0
      %v1160 = vadd.f32 0.0, %v1159
      %v1161 = vpop.f32.mrb[0].mxu0
      %v1162 = vpop.f32.mrb[0].mxu0
      %v1163 = vadd.f32 0.0, %v1162
      %v1164 = vpop.f32.mrb[0].mxu0
      %1165 = vmatprep.mubr.bf16.mxu0 %v864
      %1166 = vmatmul.mubr.bf16.gmra.mrb[0].mxu0 %v855
      %v1167 = vpop.f32.mrb[0].mxu0
      %v1168 = vadd.f32 0.0, %v1167
      %v1169 = vpop.f32.mrb[0].mxu0
      %v1170 = vpop.f32.mrb[0].mxu0
      %v1171 = vadd.f32 0.0, %v1170
      %v1172 = vpop.f32.mrb[0].mxu0
      %1173 = vdwg.mxu0
      %v1175 = vlaneseq
      %v1176 = vshrl.u32 %v1175, 7
      %v1177 = vsub.s32 0, %v1176
      %v1178 = vrot.slane %v453, %v1177
      %v1180 = vadd.f32 %v1178, %v1032
      %v1181 = vadd.f32 %v1178, %v1035
      %v1182 = vadd.f32 %v1178, %v1040
      %v1183 = vadd.f32 %v1178, %v1043
      %v1184 = vadd.f32 %v1178, %v1048
      %v1185 = vadd.f32 %v1178, %v1051
      %v1186 = vadd.f32 %v1178, %v1056
      %v1187 = vadd.f32 %v1178, %v1059
      %v1188 = vadd.f32 %v1178, %v1064
      %v1189 = vadd.f32 %v1178, %v1067
      %v1190 = vadd.f32 %v1178, %v1072
      %v1191 = vadd.f32 %v1178, %v1075
      %v1192 = vadd.f32 %v1178, %v1080
      %v1193 = vadd.f32 %v1178, %v1083
      %v1194 = vadd.f32 %v1178, %v1088
      %v1195 = vadd.f32 %v1178, %v1091
      %v1196 = vadd.f32 %v1178, %v1096
      %v1197 = vadd.f32 %v1178, %v1099
      %v1198 = vadd.f32 %v1178, %v1104
      %v1199 = vadd.f32 %v1178, %v1107
      %v1200 = vadd.f32 %v1178, %v1112
      %v1201 = vadd.f32 %v1178, %v1115
      %v1202 = vadd.f32 %v1178, %v1120
      %v1203 = vadd.f32 %v1178, %v1123
      %v1204 = vadd.f32 %v1178, %v1128
      %v1205 = vadd.f32 %v1178, %v1131
      %v1206 = vadd.f32 %v1178, %v1136
      %v1207 = vadd.f32 %v1178, %v1139
      %v1208 = vadd.f32 %v1178, %v1144
      %v1209 = vadd.f32 %v1178, %v1147
      %v1210 = vadd.f32 %v1178, %v1152
      %v1211 = vadd.f32 %v1178, %v1155
      %v1212 = vadd.f32 %v1178, %v1160
      %v1213 = vadd.f32 %v1178, %v1163
      %v1214 = vadd.f32 %v1178, %v1168
      %v1215 = vadd.f32 %v1178, %v1171
      %v1216 = vld [vmem:[#allocation2] sm:$0xf8]
      %v1217 = vld [vmem:[#allocation2 + $0x10] sm:$0xff]
      %v1218 = vld [vmem:[#allocation2 + $0x20] sm:$0xff]
      %v1219 = vld [vmem:[#allocation2 + $0x30] sm:$0xff]
      %v1220 = vld [vmem:[#allocation2 + $0x40] sm:$0xff]
      %v1221 = vld [vmem:[#allocation2 + $0x50] sm:$0xff]
      %v1222 = vld [vmem:[#allocation2 + $0x60] sm:$0xff]
      %v1223 = vld [vmem:[#allocation2 + $0x70] sm:$0xff]
      %v1224 = vld [vmem:[#allocation2 + $0x80] sm:$0xff]
      %v1225 = vld [vmem:[#allocation2 + $0x90] sm:$0xff]
      %v1226 = vld [vmem:[#allocation2 + $0xa0] sm:$0xff]
      %v1227 = vld [vmem:[#allocation2 + $0xb0] sm:$0xff]
      %v1228 = vld [vmem:[#allocation2 + $0xc0] sm:$0xff]
      %v1229 = vld [vmem:[#allocation2 + $0xd0] sm:$0xff]
      %v1230 = vld [vmem:[#allocation2 + $0xe0] sm:$0xff]
      %v1231 = vld [vmem:[#allocation2 + $0xf0] sm:$0xff]
      %v1232 = vld [vmem:[#allocation2 + $0x100] sm:$0xff]
      %v1233 = vld [vmem:[#allocation2 + $0x110] sm:$0xff]
      %v1234 = vld [vmem:[#allocation2 + $0x120] sm:$0xf]
      %v1235 = vld [vmem:[%s2] sm:$0xf]
      %v1236 = vld [vmem:[%s2 + $0x4] sm:$0xf]
      %v1237 = vld [vmem:[%s2 + $0x8] sm:$0xf]
      %v1238 = vld [vmem:[%s2 + $0xc] sm:$0xf]
      %v1239 = vld [vmem:[%s2 + $0x10] sm:$0xf]
      %v1240 = vld [vmem:[%s2 + $0x14] sm:$0xf]
      %v1241 = vld [vmem:[%s2 + $0x18] sm:$0xf]
      %v1242 = vld [vmem:[%s2 + $0x1c] sm:$0xf]
      %v1243 = vld [vmem:[%s2 + $0x20] sm:$0xf]
      %v1244 = vld [vmem:[%s2 + $0x24] sm:$0xf]
      %v1245 = vld [vmem:[%s2 + $0x28] sm:$0xf]
      %v1246 = vld [vmem:[%s2 + $0x2c] sm:$0xf]
      %v1247 = vld [vmem:[%s2 + $0x30] sm:$0xf]
      %v1248 = vld [vmem:[%s2 + $0x34] sm:$0xf]
      %v1249 = vld [vmem:[%s2 + $0x38] sm:$0xf]
      %v1250 = vld [vmem:[%s2 + $0x3c] sm:$0xf]
      %vm1251 = vsmask.f32 4352
      %v1253 = vshrl.u32 %v1216, 16
      %v1255 = vrot.slane %v1253, 3
      %v1256 = vshll.u32 %v1216, 16
      %v1258 = vrot.slane %v1256, 4
      %v1259 = vor.u32 %v1255, %v1258
      %v1261 = vshrl.u32 %v1217, 16
      %v1263 = vrot.slane %v1261, 3
      %v1264 = vshll.u32 %v1217, 16
      %v1266 = vrot.slane %v1264, 4
      %v1267 = vor.u32 %v1263, %v1266
      %v1268 = vsel %vm1251, %v1259, %v1267
      %v1270 = vshrl.u32 %v1218, 16
      %v1272 = vrot.slane %v1270, 3
      %v1273 = vshll.u32 %v1218, 16
      %v1275 = vrot.slane %v1273, 4
      %v1276 = vor.u32 %v1272, %v1275
      %v1277 = vsel %vm1251, %v1267, %v1276
      %v1279 = vshrl.u32 %v1219, 16
      %v1281 = vrot.slane %v1279, 3
      %v1282 = vshll.u32 %v1219, 16
      %v1284 = vrot.slane %v1282, 4
      %v1285 = vor.u32 %v1281, %v1284
      %v1286 = vsel %vm1251, %v1276, %v1285
      %v1288 = vshrl.u32 %v1220, 16
      %v1290 = vrot.slane %v1288, 3
      %v1291 = vshll.u32 %v1220, 16
      %v1293 = vrot.slane %v1291, 4
      %v1294 = vor.u32 %v1290, %v1293
      %v1295 = vsel %vm1251, %v1285, %v1294
      %v1297 = vshrl.u32 %v1221, 16
      %v1299 = vrot.slane %v1297, 3
      %v1300 = vshll.u32 %v1221, 16
      %v1302 = vrot.slane %v1300, 4
      %v1303 = vor.u32 %v1299, %v1302
      %v1304 = vsel %vm1251, %v1294, %v1303
      %v1306 = vshrl.u32 %v1222, 16
      %v1308 = vrot.slane %v1306, 3
      %v1309 = vshll.u32 %v1222, 16
      %v1311 = vrot.slane %v1309, 4
      %v1312 = vor.u32 %v1308, %v1311
      %v1313 = vsel %vm1251, %v1303, %v1312
      %v1315 = vshrl.u32 %v1223, 16
      %v1317 = vrot.slane %v1315, 3
      %v1318 = vshll.u32 %v1223, 16
      %v1320 = vrot.slane %v1318, 4
      %v1321 = vor.u32 %v1317, %v1320
      %v1322 = vsel %vm1251, %v1312, %v1321
      %v1324 = vshrl.u32 %v1224, 16
      %v1326 = vrot.slane %v1324, 3
      %v1327 = vshll.u32 %v1224, 16
      %v1329 = vrot.slane %v1327, 4
      %v1330 = vor.u32 %v1326, %v1329
      %v1331 = vsel %vm1251, %v1321, %v1330
      %v1333 = vshrl.u32 %v1225, 16
      %v1335 = vrot.slane %v1333, 3
      %v1336 = vshll.u32 %v1225, 16
      %v1338 = vrot.slane %v1336, 4
      %v1339 = vor.u32 %v1335, %v1338
      %v1340 = vsel %vm1251, %v1330, %v1339
      %v1342 = vshrl.u32 %v1226, 16
      %v1344 = vrot.slane %v1342, 3
      %v1345 = vshll.u32 %v1226, 16
      %v1347 = vrot.slane %v1345, 4
      %v1348 = vor.u32 %v1344, %v1347
      %v1349 = vsel %vm1251, %v1339, %v1348
      %v1351 = vshrl.u32 %v1227, 16
      %v1353 = vrot.slane %v1351, 3
      %v1354 = vshll.u32 %v1227, 16
      %v1356 = vrot.slane %v1354, 4
      %v1357 = vor.u32 %v1353, %v1356
      %v1358 = vsel %vm1251, %v1348, %v1357
      %v1360 = vshrl.u32 %v1228, 16
      %v1362 = vrot.slane %v1360, 3
      %v1363 = vshll.u32 %v1228, 16
      %v1365 = vrot.slane %v1363, 4
      %v1366 = vor.u32 %v1362, %v1365
      %v1367 = vsel %vm1251, %v1357, %v1366
      %v1369 = vshrl.u32 %v1229, 16
      %v1371 = vrot.slane %v1369, 3
      %v1372 = vshll.u32 %v1229, 16
      %v1374 = vrot.slane %v1372, 4
      %v1375 = vor.u32 %v1371, %v1374
      %v1376 = vsel %vm1251, %v1366, %v1375
      %v1378 = vshrl.u32 %v1230, 16
      %v1380 = vrot.slane %v1378, 3
      %v1381 = vshll.u32 %v1230, 16
      %v1383 = vrot.slane %v1381, 4
      %v1384 = vor.u32 %v1380, %v1383
      %v1385 = vsel %vm1251, %v1375, %v1384
      %v1387 = vshrl.u32 %v1231, 16
      %v1389 = vrot.slane %v1387, 3
      %v1390 = vshll.u32 %v1231, 16
      %v1392 = vrot.slane %v1390, 4
      %v1393 = vor.u32 %v1389, %v1392
      %v1394 = vsel %vm1251, %v1384, %v1393
      %v1396 = vshrl.u32 %v1232, 16
      %v1398 = vrot.slane %v1396, 3
      %v1399 = vshll.u32 %v1232, 16
      %v1401 = vrot.slane %v1399, 4
      %v1402 = vor.u32 %v1398, %v1401
      %v1403 = vsel %vm1251, %v1393, %v1402
      %v1405 = vshrl.u32 %v1233, 16
      %v1407 = vrot.slane %v1405, 3
      %v1408 = vshll.u32 %v1233, 16
      %v1410 = vrot.slane %v1408, 4
      %v1411 = vor.u32 %v1407, %v1410
      %v1412 = vsel %vm1251, %v1402, %v1411
      %v1414 = vshrl.u32 %v1234, 16
      %v1416 = vrot.slane %v1414, 3
      %v1417 = vshll.u32 %v1234, 16
      %v1419 = vrot.slane %v1417, 4
      %v1420 = vor.u32 %v1416, %v1419
      %v1421 = vsel %vm1251, %v1411, %v1420
      %v1456 = vunpack.c.l.b16 %v1235
      %v1457 = vunpack.c.l.b16 %v1236
      %v1458 = vunpack.c.l.b16 %v1237
      %v1459 = vunpack.c.l.b16 %v1238
      %v1460 = vunpack.c.l.b16 %v1239
      %v1461 = vunpack.c.l.b16 %v1240
      %v1462 = vunpack.c.l.b16 %v1241
      %v1463 = vunpack.c.l.b16 %v1242
      %v1464 = vunpack.c.l.b16 %v1243
      %v1465 = vunpack.c.l.b16 %v1244
      %v1466 = vunpack.c.l.b16 %v1245
      %v1467 = vunpack.c.l.b16 %v1246
      %v1468 = vunpack.c.l.b16 %v1247
      %v1469 = vunpack.c.l.b16 %v1248
      %v1470 = vunpack.c.l.b16 %v1249
      %v1471 = vunpack.c.l.b16 %v1250
      %v1472 = vpack.c.b16 %v1457, %v1456
      %v1473 = vpack.c.b16 %v1459, %v1458
      %v1474 = vpack.c.b16 %v1461, %v1460
      %v1475 = vpack.c.b16 %v1463, %v1462
      %v1476 = vpack.c.b16 %v1465, %v1464
      %v1477 = vpack.c.b16 %v1467, %v1466
      %v1478 = vpack.c.b16 %v1469, %v1468
      %v1479 = vpack.c.b16 %v1471, %v1470
      %1488 = vmatprep.subr.bf16.mxu0 0
      %1489 = vmatpush1.bf16.msra.mxu0 %v1472
      %1490 = vmatprep.subr.bf16.mxu0 0
      %1491 = vmatpush1.bf16.msra.mxu0 %v1473
      %1492 = vmatprep.subr.bf16.mxu0 0
      %1493 = vmatpush1.bf16.msra.mxu0 %v1474
      %1494 = vmatprep.subr.bf16.mxu0 0
      %1495 = vmatpush1.bf16.msra.mxu0 %v1475
      %1496 = vmatprep.subr.bf16.mxu0 0
      %1497 = vmatpush1.bf16.msra.mxu0 %v1476
      %1498 = vmatprep.subr.bf16.mxu0 0
      %1499 = vmatpush1.bf16.msra.mxu0 %v1477
      %1500 = vmatprep.subr.bf16.mxu0 0
      %1501 = vmatpush1.bf16.msra.mxu0 %v1478
      %1502 = vmatprep.subr.bf16.mxu0 0
      %1503 = vmatpush1.bf16.msra.mxu0 %v1479
      %1504 = vmatprep.subr.bf16.mxu0 0
      %1505 = vmatpush1.bf16.msra.mxu0 0
      %1506 = vmatprep.subr.bf16.mxu0 0
      %1507 = vmatpush1.bf16.msra.mxu0 0
      %1508 = vmatprep.subr.bf16.mxu0 0
      %1509 = vmatpush1.bf16.msra.mxu0 0
      %1510 = vmatprep.subr.bf16.mxu0 0
      %1511 = vmatpush1.bf16.msra.mxu0 0
      %1512 = vmatprep.subr.bf16.mxu0 0
      %1513 = vmatpush1.bf16.msra.mxu0 0
      %1514 = vmatprep.subr.bf16.mxu0 0
      %1515 = vmatpush1.bf16.msra.mxu0 0
      %1516 = vmatprep.subr.bf16.mxu0 0
      %1517 = vmatpush1.bf16.msra.mxu0 0
      %1518 = vmatprep.subr.bf16.mxu0 0
      %1519 = vmatpush1.bf16.msra.mxu0 0
      %1520 = vmatprep.mubr.bf16.mxu0 0
      %1521 = vmatmul.mubr.bf16.gmra.mrb[0].mxu0 %v1268
      %v1522 = vpop.f32.mrb[0].mxu0
      %v1523 = vadd.f32 0.0, %v1522
      %v1524 = vpop.f32.mrb[0].mxu0
      %v1525 = vpop.f32.mrb[0].mxu0
      %v1526 = vadd.f32 0.0, %v1525
      %v1527 = vpop.f32.mrb[0].mxu0
      %1528 = vmatprep.mubr.bf16.mxu0 0
      %1529 = vmatmul.mubr.bf16.gmra.mrb[0].mxu0 %v1277
      %v1530 = vpop.f32.mrb[0].mxu0
      %v1531 = vadd.f32 0.0, %v1530
      %v1532 = vpop.f32.mrb[0].mxu0
      %v1533 = vpop.f32.mrb[0].mxu0
      %v1534 = vadd.f32 0.0, %v1533
      %v1535 = vpop.f32.mrb[0].mxu0
      %1536 = vmatprep.mubr.bf16.mxu0 0
      %1537 = vmatmul.mubr.bf16.gmra.mrb[0].mxu0 %v1286
      %v1538 = vpop.f32.mrb[0].mxu0
      %v1539 = vadd.f32 0.0, %v1538
      %v1540 = vpop.f32.mrb[0].mxu0
      %v1541 = vpop.f32.mrb[0].mxu0
      %v1542 = vadd.f32 0.0, %v1541
      %v1543 = vpop.f32.mrb[0].mxu0
      %1544 = vmatprep.mubr.bf16.mxu0 0
      %1545 = vmatmul.mubr.bf16.gmra.mrb[0].mxu0 %v1295
      %v1546 = vpop.f32.mrb[0].mxu0
      %v1547 = vadd.f32 0.0, %v1546
      %v1548 = vpop.f32.mrb[0].mxu0
      %v1549 = vpop.f32.mrb[0].mxu0
      %v1550 = vadd.f32 0.0, %v1549
      %v1551 = vpop.f32.mrb[0].mxu0
      %1552 = vmatprep.mubr.bf16.mxu0 0
      %1553 = vmatmul.mubr.bf16.gmra.mrb[0].mxu0 %v1304
      %v1554 = vpop.f32.mrb[0].mxu0
      %v1555 = vadd.f32 0.0, %v1554
      %v1556 = vpop.f32.mrb[0].mxu0
      %v1557 = vpop.f32.mrb[0].mxu0
      %v1558 = vadd.f32 0.0, %v1557
      %v1559 = vpop.f32.mrb[0].mxu0
      %1560 = vmatprep.mubr.bf16.mxu0 0
      %1561 = vmatmul.mubr.bf16.gmra.mrb[0].mxu0 %v1313
      %v1562 = vpop.f32.mrb[0].mxu0
      %v1563 = vadd.f32 0.0, %v1562
      %v1564 = vpop.f32.mrb[0].mxu0
      %v1565 = vpop.f32.mrb[0].mxu0
      %v1566 = vadd.f32 0.0, %v1565
      %v1567 = vpop.f32.mrb[0].mxu0
      %1568 = vmatprep.mubr.bf16.mxu0 0
      %1569 = vmatmul.mubr.bf16.gmra.mrb[0].mxu0 %v1322
      %v1570 = vpop.f32.mrb[0].mxu0
      %v1571 = vadd.f32 0.0, %v1570
      %v1572 = vpop.f32.mrb[0].mxu0
      %v1573 = vpop.f32.mrb[0].mxu0
      %v1574 = vadd.f32 0.0, %v1573
      %v1575 = vpop.f32.mrb[0].mxu0
      %1576 = vmatprep.mubr.bf16.mxu0 0
      %1577 = vmatmul.mubr.bf16.gmra.mrb[0].mxu0 %v1331
      %v1578 = vpop.f32.mrb[0].mxu0
      %v1579 = vadd.f32 0.0, %v1578
      %v1580 = vpop.f32.mrb[0].mxu0
      %v1581 = vpop.f32.mrb[0].mxu0
      %v1582 = vadd.f32 0.0, %v1581
      %v1583 = vpop.f32.mrb[0].mxu0
      %1584 = vmatprep.mubr.bf16.mxu0 0
      %1585 = vmatmul.mubr.bf16.gmra.mrb[0].mxu0 %v1340
      %v1586 = vpop.f32.mrb[0].mxu0
      %v1587 = vadd.f32 0.0, %v1586
      %v1588 = vpop.f32.mrb[0].mxu0
      %v1589 = vpop.f32.mrb[0].mxu0
      %v1590 = vadd.f32 0.0, %v1589
      %v1591 = vpop.f32.mrb[0].mxu0
      %1592 = vmatprep.mubr.bf16.mxu0 0
      %1593 = vmatmul.mubr.bf16.gmra.mrb[0].mxu0 %v1349
      %v1594 = vpop.f32.mrb[0].mxu0
      %v1595 = vadd.f32 0.0, %v1594
      %v1596 = vpop.f32.mrb[0].mxu0
      %v1597 = vpop.f32.mrb[0].mxu0
      %v1598 = vadd.f32 0.0, %v1597
      %v1599 = vpop.f32.mrb[0].mxu0
      %1600 = vmatprep.mubr.bf16.mxu0 0
      %1601 = vmatmul.mubr.bf16.gmra.mrb[0].mxu0 %v1358
      %v1602 = vpop.f32.mrb[0].mxu0
      %v1603 = vadd.f32 0.0, %v1602
      %v1604 = vpop.f32.mrb[0].mxu0
      %v1605 = vpop.f32.mrb[0].mxu0
      %v1606 = vadd.f32 0.0, %v1605
      %v1607 = vpop.f32.mrb[0].mxu0
      %1608 = vmatprep.mubr.bf16.mxu0 0
      %1609 = vmatmul.mubr.bf16.gmra.mrb[0].mxu0 %v1367
      %v1610 = vpop.f32.mrb[0].mxu0
      %v1611 = vadd.f32 0.0, %v1610
      %v1612 = vpop.f32.mrb[0].mxu0
      %v1613 = vpop.f32.mrb[0].mxu0
      %v1614 = vadd.f32 0.0, %v1613
      %v1615 = vpop.f32.mrb[0].mxu0
      %1616 = vmatprep.mubr.bf16.mxu0 0
      %1617 = vmatmul.mubr.bf16.gmra.mrb[0].mxu0 %v1376
      %v1618 = vpop.f32.mrb[0].mxu0
      %v1619 = vadd.f32 0.0, %v1618
      %v1620 = vpop.f32.mrb[0].mxu0
      %v1621 = vpop.f32.mrb[0].mxu0
      %v1622 = vadd.f32 0.0, %v1621
      %v1623 = vpop.f32.mrb[0].mxu0
      %1624 = vmatprep.mubr.bf16.mxu0 0
      %1625 = vmatmul.mubr.bf16.gmra.mrb[0].mxu0 %v1385
      %v1626 = vpop.f32.mrb[0].mxu0
      %v1627 = vadd.f32 0.0, %v1626
      %v1628 = vpop.f32.mrb[0].mxu0
      %v1629 = vpop.f32.mrb[0].mxu0
      %v1630 = vadd.f32 0.0, %v1629
      %v1631 = vpop.f32.mrb[0].mxu0
      %1632 = vmatprep.mubr.bf16.mxu0 0
      %1633 = vmatmul.mubr.bf16.gmra.mrb[0].mxu0 %v1394
      %v1634 = vpop.f32.mrb[0].mxu0
      %v1635 = vadd.f32 0.0, %v1634
      %v1636 = vpop.f32.mrb[0].mxu0
      %v1637 = vpop.f32.mrb[0].mxu0
      %v1638 = vadd.f32 0.0, %v1637
      %v1639 = vpop.f32.mrb[0].mxu0
      %1640 = vmatprep.mubr.bf16.mxu0 0
      %1641 = vmatmul.mubr.bf16.gmra.mrb[0].mxu0 %v1403
      %v1642 = vpop.f32.mrb[0].mxu0
      %v1643 = vadd.f32 0.0, %v1642
      %v1644 = vpop.f32.mrb[0].mxu0
      %v1645 = vpop.f32.mrb[0].mxu0
      %v1646 = vadd.f32 0.0, %v1645
      %v1647 = vpop.f32.mrb[0].mxu0
      %1648 = vmatprep.mubr.bf16.mxu0 0
      %1649 = vmatmul.mubr.bf16.gmra.mrb[0].mxu0 %v1412
      %v1650 = vpop.f32.mrb[0].mxu0
      %v1651 = vadd.f32 0.0, %v1650
      %v1652 = vpop.f32.mrb[0].mxu0
      %v1653 = vpop.f32.mrb[0].mxu0
      %v1654 = vadd.f32 0.0, %v1653
      %v1655 = vpop.f32.mrb[0].mxu0
      %1656 = vmatprep.mubr.bf16.mxu0 0
      %1657 = vmatmul.mubr.bf16.gmra.mrb[0].mxu0 %v1421
      %v1658 = vpop.f32.mrb[0].mxu0
      %v1659 = vadd.f32 0.0, %v1658
      %v1660 = vpop.f32.mrb[0].mxu0
      %v1661 = vpop.f32.mrb[0].mxu0
      %v1662 = vadd.f32 0.0, %v1661
      %v1663 = vpop.f32.mrb[0].mxu0
      %1664 = vdwg.mxu0
      %v1665 = vadd.f32 %v1180, %v1523
      %v1666 = vadd.f32 %v1181, %v1526
      %v1667 = vadd.f32 %v1182, %v1531
      %v1668 = vadd.f32 %v1183, %v1534
      %v1669 = vadd.f32 %v1184, %v1539
      %v1670 = vadd.f32 %v1185, %v1542
      %v1671 = vadd.f32 %v1186, %v1547
      %v1672 = vadd.f32 %v1187, %v1550
      %v1673 = vadd.f32 %v1188, %v1555
      %v1674 = vadd.f32 %v1189, %v1558
      %v1675 = vadd.f32 %v1190, %v1563
      %v1676 = vadd.f32 %v1191, %v1566
      %v1677 = vadd.f32 %v1192, %v1571
      %v1678 = vadd.f32 %v1193, %v1574
      %v1679 = vadd.f32 %v1194, %v1579
      %v1680 = vadd.f32 %v1195, %v1582
      %v1681 = vadd.f32 %v1196, %v1587
      %v1682 = vadd.f32 %v1197, %v1590
      %v1683 = vadd.f32 %v1198, %v1595
      %v1684 = vadd.f32 %v1199, %v1598
      %v1685 = vadd.f32 %v1200, %v1603
      %v1686 = vadd.f32 %v1201, %v1606
      %v1687 = vadd.f32 %v1202, %v1611
      %v1688 = vadd.f32 %v1203, %v1614
      %v1689 = vadd.f32 %v1204, %v1619
      %v1690 = vadd.f32 %v1205, %v1622
      %v1691 = vadd.f32 %v1206, %v1627
      %v1692 = vadd.f32 %v1207, %v1630
      %v1693 = vadd.f32 %v1208, %v1635
      %v1694 = vadd.f32 %v1209, %v1638
      %v1695 = vadd.f32 %v1210, %v1643
      %v1696 = vadd.f32 %v1211, %v1646
      %v1697 = vadd.f32 %v1212, %v1651
      %v1698 = vadd.f32 %v1213, %v1654
      %v1699 = vadd.f32 %v1214, %v1659
      %v1700 = vadd.f32 %v1215, %v1662
      %v1701 = vld [vmem:[#allocation2 + $0x10] sm:$0xf8]
      %v1702 = vld [vmem:[#allocation2 + $0x18] sm:$0xf8]
      %v1703 = vld [vmem:[#allocation2 + $0x20] sm:$0xff]
      %v1704 = vld [vmem:[#allocation2 + $0x28] sm:$0xff]
      %v1705 = vld [vmem:[#allocation2 + $0x30] sm:$0xff]
      %v1706 = vld [vmem:[#allocation2 + $0x38] sm:$0xff]
      %v1707 = vld [vmem:[#allocation2 + $0x40] sm:$0xff]
      %v1708 = vld [vmem:[#allocation2 + $0x48] sm:$0xff]
      %v1709 = vld [vmem:[#allocation2 + $0x50] sm:$0xff]
      %v1710 = vld [vmem:[#allocation2 + $0x58] sm:$0xff]
      %v1711 = vld [vmem:[#allocation2 + $0x60] sm:$0xff]
      %v1712 = vld [vmem:[#allocation2 + $0x68] sm:$0xff]
      %v1713 = vld [vmem:[#allocation2 + $0x70] sm:$0xff]
      %v1714 = vld [vmem:[#allocation2 + $0x78] sm:$0xff]
      %v1715 = vld [vmem:[#allocation2 + $0x80] sm:$0xff]
      %v1716 = vld [vmem:[#allocation2 + $0x88] sm:$0xff]
      %v1717 = vld [vmem:[#allocation2 + $0x90] sm:$0xff]
      %v1718 = vld [vmem:[#allocation2 + $0x98] sm:$0xff]
      %v1719 = vld [vmem:[#allocation2 + $0xa0] sm:$0xff]
      %v1720 = vld [vmem:[#allocation2 + $0xa8] sm:$0xff]
      %v1721 = vld [vmem:[#allocation2 + $0xb0] sm:$0xff]
      %v1722 = vld [vmem:[#allocation2 + $0xb8] sm:$0xff]
      %v1723 = vld [vmem:[#allocation2 + $0xc0] sm:$0xff]
      %v1724 = vld [vmem:[#allocation2 + $0xc8] sm:$0xff]
      %v1725 = vld [vmem:[#allocation2 + $0xd0] sm:$0xff]
      %v1726 = vld [vmem:[#allocation2 + $0xd8] sm:$0xff]
      %v1727 = vld [vmem:[#allocation2 + $0xe0] sm:$0xff]
      %v1728 = vld [vmem:[#allocation2 + $0xe8] sm:$0xff]
      %v1729 = vld [vmem:[#allocation2 + $0xf0] sm:$0xff]
      %v1730 = vld [vmem:[#allocation2 + $0xf8] sm:$0xff]
      %v1731 = vld [vmem:[#allocation2 + $0x100] sm:$0xff]
      %v1732 = vld [vmem:[#allocation2 + $0x108] sm:$0xff]
      %v1733 = vld [vmem:[#allocation2 + $0x110] sm:$0xff]
      %v1734 = vld [vmem:[#allocation2 + $0x118] sm:$0xff]
      %v1735 = vld [vmem:[#allocation2 + $0x120] sm:$0xff]
      %v1736 = vld [vmem:[#allocation2 + $0x128] sm:$0xff]
      %v1737 = vld [vmem:[#allocation2 + $0x130] sm:$0xf]
      %v1738 = vld [vmem:[#allocation2 + $0x138] sm:$0xf]
      %s1739 = scalar_lea.vmem %s1, 128
      %v1740 = vld [vmem:[%s1739] sm:$0xf]
      %v1741 = vld [vmem:[%s1739 + $0x4] sm:$0xf]
      %v1742 = vld [vmem:[%s1739 + $0x8] sm:$0xf]
      %v1743 = vld [vmem:[%s1739 + $0xc] sm:$0xf]
      %v1744 = vld [vmem:[%s1739 + $0x10] sm:$0xf]
      %v1745 = vld [vmem:[%s1739 + $0x14] sm:$0xf]
      %v1746 = vld [vmem:[%s1739 + $0x18] sm:$0xf]
      %v1747 = vld [vmem:[%s1739 + $0x1c] sm:$0xf]
      %v1748 = vld [vmem:[%s1739 + $0x20] sm:$0xf]
      %v1749 = vld [vmem:[%s1739 + $0x24] sm:$0xf]
      %v1750 = vld [vmem:[%s1739 + $0x28] sm:$0xf]
      %v1751 = vld [vmem:[%s1739 + $0x2c] sm:$0xf]
      %v1752 = vld [vmem:[%s1739 + $0x30] sm:$0xf]
      %v1753 = vld [vmem:[%s1739 + $0x34] sm:$0xf]
      %v1754 = vld [vmem:[%s1739 + $0x38] sm:$0xf]
      %v1755 = vld [vmem:[%s1739 + $0x3c] sm:$0xf]
      %v1756 = vld [vmem:[%s1739 + $0x40] sm:$0xf]
      %v1757 = vld [vmem:[%s1739 + $0x44] sm:$0xf]
      %v1758 = vld [vmem:[%s1739 + $0x48] sm:$0xf]
      %v1759 = vld [vmem:[%s1739 + $0x4c] sm:$0xf]
      %v1760 = vld [vmem:[%s1739 + $0x50] sm:$0xf]
      %v1761 = vld [vmem:[%s1739 + $0x54] sm:$0xf]
      %v1762 = vld [vmem:[%s1739 + $0x58] sm:$0xf]
      %v1763 = vld [vmem:[%s1739 + $0x5c] sm:$0xf]
      %v1764 = vld [vmem:[%s1739 + $0x60] sm:$0xf]
      %v1765 = vld [vmem:[%s1739 + $0x64] sm:$0xf]
      %v1766 = vld [vmem:[%s1739 + $0x68] sm:$0xf]
      %v1767 = vld [vmem:[%s1739 + $0x6c] sm:$0xf]
      %v1768 = vld [vmem:[%s1739 + $0x70] sm:$0xf]
      %v1769 = vld [vmem:[%s1739 + $0x74] sm:$0xf]
      %v1770 = vld [vmem:[%s1739 + $0x78] sm:$0xf]
      %v1771 = vld [vmem:[%s1739 + $0x7c] sm:$0xf]
      %v1773 = vshrl.u32 %v1701, 16
      %v1775 = vrot.slane %v1773, 3
      %v1776 = vshll.u32 %v1701, 16
      %v1778 = vrot.slane %v1776, 4
      %v1779 = vor.u32 %v1775, %v1778
      %v1781 = vshrl.u32 %v1703, 16
      %v1783 = vrot.slane %v1781, 3
      %v1784 = vshll.u32 %v1703, 16
      %v1786 = vrot.slane %v1784, 4
      %v1787 = vor.u32 %v1783, %v1786
      %v1788 = vsel %vm1251, %v1779, %v1787
      %v1790 = vshrl.u32 %v1702, 16
      %v1792 = vrot.slane %v1790, 3
      %v1793 = vshll.u32 %v1702, 16
      %v1795 = vrot.slane %v1793, 4
      %v1796 = vor.u32 %v1792, %v1795
      %v1798 = vshrl.u32 %v1704, 16
      %v1800 = vrot.slane %v1798, 3
      %v1801 = vshll.u32 %v1704, 16
      %v1803 = vrot.slane %v1801, 4
      %v1804 = vor.u32 %v1800, %v1803
      %v1805 = vsel %vm1251, %v1796, %v1804
      %v1807 = vshrl.u32 %v1705, 16
      %v1809 = vrot.slane %v1807, 3
      %v1810 = vshll.u32 %v1705, 16
      %v1812 = vrot.slane %v1810, 4
      %v1813 = vor.u32 %v1809, %v1812
      %v1814 = vsel %vm1251, %v1787, %v1813
      %v1816 = vshrl.u32 %v1706, 16
      %v1818 = vrot.slane %v1816, 3
      %v1819 = vshll.u32 %v1706, 16
      %v1821 = vrot.slane %v1819, 4
      %v1822 = vor.u32 %v1818, %v1821
      %v1823 = vsel %vm1251, %v1804, %v1822
      %v1825 = vshrl.u32 %v1707, 16
      %v1827 = vrot.slane %v1825, 3
      %v1828 = vshll.u32 %v1707, 16
      %v1830 = vrot.slane %v1828, 4
      %v1831 = vor.u32 %v1827, %v1830
      %v1832 = vsel %vm1251, %v1813, %v1831
      %v1834 = vshrl.u32 %v1708, 16
      %v1836 = vrot.slane %v1834, 3
      %v1837 = vshll.u32 %v1708, 16
      %v1839 = vrot.slane %v1837, 4
      %v1840 = vor.u32 %v1836, %v1839
      %v1841 = vsel %vm1251, %v1822, %v1840
      %v1843 = vshrl.u32 %v1709, 16
      %v1845 = vrot.slane %v1843, 3
      %v1846 = vshll.u32 %v1709, 16
      %v1848 = vrot.slane %v1846, 4
      %v1849 = vor.u32 %v1845, %v1848
      %v1850 = vsel %vm1251, %v1831, %v1849
      %v1852 = vshrl.u32 %v1710, 16
      %v1854 = vrot.slane %v1852, 3
      %v1855 = vshll.u32 %v1710, 16
      %v1857 = vrot.slane %v1855, 4
      %v1858 = vor.u32 %v1854, %v1857
      %v1859 = vsel %vm1251, %v1840, %v1858
      %v1861 = vshrl.u32 %v1711, 16
      %v1863 = vrot.slane %v1861, 3
      %v1864 = vshll.u32 %v1711, 16
      %v1866 = vrot.slane %v1864, 4
      %v1867 = vor.u32 %v1863, %v1866
      %v1868 = vsel %vm1251, %v1849, %v1867
      %v1870 = vshrl.u32 %v1712, 16
      %v1872 = vrot.slane %v1870, 3
      %v1873 = vshll.u32 %v1712, 16
      %v1875 = vrot.slane %v1873, 4
      %v1876 = vor.u32 %v1872, %v1875
      %v1877 = vsel %vm1251, %v1858, %v1876
      %v1879 = vshrl.u32 %v1713, 16
      %v1881 = vrot.slane %v1879, 3
      %v1882 = vshll.u32 %v1713, 16
      %v1884 = vrot.slane %v1882, 4
      %v1885 = vor.u32 %v1881, %v1884
      %v1886 = vsel %vm1251, %v1867, %v1885
      %v1888 = vshrl.u32 %v1714, 16
      %v1890 = vrot.slane %v1888, 3
      %v1891 = vshll.u32 %v1714, 16
      %v1893 = vrot.slane %v1891, 4
      %v1894 = vor.u32 %v1890, %v1893
      %v1895 = vsel %vm1251, %v1876, %v1894
      %v1897 = vshrl.u32 %v1715, 16
      %v1899 = vrot.slane %v1897, 3
      %v1900 = vshll.u32 %v1715, 16
      %v1902 = vrot.slane %v1900, 4
      %v1903 = vor.u32 %v1899, %v1902
      %v1904 = vsel %vm1251, %v1885, %v1903
      %v1906 = vshrl.u32 %v1716, 16
      %v1908 = vrot.slane %v1906, 3
      %v1909 = vshll.u32 %v1716, 16
      %v1911 = vrot.slane %v1909, 4
      %v1912 = vor.u32 %v1908, %v1911
      %v1913 = vsel %vm1251, %v1894, %v1912
      %v1915 = vshrl.u32 %v1717, 16
      %v1917 = vrot.slane %v1915, 3
      %v1918 = vshll.u32 %v1717, 16
      %v1920 = vrot.slane %v1918, 4
      %v1921 = vor.u32 %v1917, %v1920
      %v1922 = vsel %vm1251, %v1903, %v1921
      %v1924 = vshrl.u32 %v1718, 16
      %v1926 = vrot.slane %v1924, 3
      %v1927 = vshll.u32 %v1718, 16
      %v1929 = vrot.slane %v1927, 4
      %v1930 = vor.u32 %v1926, %v1929
      %v1931 = vsel %vm1251, %v1912, %v1930
      %v1933 = vshrl.u32 %v1719, 16
      %v1935 = vrot.slane %v1933, 3
      %v1936 = vshll.u32 %v1719, 16
      %v1938 = vrot.slane %v1936, 4
      %v1939 = vor.u32 %v1935, %v1938
      %v1940 = vsel %vm1251, %v1921, %v1939
      %v1942 = vshrl.u32 %v1720, 16
      %v1944 = vrot.slane %v1942, 3
      %v1945 = vshll.u32 %v1720, 16
      %v1947 = vrot.slane %v1945, 4
      %v1948 = vor.u32 %v1944, %v1947
      %v1949 = vsel %vm1251, %v1930, %v1948
      %v1951 = vshrl.u32 %v1721, 16
      %v1953 = vrot.slane %v1951, 3
      %v1954 = vshll.u32 %v1721, 16
      %v1956 = vrot.slane %v1954, 4
      %v1957 = vor.u32 %v1953, %v1956
      %v1958 = vsel %vm1251, %v1939, %v1957
      %v1960 = vshrl.u32 %v1722, 16
      %v1962 = vrot.slane %v1960, 3
      %v1963 = vshll.u32 %v1722, 16
      %v1965 = vrot.slane %v1963, 4
      %v1966 = vor.u32 %v1962, %v1965
      %v1967 = vsel %vm1251, %v1948, %v1966
      %v1969 = vshrl.u32 %v1723, 16
      %v1971 = vrot.slane %v1969, 3
      %v1972 = vshll.u32 %v1723, 16
      %v1974 = vrot.slane %v1972, 4
      %v1975 = vor.u32 %v1971, %v1974
      %v1976 = vsel %vm1251, %v1957, %v1975
      %v1978 = vshrl.u32 %v1724, 16
      %v1980 = vrot.slane %v1978, 3
      %v1981 = vshll.u32 %v1724, 16
      %v1983 = vrot.slane %v1981, 4
      %v1984 = vor.u32 %v1980, %v1983
      %v1985 = vsel %vm1251, %v1966, %v1984
      %v1987 = vshrl.u32 %v1725, 16
      %v1989 = vrot.slane %v1987, 3
      %v1990 = vshll.u32 %v1725, 16
      %v1992 = vrot.slane %v1990, 4
      %v1993 = vor.u32 %v1989, %v1992
      %v1994 = vsel %vm1251, %v1975, %v1993
      %v1996 = vshrl.u32 %v1726, 16
      %v1998 = vrot.slane %v1996, 3
      %v1999 = vshll.u32 %v1726, 16
      %v2001 = vrot.slane %v1999, 4
      %v2002 = vor.u32 %v1998, %v2001
      %v2003 = vsel %vm1251, %v1984, %v2002
      %v2005 = vshrl.u32 %v1727, 16
      %v2007 = vrot.slane %v2005, 3
      %v2008 = vshll.u32 %v1727, 16
      %v2010 = vrot.slane %v2008, 4
      %v2011 = vor.u32 %v2007, %v2010
      %v2012 = vsel %vm1251, %v1993, %v2011
      %v2014 = vshrl.u32 %v1728, 16
      %v2016 = vrot.slane %v2014, 3
      %v2017 = vshll.u32 %v1728, 16
      %v2019 = vrot.slane %v2017, 4
      %v2020 = vor.u32 %v2016, %v2019
      %v2021 = vsel %vm1251, %v2002, %v2020
      %v2023 = vshrl.u32 %v1729, 16
      %v2025 = vrot.slane %v2023, 3
      %v2026 = vshll.u32 %v1729, 16
      %v2028 = vrot.slane %v2026, 4
      %v2029 = vor.u32 %v2025, %v2028
      %v2030 = vsel %vm1251, %v2011, %v2029
      %v2032 = vshrl.u32 %v1730, 16
      %v2034 = vrot.slane %v2032, 3
      %v2035 = vshll.u32 %v1730, 16
      %v2037 = vrot.slane %v2035, 4
      %v2038 = vor.u32 %v2034, %v2037
      %v2039 = vsel %vm1251, %v2020, %v2038
      %v2041 = vshrl.u32 %v1731, 16
      %v2043 = vrot.slane %v2041, 3
      %v2044 = vshll.u32 %v1731, 16
      %v2046 = vrot.slane %v2044, 4
      %v2047 = vor.u32 %v2043, %v2046
      %v2048 = vsel %vm1251, %v2029, %v2047
      %v2050 = vshrl.u32 %v1732, 16
      %v2052 = vrot.slane %v2050, 3
      %v2053 = vshll.u32 %v1732, 16
      %v2055 = vrot.slane %v2053, 4
      %v2056 = vor.u32 %v2052, %v2055
      %v2057 = vsel %vm1251, %v2038, %v2056
      %v2059 = vshrl.u32 %v1733, 16
      %v2061 = vrot.slane %v2059, 3
      %v2062 = vshll.u32 %v1733, 16
      %v2064 = vrot.slane %v2062, 4
      %v2065 = vor.u32 %v2061, %v2064
      %v2066 = vsel %vm1251, %v2047, %v2065
      %v2068 = vshrl.u32 %v1734, 16
      %v2070 = vrot.slane %v2068, 3
      %v2071 = vshll.u32 %v1734, 16
      %v2073 = vrot.slane %v2071, 4
      %v2074 = vor.u32 %v2070, %v2073
      %v2075 = vsel %vm1251, %v2056, %v2074
      %v2077 = vshrl.u32 %v1735, 16
      %v2079 = vrot.slane %v2077, 3
      %v2080 = vshll.u32 %v1735, 16
      %v2082 = vrot.slane %v2080, 4
      %v2083 = vor.u32 %v2079, %v2082
      %v2084 = vsel %vm1251, %v2065, %v2083
      %v2086 = vshrl.u32 %v1736, 16
      %v2088 = vrot.slane %v2086, 3
      %v2089 = vshll.u32 %v1736, 16
      %v2091 = vrot.slane %v2089, 4
      %v2092 = vor.u32 %v2088, %v2091
      %v2093 = vsel %vm1251, %v2074, %v2092
      %v2095 = vshrl.u32 %v1737, 16
      %v2097 = vrot.slane %v2095, 3
      %v2098 = vshll.u32 %v1737, 16
      %v2100 = vrot.slane %v2098, 4
      %v2101 = vor.u32 %v2097, %v2100
      %v2102 = vsel %vm1251, %v2083, %v2101
      %v2104 = vshrl.u32 %v1738, 16
      %v2106 = vrot.slane %v2104, 3
      %v2107 = vshll.u32 %v1738, 16
      %v2109 = vrot.slane %v2107, 4
      %v2110 = vor.u32 %v2106, %v2109
      %v2111 = vsel %vm1251, %v2092, %v2110
      %v2180 = vunpack.c.l.b16 %v1740
      %v2181 = vunpack.c.l.b16 %v1741
      %v2182 = vunpack.c.l.b16 %v1742
      %v2183 = vunpack.c.l.b16 %v1743
      %v2184 = vunpack.c.l.b16 %v1744
      %v2185 = vunpack.c.l.b16 %v1745
      %v2186 = vunpack.c.l.b16 %v1746
      %v2187 = vunpack.c.l.b16 %v1747
      %v2188 = vunpack.c.l.b16 %v1748
      %v2189 = vunpack.c.l.b16 %v1749
      %v2190 = vunpack.c.l.b16 %v1750
      %v2191 = vunpack.c.l.b16 %v1751
      %v2192 = vunpack.c.l.b16 %v1752
      %v2193 = vunpack.c.l.b16 %v1753
      %v2194 = vunpack.c.l.b16 %v1754
      %v2195 = vunpack.c.l.b16 %v1755
      %v2196 = vunpack.c.l.b16 %v1756
      %v2197 = vunpack.c.l.b16 %v1757
      %v2198 = vunpack.c.l.b16 %v1758
      %v2199 = vunpack.c.l.b16 %v1759
      %v2200 = vunpack.c.l.b16 %v1760
      %v2201 = vunpack.c.l.b16 %v1761
      %v2202 = vunpack.c.l.b16 %v1762
      %v2203 = vunpack.c.l.b16 %v1763
      %v2204 = vunpack.c.l.b16 %v1764
      %v2205 = vunpack.c.l.b16 %v1765
      %v2206 = vunpack.c.l.b16 %v1766
      %v2207 = vunpack.c.l.b16 %v1767
      %v2208 = vunpack.c.l.b16 %v1768
      %v2209 = vunpack.c.l.b16 %v1769
      %v2210 = vunpack.c.l.b16 %v1770
      %v2211 = vunpack.c.l.b16 %v1771
      %v2212 = vpack.c.b16 %v2181, %v2180
      %v2213 = vpack.c.b16 %v2183, %v2182
      %v2214 = vpack.c.b16 %v2185, %v2184
      %v2215 = vpack.c.b16 %v2187, %v2186
      %v2216 = vpack.c.b16 %v2189, %v2188
      %v2217 = vpack.c.b16 %v2191, %v2190
      %v2218 = vpack.c.b16 %v2193, %v2192
      %v2219 = vpack.c.b16 %v2195, %v2194
      %v2220 = vpack.c.b16 %v2197, %v2196
      %v2221 = vpack.c.b16 %v2199, %v2198
      %v2222 = vpack.c.b16 %v2201, %v2200
      %v2223 = vpack.c.b16 %v2203, %v2202
      %v2224 = vpack.c.b16 %v2205, %v2204
      %v2225 = vpack.c.b16 %v2207, %v2206
      %v2226 = vpack.c.b16 %v2209, %v2208
      %v2227 = vpack.c.b16 %v2211, %v2210
      %2244 = vmatprep.subr.bf16.mxu0 0
      %2245 = vmatpush1.bf16.msra.mxu0 %v2212
      %2246 = vmatprep.subr.bf16.mxu0 0
      %2247 = vmatpush1.bf16.msra.mxu0 %v2213
      %2248 = vmatprep.subr.bf16.mxu0 0
      %2249 = vmatpush1.bf16.msra.mxu0 %v2214
      %2250 = vmatprep.subr.bf16.mxu0 0
      %2251 = vmatpush1.bf16.msra.mxu0 %v2215
      %2252 = vmatprep.subr.bf16.mxu0 0
      %2253 = vmatpush1.bf16.msra.mxu0 %v2216
      %2254 = vmatprep.subr.bf16.mxu0 0
      %2255 = vmatpush1.bf16.msra.mxu0 %v2217
      %2256 = vmatprep.subr.bf16.mxu0 0
      %2257 = vmatpush1.bf16.msra.mxu0 %v2218
      %2258 = vmatprep.subr.bf16.mxu0 0
      %2259 = vmatpush1.bf16.msra.mxu0 %v2219
      %2260 = vmatprep.subr.bf16.mxu0 0
      %2261 = vmatpush1.bf16.msra.mxu0 %v2220
      %2262 = vmatprep.subr.bf16.mxu0 0
      %2263 = vmatpush1.bf16.msra.mxu0 %v2221
      %2264 = vmatprep.subr.bf16.mxu0 0
      %2265 = vmatpush1.bf16.msra.mxu0 %v2222
      %2266 = vmatprep.subr.bf16.mxu0 0
      %2267 = vmatpush1.bf16.msra.mxu0 %v2223
      %2268 = vmatprep.subr.bf16.mxu0 0
      %2269 = vmatpush1.bf16.msra.mxu0 %v2224
      %2270 = vmatprep.subr.bf16.mxu0 0
      %2271 = vmatpush1.bf16.msra.mxu0 %v2225
      %2272 = vmatprep.subr.bf16.mxu0 0
      %2273 = vmatpush1.bf16.msra.mxu0 %v2226
      %2274 = vmatprep.subr.bf16.mxu0 0
      %2275 = vmatpush1.bf16.msra.mxu0 %v2227
      %2276 = vmatprep.mubr.bf16.mxu0 %v1805
      %2277 = vmatmul.mubr.bf16.gmra.mrb[0].mxu0 %v1788
      %v2278 = vpop.f32.mrb[0].mxu0
      %v2279 = vadd.f32 0.0, %v2278
      %v2280 = vpop.f32.mrb[0].mxu0
      %v2281 = vpop.f32.mrb[0].mxu0
      %v2282 = vadd.f32 0.0, %v2281
      %v2283 = vpop.f32.mrb[0].mxu0
      %2284 = vmatprep.mubr.bf16.mxu0 %v1823
      %2285 = vmatmul.mubr.bf16.gmra.mrb[0].mxu0 %v1814
      %v2286 = vpop.f32.mrb[0].mxu0
      %v2287 = vadd.f32 0.0, %v2286
      %v2288 = vpop.f32.mrb[0].mxu0
      %v2289 = vpop.f32.mrb[0].mxu0
      %v2290 = vadd.f32 0.0, %v2289
      %v2291 = vpop.f32.mrb[0].mxu0
      %2292 = vmatprep.mubr.bf16.mxu0 %v1841
      %2293 = vmatmul.mubr.bf16.gmra.mrb[0].mxu0 %v1832
      %v2294 = vpop.f32.mrb[0].mxu0
      %v2295 = vadd.f32 0.0, %v2294
      %v2296 = vpop.f32.mrb[0].mxu0
      %v2297 = vpop.f32.mrb[0].mxu0
      %v2298 = vadd.f32 0.0, %v2297
      %v2299 = vpop.f32.mrb[0].mxu0
      %2300 = vmatprep.mubr.bf16.mxu0 %v1859
      %2301 = vmatmul.mubr.bf16.gmra.mrb[0].mxu0 %v1850
      %v2302 = vpop.f32.mrb[0].mxu0
      %v2303 = vadd.f32 0.0, %v2302
      %v2304 = vpop.f32.mrb[0].mxu0
      %v2305 = vpop.f32.mrb[0].mxu0
      %v2306 = vadd.f32 0.0, %v2305
      %v2307 = vpop.f32.mrb[0].mxu0
      %2308 = vmatprep.mubr.bf16.mxu0 %v1877
      %2309 = vmatmul.mubr.bf16.gmra.mrb[0].mxu0 %v1868
      %v2310 = vpop.f32.mrb[0].mxu0
      %v2311 = vadd.f32 0.0, %v2310
      %v2312 = vpop.f32.mrb[0].mxu0
      %v2313 = vpop.f32.mrb[0].mxu0
      %v2314 = vadd.f32 0.0, %v2313
      %v2315 = vpop.f32.mrb[0].mxu0
      %2316 = vmatprep.mubr.bf16.mxu0 %v1895
      %2317 = vmatmul.mubr.bf16.gmra.mrb[0].mxu0 %v1886
      %v2318 = vpop.f32.mrb[0].mxu0
      %v2319 = vadd.f32 0.0, %v2318
      %v2320 = vpop.f32.mrb[0].mxu0
      %v2321 = vpop.f32.mrb[0].mxu0
      %v2322 = vadd.f32 0.0, %v2321
      %v2323 = vpop.f32.mrb[0].mxu0
      %2324 = vmatprep.mubr.bf16.mxu0 %v1913
      %2325 = vmatmul.mubr.bf16.gmra.mrb[0].mxu0 %v1904
      %v2326 = vpop.f32.mrb[0].mxu0
      %v2327 = vadd.f32 0.0, %v2326
      %v2328 = vpop.f32.mrb[0].mxu0
      %v2329 = vpop.f32.mrb[0].mxu0
      %v2330 = vadd.f32 0.0, %v2329
      %v2331 = vpop.f32.mrb[0].mxu0
      %2332 = vmatprep.mubr.bf16.mxu0 %v1931
      %2333 = vmatmul.mubr.bf16.gmra.mrb[0].mxu0 %v1922
      %v2334 = vpop.f32.mrb[0].mxu0
      %v2335 = vadd.f32 0.0, %v2334
      %v2336 = vpop.f32.mrb[0].mxu0
      %v2337 = vpop.f32.mrb[0].mxu0
      %v2338 = vadd.f32 0.0, %v2337
      %v2339 = vpop.f32.mrb[0].mxu0
      %2340 = vmatprep.mubr.bf16.mxu0 %v1949
      %2341 = vmatmul.mubr.bf16.gmra.mrb[0].mxu0 %v1940
      %v2342 = vpop.f32.mrb[0].mxu0
      %v2343 = vadd.f32 0.0, %v2342
      %v2344 = vpop.f32.mrb[0].mxu0
      %v2345 = vpop.f32.mrb[0].mxu0
      %v2346 = vadd.f32 0.0, %v2345
      %v2347 = vpop.f32.mrb[0].mxu0
      %2348 = vmatprep.mubr.bf16.mxu0 %v1967
      %2349 = vmatmul.mubr.bf16.gmra.mrb[0].mxu0 %v1958
      %v2350 = vpop.f32.mrb[0].mxu0
      %v2351 = vadd.f32 0.0, %v2350
      %v2352 = vpop.f32.mrb[0].mxu0
      %v2353 = vpop.f32.mrb[0].mxu0
      %v2354 = vadd.f32 0.0, %v2353
      %v2355 = vpop.f32.mrb[0].mxu0
      %2356 = vmatprep.mubr.bf16.mxu0 %v1985
      %2357 = vmatmul.mubr.bf16.gmra.mrb[0].mxu0 %v1976
      %v2358 = vpop.f32.mrb[0].mxu0
      %v2359 = vadd.f32 0.0, %v2358
      %v2360 = vpop.f32.mrb[0].mxu0
      %v2361 = vpop.f32.mrb[0].mxu0
      %v2362 = vadd.f32 0.0, %v2361
      %v2363 = vpop.f32.mrb[0].mxu0
      %2364 = vmatprep.mubr.bf16.mxu0 %v2003
      %2365 = vmatmul.mubr.bf16.gmra.mrb[0].mxu0 %v1994
      %v2366 = vpop.f32.mrb[0].mxu0
      %v2367 = vadd.f32 0.0, %v2366
      %v2368 = vpop.f32.mrb[0].mxu0
      %v2369 = vpop.f32.mrb[0].mxu0
      %v2370 = vadd.f32 0.0, %v2369
      %v2371 = vpop.f32.mrb[0].mxu0
      %2372 = vmatprep.mubr.bf16.mxu0 %v2021
      %2373 = vmatmul.mubr.bf16.gmra.mrb[0].mxu0 %v2012
      %v2374 = vpop.f32.mrb[0].mxu0
      %v2375 = vadd.f32 0.0, %v2374
      %v2376 = vpop.f32.mrb[0].mxu0
      %v2377 = vpop.f32.mrb[0].mxu0
      %v2378 = vadd.f32 0.0, %v2377
      %v2379 = vpop.f32.mrb[0].mxu0
      %2380 = vmatprep.mubr.bf16.mxu0 %v2039
      %2381 = vmatmul.mubr.bf16.gmra.mrb[0].mxu0 %v2030
      %v2382 = vpop.f32.mrb[0].mxu0
      %v2383 = vadd.f32 0.0, %v2382
      %v2384 = vpop.f32.mrb[0].mxu0
      %v2385 = vpop.f32.mrb[0].mxu0
      %v2386 = vadd.f32 0.0, %v2385
      %v2387 = vpop.f32.mrb[0].mxu0
      %2388 = vmatprep.mubr.bf16.mxu0 %v2057
      %2389 = vmatmul.mubr.bf16.gmra.mrb[0].mxu0 %v2048
      %v2390 = vpop.f32.mrb[0].mxu0
      %v2391 = vadd.f32 0.0, %v2390
      %v2392 = vpop.f32.mrb[0].mxu0
      %v2393 = vpop.f32.mrb[0].mxu0
      %v2394 = vadd.f32 0.0, %v2393
      %v2395 = vpop.f32.mrb[0].mxu0
      %2396 = vmatprep.mubr.bf16.mxu0 %v2075
      %2397 = vmatmul.mubr.bf16.gmra.mrb[0].mxu0 %v2066
      %v2398 = vpop.f32.mrb[0].mxu0
      %v2399 = vadd.f32 0.0, %v2398
      %v2400 = vpop.f32.mrb[0].mxu0
      %v2401 = vpop.f32.mrb[0].mxu0
      %v2402 = vadd.f32 0.0, %v2401
      %v2403 = vpop.f32.mrb[0].mxu0
      %2404 = vmatprep.mubr.bf16.mxu0 %v2093
      %2405 = vmatmul.mubr.bf16.gmra.mrb[0].mxu0 %v2084
      %v2406 = vpop.f32.mrb[0].mxu0
      %v2407 = vadd.f32 0.0, %v2406
      %v2408 = vpop.f32.mrb[0].mxu0
      %v2409 = vpop.f32.mrb[0].mxu0
      %v2410 = vadd.f32 0.0, %v2409
      %v2411 = vpop.f32.mrb[0].mxu0
      %2412 = vmatprep.mubr.bf16.mxu0 %v2111
      %2413 = vmatmul.mubr.bf16.gmra.mrb[0].mxu0 %v2102
      %v2414 = vpop.f32.mrb[0].mxu0
      %v2415 = vadd.f32 0.0, %v2414
      %v2416 = vpop.f32.mrb[0].mxu0
      %v2417 = vpop.f32.mrb[0].mxu0
      %v2418 = vadd.f32 0.0, %v2417
      %v2419 = vpop.f32.mrb[0].mxu0
      %2420 = vdwg.mxu0
      %v2421 = vadd.f32 %v1665, %v2279
      %v2422 = vadd.f32 %v1666, %v2282
      %v2423 = vadd.f32 %v1667, %v2287
      %v2424 = vadd.f32 %v1668, %v2290
      %v2425 = vadd.f32 %v1669, %v2295
      %v2426 = vadd.f32 %v1670, %v2298
      %v2427 = vadd.f32 %v1671, %v2303
      %v2428 = vadd.f32 %v1672, %v2306
      %v2429 = vadd.f32 %v1673, %v2311
      %v2430 = vadd.f32 %v1674, %v2314
      %v2431 = vadd.f32 %v1675, %v2319
      %v2432 = vadd.f32 %v1676, %v2322
      %v2433 = vadd.f32 %v1677, %v2327
      %v2434 = vadd.f32 %v1678, %v2330
      %v2435 = vadd.f32 %v1679, %v2335
      %v2436 = vadd.f32 %v1680, %v2338
      %v2437 = vadd.f32 %v1681, %v2343
      %v2438 = vadd.f32 %v1682, %v2346
      %v2439 = vadd.f32 %v1683, %v2351
      %v2440 = vadd.f32 %v1684, %v2354
      %v2441 = vadd.f32 %v1685, %v2359
      %v2442 = vadd.f32 %v1686, %v2362
      %v2443 = vadd.f32 %v1687, %v2367
      %v2444 = vadd.f32 %v1688, %v2370
      %v2445 = vadd.f32 %v1689, %v2375
      %v2446 = vadd.f32 %v1690, %v2378
      %v2447 = vadd.f32 %v1691, %v2383
      %v2448 = vadd.f32 %v1692, %v2386
      %v2449 = vadd.f32 %v1693, %v2391
      %v2450 = vadd.f32 %v1694, %v2394
      %v2451 = vadd.f32 %v1695, %v2399
      %v2452 = vadd.f32 %v1696, %v2402
      %v2453 = vadd.f32 %v1697, %v2407
      %v2454 = vadd.f32 %v1698, %v2410
      %v2455 = vadd.f32 %v1699, %v2415
      %v2456 = vadd.f32 %v1700, %v2418
      %v2457 = vld [vmem:[#allocation2 + $0x10] sm:$0xf0]
      %v2458 = vld [vmem:[#allocation2 + $0x20] sm:$0xff]
      %v2459 = vld [vmem:[#allocation2 + $0x30] sm:$0xff]
      %v2460 = vld [vmem:[#allocation2 + $0x40] sm:$0xff]
      %v2461 = vld [vmem:[#allocation2 + $0x50] sm:$0xff]
      %v2462 = vld [vmem:[#allocation2 + $0x60] sm:$0xff]
      %v2463 = vld [vmem:[#allocation2 + $0x70] sm:$0xff]
      %v2464 = vld [vmem:[#allocation2 + $0x80] sm:$0xff]
      %v2465 = vld [vmem:[#allocation2 + $0x90] sm:$0xff]
      %v2466 = vld [vmem:[#allocation2 + $0xa0] sm:$0xff]
      %v2467 = vld [vmem:[#allocation2 + $0xb0] sm:$0xff]
      %v2468 = vld [vmem:[#allocation2 + $0xc0] sm:$0xff]
      %v2469 = vld [vmem:[#allocation2 + $0xd0] sm:$0xff]
      %v2470 = vld [vmem:[#allocation2 + $0xe0] sm:$0xff]
      %v2471 = vld [vmem:[#allocation2 + $0xf0] sm:$0xff]
      %v2472 = vld [vmem:[#allocation2 + $0x100] sm:$0xff]
      %v2473 = vld [vmem:[#allocation2 + $0x110] sm:$0xff]
      %v2474 = vld [vmem:[#allocation2 + $0x120] sm:$0xff]
      %v2475 = vld [vmem:[#allocation2 + $0x130] sm:$0x1f]
      %s2476 = scalar_lea.vmem %s2, 64
      %v2477 = vld [vmem:[%s2476] sm:$0xf]
      %v2478 = vld [vmem:[%s2476 + $0x4] sm:$0xf]
      %v2479 = vld [vmem:[%s2476 + $0x8] sm:$0xf]
      %v2480 = vld [vmem:[%s2476 + $0xc] sm:$0xf]
      %v2481 = vld [vmem:[%s2476 + $0x10] sm:$0xf]
      %v2482 = vld [vmem:[%s2476 + $0x14] sm:$0xf]
      %v2483 = vld [vmem:[%s2476 + $0x18] sm:$0xf]
      %v2484 = vld [vmem:[%s2476 + $0x1c] sm:$0xf]
      %v2485 = vld [vmem:[%s2476 + $0x20] sm:$0xf]
      %v2486 = vld [vmem:[%s2476 + $0x24] sm:$0xf]
      %v2487 = vld [vmem:[%s2476 + $0x28] sm:$0xf]
      %v2488 = vld [vmem:[%s2476 + $0x2c] sm:$0xf]
      %v2489 = vld [vmem:[%s2476 + $0x30] sm:$0xf]
      %v2490 = vld [vmem:[%s2476 + $0x34] sm:$0xf]
      %v2491 = vld [vmem:[%s2476 + $0x38] sm:$0xf]
      %v2492 = vld [vmem:[%s2476 + $0x3c] sm:$0xf]
      %vm2493 = vsmask.f32 3328
      %v2495 = vshrl.u32 %v2457, 16
      %v2497 = vrot.slane %v2495, 4
      %v2498 = vshll.u32 %v2457, 16
      %v2500 = vrot.slane %v2498, 5
      %v2501 = vor.u32 %v2497, %v2500
      %v2503 = vshrl.u32 %v2458, 16
      %v2505 = vrot.slane %v2503, 4
      %v2506 = vshll.u32 %v2458, 16
      %v2508 = vrot.slane %v2506, 5
      %v2509 = vor.u32 %v2505, %v2508
      %v2510 = vsel %vm2493, %v2501, %v2509
      %v2512 = vshrl.u32 %v2459, 16
      %v2514 = vrot.slane %v2512, 4
      %v2515 = vshll.u32 %v2459, 16
      %v2517 = vrot.slane %v2515, 5
      %v2518 = vor.u32 %v2514, %v2517
      %v2519 = vsel %vm2493, %v2509, %v2518
      %v2521 = vshrl.u32 %v2460, 16
      %v2523 = vrot.slane %v2521, 4
      %v2524 = vshll.u32 %v2460, 16
      %v2526 = vrot.slane %v2524, 5
      %v2527 = vor.u32 %v2523, %v2526
      %v2528 = vsel %vm2493, %v2518, %v2527
      %v2530 = vshrl.u32 %v2461, 16
      %v2532 = vrot.slane %v2530, 4
      %v2533 = vshll.u32 %v2461, 16
      %v2535 = vrot.slane %v2533, 5
      %v2536 = vor.u32 %v2532, %v2535
      %v2537 = vsel %vm2493, %v2527, %v2536
      %v2539 = vshrl.u32 %v2462, 16
      %v2541 = vrot.slane %v2539, 4
      %v2542 = vshll.u32 %v2462, 16
      %v2544 = vrot.slane %v2542, 5
      %v2545 = vor.u32 %v2541, %v2544
      %v2546 = vsel %vm2493, %v2536, %v2545
      %v2548 = vshrl.u32 %v2463, 16
      %v2550 = vrot.slane %v2548, 4
      %v2551 = vshll.u32 %v2463, 16
      %v2553 = vrot.slane %v2551, 5
      %v2554 = vor.u32 %v2550, %v2553
      %v2555 = vsel %vm2493, %v2545, %v2554
      %v2557 = vshrl.u32 %v2464, 16
      %v2559 = vrot.slane %v2557, 4
      %v2560 = vshll.u32 %v2464, 16
      %v2562 = vrot.slane %v2560, 5
      %v2563 = vor.u32 %v2559, %v2562
      %v2564 = vsel %vm2493, %v2554, %v2563
      %v2566 = vshrl.u32 %v2465, 16
      %v2568 = vrot.slane %v2566, 4
      %v2569 = vshll.u32 %v2465, 16
      %v2571 = vrot.slane %v2569, 5
      %v2572 = vor.u32 %v2568, %v2571
      %v2573 = vsel %vm2493, %v2563, %v2572
      %v2575 = vshrl.u32 %v2466, 16
      %v2577 = vrot.slane %v2575, 4
      %v2578 = vshll.u32 %v2466, 16
      %v2580 = vrot.slane %v2578, 5
      %v2581 = vor.u32 %v2577, %v2580
      %v2582 = vsel %vm2493, %v2572, %v2581
      %v2584 = vshrl.u32 %v2467, 16
      %v2586 = vrot.slane %v2584, 4
      %v2587 = vshll.u32 %v2467, 16
      %v2589 = vrot.slane %v2587, 5
      %v2590 = vor.u32 %v2586, %v2589
      %v2591 = vsel %vm2493, %v2581, %v2590
      %v2593 = vshrl.u32 %v2468, 16
      %v2595 = vrot.slane %v2593, 4
      %v2596 = vshll.u32 %v2468, 16
      %v2598 = vrot.slane %v2596, 5
      %v2599 = vor.u32 %v2595, %v2598
      %v2600 = vsel %vm2493, %v2590, %v2599
      %v2602 = vshrl.u32 %v2469, 16
      %v2604 = vrot.slane %v2602, 4
      %v2605 = vshll.u32 %v2469, 16
      %v2607 = vrot.slane %v2605, 5
      %v2608 = vor.u32 %v2604, %v2607
      %v2609 = vsel %vm2493, %v2599, %v2608
      %v2611 = vshrl.u32 %v2470, 16
      %v2613 = vrot.slane %v2611, 4
      %v2614 = vshll.u32 %v2470, 16
      %v2616 = vrot.slane %v2614, 5
      %v2617 = vor.u32 %v2613, %v2616
      %v2618 = vsel %vm2493, %v2608, %v2617
      %v2620 = vshrl.u32 %v2471, 16
      %v2622 = vrot.slane %v2620, 4
      %v2623 = vshll.u32 %v2471, 16
      %v2625 = vrot.slane %v2623, 5
      %v2626 = vor.u32 %v2622, %v2625
      %v2627 = vsel %vm2493, %v2617, %v2626
      %v2629 = vshrl.u32 %v2472, 16
      %v2631 = vrot.slane %v2629, 4
      %v2632 = vshll.u32 %v2472, 16
      %v2634 = vrot.slane %v2632, 5
      %v2635 = vor.u32 %v2631, %v2634
      %v2636 = vsel %vm2493, %v2626, %v2635
      %v2638 = vshrl.u32 %v2473, 16
      %v2640 = vrot.slane %v2638, 4
      %v2641 = vshll.u32 %v2473, 16
      %v2643 = vrot.slane %v2641, 5
      %v2644 = vor.u32 %v2640, %v2643
      %v2645 = vsel %vm2493, %v2635, %v2644
      %v2647 = vshrl.u32 %v2474, 16
      %v2649 = vrot.slane %v2647, 4
      %v2650 = vshll.u32 %v2474, 16
      %v2652 = vrot.slane %v2650, 5
      %v2653 = vor.u32 %v2649, %v2652
      %v2654 = vsel %vm2493, %v2644, %v2653
      %v2656 = vshrl.u32 %v2475, 16
      %v2658 = vrot.slane %v2656, 4
      %v2659 = vshll.u32 %v2475, 16
      %v2661 = vrot.slane %v2659, 5
      %v2662 = vor.u32 %v2658, %v2661
      %v2663 = vsel %vm2493, %v2653, %v2662
      %v2698 = vunpack.c.l.b16 %v2477
      %v2699 = vunpack.c.l.b16 %v2478
      %v2700 = vunpack.c.l.b16 %v2479
      %v2701 = vunpack.c.l.b16 %v2480
      %v2702 = vunpack.c.l.b16 %v2481
      %v2703 = vunpack.c.l.b16 %v2482
      %v2704 = vunpack.c.l.b16 %v2483
      %v2705 = vunpack.c.l.b16 %v2484
      %v2706 = vunpack.c.l.b16 %v2485
      %v2707 = vunpack.c.l.b16 %v2486
      %v2708 = vunpack.c.l.b16 %v2487
      %v2709 = vunpack.c.l.b16 %v2488
      %v2710 = vunpack.c.l.b16 %v2489
      %v2711 = vunpack.c.l.b16 %v2490
      %v2712 = vunpack.c.l.b16 %v2491
      %v2713 = vunpack.c.l.b16 %v2492
      %v2714 = vpack.c.b16 %v2699, %v2698
      %v2715 = vpack.c.b16 %v2701, %v2700
      %v2716 = vpack.c.b16 %v2703, %v2702
      %v2717 = vpack.c.b16 %v2705, %v2704
      %v2718 = vpack.c.b16 %v2707, %v2706
      %v2719 = vpack.c.b16 %v2709, %v2708
      %v2720 = vpack.c.b16 %v2711, %v2710
      %v2721 = vpack.c.b16 %v2713, %v2712
      %2730 = vmatprep.subr.bf16.mxu0 0
      %2731 = vmatpush1.bf16.msra.mxu0 %v2714
      %2732 = vmatprep.subr.bf16.mxu0 0
      %2733 = vmatpush1.bf16.msra.mxu0 %v2715
      %2734 = vmatprep.subr.bf16.mxu0 0
      %2735 = vmatpush1.bf16.msra.mxu0 %v2716
      %2736 = vmatprep.subr.bf16.mxu0 0
      %2737 = vmatpush1.bf16.msra.mxu0 %v2717
      %2738 = vmatprep.subr.bf16.mxu0 0
      %2739 = vmatpush1.bf16.msra.mxu0 %v2718
      %2740 = vmatprep.subr.bf16.mxu0 0
      %2741 = vmatpush1.bf16.msra.mxu0 %v2719
      %2742 = vmatprep.subr.bf16.mxu0 0
      %2743 = vmatpush1.bf16.msra.mxu0 %v2720
      %2744 = vmatprep.subr.bf16.mxu0 0
      %2745 = vmatpush1.bf16.msra.mxu0 %v2721
      %2746 = vmatprep.subr.bf16.mxu0 0
      %2747 = vmatpush1.bf16.msra.mxu0 0
      %2748 = vmatprep.subr.bf16.mxu0 0
      %2749 = vmatpush1.bf16.msra.mxu0 0
      %2750 = vmatprep.subr.bf16.mxu0 0
      %2751 = vmatpush1.bf16.msra.mxu0 0
      %2752 = vmatprep.subr.bf16.mxu0 0
      %2753 = vmatpush1.bf16.msra.mxu0 0
      %2754 = vmatprep.subr.bf16.mxu0 0
      %2755 = vmatpush1.bf16.msra.mxu0 0
      %2756 = vmatprep.subr.bf16.mxu0 0
      %2757 = vmatpush1.bf16.msra.mxu0 0
      %2758 = vmatprep.subr.bf16.mxu0 0
      %2759 = vmatpush1.bf16.msra.mxu0 0
      %2760 = vmatprep.subr.bf16.mxu0 0
      %2761 = vmatpush1.bf16.msra.mxu0 0
      %2762 = vmatprep.mubr.bf16.mxu0 0
      %2763 = vmatmul.mubr.bf16.gmra.mrb[0].mxu0 %v2510
      %v2764 = vpop.f32.mrb[0].mxu0
      %v2765 = vadd.f32 0.0, %v2764
      %v2766 = vpop.f32.mrb[0].mxu0
      %v2767 = vpop.f32.mrb[0].mxu0
      %v2768 = vadd.f32 0.0, %v2767
      %v2769 = vpop.f32.mrb[0].mxu0
      %2770 = vmatprep.mubr.bf16.mxu0 0
      %2771 = vmatmul.mubr.bf16.gmra.mrb[0].mxu0 %v2519
      %v2772 = vpop.f32.mrb[0].mxu0
      %v2773 = vadd.f32 0.0, %v2772
      %v2774 = vpop.f32.mrb[0].mxu0
      %v2775 = vpop.f32.mrb[0].mxu0
      %v2776 = vadd.f32 0.0, %v2775
      %v2777 = vpop.f32.mrb[0].mxu0
      %2778 = vmatprep.mubr.bf16.mxu0 0
      %2779 = vmatmul.mubr.bf16.gmra.mrb[0].mxu0 %v2528
      %v2780 = vpop.f32.mrb[0].mxu0
      %v2781 = vadd.f32 0.0, %v2780
      %v2782 = vpop.f32.mrb[0].mxu0
      %v2783 = vpop.f32.mrb[0].mxu0
      %v2784 = vadd.f32 0.0, %v2783
      %v2785 = vpop.f32.mrb[0].mxu0
      %2786 = vmatprep.mubr.bf16.mxu0 0
      %2787 = vmatmul.mubr.bf16.gmra.mrb[0].mxu0 %v2537
      %v2788 = vpop.f32.mrb[0].mxu0
      %v2789 = vadd.f32 0.0, %v2788
      %v2790 = vpop.f32.mrb[0].mxu0
      %v2791 = vpop.f32.mrb[0].mxu0
      %v2792 = vadd.f32 0.0, %v2791
      %v2793 = vpop.f32.mrb[0].mxu0
      %2794 = vmatprep.mubr.bf16.mxu0 0
      %2795 = vmatmul.mubr.bf16.gmra.mrb[0].mxu0 %v2546
      %v2796 = vpop.f32.mrb[0].mxu0
      %v2797 = vadd.f32 0.0, %v2796
      %v2798 = vpop.f32.mrb[0].mxu0
      %v2799 = vpop.f32.mrb[0].mxu0
      %v2800 = vadd.f32 0.0, %v2799
      %v2801 = vpop.f32.mrb[0].mxu0
      %2802 = vmatprep.mubr.bf16.mxu0 0
      %2803 = vmatmul.mubr.bf16.gmra.mrb[0].mxu0 %v2555
      %v2804 = vpop.f32.mrb[0].mxu0
      %v2805 = vadd.f32 0.0, %v2804
      %v2806 = vpop.f32.mrb[0].mxu0
      %v2807 = vpop.f32.mrb[0].mxu0
      %v2808 = vadd.f32 0.0, %v2807
      %v2809 = vpop.f32.mrb[0].mxu0
      %2810 = vmatprep.mubr.bf16.mxu0 0
      %2811 = vmatmul.mubr.bf16.gmra.mrb[0].mxu0 %v2564
      %v2812 = vpop.f32.mrb[0].mxu0
      %v2813 = vadd.f32 0.0, %v2812
      %v2814 = vpop.f32.mrb[0].mxu0
      %v2815 = vpop.f32.mrb[0].mxu0
      %v2816 = vadd.f32 0.0, %v2815
      %v2817 = vpop.f32.mrb[0].mxu0
      %2818 = vmatprep.mubr.bf16.mxu0 0
      %2819 = vmatmul.mubr.bf16.gmra.mrb[0].mxu0 %v2573
      %v2820 = vpop.f32.mrb[0].mxu0
      %v2821 = vadd.f32 0.0, %v2820
      %v2822 = vpop.f32.mrb[0].mxu0
      %v2823 = vpop.f32.mrb[0].mxu0
      %v2824 = vadd.f32 0.0, %v2823
      %v2825 = vpop.f32.mrb[0].mxu0
      %2826 = vmatprep.mubr.bf16.mxu0 0
      %2827 = vmatmul.mubr.bf16.gmra.mrb[0].mxu0 %v2582
      %v2828 = vpop.f32.mrb[0].mxu0
      %v2829 = vadd.f32 0.0, %v2828
      %v2830 = vpop.f32.mrb[0].mxu0
      %v2831 = vpop.f32.mrb[0].mxu0
      %v2832 = vadd.f32 0.0, %v2831
      %v2833 = vpop.f32.mrb[0].mxu0
      %2834 = vmatprep.mubr.bf16.mxu0 0
      %2835 = vmatmul.mubr.bf16.gmra.mrb[0].mxu0 %v2591
      %v2836 = vpop.f32.mrb[0].mxu0
      %v2837 = vadd.f32 0.0, %v2836
      %v2838 = vpop.f32.mrb[0].mxu0
      %v2839 = vpop.f32.mrb[0].mxu0
      %v2840 = vadd.f32 0.0, %v2839
      %v2841 = vpop.f32.mrb[0].mxu0
      %2842 = vmatprep.mubr.bf16.mxu0 0
      %2843 = vmatmul.mubr.bf16.gmra.mrb[0].mxu0 %v2600
      %v2844 = vpop.f32.mrb[0].mxu0
      %v2845 = vadd.f32 0.0, %v2844
      %v2846 = vpop.f32.mrb[0].mxu0
      %v2847 = vpop.f32.mrb[0].mxu0
      %v2848 = vadd.f32 0.0, %v2847
      %v2849 = vpop.f32.mrb[0].mxu0
      %2850 = vmatprep.mubr.bf16.mxu0 0
      %2851 = vmatmul.mubr.bf16.gmra.mrb[0].mxu0 %v2609
      %v2852 = vpop.f32.mrb[0].mxu0
      %v2853 = vadd.f32 0.0, %v2852
      %v2854 = vpop.f32.mrb[0].mxu0
      %v2855 = vpop.f32.mrb[0].mxu0
      %v2856 = vadd.f32 0.0, %v2855
      %v2857 = vpop.f32.mrb[0].mxu0
      %2858 = vmatprep.mubr.bf16.mxu0 0
      %2859 = vmatmul.mubr.bf16.gmra.mrb[0].mxu0 %v2618
      %v2860 = vpop.f32.mrb[0].mxu0
      %v2861 = vadd.f32 0.0, %v2860
      %v2862 = vpop.f32.mrb[0].mxu0
      %v2863 = vpop.f32.mrb[0].mxu0
      %v2864 = vadd.f32 0.0, %v2863
      %v2865 = vpop.f32.mrb[0].mxu0
      %2866 = vmatprep.mubr.bf16.mxu0 0
      %2867 = vmatmul.mubr.bf16.gmra.mrb[0].mxu0 %v2627
      %v2868 = vpop.f32.mrb[0].mxu0
      %v2869 = vadd.f32 0.0, %v2868
      %v2870 = vpop.f32.mrb[0].mxu0
      %v2871 = vpop.f32.mrb[0].mxu0
      %v2872 = vadd.f32 0.0, %v2871
      %v2873 = vpop.f32.mrb[0].mxu0
      %2874 = vmatprep.mubr.bf16.mxu0 0
      %2875 = vmatmul.mubr.bf16.gmra.mrb[0].mxu0 %v2636
      %v2876 = vpop.f32.mrb[0].mxu0
      %v2877 = vadd.f32 0.0, %v2876
      %v2878 = vpop.f32.mrb[0].mxu0
      %v2879 = vpop.f32.mrb[0].mxu0
      %v2880 = vadd.f32 0.0, %v2879
      %v2881 = vpop.f32.mrb[0].mxu0
      %2882 = vmatprep.mubr.bf16.mxu0 0
      %2883 = vmatmul.mubr.bf16.gmra.mrb[0].mxu0 %v2645
      %v2884 = vpop.f32.mrb[0].mxu0
      %v2885 = vadd.f32 0.0, %v2884
      %v2886 = vpop.f32.mrb[0].mxu0
      %v2887 = vpop.f32.mrb[0].mxu0
      %v2888 = vadd.f32 0.0, %v2887
      %v2889 = vpop.f32.mrb[0].mxu0
      %2890 = vmatprep.mubr.bf16.mxu0 0
      %2891 = vmatmul.mubr.bf16.gmra.mrb[0].mxu0 %v2654
      %v2892 = vpop.f32.mrb[0].mxu0
      %v2893 = vadd.f32 0.0, %v2892
      %v2894 = vpop.f32.mrb[0].mxu0
      %v2895 = vpop.f32.mrb[0].mxu0
      %v2896 = vadd.f32 0.0, %v2895
      %v2897 = vpop.f32.mrb[0].mxu0
      %2898 = vmatprep.mubr.bf16.mxu0 0
      %2899 = vmatmul.mubr.bf16.gmra.mrb[0].mxu0 %v2663
      %v2900 = vpop.f32.mrb[0].mxu0
      %v2901 = vadd.f32 0.0, %v2900
      %v2902 = vpop.f32.mrb[0].mxu0
      %v2903 = vpop.f32.mrb[0].mxu0
      %v2904 = vadd.f32 0.0, %v2903
      %v2905 = vpop.f32.mrb[0].mxu0
      %2906 = vdwg.mxu0
      %v2907 = vadd.f32 %v2421, %v2765
      %v2908 = vadd.f32 %v2422, %v2768
      %v2909 = vadd.f32 %v2423, %v2773
      %v2910 = vadd.f32 %v2424, %v2776
      %v2911 = vadd.f32 %v2425, %v2781
      %v2912 = vadd.f32 %v2426, %v2784
      %v2913 = vadd.f32 %v2427, %v2789
      %v2914 = vadd.f32 %v2428, %v2792
      %v2915 = vadd.f32 %v2429, %v2797
      %v2916 = vadd.f32 %v2430, %v2800
      %v2917 = vadd.f32 %v2431, %v2805
      %v2918 = vadd.f32 %v2432, %v2808
      %v2919 = vadd.f32 %v2433, %v2813
      %v2920 = vadd.f32 %v2434, %v2816
      %v2921 = vadd.f32 %v2435, %v2821
      %v2922 = vadd.f32 %v2436, %v2824
      %v2923 = vadd.f32 %v2437, %v2829
      %v2924 = vadd.f32 %v2438, %v2832
      %v2925 = vadd.f32 %v2439, %v2837
      %v2926 = vadd.f32 %v2440, %v2840
      %v2927 = vadd.f32 %v2441, %v2845
      %v2928 = vadd.f32 %v2442, %v2848
      %v2929 = vadd.f32 %v2443, %v2853
      %v2930 = vadd.f32 %v2444, %v2856
      %v2931 = vadd.f32 %v2445, %v2861
      %v2932 = vadd.f32 %v2446, %v2864
      %v2933 = vadd.f32 %v2447, %v2869
      %v2934 = vadd.f32 %v2448, %v2872
      %v2935 = vadd.f32 %v2449, %v2877
      %v2936 = vadd.f32 %v2450, %v2880
      %v2937 = vadd.f32 %v2451, %v2885
      %v2938 = vadd.f32 %v2452, %v2888
      %v2939 = vadd.f32 %v2453, %v2893
      %v2940 = vadd.f32 %v2454, %v2896
      %v2941 = vadd.f32 %v2455, %v2901
      %v2942 = vadd.f32 %v2456, %v2904
      %v2943 = vld [vmem:[#allocation2 + $0x20] sm:$0xf0]
      %v2944 = vld [vmem:[#allocation2 + $0x28] sm:$0xf0]
      %v2945 = vld [vmem:[#allocation2 + $0x30] sm:$0xff]
      %v2946 = vld [vmem:[#allocation2 + $0x38] sm:$0xff]
      %v2947 = vld [vmem:[#allocation2 + $0x40] sm:$0xff]
      %v2948 = vld [vmem:[#allocation2 + $0x48] sm:$0xff]
      %v2949 = vld [vmem:[#allocation2 + $0x50] sm:$0xff]
      %v2950 = vld [vmem:[#allocation2 + $0x58] sm:$0xff]
      %v2951 = vld [vmem:[#allocation2 + $0x60] sm:$0xff]
      %v2952 = vld [vmem:[#allocation2 + $0x68] sm:$0xff]
      %v2953 = vld [vmem:[#allocation2 + $0x70] sm:$0xff]
      %v2954 = vld [vmem:[#allocation2 + $0x78] sm:$0xff]
      %v2955 = vld [vmem:[#allocation2 + $0x80] sm:$0xff]
      %v2956 = vld [vmem:[#allocation2 + $0x88] sm:$0xff]
      %v2957 = vld [vmem:[#allocation2 + $0x90] sm:$0xff]
      %v2958 = vld [vmem:[#allocation2 + $0x98] sm:$0xff]
      %v2959 = vld [vmem:[#allocation2 + $0xa0] sm:$0xff]
      %v2960 = vld [vmem:[#allocation2 + $0xa8] sm:$0xff]
      %v2961 = vld [vmem:[#allocation2 + $0xb0] sm:$0xff]
      %v2962 = vld [vmem:[#allocation2 + $0xb8] sm:$0xff]
      %v2963 = vld [vmem:[#allocation2 + $0xc0] sm:$0xff]
      %v2964 = vld [vmem:[#allocation2 + $0xc8] sm:$0xff]
      %v2965 = vld [vmem:[#allocation2 + $0xd0] sm:$0xff]
      %v2966 = vld [vmem:[#allocation2 + $0xd8] sm:$0xff]
      %v2967 = vld [vmem:[#allocation2 + $0xe0] sm:$0xff]
      %v2968 = vld [vmem:[#allocation2 + $0xe8] sm:$0xff]
      %v2969 = vld [vmem:[#allocation2 + $0xf0] sm:$0xff]
      %v2970 = vld [vmem:[#allocation2 + $0xf8] sm:$0xff]
      %v2971 = vld [vmem:[#allocation2 + $0x100] sm:$0xff]
      %v2972 = vld [vmem:[#allocation2 + $0x108] sm:$0xff]
      %v2973 = vld [vmem:[#allocation2 + $0x110] sm:$0xff]
      %v2974 = vld [vmem:[#allocation2 + $0x118] sm:$0xff]
      %v2975 = vld [vmem:[#allocation2 + $0x120] sm:$0xff]
      %v2976 = vld [vmem:[#allocation2 + $0x128] sm:$0xff]
      %v2977 = vld [vmem:[#allocation2 + $0x130] sm:$0xff]
      %v2978 = vld [vmem:[#allocation2 + $0x138] sm:$0xff]
      %v2979 = vld [vmem:[#allocation2 + $0x140] sm:$0x1f]
      %v2980 = vld [vmem:[#allocation2 + $0x148] sm:$0x1f]
      %s2981 = scalar_lea.vmem %s1, 256
      %v2982 = vld [vmem:[%s2981] sm:$0xf]
      %v2983 = vld [vmem:[%s2981 + $0x4] sm:$0xf]
      %v2984 = vld [vmem:[%s2981 + $0x8] sm:$0xf]
      %v2985 = vld [vmem:[%s2981 + $0xc] sm:$0xf]
      %v2986 = vld [vmem:[%s2981 + $0x10] sm:$0xf]
      %v2987 = vld [vmem:[%s2981 + $0x14] sm:$0xf]
      %v2988 = vld [vmem:[%s2981 + $0x18] sm:$0xf]
      %v2989 = vld [vmem:[%s2981 + $0x1c] sm:$0xf]
      %v2990 = vld [vmem:[%s2981 + $0x20] sm:$0xf]
      %v2991 = vld [vmem:[%s2981 + $0x24] sm:$0xf]
      %v2992 = vld [vmem:[%s2981 + $0x28] sm:$0xf]
      %v2993 = vld [vmem:[%s2981 + $0x2c] sm:$0xf]
      %v2994 = vld [vmem:[%s2981 + $0x30] sm:$0xf]
      %v2995 = vld [vmem:[%s2981 + $0x34] sm:$0xf]
      %v2996 = vld [vmem:[%s2981 + $0x38] sm:$0xf]
      %v2997 = vld [vmem:[%s2981 + $0x3c] sm:$0xf]
      %v2998 = vld [vmem:[%s2981 + $0x40] sm:$0xf]
      %v2999 = vld [vmem:[%s2981 + $0x44] sm:$0xf]
      %v3000 = vld [vmem:[%s2981 + $0x48] sm:$0xf]
      %v3001 = vld [vmem:[%s2981 + $0x4c] sm:$0xf]
      %v3002 = vld [vmem:[%s2981 + $0x50] sm:$0xf]
      %v3003 = vld [vmem:[%s2981 + $0x54] sm:$0xf]
      %v3004 = vld [vmem:[%s2981 + $0x58] sm:$0xf]
      %v3005 = vld [vmem:[%s2981 + $0x5c] sm:$0xf]
      %v3006 = vld [vmem:[%s2981 + $0x60] sm:$0xf]
      %v3007 = vld [vmem:[%s2981 + $0x64] sm:$0xf]
      %v3008 = vld [vmem:[%s2981 + $0x68] sm:$0xf]
      %v3009 = vld [vmem:[%s2981 + $0x6c] sm:$0xf]
      %v3010 = vld [vmem:[%s2981 + $0x70] sm:$0xf]
      %v3011 = vld [vmem:[%s2981 + $0x74] sm:$0xf]
      %v3012 = vld [vmem:[%s2981 + $0x78] sm:$0xf]
      %v3013 = vld [vmem:[%s2981 + $0x7c] sm:$0xf]
      %v3015 = vshrl.u32 %v2943, 16
      %v3017 = vrot.slane %v3015, 4
      %v3018 = vshll.u32 %v2943, 16
      %v3020 = vrot.slane %v3018, 5
      %v3021 = vor.u32 %v3017, %v3020
      %v3023 = vshrl.u32 %v2945, 16
      %v3025 = vrot.slane %v3023, 4
      %v3026 = vshll.u32 %v2945, 16
      %v3028 = vrot.slane %v3026, 5
      %v3029 = vor.u32 %v3025, %v3028
      %v3030 = vsel %vm2493, %v3021, %v3029
      %v3032 = vshrl.u32 %v2944, 16
      %v3034 = vrot.slane %v3032, 4
      %v3035 = vshll.u32 %v2944, 16
      %v3037 = vrot.slane %v3035, 5
      %v3038 = vor.u32 %v3034, %v3037
      %v3040 = vshrl.u32 %v2946, 16
      %v3042 = vrot.slane %v3040, 4
      %v3043 = vshll.u32 %v2946, 16
      %v3045 = vrot.slane %v3043, 5
      %v3046 = vor.u32 %v3042, %v3045
      %v3047 = vsel %vm2493, %v3038, %v3046
      %v3049 = vshrl.u32 %v2947, 16
      %v3051 = vrot.slane %v3049, 4
      %v3052 = vshll.u32 %v2947, 16
      %v3054 = vrot.slane %v3052, 5
      %v3055 = vor.u32 %v3051, %v3054
      %v3056 = vsel %vm2493, %v3029, %v3055
      %v3058 = vshrl.u32 %v2948, 16
      %v3060 = vrot.slane %v3058, 4
      %v3061 = vshll.u32 %v2948, 16
      %v3063 = vrot.slane %v3061, 5
      %v3064 = vor.u32 %v3060, %v3063
      %v3065 = vsel %vm2493, %v3046, %v3064
      %v3067 = vshrl.u32 %v2949, 16
      %v3069 = vrot.slane %v3067, 4
      %v3070 = vshll.u32 %v2949, 16
      %v3072 = vrot.slane %v3070, 5
      %v3073 = vor.u32 %v3069, %v3072
      %v3074 = vsel %vm2493, %v3055, %v3073
      %v3076 = vshrl.u32 %v2950, 16
      %v3078 = vrot.slane %v3076, 4
      %v3079 = vshll.u32 %v2950, 16
      %v3081 = vrot.slane %v3079, 5
      %v3082 = vor.u32 %v3078, %v3081
      %v3083 = vsel %vm2493, %v3064, %v3082
      %v3085 = vshrl.u32 %v2951, 16
      %v3087 = vrot.slane %v3085, 4
      %v3088 = vshll.u32 %v2951, 16
      %v3090 = vrot.slane %v3088, 5
      %v3091 = vor.u32 %v3087, %v3090
      %v3092 = vsel %vm2493, %v3073, %v3091
      %v3094 = vshrl.u32 %v2952, 16
      %v3096 = vrot.slane %v3094, 4
      %v3097 = vshll.u32 %v2952, 16
      %v3099 = vrot.slane %v3097, 5
      %v3100 = vor.u32 %v3096, %v3099
      %v3101 = vsel %vm2493, %v3082, %v3100
      %v3103 = vshrl.u32 %v2953, 16
      %v3105 = vrot.slane %v3103, 4
      %v3106 = vshll.u32 %v2953, 16
      %v3108 = vrot.slane %v3106, 5
      %v3109 = vor.u32 %v3105, %v3108
      %v3110 = vsel %vm2493, %v3091, %v3109
      %v3112 = vshrl.u32 %v2954, 16
      %v3114 = vrot.slane %v3112, 4
      %v3115 = vshll.u32 %v2954, 16
      %v3117 = vrot.slane %v3115, 5
      %v3118 = vor.u32 %v3114, %v3117
      %v3119 = vsel %vm2493, %v3100, %v3118
      %v3121 = vshrl.u32 %v2955, 16
      %v3123 = vrot.slane %v3121, 4
      %v3124 = vshll.u32 %v2955, 16
      %v3126 = vrot.slane %v3124, 5
      %v3127 = vor.u32 %v3123, %v3126
      %v3128 = vsel %vm2493, %v3109, %v3127
      %v3130 = vshrl.u32 %v2956, 16
      %v3132 = vrot.slane %v3130, 4
      %v3133 = vshll.u32 %v2956, 16
      %v3135 = vrot.slane %v3133, 5
      %v3136 = vor.u32 %v3132, %v3135
      %v3137 = vsel %vm2493, %v3118, %v3136
      %v3139 = vshrl.u32 %v2957, 16
      %v3141 = vrot.slane %v3139, 4
      %v3142 = vshll.u32 %v2957, 16
      %v3144 = vrot.slane %v3142, 5
      %v3145 = vor.u32 %v3141, %v3144
      %v3146 = vsel %vm2493, %v3127, %v3145
      %v3148 = vshrl.u32 %v2958, 16
      %v3150 = vrot.slane %v3148, 4
      %v3151 = vshll.u32 %v2958, 16
      %v3153 = vrot.slane %v3151, 5
      %v3154 = vor.u32 %v3150, %v3153
      %v3155 = vsel %vm2493, %v3136, %v3154
      %v3157 = vshrl.u32 %v2959, 16
      %v3159 = vrot.slane %v3157, 4
      %v3160 = vshll.u32 %v2959, 16
      %v3162 = vrot.slane %v3160, 5
      %v3163 = vor.u32 %v3159, %v3162
      %v3164 = vsel %vm2493, %v3145, %v3163
      %v3166 = vshrl.u32 %v2960, 16
      %v3168 = vrot.slane %v3166, 4
      %v3169 = vshll.u32 %v2960, 16
      %v3171 = vrot.slane %v3169, 5
      %v3172 = vor.u32 %v3168, %v3171
      %v3173 = vsel %vm2493, %v3154, %v3172
      %v3175 = vshrl.u32 %v2961, 16
      %v3177 = vrot.slane %v3175, 4
      %v3178 = vshll.u32 %v2961, 16
      %v3180 = vrot.slane %v3178, 5
      %v3181 = vor.u32 %v3177, %v3180
      %v3182 = vsel %vm2493, %v3163, %v3181
      %v3184 = vshrl.u32 %v2962, 16
      %v3186 = vrot.slane %v3184, 4
      %v3187 = vshll.u32 %v2962, 16
      %v3189 = vrot.slane %v3187, 5
      %v3190 = vor.u32 %v3186, %v3189
      %v3191 = vsel %vm2493, %v3172, %v3190
      %v3193 = vshrl.u32 %v2963, 16
      %v3195 = vrot.slane %v3193, 4
      %v3196 = vshll.u32 %v2963, 16
      %v3198 = vrot.slane %v3196, 5
      %v3199 = vor.u32 %v3195, %v3198
      %v3200 = vsel %vm2493, %v3181, %v3199
      %v3202 = vshrl.u32 %v2964, 16
      %v3204 = vrot.slane %v3202, 4
      %v3205 = vshll.u32 %v2964, 16
      %v3207 = vrot.slane %v3205, 5
      %v3208 = vor.u32 %v3204, %v3207
      %v3209 = vsel %vm2493, %v3190, %v3208
      %v3211 = vshrl.u32 %v2965, 16
      %v3213 = vrot.slane %v3211, 4
      %v3214 = vshll.u32 %v2965, 16
      %v3216 = vrot.slane %v3214, 5
      %v3217 = vor.u32 %v3213, %v3216
      %v3218 = vsel %vm2493, %v3199, %v3217
      %v3220 = vshrl.u32 %v2966, 16
      %v3222 = vrot.slane %v3220, 4
      %v3223 = vshll.u32 %v2966, 16
      %v3225 = vrot.slane %v3223, 5
      %v3226 = vor.u32 %v3222, %v3225
      %v3227 = vsel %vm2493, %v3208, %v3226
      %v3229 = vshrl.u32 %v2967, 16
      %v3231 = vrot.slane %v3229, 4
      %v3232 = vshll.u32 %v2967, 16
      %v3234 = vrot.slane %v3232, 5
      %v3235 = vor.u32 %v3231, %v3234
      %v3236 = vsel %vm2493, %v3217, %v3235
      %v3238 = vshrl.u32 %v2968, 16
      %v3240 = vrot.slane %v3238, 4
      %v3241 = vshll.u32 %v2968, 16
      %v3243 = vrot.slane %v3241, 5
      %v3244 = vor.u32 %v3240, %v3243
      %v3245 = vsel %vm2493, %v3226, %v3244
      %v3247 = vshrl.u32 %v2969, 16
      %v3249 = vrot.slane %v3247, 4
      %v3250 = vshll.u32 %v2969, 16
      %v3252 = vrot.slane %v3250, 5
      %v3253 = vor.u32 %v3249, %v3252
      %v3254 = vsel %vm2493, %v3235, %v3253
      %v3256 = vshrl.u32 %v2970, 16
      %v3258 = vrot.slane %v3256, 4
      %v3259 = vshll.u32 %v2970, 16
      %v3261 = vrot.slane %v3259, 5
      %v3262 = vor.u32 %v3258, %v3261
      %v3263 = vsel %vm2493, %v3244, %v3262
      %v3265 = vshrl.u32 %v2971, 16
      %v3267 = vrot.slane %v3265, 4
      %v3268 = vshll.u32 %v2971, 16
      %v3270 = vrot.slane %v3268, 5
      %v3271 = vor.u32 %v3267, %v3270
      %v3272 = vsel %vm2493, %v3253, %v3271
      %v3274 = vshrl.u32 %v2972, 16
      %v3276 = vrot.slane %v3274, 4
      %v3277 = vshll.u32 %v2972, 16
      %v3279 = vrot.slane %v3277, 5
      %v3280 = vor.u32 %v3276, %v3279
      %v3281 = vsel %vm2493, %v3262, %v3280
      %v3283 = vshrl.u32 %v2973, 16
      %v3285 = vrot.slane %v3283, 4
      %v3286 = vshll.u32 %v2973, 16
      %v3288 = vrot.slane %v3286, 5
      %v3289 = vor.u32 %v3285, %v3288
      %v3290 = vsel %vm2493, %v3271, %v3289
      %v3292 = vshrl.u32 %v2974, 16
      %v3294 = vrot.slane %v3292, 4
      %v3295 = vshll.u32 %v2974, 16
      %v3297 = vrot.slane %v3295, 5
      %v3298 = vor.u32 %v3294, %v3297
      %v3299 = vsel %vm2493, %v3280, %v3298
      %v3301 = vshrl.u32 %v2975, 16
      %v3303 = vrot.slane %v3301, 4
      %v3304 = vshll.u32 %v2975, 16
      %v3306 = vrot.slane %v3304, 5
      %v3307 = vor.u32 %v3303, %v3306
      %v3308 = vsel %vm2493, %v3289, %v3307
      %v3310 = vshrl.u32 %v2976, 16
      %v3312 = vrot.slane %v3310, 4
      %v3313 = vshll.u32 %v2976, 16
      %v3315 = vrot.slane %v3313, 5
      %v3316 = vor.u32 %v3312, %v3315
      %v3317 = vsel %vm2493, %v3298, %v3316
      %v3319 = vshrl.u32 %v2977, 16
      %v3321 = vrot.slane %v3319, 4
      %v3322 = vshll.u32 %v2977, 16
      %v3324 = vrot.slane %v3322, 5
      %v3325 = vor.u32 %v3321, %v3324
      %v3326 = vsel %vm2493, %v3307, %v3325
      %v3328 = vshrl.u32 %v2978, 16
      %v3330 = vrot.slane %v3328, 4
      %v3331 = vshll.u32 %v2978, 16
      %v3333 = vrot.slane %v3331, 5
      %v3334 = vor.u32 %v3330, %v3333
      %v3335 = vsel %vm2493, %v3316, %v3334
      %v3337 = vshrl.u32 %v2979, 16
      %v3339 = vrot.slane %v3337, 4
      %v3340 = vshll.u32 %v2979, 16
      %v3342 = vrot.slane %v3340, 5
      %v3343 = vor.u32 %v3339, %v3342
      %v3344 = vsel %vm2493, %v3325, %v3343
      %v3346 = vshrl.u32 %v2980, 16
      %v3348 = vrot.slane %v3346, 4
      %v3349 = vshll.u32 %v2980, 16
      %v3351 = vrot.slane %v3349, 5
      %v3352 = vor.u32 %v3348, %v3351
      %v3353 = vsel %vm2493, %v3334, %v3352
      %v3422 = vunpack.c.l.b16 %v2982
      %v3423 = vunpack.c.l.b16 %v2983
      %v3424 = vunpack.c.l.b16 %v2984
      %v3425 = vunpack.c.l.b16 %v2985
      %v3426 = vunpack.c.l.b16 %v2986
      %v3427 = vunpack.c.l.b16 %v2987
      %v3428 = vunpack.c.l.b16 %v2988
      %v3429 = vunpack.c.l.b16 %v2989
      %v3430 = vunpack.c.l.b16 %v2990
      %v3431 = vunpack.c.l.b16 %v2991
      %v3432 = vunpack.c.l.b16 %v2992
      %v3433 = vunpack.c.l.b16 %v2993
      %v3434 = vunpack.c.l.b16 %v2994
      %v3435 = vunpack.c.l.b16 %v2995
      %v3436 = vunpack.c.l.b16 %v2996
      %v3437 = vunpack.c.l.b16 %v2997
      %v3438 = vunpack.c.l.b16 %v2998
      %v3439 = vunpack.c.l.b16 %v2999
      %v3440 = vunpack.c.l.b16 %v3000
      %v3441 = vunpack.c.l.b16 %v3001
      %v3442 = vunpack.c.l.b16 %v3002
      %v3443 = vunpack.c.l.b16 %v3003
      %v3444 = vunpack.c.l.b16 %v3004
      %v3445 = vunpack.c.l.b16 %v3005
      %v3446 = vunpack.c.l.b16 %v3006
      %v3447 = vunpack.c.l.b16 %v3007
      %v3448 = vunpack.c.l.b16 %v3008
      %v3449 = vunpack.c.l.b16 %v3009
      %v3450 = vunpack.c.l.b16 %v3010
      %v3451 = vunpack.c.l.b16 %v3011
      %v3452 = vunpack.c.l.b16 %v3012
      %v3453 = vunpack.c.l.b16 %v3013
      %v3454 = vpack.c.b16 %v3423, %v3422
      %v3455 = vpack.c.b16 %v3425, %v3424
      %v3456 = vpack.c.b16 %v3427, %v3426
      %v3457 = vpack.c.b16 %v3429, %v3428
      %v3458 = vpack.c.b16 %v3431, %v3430
      %v3459 = vpack.c.b16 %v3433, %v3432
      %v3460 = vpack.c.b16 %v3435, %v3434
      %v3461 = vpack.c.b16 %v3437, %v3436
      %v3462 = vpack.c.b16 %v3439, %v3438
      %v3463 = vpack.c.b16 %v3441, %v3440
      %v3464 = vpack.c.b16 %v3443, %v3442
      %v3465 = vpack.c.b16 %v3445, %v3444
      %v3466 = vpack.c.b16 %v3447, %v3446
      %v3467 = vpack.c.b16 %v3449, %v3448
      %v3468 = vpack.c.b16 %v3451, %v3450
      %v3469 = vpack.c.b16 %v3453, %v3452
      %3486 = vmatprep.subr.bf16.mxu0 0
      %3487 = vmatpush1.bf16.msra.mxu0 %v3454
      %3488 = vmatprep.subr.bf16.mxu0 0
      %3489 = vmatpush1.bf16.msra.mxu0 %v3455
      %3490 = vmatprep.subr.bf16.mxu0 0
      %3491 = vmatpush1.bf16.msra.mxu0 %v3456
      %3492 = vmatprep.subr.bf16.mxu0 0
      %3493 = vmatpush1.bf16.msra.mxu0 %v3457
      %3494 = vmatprep.subr.bf16.mxu0 0
      %3495 = vmatpush1.bf16.msra.mxu0 %v3458
      %3496 = vmatprep.subr.bf16.mxu0 0
      %3497 = vmatpush1.bf16.msra.mxu0 %v3459
      %3498 = vmatprep.subr.bf16.mxu0 0
      %3499 = vmatpush1.bf16.msra.mxu0 %v3460
      %3500 = vmatprep.subr.bf16.mxu0 0
      %3501 = vmatpush1.bf16.msra.mxu0 %v3461
      %3502 = vmatprep.subr.bf16.mxu0 0
      %3503 = vmatpush1.bf16.msra.mxu0 %v3462
      %3504 = vmatprep.subr.bf16.mxu0 0
      %3505 = vmatpush1.bf16.msra.mxu0 %v3463
      %3506 = vmatprep.subr.bf16.mxu0 0
      %3507 = vmatpush1.bf16.msra.mxu0 %v3464
      %3508 = vmatprep.subr.bf16.mxu0 0
      %3509 = vmatpush1.bf16.msra.mxu0 %v3465
      %3510 = vmatprep.subr.bf16.mxu0 0
      %3511 = vmatpush1.bf16.msra.mxu0 %v3466
      %3512 = vmatprep.subr.bf16.mxu0 0
      %3513 = vmatpush1.bf16.msra.mxu0 %v3467
      %3514 = vmatprep.subr.bf16.mxu0 0
      %3515 = vmatpush1.bf16.msra.mxu0 %v3468
      %3516 = vmatprep.subr.bf16.mxu0 0
      %3517 = vmatpush1.bf16.msra.mxu0 %v3469
      %3518 = vmatprep.mubr.bf16.mxu0 %v3047
      %3519 = vmatmul.mubr.bf16.gmra.mrb[0].mxu0 %v3030
      %v3520 = vpop.f32.mrb[0].mxu0
      %v3521 = vadd.f32 0.0, %v3520
      %v3522 = vpop.f32.mrb[0].mxu0
      %v3523 = vpop.f32.mrb[0].mxu0
      %v3524 = vadd.f32 0.0, %v3523
      %v3525 = vpop.f32.mrb[0].mxu0
      %3526 = vmatprep.mubr.bf16.mxu0 %v3065
      %3527 = vmatmul.mubr.bf16.gmra.mrb[0].mxu0 %v3056
      %v3528 = vpop.f32.mrb[0].mxu0
      %v3529 = vadd.f32 0.0, %v3528
      %v3530 = vpop.f32.mrb[0].mxu0
      %v3531 = vpop.f32.mrb[0].mxu0
      %v3532 = vadd.f32 0.0, %v3531
      %v3533 = vpop.f32.mrb[0].mxu0
      %3534 = vmatprep.mubr.bf16.mxu0 %v3083
      %3535 = vmatmul.mubr.bf16.gmra.mrb[0].mxu0 %v3074
      %v3536 = vpop.f32.mrb[0].mxu0
      %v3537 = vadd.f32 0.0, %v3536
      %v3538 = vpop.f32.mrb[0].mxu0
      %v3539 = vpop.f32.mrb[0].mxu0
      %v3540 = vadd.f32 0.0, %v3539
      %v3541 = vpop.f32.mrb[0].mxu0
      %3542 = vmatprep.mubr.bf16.mxu0 %v3101
      %3543 = vmatmul.mubr.bf16.gmra.mrb[0].mxu0 %v3092
      %v3544 = vpop.f32.mrb[0].mxu0
      %v3545 = vadd.f32 0.0, %v3544
      %v3546 = vpop.f32.mrb[0].mxu0
      %v3547 = vpop.f32.mrb[0].mxu0
      %v3548 = vadd.f32 0.0, %v3547
      %v3549 = vpop.f32.mrb[0].mxu0
      %3550 = vmatprep.mubr.bf16.mxu0 %v3119
      %3551 = vmatmul.mubr.bf16.gmra.mrb[0].mxu0 %v3110
      %v3552 = vpop.f32.mrb[0].mxu0
      %v3553 = vadd.f32 0.0, %v3552
      %v3554 = vpop.f32.mrb[0].mxu0
      %v3555 = vpop.f32.mrb[0].mxu0
      %v3556 = vadd.f32 0.0, %v3555
      %v3557 = vpop.f32.mrb[0].mxu0
      %3558 = vmatprep.mubr.bf16.mxu0 %v3137
      %3559 = vmatmul.mubr.bf16.gmra.mrb[0].mxu0 %v3128
      %v3560 = vpop.f32.mrb[0].mxu0
      %v3561 = vadd.f32 0.0, %v3560
      %v3562 = vpop.f32.mrb[0].mxu0
      %v3563 = vpop.f32.mrb[0].mxu0
      %v3564 = vadd.f32 0.0, %v3563
      %v3565 = vpop.f32.mrb[0].mxu0
      %3566 = vmatprep.mubr.bf16.mxu0 %v3155
      %3567 = vmatmul.mubr.bf16.gmra.mrb[0].mxu0 %v3146
      %v3568 = vpop.f32.mrb[0].mxu0
      %v3569 = vadd.f32 0.0, %v3568
      %v3570 = vpop.f32.mrb[0].mxu0
      %v3571 = vpop.f32.mrb[0].mxu0
      %v3572 = vadd.f32 0.0, %v3571
      %v3573 = vpop.f32.mrb[0].mxu0
      %3574 = vmatprep.mubr.bf16.mxu0 %v3173
      %3575 = vmatmul.mubr.bf16.gmra.mrb[0].mxu0 %v3164
      %v3576 = vpop.f32.mrb[0].mxu0
      %v3577 = vadd.f32 0.0, %v3576
      %v3578 = vpop.f32.mrb[0].mxu0
      %v3579 = vpop.f32.mrb[0].mxu0
      %v3580 = vadd.f32 0.0, %v3579
      %v3581 = vpop.f32.mrb[0].mxu0
      %3582 = vmatprep.mubr.bf16.mxu0 %v3191
      %3583 = vmatmul.mubr.bf16.gmra.mrb[0].mxu0 %v3182
      %v3584 = vpop.f32.mrb[0].mxu0
      %v3585 = vadd.f32 0.0, %v3584
      %v3586 = vpop.f32.mrb[0].mxu0
      %v3587 = vpop.f32.mrb[0].mxu0
      %v3588 = vadd.f32 0.0, %v3587
      %v3589 = vpop.f32.mrb[0].mxu0
      %3590 = vmatprep.mubr.bf16.mxu0 %v3209
      %3591 = vmatmul.mubr.bf16.gmra.mrb[0].mxu0 %v3200
      %v3592 = vpop.f32.mrb[0].mxu0
      %v3593 = vadd.f32 0.0, %v3592
      %v3594 = vpop.f32.mrb[0].mxu0
      %v3595 = vpop.f32.mrb[0].mxu0
      %v3596 = vadd.f32 0.0, %v3595
      %v3597 = vpop.f32.mrb[0].mxu0
      %3598 = vmatprep.mubr.bf16.mxu0 %v3227
      %3599 = vmatmul.mubr.bf16.gmra.mrb[0].mxu0 %v3218
      %v3600 = vpop.f32.mrb[0].mxu0
      %v3601 = vadd.f32 0.0, %v3600
      %v3602 = vpop.f32.mrb[0].mxu0
      %v3603 = vpop.f32.mrb[0].mxu0
      %v3604 = vadd.f32 0.0, %v3603
      %v3605 = vpop.f32.mrb[0].mxu0
      %3606 = vmatprep.mubr.bf16.mxu0 %v3245
      %3607 = vmatmul.mubr.bf16.gmra.mrb[0].mxu0 %v3236
      %v3608 = vpop.f32.mrb[0].mxu0
      %v3609 = vadd.f32 0.0, %v3608
      %v3610 = vpop.f32.mrb[0].mxu0
      %v3611 = vpop.f32.mrb[0].mxu0
      %v3612 = vadd.f32 0.0, %v3611
      %v3613 = vpop.f32.mrb[0].mxu0
      %3614 = vmatprep.mubr.bf16.mxu0 %v3263
      %3615 = vmatmul.mubr.bf16.gmra.mrb[0].mxu0 %v3254
      %v3616 = vpop.f32.mrb[0].mxu0
      %v3617 = vadd.f32 0.0, %v3616
      %v3618 = vpop.f32.mrb[0].mxu0
      %v3619 = vpop.f32.mrb[0].mxu0
      %v3620 = vadd.f32 0.0, %v3619
      %v3621 = vpop.f32.mrb[0].mxu0
      %3622 = vmatprep.mubr.bf16.mxu0 %v3281
      %3623 = vmatmul.mubr.bf16.gmra.mrb[0].mxu0 %v3272
      %v3624 = vpop.f32.mrb[0].mxu0
      %v3625 = vadd.f32 0.0, %v3624
      %v3626 = vpop.f32.mrb[0].mxu0
      %v3627 = vpop.f32.mrb[0].mxu0
      %v3628 = vadd.f32 0.0, %v3627
      %v3629 = vpop.f32.mrb[0].mxu0
      %3630 = vmatprep.mubr.bf16.mxu0 %v3299
      %3631 = vmatmul.mubr.bf16.gmra.mrb[0].mxu0 %v3290
      %v3632 = vpop.f32.mrb[0].mxu0
      %v3633 = vadd.f32 0.0, %v3632
      %v3634 = vpop.f32.mrb[0].mxu0
      %v3635 = vpop.f32.mrb[0].mxu0
      %v3636 = vadd.f32 0.0, %v3635
      %v3637 = vpop.f32.mrb[0].mxu0
      %3638 = vmatprep.mubr.bf16.mxu0 %v3317
      %3639 = vmatmul.mubr.bf16.gmra.mrb[0].mxu0 %v3308
      %v3640 = vpop.f32.mrb[0].mxu0
      %v3641 = vadd.f32 0.0, %v3640
      %v3642 = vpop.f32.mrb[0].mxu0
      %v3643 = vpop.f32.mrb[0].mxu0
      %v3644 = vadd.f32 0.0, %v3643
      %v3645 = vpop.f32.mrb[0].mxu0
      %3646 = vmatprep.mubr.bf16.mxu0 %v3335
      %3647 = vmatmul.mubr.bf16.gmra.mrb[0].mxu0 %v3326
      %v3648 = vpop.f32.mrb[0].mxu0
      %v3649 = vadd.f32 0.0, %v3648
      %v3650 = vpop.f32.mrb[0].mxu0
      %v3651 = vpop.f32.mrb[0].mxu0
      %v3652 = vadd.f32 0.0, %v3651
      %v3653 = vpop.f32.mrb[0].mxu0
      %3654 = vmatprep.mubr.bf16.mxu0 %v3353
      %3655 = vmatmul.mubr.bf16.gmra.mrb[0].mxu0 %v3344
      %v3656 = vpop.f32.mrb[0].mxu0
      %v3657 = vadd.f32 0.0, %v3656
      %v3658 = vpop.f32.mrb[0].mxu0
      %v3659 = vpop.f32.mrb[0].mxu0
      %v3660 = vadd.f32 0.0, %v3659
      %v3661 = vpop.f32.mrb[0].mxu0
      %3662 = vdwg.mxu0
      %v3663 = vadd.f32 %v2907, %v3521
      %v3664 = vadd.f32 %v2908, %v3524
      %v3665 = vadd.f32 %v2909, %v3529
      %v3666 = vadd.f32 %v2910, %v3532
      %v3667 = vadd.f32 %v2911, %v3537
      %v3668 = vadd.f32 %v2912, %v3540
      %v3669 = vadd.f32 %v2913, %v3545
      %v3670 = vadd.f32 %v2914, %v3548
      %v3671 = vadd.f32 %v2915, %v3553
      %v3672 = vadd.f32 %v2916, %v3556
      %v3673 = vadd.f32 %v2917, %v3561
      %v3674 = vadd.f32 %v2918, %v3564
      %v3675 = vadd.f32 %v2919, %v3569
      %v3676 = vadd.f32 %v2920, %v3572
      %v3677 = vadd.f32 %v2921, %v3577
      %v3678 = vadd.f32 %v2922, %v3580
      %v3679 = vadd.f32 %v2923, %v3585
      %v3680 = vadd.f32 %v2924, %v3588
      %v3681 = vadd.f32 %v2925, %v3593
      %v3682 = vadd.f32 %v2926, %v3596
      %v3683 = vadd.f32 %v2927, %v3601
      %v3684 = vadd.f32 %v2928, %v3604
      %v3685 = vadd.f32 %v2929, %v3609
      %v3686 = vadd.f32 %v2930, %v3612
      %v3687 = vadd.f32 %v2931, %v3617
      %v3688 = vadd.f32 %v2932, %v3620
      %v3689 = vadd.f32 %v2933, %v3625
      %v3690 = vadd.f32 %v2934, %v3628
      %v3691 = vadd.f32 %v2935, %v3633
      %v3692 = vadd.f32 %v2936, %v3636
      %v3693 = vadd.f32 %v2937, %v3641
      %v3694 = vadd.f32 %v2938, %v3644
      %v3695 = vadd.f32 %v2939, %v3649
      %v3696 = vadd.f32 %v2940, %v3652
      %v3697 = vadd.f32 %v2941, %v3657
      %v3698 = vadd.f32 %v2942, %v3660
      %v3699 = vld [vmem:[#allocation2 + $0x20] sm:$0xe0]
      %v3700 = vld [vmem:[#allocation2 + $0x30] sm:$0xff]
      %v3701 = vld [vmem:[#allocation2 + $0x40] sm:$0xff]
      %v3702 = vld [vmem:[#allocation2 + $0x50] sm:$0xff]
      %v3703 = vld [vmem:[#allocation2 + $0x60] sm:$0xff]
      %v3704 = vld [vmem:[#allocation2 + $0x70] sm:$0xff]
      %v3705 = vld [vmem:[#allocation2 + $0x80] sm:$0xff]
      %v3706 = vld [vmem:[#allocation2 + $0x90] sm:$0xff]
      %v3707 = vld [vmem:[#allocation2 + $0xa0] sm:$0xff]
      %v3708 = vld [vmem:[#allocation2 + $0xb0] sm:$0xff]
      %v3709 = vld [vmem:[#allocation2 + $0xc0] sm:$0xff]
      %v3710 = vld [vmem:[#allocation2 + $0xd0] sm:$0xff]
      %v3711 = vld [vmem:[#allocation2 + $0xe0] sm:$0xff]
      %v3712 = vld [vmem:[#allocation2 + $0xf0] sm:$0xff]
      %v3713 = vld [vmem:[#allocation2 + $0x100] sm:$0xff]
      %v3714 = vld [vmem:[#allocation2 + $0x110] sm:$0xff]
      %v3715 = vld [vmem:[#allocation2 + $0x120] sm:$0xff]
      %v3716 = vld [vmem:[#allocation2 + $0x130] sm:$0xff]
      %v3717 = vld [vmem:[#allocation2 + $0x140] sm:$0x3f]
      %s3718 = scalar_lea.vmem %s2, 128
      %v3719 = vld [vmem:[%s3718] sm:$0xf]
      %v3720 = vld [vmem:[%s3718 + $0x4] sm:$0xf]
      %v3721 = vld [vmem:[%s3718 + $0x8] sm:$0xf]
      %v3722 = vld [vmem:[%s3718 + $0xc] sm:$0xf]
      %v3723 = vld [vmem:[%s3718 + $0x10] sm:$0xf]
      %v3724 = vld [vmem:[%s3718 + $0x14] sm:$0xf]
      %v3725 = vld [vmem:[%s3718 + $0x18] sm:$0xf]
      %v3726 = vld [vmem:[%s3718 + $0x1c] sm:$0xf]
      %v3727 = vld [vmem:[%s3718 + $0x20] sm:$0xf]
      %v3728 = vld [vmem:[%s3718 + $0x24] sm:$0xf]
      %v3729 = vld [vmem:[%s3718 + $0x28] sm:$0xf]
      %v3730 = vld [vmem:[%s3718 + $0x2c] sm:$0xf]
      %v3731 = vld [vmem:[%s3718 + $0x30] sm:$0xf]
      %v3732 = vld [vmem:[%s3718 + $0x34] sm:$0xf]
      %v3733 = vld [vmem:[%s3718 + $0x38] sm:$0xf]
      %v3734 = vld [vmem:[%s3718 + $0x3c] sm:$0xf]
      %vm3735 = vsmask.f32 2304
      %v3737 = vshrl.u32 %v3699, 16
      %v3739 = vrot.slane %v3737, 5
      %v3740 = vshll.u32 %v3699, 16
      %v3742 = vrot.slane %v3740, 6
      %v3743 = vor.u32 %v3739, %v3742
      %v3745 = vshrl.u32 %v3700, 16
      %v3747 = vrot.slane %v3745, 5
      %v3748 = vshll.u32 %v3700, 16
      %v3750 = vrot.slane %v3748, 6
      %v3751 = vor.u32 %v3747, %v3750
      %v3752 = vsel %vm3735, %v3743, %v3751
      %v3754 = vshrl.u32 %v3701, 16
      %v3756 = vrot.slane %v3754, 5
      %v3757 = vshll.u32 %v3701, 16
      %v3759 = vrot.slane %v3757, 6
      %v3760 = vor.u32 %v3756, %v3759
      %v3761 = vsel %vm3735, %v3751, %v3760
      %v3763 = vshrl.u32 %v3702, 16
      %v3765 = vrot.slane %v3763, 5
      %v3766 = vshll.u32 %v3702, 16
      %v3768 = vrot.slane %v3766, 6
      %v3769 = vor.u32 %v3765, %v3768
      %v3770 = vsel %vm3735, %v3760, %v3769
      %v3772 = vshrl.u32 %v3703, 16
      %v3774 = vrot.slane %v3772, 5
      %v3775 = vshll.u32 %v3703, 16
      %v3777 = vrot.slane %v3775, 6
      %v3778 = vor.u32 %v3774, %v3777
      %v3779 = vsel %vm3735, %v3769, %v3778
      %v3781 = vshrl.u32 %v3704, 16
      %v3783 = vrot.slane %v3781, 5
      %v3784 = vshll.u32 %v3704, 16
      %v3786 = vrot.slane %v3784, 6
      %v3787 = vor.u32 %v3783, %v3786
      %v3788 = vsel %vm3735, %v3778, %v3787
      %v3790 = vshrl.u32 %v3705, 16
      %v3792 = vrot.slane %v3790, 5
      %v3793 = vshll.u32 %v3705, 16
      %v3795 = vrot.slane %v3793, 6
      %v3796 = vor.u32 %v3792, %v3795
      %v3797 = vsel %vm3735, %v3787, %v3796
      %v3799 = vshrl.u32 %v3706, 16
      %v3801 = vrot.slane %v3799, 5
      %v3802 = vshll.u32 %v3706, 16
      %v3804 = vrot.slane %v3802, 6
      %v3805 = vor.u32 %v3801, %v3804
      %v3806 = vsel %vm3735, %v3796, %v3805
      %v3808 = vshrl.u32 %v3707, 16
      %v3810 = vrot.slane %v3808, 5
      %v3811 = vshll.u32 %v3707, 16
      %v3813 = vrot.slane %v3811, 6
      %v3814 = vor.u32 %v3810, %v3813
      %v3815 = vsel %vm3735, %v3805, %v3814
      %v3817 = vshrl.u32 %v3708, 16
      %v3819 = vrot.slane %v3817, 5
      %v3820 = vshll.u32 %v3708, 16
      %v3822 = vrot.slane %v3820, 6
      %v3823 = vor.u32 %v3819, %v3822
      %v3824 = vsel %vm3735, %v3814, %v3823
      %v3826 = vshrl.u32 %v3709, 16
      %v3828 = vrot.slane %v3826, 5
      %v3829 = vshll.u32 %v3709, 16
      %v3831 = vrot.slane %v3829, 6
      %v3832 = vor.u32 %v3828, %v3831
      %v3833 = vsel %vm3735, %v3823, %v3832
      %v3835 = vshrl.u32 %v3710, 16
      %v3837 = vrot.slane %v3835, 5
      %v3838 = vshll.u32 %v3710, 16
      %v3840 = vrot.slane %v3838, 6
      %v3841 = vor.u32 %v3837, %v3840
      %v3842 = vsel %vm3735, %v3832, %v3841
      %v3844 = vshrl.u32 %v3711, 16
      %v3846 = vrot.slane %v3844, 5
      %v3847 = vshll.u32 %v3711, 16
      %v3849 = vrot.slane %v3847, 6
      %v3850 = vor.u32 %v3846, %v3849
      %v3851 = vsel %vm3735, %v3841, %v3850
      %v3853 = vshrl.u32 %v3712, 16
      %v3855 = vrot.slane %v3853, 5
      %v3856 = vshll.u32 %v3712, 16
      %v3858 = vrot.slane %v3856, 6
      %v3859 = vor.u32 %v3855, %v3858
      %v3860 = vsel %vm3735, %v3850, %v3859
      %v3862 = vshrl.u32 %v3713, 16
      %v3864 = vrot.slane %v3862, 5
      %v3865 = vshll.u32 %v3713, 16
      %v3867 = vrot.slane %v3865, 6
      %v3868 = vor.u32 %v3864, %v3867
      %v3869 = vsel %vm3735, %v3859, %v3868
      %v3871 = vshrl.u32 %v3714, 16
      %v3873 = vrot.slane %v3871, 5
      %v3874 = vshll.u32 %v3714, 16
      %v3876 = vrot.slane %v3874, 6
      %v3877 = vor.u32 %v3873, %v3876
      %v3878 = vsel %vm3735, %v3868, %v3877
      %v3880 = vshrl.u32 %v3715, 16
      %v3882 = vrot.slane %v3880, 5
      %v3883 = vshll.u32 %v3715, 16
      %v3885 = vrot.slane %v3883, 6
      %v3886 = vor.u32 %v3882, %v3885
      %v3887 = vsel %vm3735, %v3877, %v3886
      %v3889 = vshrl.u32 %v3716, 16
      %v3891 = vrot.slane %v3889, 5
      %v3892 = vshll.u32 %v3716, 16
      %v3894 = vrot.slane %v3892, 6
      %v3895 = vor.u32 %v3891, %v3894
      %v3896 = vsel %vm3735, %v3886, %v3895
      %v3898 = vshrl.u32 %v3717, 16
      %v3900 = vrot.slane %v3898, 5
      %v3901 = vshll.u32 %v3717, 16
      %v3903 = vrot.slane %v3901, 6
      %v3904 = vor.u32 %v3900, %v3903
      %v3905 = vsel %vm3735, %v3895, %v3904
      %v3940 = vunpack.c.l.b16 %v3719
      %v3941 = vunpack.c.l.b16 %v3720
      %v3942 = vunpack.c.l.b16 %v3721
      %v3943 = vunpack.c.l.b16 %v3722
      %v3944 = vunpack.c.l.b16 %v3723
      %v3945 = vunpack.c.l.b16 %v3724
      %v3946 = vunpack.c.l.b16 %v3725
      %v3947 = vunpack.c.l.b16 %v3726
      %v3948 = vunpack.c.l.b16 %v3727
      %v3949 = vunpack.c.l.b16 %v3728
      %v3950 = vunpack.c.l.b16 %v3729
      %v3951 = vunpack.c.l.b16 %v3730
      %v3952 = vunpack.c.l.b16 %v3731
      %v3953 = vunpack.c.l.b16 %v3732
      %v3954 = vunpack.c.l.b16 %v3733
      %v3955 = vunpack.c.l.b16 %v3734
      %v3956 = vpack.c.b16 %v3941, %v3940
      %v3957 = vpack.c.b16 %v3943, %v3942
      %v3958 = vpack.c.b16 %v3945, %v3944
      %v3959 = vpack.c.b16 %v3947, %v3946
      %v3960 = vpack.c.b16 %v3949, %v3948
      %v3961 = vpack.c.b16 %v3951, %v3950
      %v3962 = vpack.c.b16 %v3953, %v3952
      %v3963 = vpack.c.b16 %v3955, %v3954
      %3972 = vmatprep.subr.bf16.mxu0 0
      %3973 = vmatpush1.bf16.msra.mxu0 %v3956
      %3974 = vmatprep.subr.bf16.mxu0 0
      %3975 = vmatpush1.bf16.msra.mxu0 %v3957
      %3976 = vmatprep.subr.bf16.mxu0 0
      %3977 = vmatpush1.bf16.msra.mxu0 %v3958
      %3978 = vmatprep.subr.bf16.mxu0 0
      %3979 = vmatpush1.bf16.msra.mxu0 %v3959
      %3980 = vmatprep.subr.bf16.mxu0 0
      %3981 = vmatpush1.bf16.msra.mxu0 %v3960
      %3982 = vmatprep.subr.bf16.mxu0 0
      %3983 = vmatpush1.bf16.msra.mxu0 %v3961
      %3984 = vmatprep.subr.bf16.mxu0 0
      %3985 = vmatpush1.bf16.msra.mxu0 %v3962
      %3986 = vmatprep.subr.bf16.mxu0 0
      %3987 = vmatpush1.bf16.msra.mxu0 %v3963
      %3988 = vmatprep.subr.bf16.mxu0 0
      %3989 = vmatpush1.bf16.msra.mxu0 0
      %3990 = vmatprep.subr.bf16.mxu0 0
      %3991 = vmatpush1.bf16.msra.mxu0 0
      %3992 = vmatprep.subr.bf16.mxu0 0
      %3993 = vmatpush1.bf16.msra.mxu0 0
      %3994 = vmatprep.subr.bf16.mxu0 0
      %3995 = vmatpush1.bf16.msra.mxu0 0
      %3996 = vmatprep.subr.bf16.mxu0 0
      %3997 = vmatpush1.bf16.msra.mxu0 0
      %3998 = vmatprep.subr.bf16.mxu0 0
      %3999 = vmatpush1.bf16.msra.mxu0 0
      %4000 = vmatprep.subr.bf16.mxu0 0
      %4001 = vmatpush1.bf16.msra.mxu0 0
      %4002 = vmatprep.subr.bf16.mxu0 0
      %4003 = vmatpush1.bf16.msra.mxu0 0
      %4004 = vmatprep.mubr.bf16.mxu0 0
      %4005 = vmatmul.mubr.bf16.gmra.mrb[0].mxu0 %v3752
      %v4006 = vpop.f32.mrb[0].mxu0
      %v4007 = vadd.f32 0.0, %v4006
      %v4008 = vpop.f32.mrb[0].mxu0
      %v4009 = vpop.f32.mrb[0].mxu0
      %v4010 = vadd.f32 0.0, %v4009
      %v4011 = vpop.f32.mrb[0].mxu0
      %4012 = vmatprep.mubr.bf16.mxu0 0
      %4013 = vmatmul.mubr.bf16.gmra.mrb[0].mxu0 %v3761
      %v4014 = vpop.f32.mrb[0].mxu0
      %v4015 = vadd.f32 0.0, %v4014
      %v4016 = vpop.f32.mrb[0].mxu0
      %v4017 = vpop.f32.mrb[0].mxu0
      %v4018 = vadd.f32 0.0, %v4017
      %v4019 = vpop.f32.mrb[0].mxu0
      %4020 = vmatprep.mubr.bf16.mxu0 0
      %4021 = vmatmul.mubr.bf16.gmra.mrb[0].mxu0 %v3770
      %v4022 = vpop.f32.mrb[0].mxu0
      %v4023 = vadd.f32 0.0, %v4022
      %v4024 = vpop.f32.mrb[0].mxu0
      %v4025 = vpop.f32.mrb[0].mxu0
      %v4026 = vadd.f32 0.0, %v4025
      %v4027 = vpop.f32.mrb[0].mxu0
      %4028 = vmatprep.mubr.bf16.mxu0 0
      %4029 = vmatmul.mubr.bf16.gmra.mrb[0].mxu0 %v3779
      %v4030 = vpop.f32.mrb[0].mxu0
      %v4031 = vadd.f32 0.0, %v4030
      %v4032 = vpop.f32.mrb[0].mxu0
      %v4033 = vpop.f32.mrb[0].mxu0
      %v4034 = vadd.f32 0.0, %v4033
      %v4035 = vpop.f32.mrb[0].mxu0
      %4036 = vmatprep.mubr.bf16.mxu0 0
      %4037 = vmatmul.mubr.bf16.gmra.mrb[0].mxu0 %v3788
      %v4038 = vpop.f32.mrb[0].mxu0
      %v4039 = vadd.f32 0.0, %v4038
      %v4040 = vpop.f32.mrb[0].mxu0
      %v4041 = vpop.f32.mrb[0].mxu0
      %v4042 = vadd.f32 0.0, %v4041
      %v4043 = vpop.f32.mrb[0].mxu0
      %4044 = vmatprep.mubr.bf16.mxu0 0
      %4045 = vmatmul.mubr.bf16.gmra.mrb[0].mxu0 %v3797
      %v4046 = vpop.f32.mrb[0].mxu0
      %v4047 = vadd.f32 0.0, %v4046
      %v4048 = vpop.f32.mrb[0].mxu0
      %v4049 = vpop.f32.mrb[0].mxu0
      %v4050 = vadd.f32 0.0, %v4049
      %v4051 = vpop.f32.mrb[0].mxu0
      %4052 = vmatprep.mubr.bf16.mxu0 0
      %4053 = vmatmul.mubr.bf16.gmra.mrb[0].mxu0 %v3806
      %v4054 = vpop.f32.mrb[0].mxu0
      %v4055 = vadd.f32 0.0, %v4054
      %v4056 = vpop.f32.mrb[0].mxu0
      %v4057 = vpop.f32.mrb[0].mxu0
      %v4058 = vadd.f32 0.0, %v4057
      %v4059 = vpop.f32.mrb[0].mxu0
      %4060 = vmatprep.mubr.bf16.mxu0 0
      %4061 = vmatmul.mubr.bf16.gmra.mrb[0].mxu0 %v3815
      %v4062 = vpop.f32.mrb[0].mxu0
      %v4063 = vadd.f32 0.0, %v4062
      %v4064 = vpop.f32.mrb[0].mxu0
      %v4065 = vpop.f32.mrb[0].mxu0
      %v4066 = vadd.f32 0.0, %v4065
      %v4067 = vpop.f32.mrb[0].mxu0
      %4068 = vmatprep.mubr.bf16.mxu0 0
      %4069 = vmatmul.mubr.bf16.gmra.mrb[0].mxu0 %v3824
      %v4070 = vpop.f32.mrb[0].mxu0
      %v4071 = vadd.f32 0.0, %v4070
      %v4072 = vpop.f32.mrb[0].mxu0
      %v4073 = vpop.f32.mrb[0].mxu0
      %v4074 = vadd.f32 0.0, %v4073
      %v4075 = vpop.f32.mrb[0].mxu0
      %4076 = vmatprep.mubr.bf16.mxu0 0
      %4077 = vmatmul.mubr.bf16.gmra.mrb[0].mxu0 %v3833
      %v4078 = vpop.f32.mrb[0].mxu0
      %v4079 = vadd.f32 0.0, %v4078
      %v4080 = vpop.f32.mrb[0].mxu0
      %v4081 = vpop.f32.mrb[0].mxu0
      %v4082 = vadd.f32 0.0, %v4081
      %v4083 = vpop.f32.mrb[0].mxu0
      %4084 = vmatprep.mubr.bf16.mxu0 0
      %4085 = vmatmul.mubr.bf16.gmra.mrb[0].mxu0 %v3842
      %v4086 = vpop.f32.mrb[0].mxu0
      %v4087 = vadd.f32 0.0, %v4086
      %v4088 = vpop.f32.mrb[0].mxu0
      %v4089 = vpop.f32.mrb[0].mxu0
      %v4090 = vadd.f32 0.0, %v4089
      %v4091 = vpop.f32.mrb[0].mxu0
      %4092 = vmatprep.mubr.bf16.mxu0 0
      %4093 = vmatmul.mubr.bf16.gmra.mrb[0].mxu0 %v3851
      %v4094 = vpop.f32.mrb[0].mxu0
      %v4095 = vadd.f32 0.0, %v4094
      %v4096 = vpop.f32.mrb[0].mxu0
      %v4097 = vpop.f32.mrb[0].mxu0
      %v4098 = vadd.f32 0.0, %v4097
      %v4099 = vpop.f32.mrb[0].mxu0
      %4100 = vmatprep.mubr.bf16.mxu0 0
      %4101 = vmatmul.mubr.bf16.gmra.mrb[0].mxu0 %v3860
      %v4102 = vpop.f32.mrb[0].mxu0
      %v4103 = vadd.f32 0.0, %v4102
      %v4104 = vpop.f32.mrb[0].mxu0
      %v4105 = vpop.f32.mrb[0].mxu0
      %v4106 = vadd.f32 0.0, %v4105
      %v4107 = vpop.f32.mrb[0].mxu0
      %4108 = vmatprep.mubr.bf16.mxu0 0
      %4109 = vmatmul.mubr.bf16.gmra.mrb[0].mxu0 %v3869
      %v4110 = vpop.f32.mrb[0].mxu0
      %v4111 = vadd.f32 0.0, %v4110
      %v4112 = vpop.f32.mrb[0].mxu0
      %v4113 = vpop.f32.mrb[0].mxu0
      %v4114 = vadd.f32 0.0, %v4113
      %v4115 = vpop.f32.mrb[0].mxu0
      %4116 = vmatprep.mubr.bf16.mxu0 0
      %4117 = vmatmul.mubr.bf16.gmra.mrb[0].mxu0 %v3878
      %v4118 = vpop.f32.mrb[0].mxu0
      %v4119 = vadd.f32 0.0, %v4118
      %v4120 = vpop.f32.mrb[0].mxu0
      %v4121 = vpop.f32.mrb[0].mxu0
      %v4122 = vadd.f32 0.0, %v4121
      %v4123 = vpop.f32.mrb[0].mxu0
      %4124 = vmatprep.mubr.bf16.mxu0 0
      %4125 = vmatmul.mubr.bf16.gmra.mrb[0].mxu0 %v3887
      %v4126 = vpop.f32.mrb[0].mxu0
      %v4127 = vadd.f32 0.0, %v4126
      %v4128 = vpop.f32.mrb[0].mxu0
      %v4129 = vpop.f32.mrb[0].mxu0
      %v4130 = vadd.f32 0.0, %v4129
      %v4131 = vpop.f32.mrb[0].mxu0
      %4132 = vmatprep.mubr.bf16.mxu0 0
      %4133 = vmatmul.mubr.bf16.gmra.mrb[0].mxu0 %v3896
      %v4134 = vpop.f32.mrb[0].mxu0
      %v4135 = vadd.f32 0.0, %v4134
      %v4136 = vpop.f32.mrb[0].mxu0
      %v4137 = vpop.f32.mrb[0].mxu0
      %v4138 = vadd.f32 0.0, %v4137
      %v4139 = vpop.f32.mrb[0].mxu0
      %4140 = vmatprep.mubr.bf16.mxu0 0
      %4141 = vmatmul.mubr.bf16.gmra.mrb[0].mxu0 %v3905
      %v4142 = vpop.f32.mrb[0].mxu0
      %v4143 = vadd.f32 0.0, %v4142
      %v4144 = vpop.f32.mrb[0].mxu0
      %v4145 = vpop.f32.mrb[0].mxu0
      %v4146 = vadd.f32 0.0, %v4145
      %v4147 = vpop.f32.mrb[0].mxu0
      %4148 = vdwg.mxu0
      %v4149 = vadd.f32 %v3663, %v4007
      %v4150 = vadd.f32 %v3664, %v4010
      %v4151 = vadd.f32 %v3665, %v4015
      %v4152 = vadd.f32 %v3666, %v4018
      %v4153 = vadd.f32 %v3667, %v4023
      %v4154 = vadd.f32 %v3668, %v4026
      %v4155 = vadd.f32 %v3669, %v4031
      %v4156 = vadd.f32 %v3670, %v4034
      %v4157 = vadd.f32 %v3671, %v4039
      %v4158 = vadd.f32 %v3672, %v4042
      %v4159 = vadd.f32 %v3673, %v4047
      %v4160 = vadd.f32 %v3674, %v4050
      %v4161 = vadd.f32 %v3675, %v4055
      %v4162 = vadd.f32 %v3676, %v4058
      %v4163 = vadd.f32 %v3677, %v4063
      %v4164 = vadd.f32 %v3678, %v4066
      %v4165 = vadd.f32 %v3679, %v4071
      %v4166 = vadd.f32 %v3680, %v4074
      %v4167 = vadd.f32 %v3681, %v4079
      %v4168 = vadd.f32 %v3682, %v4082
      %v4169 = vadd.f32 %v3683, %v4087
      %v4170 = vadd.f32 %v3684, %v4090
      %v4171 = vadd.f32 %v3685, %v4095
      %v4172 = vadd.f32 %v3686, %v4098
      %v4173 = vadd.f32 %v3687, %v4103
      %v4174 = vadd.f32 %v3688, %v4106
      %v4175 = vadd.f32 %v3689, %v4111
      %v4176 = vadd.f32 %v3690, %v4114
      %v4177 = vadd.f32 %v3691, %v4119
      %v4178 = vadd.f32 %v3692, %v4122
      %v4179 = vadd.f32 %v3693, %v4127
      %v4180 = vadd.f32 %v3694, %v4130
      %v4181 = vadd.f32 %v3695, %v4135
      %v4182 = vadd.f32 %v3696, %v4138
      %v4183 = vadd.f32 %v3697, %v4143
      %v4184 = vadd.f32 %v3698, %v4146
      %v4185 = vlaneseq
      %v4186 = vshrl.u32 %v4185, 7
      %v4187 = vadd.s32 %v4186, 8
      %v4188 = vadd.s32 %v4186, 16
      %v4189 = vadd.s32 %v4186, 24
      %v4190 = vadd.s32 %v4186, 32
      %v4191 = vadd.s32 %v4186, 40
      %v4192 = vadd.s32 %v4186, 48
      %v4193 = vadd.s32 %v4186, 56
      %v4194 = vadd.s32 %v4186, 64
      %v4195 = vadd.s32 %v4186, 72
      %v4196 = vadd.s32 %v4186, 80
      %v4197 = vadd.s32 %v4186, 88
      %v4198 = vadd.s32 %v4186, 96
      %v4199 = vadd.s32 %v4186, 104
      %v4200 = vadd.s32 %v4186, 112
      %v4201 = vadd.s32 %v4186, 120
      %v4202 = vadd.s32 %v4186, 128
      %v4203 = vadd.s32 %v4186, 136
      %v4204 = vadd.s32 %v4186, 144
      %v4205 = vadd.s32 %v4186, 152
      %v4206 = vadd.s32 %v4186, 160
      %v4207 = vadd.s32 %v4186, 168
      %v4208 = vadd.s32 %v4186, 176
      %v4209 = vadd.s32 %v4186, 184
      %v4210 = vadd.s32 %v4186, 192
      %v4211 = vadd.s32 %v4186, 200
      %v4212 = vadd.s32 %v4186, 208
      %v4213 = vadd.s32 %v4186, 216
      %v4214 = vadd.s32 %v4186, 224
      %v4215 = vadd.s32 %v4186, 232
      %v4216 = vadd.s32 %v4186, 240
      %v4217 = vadd.s32 %v4186, 248
      %v4218 = vadd.s32 %v4186, 256
      %v4219 = vadd.s32 %v4186, 264
      %v4220 = vadd.s32 %v4186, 272
      %v4221 = vadd.s32 %v4186, 280
      %v4222 = vcvt.s32.f32 %v4186
      %v4223 = vcvt.s32.f32 %v4187
      %v4224 = vcvt.s32.f32 %v4188
      %v4225 = vcvt.s32.f32 %v4189
      %v4226 = vcvt.s32.f32 %v4190
      %v4227 = vcvt.s32.f32 %v4191
      %v4228 = vcvt.s32.f32 %v4192
      %v4229 = vcvt.s32.f32 %v4193
      %v4230 = vcvt.s32.f32 %v4194
      %v4231 = vcvt.s32.f32 %v4195
      %v4232 = vcvt.s32.f32 %v4196
      %v4233 = vcvt.s32.f32 %v4197
      %v4234 = vcvt.s32.f32 %v4198
      %v4235 = vcvt.s32.f32 %v4199
      %v4236 = vcvt.s32.f32 %v4200
      %v4237 = vcvt.s32.f32 %v4201
      %v4238 = vcvt.s32.f32 %v4202
      %v4239 = vcvt.s32.f32 %v4203
      %v4240 = vcvt.s32.f32 %v4204
      %v4241 = vcvt.s32.f32 %v4205
      %v4242 = vcvt.s32.f32 %v4206
      %v4243 = vcvt.s32.f32 %v4207
      %v4244 = vcvt.s32.f32 %v4208
      %v4245 = vcvt.s32.f32 %v4209
      %v4246 = vcvt.s32.f32 %v4210
      %v4247 = vcvt.s32.f32 %v4211
      %v4248 = vcvt.s32.f32 %v4212
      %v4249 = vcvt.s32.f32 %v4213
      %v4250 = vcvt.s32.f32 %v4214
      %v4251 = vcvt.s32.f32 %v4215
      %v4252 = vcvt.s32.f32 %v4216
      %v4253 = vcvt.s32.f32 %v4217
      %v4254 = vcvt.s32.f32 %v4218
      %v4255 = vcvt.s32.f32 %v4219
      %v4256 = vcvt.s32.f32 %v4220
      %v4257 = vcvt.s32.f32 %v4221
      %v4258 = vadd.f32 %v4222, 0.5
      %v4259 = vadd.f32 %v4223, 0.5
      %v4260 = vadd.f32 %v4224, 0.5
      %v4261 = vadd.f32 %v4225, 0.5
      %v4262 = vadd.f32 %v4226, 0.5
      %v4263 = vadd.f32 %v4227, 0.5
      %v4264 = vadd.f32 %v4228, 0.5
      %v4265 = vadd.f32 %v4229, 0.5
      %v4266 = vadd.f32 %v4230, 0.5
      %v4267 = vadd.f32 %v4231, 0.5
      %v4268 = vadd.f32 %v4232, 0.5
      %v4269 = vadd.f32 %v4233, 0.5
      %v4270 = vadd.f32 %v4234, 0.5
      %v4271 = vadd.f32 %v4235, 0.5
      %v4272 = vadd.f32 %v4236, 0.5
      %v4273 = vadd.f32 %v4237, 0.5
      %v4274 = vadd.f32 %v4238, 0.5
      %v4275 = vadd.f32 %v4239, 0.5
      %v4276 = vadd.f32 %v4240, 0.5
      %v4277 = vadd.f32 %v4241, 0.5
      %v4278 = vadd.f32 %v4242, 0.5
      %v4279 = vadd.f32 %v4243, 0.5
      %v4280 = vadd.f32 %v4244, 0.5
      %v4281 = vadd.f32 %v4245, 0.5
      %v4282 = vadd.f32 %v4246, 0.5
      %v4283 = vadd.f32 %v4247, 0.5
      %v4284 = vadd.f32 %v4248, 0.5
      %v4285 = vadd.f32 %v4249, 0.5
      %v4286 = vadd.f32 %v4250, 0.5
      %v4287 = vadd.f32 %v4251, 0.5
      %v4288 = vadd.f32 %v4252, 0.5
      %v4289 = vadd.f32 %v4253, 0.5
      %v4290 = vadd.f32 %v4254, 0.5
      %v4291 = vadd.f32 %v4255, 0.5
      %v4292 = vadd.f32 %v4256, 0.5
      %v4293 = vadd.f32 %v4257, 0.5
      %v4294 = vmul.f32 %v4258, 0.055555556
      %v4295 = vmul.f32 %v4259, 0.055555556
      %v4296 = vmul.f32 %v4260, 0.055555556
      %v4297 = vmul.f32 %v4261, 0.055555556
      %v4298 = vmul.f32 %v4262, 0.055555556
      %v4299 = vmul.f32 %v4263, 0.055555556
      %v4300 = vmul.f32 %v4264, 0.055555556
      %v4301 = vmul.f32 %v4265, 0.055555556
      %v4302 = vmul.f32 %v4266, 0.055555556
      %v4303 = vmul.f32 %v4267, 0.055555556
      %v4304 = vmul.f32 %v4268, 0.055555556
      %v4305 = vmul.f32 %v4269, 0.055555556
      %v4306 = vmul.f32 %v4270, 0.055555556
      %v4307 = vmul.f32 %v4271, 0.055555556
      %v4308 = vmul.f32 %v4272, 0.055555556
      %v4309 = vmul.f32 %v4273, 0.055555556
      %v4310 = vmul.f32 %v4274, 0.055555556
      %v4311 = vmul.f32 %v4275, 0.055555556
      %v4312 = vmul.f32 %v4276, 0.055555556
      %v4313 = vmul.f32 %v4277, 0.055555556
      %v4314 = vmul.f32 %v4278, 0.055555556
      %v4315 = vmul.f32 %v4279, 0.055555556
      %v4316 = vmul.f32 %v4280, 0.055555556
      %v4317 = vmul.f32 %v4281, 0.055555556
      %v4318 = vmul.f32 %v4282, 0.055555556
      %v4319 = vmul.f32 %v4283, 0.055555556
      %v4320 = vmul.f32 %v4284, 0.055555556
      %v4321 = vmul.f32 %v4285, 0.055555556
      %v4322 = vmul.f32 %v4286, 0.055555556
      %v4323 = vmul.f32 %v4287, 0.055555556
      %v4324 = vmul.f32 %v4288, 0.055555556
      %v4325 = vmul.f32 %v4289, 0.055555556
      %v4326 = vmul.f32 %v4290, 0.055555556
      %v4327 = vmul.f32 %v4291, 0.055555556
      %v4328 = vmul.f32 %v4292, 0.055555556
      %v4329 = vmul.f32 %v4293, 0.055555556
      %v4330 = vfloor.f32 %v4294
      %v4331 = vfloor.f32 %v4295
      %v4332 = vfloor.f32 %v4296
      %v4333 = vfloor.f32 %v4297
      %v4334 = vfloor.f32 %v4298
      %v4335 = vfloor.f32 %v4299
      %v4336 = vfloor.f32 %v4300
      %v4337 = vfloor.f32 %v4301
      %v4338 = vfloor.f32 %v4302
      %v4339 = vfloor.f32 %v4303
      %v4340 = vfloor.f32 %v4304
      %v4341 = vfloor.f32 %v4305
      %v4342 = vfloor.f32 %v4306
      %v4343 = vfloor.f32 %v4307
      %v4344 = vfloor.f32 %v4308
      %v4345 = vfloor.f32 %v4309
      %v4346 = vfloor.f32 %v4310
      %v4347 = vfloor.f32 %v4311
      %v4348 = vfloor.f32 %v4312
      %v4349 = vfloor.f32 %v4313
      %v4350 = vfloor.f32 %v4314
      %v4351 = vfloor.f32 %v4315
      %v4352 = vfloor.f32 %v4316
      %v4353 = vfloor.f32 %v4317
      %v4354 = vfloor.f32 %v4318
      %v4355 = vfloor.f32 %v4319
      %v4356 = vfloor.f32 %v4320
      %v4357 = vfloor.f32 %v4321
      %v4358 = vfloor.f32 %v4322
      %v4359 = vfloor.f32 %v4323
      %v4360 = vfloor.f32 %v4324
      %v4361 = vfloor.f32 %v4325
      %v4362 = vfloor.f32 %v4326
      %v4363 = vfloor.f32 %v4327
      %v4364 = vfloor.f32 %v4328
      %v4365 = vfloor.f32 %v4329
      %v4366 = vmul.f32 %v4330, 18.0
      %v4367 = vmul.f32 %v4331, 18.0
      %v4368 = vmul.f32 %v4332, 18.0
      %v4369 = vmul.f32 %v4333, 18.0
      %v4370 = vmul.f32 %v4334, 18.0
      %v4371 = vmul.f32 %v4335, 18.0
      %v4372 = vmul.f32 %v4336, 18.0
      %v4373 = vmul.f32 %v4337, 18.0
      %v4374 = vmul.f32 %v4338, 18.0
      %v4375 = vmul.f32 %v4339, 18.0
      %v4376 = vmul.f32 %v4340, 18.0
      %v4377 = vmul.f32 %v4341, 18.0
      %v4378 = vmul.f32 %v4342, 18.0
      %v4379 = vmul.f32 %v4343, 18.0
      %v4380 = vmul.f32 %v4344, 18.0
      %v4381 = vmul.f32 %v4345, 18.0
      %v4382 = vmul.f32 %v4346, 18.0
      %v4383 = vmul.f32 %v4347, 18.0
      %v4384 = vmul.f32 %v4348, 18.0
      %v4385 = vmul.f32 %v4349, 18.0
      %v4386 = vmul.f32 %v4350, 18.0
      %v4387 = vmul.f32 %v4351, 18.0
      %v4388 = vmul.f32 %v4352, 18.0
      %v4389 = vmul.f32 %v4353, 18.0
      %v4390 = vmul.f32 %v4354, 18.0
      %v4391 = vmul.f32 %v4355, 18.0
      %v4392 = vmul.f32 %v4356, 18.0
      %v4393 = vmul.f32 %v4357, 18.0
      %v4394 = vmul.f32 %v4358, 18.0
      %v4395 = vmul.f32 %v4359, 18.0
      %v4396 = vmul.f32 %v4360, 18.0
      %v4397 = vmul.f32 %v4361, 18.0
      %v4398 = vmul.f32 %v4362, 18.0
      %v4399 = vmul.f32 %v4363, 18.0
      %v4400 = vmul.f32 %v4364, 18.0
      %v4401 = vmul.f32 %v4365, 18.0
      %v4402 = vsub.f32 %v4222, %v4366
      %v4403 = vsub.f32 %v4223, %v4367
      %v4404 = vsub.f32 %v4224, %v4368
      %v4405 = vsub.f32 %v4225, %v4369
      %v4406 = vsub.f32 %v4226, %v4370
      %v4407 = vsub.f32 %v4227, %v4371
      %v4408 = vsub.f32 %v4228, %v4372
      %v4409 = vsub.f32 %v4229, %v4373
      %v4410 = vsub.f32 %v4230, %v4374
      %v4411 = vsub.f32 %v4231, %v4375
      %v4412 = vsub.f32 %v4232, %v4376
      %v4413 = vsub.f32 %v4233, %v4377
      %v4414 = vsub.f32 %v4234, %v4378
      %v4415 = vsub.f32 %v4235, %v4379
      %v4416 = vsub.f32 %v4236, %v4380
      %v4417 = vsub.f32 %v4237, %v4381
      %v4418 = vsub.f32 %v4238, %v4382
      %v4419 = vsub.f32 %v4239, %v4383
      %v4420 = vsub.f32 %v4240, %v4384
      %v4421 = vsub.f32 %v4241, %v4385
      %v4422 = vsub.f32 %v4242, %v4386
      %v4423 = vsub.f32 %v4243, %v4387
      %v4424 = vsub.f32 %v4244, %v4388
      %v4425 = vsub.f32 %v4245, %v4389
      %v4426 = vsub.f32 %v4246, %v4390
      %v4427 = vsub.f32 %v4247, %v4391
      %v4428 = vsub.f32 %v4248, %v4392
      %v4429 = vsub.f32 %v4249, %v4393
      %v4430 = vsub.f32 %v4250, %v4394
      %v4431 = vsub.f32 %v4251, %v4395
      %v4432 = vsub.f32 %v4252, %v4396
      %v4433 = vsub.f32 %v4253, %v4397
      %v4434 = vsub.f32 %v4254, %v4398
      %v4435 = vsub.f32 %v4255, %v4399
      %v4436 = vsub.f32 %v4256, %v4400
      %v4437 = vsub.f32 %v4257, %v4401
      %vm4438 = vcmp.lt.f32.partialorder %v4402, 16.0
      %vm4439 = vcmp.lt.f32.partialorder %v4403, 16.0
      %vm4440 = vcmp.lt.f32.partialorder %v4404, 16.0
      %vm4441 = vcmp.lt.f32.partialorder %v4405, 16.0
      %vm4442 = vcmp.lt.f32.partialorder %v4406, 16.0
      %vm4443 = vcmp.lt.f32.partialorder %v4407, 16.0
      %vm4444 = vcmp.lt.f32.partialorder %v4408, 16.0
      %vm4445 = vcmp.lt.f32.partialorder %v4409, 16.0
      %vm4446 = vcmp.lt.f32.partialorder %v4410, 16.0
      %vm4447 = vcmp.lt.f32.partialorder %v4411, 16.0
      %vm4448 = vcmp.lt.f32.partialorder %v4412, 16.0
      %vm4449 = vcmp.lt.f32.partialorder %v4413, 16.0
      %vm4450 = vcmp.lt.f32.partialorder %v4414, 16.0
      %vm4451 = vcmp.lt.f32.partialorder %v4415, 16.0
      %vm4452 = vcmp.lt.f32.partialorder %v4416, 16.0
      %vm4453 = vcmp.lt.f32.partialorder %v4417, 16.0
      %vm4454 = vcmp.lt.f32.partialorder %v4418, 16.0
      %vm4455 = vcmp.lt.f32.partialorder %v4419, 16.0
      %vm4456 = vcmp.lt.f32.partialorder %v4420, 16.0
      %vm4457 = vcmp.lt.f32.partialorder %v4421, 16.0
      %vm4458 = vcmp.lt.f32.partialorder %v4422, 16.0
      %vm4459 = vcmp.lt.f32.partialorder %v4423, 16.0
      %vm4460 = vcmp.lt.f32.partialorder %v4424, 16.0
      %vm4461 = vcmp.lt.f32.partialorder %v4425, 16.0
      %vm4462 = vcmp.lt.f32.partialorder %v4426, 16.0
      %vm4463 = vcmp.lt.f32.partialorder %v4427, 16.0
      %vm4464 = vcmp.lt.f32.partialorder %v4428, 16.0
      %vm4465 = vcmp.lt.f32.partialorder %v4429, 16.0
      %vm4466 = vcmp.lt.f32.partialorder %v4430, 16.0
      %vm4467 = vcmp.lt.f32.partialorder %v4431, 16.0
      %vm4468 = vcmp.lt.f32.partialorder %v4432, 16.0
      %vm4469 = vcmp.lt.f32.partialorder %v4433, 16.0
      %vm4470 = vcmp.lt.f32.partialorder %v4434, 16.0
      %vm4471 = vcmp.lt.f32.partialorder %v4435, 16.0
      %vm4472 = vcmp.lt.f32.partialorder %v4436, 16.0
      %vm4473 = vcmp.lt.f32.partialorder %v4437, 16.0
      %v4474 = vsel %vm4438, 1, 0
      %v4475 = vsel %vm4439, 1, 0
      %v4476 = vsel %vm4440, 1, 0
      %v4477 = vsel %vm4441, 1, 0
      %v4478 = vsel %vm4442, 1, 0
      %v4479 = vsel %vm4443, 1, 0
      %v4480 = vsel %vm4444, 1, 0
      %v4481 = vsel %vm4445, 1, 0
      %v4482 = vsel %vm4446, 1, 0
      %v4483 = vsel %vm4447, 1, 0
      %v4484 = vsel %vm4448, 1, 0
      %v4485 = vsel %vm4449, 1, 0
      %v4486 = vsel %vm4450, 1, 0
      %v4487 = vsel %vm4451, 1, 0
      %v4488 = vsel %vm4452, 1, 0
      %v4489 = vsel %vm4453, 1, 0
      %v4490 = vsel %vm4454, 1, 0
      %v4491 = vsel %vm4455, 1, 0
      %v4492 = vsel %vm4456, 1, 0
      %v4493 = vsel %vm4457, 1, 0
      %v4494 = vsel %vm4458, 1, 0
      %v4495 = vsel %vm4459, 1, 0
      %v4496 = vsel %vm4460, 1, 0
      %v4497 = vsel %vm4461, 1, 0
      %v4498 = vsel %vm4462, 1, 0
      %v4499 = vsel %vm4463, 1, 0
      %v4500 = vsel %vm4464, 1, 0
      %v4501 = vsel %vm4465, 1, 0
      %v4502 = vsel %vm4466, 1, 0
      %v4503 = vsel %vm4467, 1, 0
      %v4504 = vsel %vm4468, 1, 0
      %v4505 = vsel %vm4469, 1, 0
      %v4506 = vsel %vm4470, 1, 0
      %v4507 = vsel %vm4471, 1, 0
      %v4508 = vsel %vm4472, 1, 0
      %v4509 = vsel %vm4473, 1, 0
      %v4510 = vcvt.s32.f32 %v4474
      %v4511 = vcvt.s32.f32 %v4475
      %v4512 = vcvt.s32.f32 %v4476
      %v4513 = vcvt.s32.f32 %v4477
      %v4514 = vcvt.s32.f32 %v4478
      %v4515 = vcvt.s32.f32 %v4479
      %v4516 = vcvt.s32.f32 %v4480
      %v4517 = vcvt.s32.f32 %v4481
      %v4518 = vcvt.s32.f32 %v4482
      %v4519 = vcvt.s32.f32 %v4483
      %v4520 = vcvt.s32.f32 %v4484
      %v4521 = vcvt.s32.f32 %v4485
      %v4522 = vcvt.s32.f32 %v4486
      %v4523 = vcvt.s32.f32 %v4487
      %v4524 = vcvt.s32.f32 %v4488
      %v4525 = vcvt.s32.f32 %v4489
      %v4526 = vcvt.s32.f32 %v4490
      %v4527 = vcvt.s32.f32 %v4491
      %v4528 = vcvt.s32.f32 %v4492
      %v4529 = vcvt.s32.f32 %v4493
      %v4530 = vcvt.s32.f32 %v4494
      %v4531 = vcvt.s32.f32 %v4495
      %v4532 = vcvt.s32.f32 %v4496
      %v4533 = vcvt.s32.f32 %v4497
      %v4534 = vcvt.s32.f32 %v4498
      %v4535 = vcvt.s32.f32 %v4499
      %v4536 = vcvt.s32.f32 %v4500
      %v4537 = vcvt.s32.f32 %v4501
      %v4538 = vcvt.s32.f32 %v4502
      %v4539 = vcvt.s32.f32 %v4503
      %v4540 = vcvt.s32.f32 %v4504
      %v4541 = vcvt.s32.f32 %v4505
      %v4542 = vcvt.s32.f32 %v4506
      %v4543 = vcvt.s32.f32 %v4507
      %v4544 = vcvt.s32.f32 %v4508
      %v4545 = vcvt.s32.f32 %v4509
      %v4546 = vmax.f32 %v4149, 0.0
      %v4547 = vmax.f32 %v4150, 0.0
      %v4548 = vmax.f32 %v4151, 0.0
      %v4549 = vmax.f32 %v4152, 0.0
      %v4550 = vmax.f32 %v4153, 0.0
      %v4551 = vmax.f32 %v4154, 0.0
      %v4552 = vmax.f32 %v4155, 0.0
      %v4553 = vmax.f32 %v4156, 0.0
      %v4554 = vmax.f32 %v4157, 0.0
      %v4555 = vmax.f32 %v4158, 0.0
      %v4556 = vmax.f32 %v4159, 0.0
      %v4557 = vmax.f32 %v4160, 0.0
      %v4558 = vmax.f32 %v4161, 0.0
      %v4559 = vmax.f32 %v4162, 0.0
      %v4560 = vmax.f32 %v4163, 0.0
      %v4561 = vmax.f32 %v4164, 0.0
      %v4562 = vmax.f32 %v4165, 0.0
      %v4563 = vmax.f32 %v4166, 0.0
      %v4564 = vmax.f32 %v4167, 0.0
      %v4565 = vmax.f32 %v4168, 0.0
      %v4566 = vmax.f32 %v4169, 0.0
      %v4567 = vmax.f32 %v4170, 0.0
      %v4568 = vmax.f32 %v4171, 0.0
      %v4569 = vmax.f32 %v4172, 0.0
      %v4570 = vmax.f32 %v4173, 0.0
      %v4571 = vmax.f32 %v4174, 0.0
      %v4572 = vmax.f32 %v4175, 0.0
      %v4573 = vmax.f32 %v4176, 0.0
      %v4574 = vmax.f32 %v4177, 0.0
      %v4575 = vmax.f32 %v4178, 0.0
      %v4576 = vmax.f32 %v4179, 0.0
      %v4577 = vmax.f32 %v4180, 0.0
      %v4578 = vmax.f32 %v4181, 0.0
      %v4579 = vmax.f32 %v4182, 0.0
      %v4580 = vmax.f32 %v4183, 0.0
      %v4581 = vmax.f32 %v4184, 0.0
      %v4582 = vmul.f32 %v4546, %v4510
      %v4583 = vmul.f32 %v4547, %v4511
      %v4584 = vmul.f32 %v4548, %v4512
      %v4585 = vmul.f32 %v4549, %v4513
      %v4586 = vmul.f32 %v4550, %v4514
      %v4587 = vmul.f32 %v4551, %v4515
      %v4588 = vmul.f32 %v4552, %v4516
      %v4589 = vmul.f32 %v4553, %v4517
      %v4590 = vmul.f32 %v4554, %v4518
      %v4591 = vmul.f32 %v4555, %v4519
      %v4592 = vmul.f32 %v4556, %v4520
      %v4593 = vmul.f32 %v4557, %v4521
      %v4594 = vmul.f32 %v4558, %v4522
      %v4595 = vmul.f32 %v4559, %v4523
      %v4596 = vmul.f32 %v4560, %v4524
      %v4597 = vmul.f32 %v4561, %v4525
      %v4598 = vmul.f32 %v4562, %v4526
      %v4599 = vmul.f32 %v4563, %v4527
      %v4600 = vmul.f32 %v4564, %v4528
      %v4601 = vmul.f32 %v4565, %v4529
      %v4602 = vmul.f32 %v4566, %v4530
      %v4603 = vmul.f32 %v4567, %v4531
      %v4604 = vmul.f32 %v4568, %v4532
      %v4605 = vmul.f32 %v4569, %v4533
      %v4606 = vmul.f32 %v4570, %v4534
      %v4607 = vmul.f32 %v4571, %v4535
      %v4608 = vmul.f32 %v4572, %v4536
      %v4609 = vmul.f32 %v4573, %v4537
      %v4610 = vmul.f32 %v4574, %v4538
      %v4611 = vmul.f32 %v4575, %v4539
      %v4612 = vmul.f32 %v4576, %v4540
      %v4613 = vmul.f32 %v4577, %v4541
      %v4614 = vmul.f32 %v4578, %v4542
      %v4615 = vmul.f32 %v4579, %v4543
      %v4616 = vmul.f32 %v4580, %v4544
      %v4617 = vmul.f32 %v4581, %v4545
      %v4618 = vpack.c.bf16 %v4583, %v4582
      %v4619 = vpack.c.bf16 %v4585, %v4584
      %v4620 = vpack.c.bf16 %v4587, %v4586
      %v4621 = vpack.c.bf16 %v4589, %v4588
      %v4622 = vpack.c.bf16 %v4591, %v4590
      %v4623 = vpack.c.bf16 %v4593, %v4592
      %v4624 = vpack.c.bf16 %v4595, %v4594
      %v4625 = vpack.c.bf16 %v4597, %v4596
      %v4626 = vpack.c.bf16 %v4599, %v4598
      %v4627 = vpack.c.bf16 %v4601, %v4600
      %v4628 = vpack.c.bf16 %v4603, %v4602
      %v4629 = vpack.c.bf16 %v4605, %v4604
      %v4630 = vpack.c.bf16 %v4607, %v4606
      %v4631 = vpack.c.bf16 %v4609, %v4608
      %v4632 = vpack.c.bf16 %v4611, %v4610
      %v4633 = vpack.c.bf16 %v4613, %v4612
      %v4634 = vpack.c.bf16 %v4615, %v4614
      %v4635 = vpack.c.bf16 %v4617, %v4616
      %vm4654 = vcmask 1043456
      %v4655 = vrot.slane %v4618, 4
      %v4656 = vrot.slane %v4619, 4
      %v4657 = vsel %vm4654, %v4655, %v4656
      %v4658 = vrot.slane %v4620, 4
      %v4659 = vsel %vm4654, %v4656, %v4658
      %v4660 = vrot.slane %v4621, 4
      %v4661 = vsel %vm4654, %v4658, %v4660
      %v4662 = vrot.slane %v4622, 4
      %v4663 = vsel %vm4654, %v4660, %v4662
      %v4664 = vrot.slane %v4623, 4
      %v4665 = vsel %vm4654, %v4662, %v4664
      %v4666 = vrot.slane %v4624, 4
      %v4667 = vsel %vm4654, %v4664, %v4666
      %v4668 = vrot.slane %v4625, 4
      %v4669 = vsel %vm4654, %v4666, %v4668
      %v4670 = vrot.slane %v4626, 4
      %v4671 = vsel %vm4654, %v4668, %v4670
      %v4672 = vrot.slane %v4627, 4
      %v4673 = vsel %vm4654, %v4670, %v4672
      %v4674 = vrot.slane %v4628, 4
      %v4675 = vsel %vm4654, %v4672, %v4674
      %v4676 = vrot.slane %v4629, 4
      %v4677 = vsel %vm4654, %v4674, %v4676
      %v4678 = vrot.slane %v4630, 4
      %v4679 = vsel %vm4654, %v4676, %v4678
      %v4680 = vrot.slane %v4631, 4
      %v4681 = vsel %vm4654, %v4678, %v4680
      %v4682 = vrot.slane %v4632, 4
      %v4683 = vsel %vm4654, %v4680, %v4682
      %v4684 = vrot.slane %v4633, 4
      %v4685 = vsel %vm4654, %v4682, %v4684
      %v4686 = vrot.slane %v4634, 4
      %v4687 = vsel %vm4654, %v4684, %v4686
      %v4688 = vrot.slane %v4635, 4
      %v4689 = vsel %vm4654, %v4686, %v4688
      %4709 = vst [vmem:[#allocation2 + $0x10] sm:$0xf0] %v4655
      %4710 = vst [vmem:[#allocation2 + $0x20] sm:$0xff] %v4657
      %4711 = vst [vmem:[#allocation2 + $0x30] sm:$0xff] %v4659
      %4712 = vst [vmem:[#allocation2 + $0x40] sm:$0xff] %v4661
      %4713 = vst [vmem:[#allocation2 + $0x50] sm:$0xff] %v4663
      %4714 = vst [vmem:[#allocation2 + $0x60] sm:$0xff] %v4665
      %4715 = vst [vmem:[#allocation2 + $0x70] sm:$0xff] %v4667
      %4716 = vst [vmem:[#allocation2 + $0x80] sm:$0xff] %v4669
      %4717 = vst [vmem:[#allocation2 + $0x90] sm:$0xff] %v4671
      %4718 = vst [vmem:[#allocation2 + $0xa0] sm:$0xff] %v4673
      %4719 = vst [vmem:[#allocation2 + $0xb0] sm:$0xff] %v4675
      %4720 = vst [vmem:[#allocation2 + $0xc0] sm:$0xff] %v4677
      %4721 = vst [vmem:[#allocation2 + $0xd0] sm:$0xff] %v4679
      %4722 = vst [vmem:[#allocation2 + $0xe0] sm:$0xff] %v4681
      %4723 = vst [vmem:[#allocation2 + $0xf0] sm:$0xff] %v4683
      %4724 = vst [vmem:[#allocation2 + $0x100] sm:$0xff] %v4685
      %4725 = vst [vmem:[#allocation2 + $0x110] sm:$0xff] %v4687
      %4726 = vst [vmem:[#allocation2 + $0x120] sm:$0xff] %v4689
      %4727 = vst [vmem:[#allocation2 + $0x130] sm:$0xf] %v4688
      %v4729 = vshrl.u32 %v4618, 16
      %v4731 = vrot.slane %v4729, 4
      %v4732 = vshll.u32 %v4618, 16
      %v4734 = vrot.slane %v4732, 5
      %v4735 = vor.u32 %v4731, %v4734
      %v4737 = vshrl.u32 %v4619, 16
      %v4739 = vrot.slane %v4737, 4
      %v4740 = vshll.u32 %v4619, 16
      %v4742 = vrot.slane %v4740, 5
      %v4743 = vor.u32 %v4739, %v4742
      %v4744 = vsel %vm2493, %v4735, %v4743
      %v4746 = vshrl.u32 %v4620, 16
      %v4748 = vrot.slane %v4746, 4
      %v4749 = vshll.u32 %v4620, 16
      %v4751 = vrot.slane %v4749, 5
      %v4752 = vor.u32 %v4748, %v4751
      %v4753 = vsel %vm2493, %v4743, %v4752
      %v4755 = vshrl.u32 %v4621, 16
      %v4757 = vrot.slane %v4755, 4
      %v4758 = vshll.u32 %v4621, 16
      %v4760 = vrot.slane %v4758, 5
      %v4761 = vor.u32 %v4757, %v4760
      %v4762 = vsel %vm2493, %v4752, %v4761
      %v4764 = vshrl.u32 %v4622, 16
      %v4766 = vrot.slane %v4764, 4
      %v4767 = vshll.u32 %v4622, 16
      %v4769 = vrot.slane %v4767, 5
      %v4770 = vor.u32 %v4766, %v4769
      %v4771 = vsel %vm2493, %v4761, %v4770
      %v4773 = vshrl.u32 %v4623, 16
      %v4775 = vrot.slane %v4773, 4
      %v4776 = vshll.u32 %v4623, 16
      %v4778 = vrot.slane %v4776, 5
      %v4779 = vor.u32 %v4775, %v4778
      %v4780 = vsel %vm2493, %v4770, %v4779
      %v4782 = vshrl.u32 %v4624, 16
      %v4784 = vrot.slane %v4782, 4
      %v4785 = vshll.u32 %v4624, 16
      %v4787 = vrot.slane %v4785, 5
      %v4788 = vor.u32 %v4784, %v4787
      %v4789 = vsel %vm2493, %v4779, %v4788
      %v4791 = vshrl.u32 %v4625, 16
      %v4793 = vrot.slane %v4791, 4
      %v4794 = vshll.u32 %v4625, 16
      %v4796 = vrot.slane %v4794, 5
      %v4797 = vor.u32 %v4793, %v4796
      %v4798 = vsel %vm2493, %v4788, %v4797
      %v4800 = vshrl.u32 %v4626, 16
      %v4802 = vrot.slane %v4800, 4
      %v4803 = vshll.u32 %v4626, 16
      %v4805 = vrot.slane %v4803, 5
      %v4806 = vor.u32 %v4802, %v4805
      %v4807 = vsel %vm2493, %v4797, %v4806
      %v4809 = vshrl.u32 %v4627, 16
      %v4811 = vrot.slane %v4809, 4
      %v4812 = vshll.u32 %v4627, 16
      %v4814 = vrot.slane %v4812, 5
      %v4815 = vor.u32 %v4811, %v4814
      %v4816 = vsel %vm2493, %v4806, %v4815
      %v4818 = vshrl.u32 %v4628, 16
      %v4820 = vrot.slane %v4818, 4
      %v4821 = vshll.u32 %v4628, 16
      %v4823 = vrot.slane %v4821, 5
      %v4824 = vor.u32 %v4820, %v4823
      %v4825 = vsel %vm2493, %v4815, %v4824
      %v4827 = vshrl.u32 %v4629, 16
      %v4829 = vrot.slane %v4827, 4
      %v4830 = vshll.u32 %v4629, 16
      %v4832 = vrot.slane %v4830, 5
      %v4833 = vor.u32 %v4829, %v4832
      %v4834 = vsel %vm2493, %v4824, %v4833
      %v4836 = vshrl.u32 %v4630, 16
      %v4838 = vrot.slane %v4836, 4
      %v4839 = vshll.u32 %v4630, 16
      %v4841 = vrot.slane %v4839, 5
      %v4842 = vor.u32 %v4838, %v4841
      %v4843 = vsel %vm2493, %v4833, %v4842
      %v4845 = vshrl.u32 %v4631, 16
      %v4847 = vrot.slane %v4845, 4
      %v4848 = vshll.u32 %v4631, 16
      %v4850 = vrot.slane %v4848, 5
      %v4851 = vor.u32 %v4847, %v4850
      %v4852 = vsel %vm2493, %v4842, %v4851
      %v4854 = vshrl.u32 %v4632, 16
      %v4856 = vrot.slane %v4854, 4
      %v4857 = vshll.u32 %v4632, 16
      %v4859 = vrot.slane %v4857, 5
      %v4860 = vor.u32 %v4856, %v4859
      %v4861 = vsel %vm2493, %v4851, %v4860
      %v4863 = vshrl.u32 %v4633, 16
      %v4865 = vrot.slane %v4863, 4
      %v4866 = vshll.u32 %v4633, 16
      %v4868 = vrot.slane %v4866, 5
      %v4869 = vor.u32 %v4865, %v4868
      %v4870 = vsel %vm2493, %v4860, %v4869
      %v4872 = vshrl.u32 %v4634, 16
      %v4874 = vrot.slane %v4872, 4
      %v4875 = vshll.u32 %v4634, 16
      %v4877 = vrot.slane %v4875, 5
      %v4878 = vor.u32 %v4874, %v4877
      %v4879 = vsel %vm2493, %v4869, %v4878
      %v4881 = vshrl.u32 %v4635, 16
      %v4883 = vrot.slane %v4881, 4
      %v4884 = vshll.u32 %v4635, 16
      %v4886 = vrot.slane %v4884, 5
      %v4887 = vor.u32 %v4883, %v4886
      %v4888 = vsel %vm2493, %v4878, %v4887
      %vm4908 = vcmask 1047555
      %vm4909 = vsmask.f32 7950
      %vm4910 = vmand %vm4908, %vm4909
      %v4911 = vld [vmem:[#allocation2 + $0x18] sm:$0xf8]
      %v4912 = vsel %vm4910, %v4735, %v4911
      %4913 = vst [vmem:[#allocation2 + $0x18] sm:$0xf8] %v4912
      %4914 = vst [vmem:[#allocation2 + $0x28] sm:$0xff] %v4744
      %4915 = vst [vmem:[#allocation2 + $0x38] sm:$0xff] %v4753
      %4916 = vst [vmem:[#allocation2 + $0x48] sm:$0xff] %v4762
      %4917 = vst [vmem:[#allocation2 + $0x58] sm:$0xff] %v4771
      %4918 = vst [vmem:[#allocation2 + $0x68] sm:$0xff] %v4780
      %4919 = vst [vmem:[#allocation2 + $0x78] sm:$0xff] %v4789
      %4920 = vst [vmem:[#allocation2 + $0x88] sm:$0xff] %v4798
      %4921 = vst [vmem:[#allocation2 + $0x98] sm:$0xff] %v4807
      %4922 = vst [vmem:[#allocation2 + $0xa8] sm:$0xff] %v4816
      %4923 = vst [vmem:[#allocation2 + $0xb8] sm:$0xff] %v4825
      %4924 = vst [vmem:[#allocation2 + $0xc8] sm:$0xff] %v4834
      %4925 = vst [vmem:[#allocation2 + $0xd8] sm:$0xff] %v4843
      %4926 = vst [vmem:[#allocation2 + $0xe8] sm:$0xff] %v4852
      %4927 = vst [vmem:[#allocation2 + $0xf8] sm:$0xff] %v4861
      %4928 = vst [vmem:[#allocation2 + $0x108] sm:$0xff] %v4870
      %4929 = vst [vmem:[#allocation2 + $0x118] sm:$0xff] %v4879
      %4930 = vst [vmem:[#allocation2 + $0x128] sm:$0xff] %v4888
      %vm4931 = vmand %vm4654, %vm2493
      %v4932 = vld [vmem:[#allocation2 + $0x138] sm:$0xf]
      %v4933 = vsel %vm4931, %v4887, %v4932
      %4934 = vst [vmem:[#allocation2 + $0x138] sm:$0xf] %v4933
      %v4935 = vld [vmem:[%s6] sm:$0x1]
      %v4936 = vld [vmem:[#allocation2] sm:$0xfc]
      %v4937 = vld [vmem:[#allocation2 + $0x8] sm:$0xfc]
      %v4938 = vld [vmem:[#allocation2 + $0x10] sm:$0xff]
      %v4939 = vld [vmem:[#allocation2 + $0x18] sm:$0xff]
      %v4940 = vld [vmem:[#allocation2 + $0x20] sm:$0xff]
      %v4941 = vld [vmem:[#allocation2 + $0x28] sm:$0xff]
      %v4942 = vld [vmem:[#allocation2 + $0x30] sm:$0xff]
      %v4943 = vld [vmem:[#allocation2 + $0x38] sm:$0xff]
      %v4944 = vld [vmem:[#allocation2 + $0x40] sm:$0xff]
      %v4945 = vld [vmem:[#allocation2 + $0x48] sm:$0xff]
      %v4946 = vld [vmem:[#allocation2 + $0x50] sm:$0xff]
      %v4947 = vld [vmem:[#allocation2 + $0x58] sm:$0xff]
      %v4948 = vld [vmem:[#allocation2 + $0x60] sm:$0xff]
      %v4949 = vld [vmem:[#allocation2 + $0x68] sm:$0xff]
      %v4950 = vld [vmem:[#allocation2 + $0x70] sm:$0xff]
      %v4951 = vld [vmem:[#allocation2 + $0x78] sm:$0xff]
      %v4952 = vld [vmem:[#allocation2 + $0x80] sm:$0xff]
      %v4953 = vld [vmem:[#allocation2 + $0x88] sm:$0xff]
      %v4954 = vld [vmem:[#allocation2 + $0x90] sm:$0xff]
      %v4955 = vld [vmem:[#allocation2 + $0x98] sm:$0xff]
      %v4956 = vld [vmem:[#allocation2 + $0xa0] sm:$0xff]
      %v4957 = vld [vmem:[#allocation2 + $0xa8] sm:$0xff]
      %v4958 = vld [vmem:[#allocation2 + $0xb0] sm:$0xff]
      %v4959 = vld [vmem:[#allocation2 + $0xb8] sm:$0xff]
      %v4960 = vld [vmem:[#allocation2 + $0xc0] sm:$0xff]
      %v4961 = vld [vmem:[#allocation2 + $0xc8] sm:$0xff]
      %v4962 = vld [vmem:[#allocation2 + $0xd0] sm:$0xff]
      %v4963 = vld [vmem:[#allocation2 + $0xd8] sm:$0xff]
      %v4964 = vld [vmem:[#allocation2 + $0xe0] sm:$0xff]
      %v4965 = vld [vmem:[#allocation2 + $0xe8] sm:$0xff]
      %v4966 = vld [vmem:[#allocation2 + $0xf0] sm:$0xff]
      %v4967 = vld [vmem:[#allocation2 + $0xf8] sm:$0xff]
      %v4968 = vld [vmem:[#allocation2 + $0x100] sm:$0xff]
      %v4969 = vld [vmem:[#allocation2 + $0x108] sm:$0xff]
      %v4970 = vld [vmem:[#allocation2 + $0x110] sm:$0xff]
      %v4971 = vld [vmem:[#allocation2 + $0x118] sm:$0xff]
      %v4972 = vld [vmem:[#allocation2 + $0x120] sm:$0x7]
      %v4973 = vld [vmem:[#allocation2 + $0x128] sm:$0x7]
      %v4974 = vld [vmem:[%s4] sm:$0xf]
      %v4975 = vld [vmem:[%s4 + $0x4] sm:$0xf]
      %v4976 = vld [vmem:[%s4 + $0x8] sm:$0xf]
      %v4977 = vld [vmem:[%s4 + $0xc] sm:$0xf]
      %v4978 = vld [vmem:[%s4 + $0x10] sm:$0xf]
      %v4979 = vld [vmem:[%s4 + $0x14] sm:$0xf]
      %v4980 = vld [vmem:[%s4 + $0x18] sm:$0xf]
      %v4981 = vld [vmem:[%s4 + $0x1c] sm:$0xf]
      %v4982 = vld [vmem:[%s4 + $0x20] sm:$0xf]
      %v4983 = vld [vmem:[%s4 + $0x24] sm:$0xf]
      %v4984 = vld [vmem:[%s4 + $0x28] sm:$0xf]
      %v4985 = vld [vmem:[%s4 + $0x2c] sm:$0xf]
      %v4986 = vld [vmem:[%s4 + $0x30] sm:$0xf]
      %v4987 = vld [vmem:[%s4 + $0x34] sm:$0xf]
      %v4988 = vld [vmem:[%s4 + $0x38] sm:$0xf]
      %v4989 = vld [vmem:[%s4 + $0x3c] sm:$0xf]
      %v4990 = vld [vmem:[%s4 + $0x40] sm:$0xf]
      %v4991 = vld [vmem:[%s4 + $0x44] sm:$0xf]
      %v4992 = vld [vmem:[%s4 + $0x48] sm:$0xf]
      %v4993 = vld [vmem:[%s4 + $0x4c] sm:$0xf]
      %v4994 = vld [vmem:[%s4 + $0x50] sm:$0xf]
      %v4995 = vld [vmem:[%s4 + $0x54] sm:$0xf]
      %v4996 = vld [vmem:[%s4 + $0x58] sm:$0xf]
      %v4997 = vld [vmem:[%s4 + $0x5c] sm:$0xf]
      %v4998 = vld [vmem:[%s4 + $0x60] sm:$0xf]
      %v4999 = vld [vmem:[%s4 + $0x64] sm:$0xf]
      %v5000 = vld [vmem:[%s4 + $0x68] sm:$0xf]
      %v5001 = vld [vmem:[%s4 + $0x6c] sm:$0xf]
      %v5002 = vld [vmem:[%s4 + $0x70] sm:$0xf]
      %v5003 = vld [vmem:[%s4 + $0x74] sm:$0xf]
      %v5004 = vld [vmem:[%s4 + $0x78] sm:$0xf]
      %v5005 = vld [vmem:[%s4 + $0x7c] sm:$0xf]
      %v5007 = vshrl.u32 %v4936, 16
      %v5009 = vrot.slane %v5007, 2
      %v5010 = vshll.u32 %v4936, 16
      %v5012 = vrot.slane %v5010, 3
      %v5013 = vor.u32 %v5009, %v5012
      %v5015 = vshrl.u32 %v4938, 16
      %v5017 = vrot.slane %v5015, 2
      %v5018 = vshll.u32 %v4938, 16
      %v5020 = vrot.slane %v5018, 3
      %v5021 = vor.u32 %v5017, %v5020
      %v5022 = vsel %vm524, %v5013, %v5021
      %v5024 = vshrl.u32 %v4937, 16
      %v5026 = vrot.slane %v5024, 2
      %v5027 = vshll.u32 %v4937, 16
      %v5029 = vrot.slane %v5027, 3
      %v5030 = vor.u32 %v5026, %v5029
      %v5032 = vshrl.u32 %v4939, 16
      %v5034 = vrot.slane %v5032, 2
      %v5035 = vshll.u32 %v4939, 16
      %v5037 = vrot.slane %v5035, 3
      %v5038 = vor.u32 %v5034, %v5037
      %v5039 = vsel %vm524, %v5030, %v5038
      %v5041 = vshrl.u32 %v4940, 16
      %v5043 = vrot.slane %v5041, 2
      %v5044 = vshll.u32 %v4940, 16
      %v5046 = vrot.slane %v5044, 3
      %v5047 = vor.u32 %v5043, %v5046
      %v5048 = vsel %vm524, %v5021, %v5047
      %v5050 = vshrl.u32 %v4941, 16
      %v5052 = vrot.slane %v5050, 2
      %v5053 = vshll.u32 %v4941, 16
      %v5055 = vrot.slane %v5053, 3
      %v5056 = vor.u32 %v5052, %v5055
      %v5057 = vsel %vm524, %v5038, %v5056
      %v5059 = vshrl.u32 %v4942, 16
      %v5061 = vrot.slane %v5059, 2
      %v5062 = vshll.u32 %v4942, 16
      %v5064 = vrot.slane %v5062, 3
      %v5065 = vor.u32 %v5061, %v5064
      %v5066 = vsel %vm524, %v5047, %v5065
      %v5068 = vshrl.u32 %v4943, 16
      %v5070 = vrot.slane %v5068, 2
      %v5071 = vshll.u32 %v4943, 16
      %v5073 = vrot.slane %v5071, 3
      %v5074 = vor.u32 %v5070, %v5073
      %v5075 = vsel %vm524, %v5056, %v5074
      %v5077 = vshrl.u32 %v4944, 16
      %v5079 = vrot.slane %v5077, 2
      %v5080 = vshll.u32 %v4944, 16
      %v5082 = vrot.slane %v5080, 3
      %v5083 = vor.u32 %v5079, %v5082
      %v5084 = vsel %vm524, %v5065, %v5083
      %v5086 = vshrl.u32 %v4945, 16
      %v5088 = vrot.slane %v5086, 2
      %v5089 = vshll.u32 %v4945, 16
      %v5091 = vrot.slane %v5089, 3
      %v5092 = vor.u32 %v5088, %v5091
      %v5093 = vsel %vm524, %v5074, %v5092
      %v5095 = vshrl.u32 %v4946, 16
      %v5097 = vrot.slane %v5095, 2
      %v5098 = vshll.u32 %v4946, 16
      %v5100 = vrot.slane %v5098, 3
      %v5101 = vor.u32 %v5097, %v5100
      %v5102 = vsel %vm524, %v5083, %v5101
      %v5104 = vshrl.u32 %v4947, 16
      %v5106 = vrot.slane %v5104, 2
      %v5107 = vshll.u32 %v4947, 16
      %v5109 = vrot.slane %v5107, 3
      %v5110 = vor.u32 %v5106, %v5109
      %v5111 = vsel %vm524, %v5092, %v5110
      %v5113 = vshrl.u32 %v4948, 16
      %v5115 = vrot.slane %v5113, 2
      %v5116 = vshll.u32 %v4948, 16
      %v5118 = vrot.slane %v5116, 3
      %v5119 = vor.u32 %v5115, %v5118
      %v5120 = vsel %vm524, %v5101, %v5119
      %v5122 = vshrl.u32 %v4949, 16
      %v5124 = vrot.slane %v5122, 2
      %v5125 = vshll.u32 %v4949, 16
      %v5127 = vrot.slane %v5125, 3
      %v5128 = vor.u32 %v5124, %v5127
      %v5129 = vsel %vm524, %v5110, %v5128
      %v5131 = vshrl.u32 %v4950, 16
      %v5133 = vrot.slane %v5131, 2
      %v5134 = vshll.u32 %v4950, 16
      %v5136 = vrot.slane %v5134, 3
      %v5137 = vor.u32 %v5133, %v5136
      %v5138 = vsel %vm524, %v5119, %v5137
      %v5140 = vshrl.u32 %v4951, 16
      %v5142 = vrot.slane %v5140, 2
      %v5143 = vshll.u32 %v4951, 16
      %v5145 = vrot.slane %v5143, 3
      %v5146 = vor.u32 %v5142, %v5145
      %v5147 = vsel %vm524, %v5128, %v5146
      %v5149 = vshrl.u32 %v4952, 16
      %v5151 = vrot.slane %v5149, 2
      %v5152 = vshll.u32 %v4952, 16
      %v5154 = vrot.slane %v5152, 3
      %v5155 = vor.u32 %v5151, %v5154
      %v5156 = vsel %vm524, %v5137, %v5155
      %v5158 = vshrl.u32 %v4953, 16
      %v5160 = vrot.slane %v5158, 2
      %v5161 = vshll.u32 %v4953, 16
      %v5163 = vrot.slane %v5161, 3
      %v5164 = vor.u32 %v5160, %v5163
      %v5165 = vsel %vm524, %v5146, %v5164
      %v5167 = vshrl.u32 %v4954, 16
      %v5169 = vrot.slane %v5167, 2
      %v5170 = vshll.u32 %v4954, 16
      %v5172 = vrot.slane %v5170, 3
      %v5173 = vor.u32 %v5169, %v5172
      %v5174 = vsel %vm524, %v5155, %v5173
      %v5176 = vshrl.u32 %v4955, 16
      %v5178 = vrot.slane %v5176, 2
      %v5179 = vshll.u32 %v4955, 16
      %v5181 = vrot.slane %v5179, 3
      %v5182 = vor.u32 %v5178, %v5181
      %v5183 = vsel %vm524, %v5164, %v5182
      %v5185 = vshrl.u32 %v4956, 16
      %v5187 = vrot.slane %v5185, 2
      %v5188 = vshll.u32 %v4956, 16
      %v5190 = vrot.slane %v5188, 3
      %v5191 = vor.u32 %v5187, %v5190
      %v5192 = vsel %vm524, %v5173, %v5191
      %v5194 = vshrl.u32 %v4957, 16
      %v5196 = vrot.slane %v5194, 2
      %v5197 = vshll.u32 %v4957, 16
      %v5199 = vrot.slane %v5197, 3
      %v5200 = vor.u32 %v5196, %v5199
      %v5201 = vsel %vm524, %v5182, %v5200
      %v5203 = vshrl.u32 %v4958, 16
      %v5205 = vrot.slane %v5203, 2
      %v5206 = vshll.u32 %v4958, 16
      %v5208 = vrot.slane %v5206, 3
      %v5209 = vor.u32 %v5205, %v5208
      %v5210 = vsel %vm524, %v5191, %v5209
      %v5212 = vshrl.u32 %v4959, 16
      %v5214 = vrot.slane %v5212, 2
      %v5215 = vshll.u32 %v4959, 16
      %v5217 = vrot.slane %v5215, 3
      %v5218 = vor.u32 %v5214, %v5217
      %v5219 = vsel %vm524, %v5200, %v5218
      %v5221 = vshrl.u32 %v4960, 16
      %v5223 = vrot.slane %v5221, 2
      %v5224 = vshll.u32 %v4960, 16
      %v5226 = vrot.slane %v5224, 3
      %v5227 = vor.u32 %v5223, %v5226
      %v5228 = vsel %vm524, %v5209, %v5227
      %v5230 = vshrl.u32 %v4961, 16
      %v5232 = vrot.slane %v5230, 2
      %v5233 = vshll.u32 %v4961, 16
      %v5235 = vrot.slane %v5233, 3
      %v5236 = vor.u32 %v5232, %v5235
      %v5237 = vsel %vm524, %v5218, %v5236
      %v5239 = vshrl.u32 %v4962, 16
      %v5241 = vrot.slane %v5239, 2
      %v5242 = vshll.u32 %v4962, 16
      %v5244 = vrot.slane %v5242, 3
      %v5245 = vor.u32 %v5241, %v5244
      %v5246 = vsel %vm524, %v5227, %v5245
      %v5248 = vshrl.u32 %v4963, 16
      %v5250 = vrot.slane %v5248, 2
      %v5251 = vshll.u32 %v4963, 16
      %v5253 = vrot.slane %v5251, 3
      %v5254 = vor.u32 %v5250, %v5253
      %v5255 = vsel %vm524, %v5236, %v5254
      %v5257 = vshrl.u32 %v4964, 16
      %v5259 = vrot.slane %v5257, 2
      %v5260 = vshll.u32 %v4964, 16
      %v5262 = vrot.slane %v5260, 3
      %v5263 = vor.u32 %v5259, %v5262
      %v5264 = vsel %vm524, %v5245, %v5263
      %v5266 = vshrl.u32 %v4965, 16
      %v5268 = vrot.slane %v5266, 2
      %v5269 = vshll.u32 %v4965, 16
      %v5271 = vrot.slane %v5269, 3
      %v5272 = vor.u32 %v5268, %v5271
      %v5273 = vsel %vm524, %v5254, %v5272
      %v5275 = vshrl.u32 %v4966, 16
      %v5277 = vrot.slane %v5275, 2
      %v5278 = vshll.u32 %v4966, 16
      %v5280 = vrot.slane %v5278, 3
      %v5281 = vor.u32 %v5277, %v5280
      %v5282 = vsel %vm524, %v5263, %v5281
      %v5284 = vshrl.u32 %v4967, 16
      %v5286 = vrot.slane %v5284, 2
      %v5287 = vshll.u32 %v4967, 16
      %v5289 = vrot.slane %v5287, 3
      %v5290 = vor.u32 %v5286, %v5289
      %v5291 = vsel %vm524, %v5272, %v5290
      %v5293 = vshrl.u32 %v4968, 16
      %v5295 = vrot.slane %v5293, 2
      %v5296 = vshll.u32 %v4968, 16
      %v5298 = vrot.slane %v5296, 3
      %v5299 = vor.u32 %v5295, %v5298
      %v5300 = vsel %vm524, %v5281, %v5299
      %v5302 = vshrl.u32 %v4969, 16
      %v5304 = vrot.slane %v5302, 2
      %v5305 = vshll.u32 %v4969, 16
      %v5307 = vrot.slane %v5305, 3
      %v5308 = vor.u32 %v5304, %v5307
      %v5309 = vsel %vm524, %v5290, %v5308
      %v5311 = vshrl.u32 %v4970, 16
      %v5313 = vrot.slane %v5311, 2
      %v5314 = vshll.u32 %v4970, 16
      %v5316 = vrot.slane %v5314, 3
      %v5317 = vor.u32 %v5313, %v5316
      %v5318 = vsel %vm524, %v5299, %v5317
      %v5320 = vshrl.u32 %v4971, 16
      %v5322 = vrot.slane %v5320, 2
      %v5323 = vshll.u32 %v4971, 16
      %v5325 = vrot.slane %v5323, 3
      %v5326 = vor.u32 %v5322, %v5325
      %v5327 = vsel %vm524, %v5308, %v5326
      %v5329 = vshrl.u32 %v4972, 16
      %v5331 = vrot.slane %v5329, 2
      %v5332 = vshll.u32 %v4972, 16
      %v5334 = vrot.slane %v5332, 3
      %v5335 = vor.u32 %v5331, %v5334
      %v5336 = vsel %vm524, %v5317, %v5335
      %v5338 = vshrl.u32 %v4973, 16
      %v5340 = vrot.slane %v5338, 2
      %v5341 = vshll.u32 %v4973, 16
      %v5343 = vrot.slane %v5341, 3
      %v5344 = vor.u32 %v5340, %v5343
      %v5345 = vsel %vm524, %v5326, %v5344
      %v5414 = vunpack.c.l.b16 %v4974
      %v5415 = vunpack.c.l.b16 %v4975
      %v5416 = vunpack.c.l.b16 %v4976
      %v5417 = vunpack.c.l.b16 %v4977
      %v5418 = vunpack.c.l.b16 %v4978
      %v5419 = vunpack.c.l.b16 %v4979
      %v5420 = vunpack.c.l.b16 %v4980
      %v5421 = vunpack.c.l.b16 %v4981
      %v5422 = vunpack.c.l.b16 %v4982
      %v5423 = vunpack.c.l.b16 %v4983
      %v5424 = vunpack.c.l.b16 %v4984
      %v5425 = vunpack.c.l.b16 %v4985
      %v5426 = vunpack.c.l.b16 %v4986
      %v5427 = vunpack.c.l.b16 %v4987
      %v5428 = vunpack.c.l.b16 %v4988
      %v5429 = vunpack.c.l.b16 %v4989
      %v5430 = vunpack.c.l.b16 %v4990
      %v5431 = vunpack.c.l.b16 %v4991
      %v5432 = vunpack.c.l.b16 %v4992
      %v5433 = vunpack.c.l.b16 %v4993
      %v5434 = vunpack.c.l.b16 %v4994
      %v5435 = vunpack.c.l.b16 %v4995
      %v5436 = vunpack.c.l.b16 %v4996
      %v5437 = vunpack.c.l.b16 %v4997
      %v5438 = vunpack.c.l.b16 %v4998
      %v5439 = vunpack.c.l.b16 %v4999
      %v5440 = vunpack.c.l.b16 %v5000
      %v5441 = vunpack.c.l.b16 %v5001
      %v5442 = vunpack.c.l.b16 %v5002
      %v5443 = vunpack.c.l.b16 %v5003
      %v5444 = vunpack.c.l.b16 %v5004
      %v5445 = vunpack.c.l.b16 %v5005
      %v5446 = vpack.c.b16 %v5415, %v5414
      %v5447 = vpack.c.b16 %v5417, %v5416
      %v5448 = vpack.c.b16 %v5419, %v5418
      %v5449 = vpack.c.b16 %v5421, %v5420
      %v5450 = vpack.c.b16 %v5423, %v5422
      %v5451 = vpack.c.b16 %v5425, %v5424
      %v5452 = vpack.c.b16 %v5427, %v5426
      %v5453 = vpack.c.b16 %v5429, %v5428
      %v5454 = vpack.c.b16 %v5431, %v5430
      %v5455 = vpack.c.b16 %v5433, %v5432
      %v5456 = vpack.c.b16 %v5435, %v5434
      %v5457 = vpack.c.b16 %v5437, %v5436
      %v5458 = vpack.c.b16 %v5439, %v5438
      %v5459 = vpack.c.b16 %v5441, %v5440
      %v5460 = vpack.c.b16 %v5443, %v5442
      %v5461 = vpack.c.b16 %v5445, %v5444
      %5478 = vmatprep.subr.bf16.mxu0 0
      %5479 = vmatpush1.bf16.msra.mxu0 %v5446
      %5480 = vmatprep.subr.bf16.mxu0 0
      %5481 = vmatpush1.bf16.msra.mxu0 %v5447
      %5482 = vmatprep.subr.bf16.mxu0 0
      %5483 = vmatpush1.bf16.msra.mxu0 %v5448
      %5484 = vmatprep.subr.bf16.mxu0 0
      %5485 = vmatpush1.bf16.msra.mxu0 %v5449
      %5486 = vmatprep.subr.bf16.mxu0 0
      %5487 = vmatpush1.bf16.msra.mxu0 %v5450
      %5488 = vmatprep.subr.bf16.mxu0 0
      %5489 = vmatpush1.bf16.msra.mxu0 %v5451
      %5490 = vmatprep.subr.bf16.mxu0 0
      %5491 = vmatpush1.bf16.msra.mxu0 %v5452
      %5492 = vmatprep.subr.bf16.mxu0 0
      %5493 = vmatpush1.bf16.msra.mxu0 %v5453
      %5494 = vmatprep.subr.bf16.mxu0 0
      %5495 = vmatpush1.bf16.msra.mxu0 %v5454
      %5496 = vmatprep.subr.bf16.mxu0 0
      %5497 = vmatpush1.bf16.msra.mxu0 %v5455
      %5498 = vmatprep.subr.bf16.mxu0 0
      %5499 = vmatpush1.bf16.msra.mxu0 %v5456
      %5500 = vmatprep.subr.bf16.mxu0 0
      %5501 = vmatpush1.bf16.msra.mxu0 %v5457
      %5502 = vmatprep.subr.bf16.mxu0 0
      %5503 = vmatpush1.bf16.msra.mxu0 %v5458
      %5504 = vmatprep.subr.bf16.mxu0 0
      %5505 = vmatpush1.bf16.msra.mxu0 %v5459
      %5506 = vmatprep.subr.bf16.mxu0 0
      %5507 = vmatpush1.bf16.msra.mxu0 %v5460
      %5508 = vmatprep.subr.bf16.mxu0 0
      %5509 = vmatpush1.bf16.msra.mxu0 %v5461
      %5510 = vmatprep.mubr.bf16.mxu0 %v5039
      %5511 = vmatmul.mubr.bf16.gmra.mrb[0].mxu0 %v5022
      %v5512 = vpop.f32.mrb[0].mxu0
      %v5513 = vadd.f32 0.0, %v5512
      %v5514 = vpop.f32.mrb[0].mxu0
      %v5515 = vpop.f32.mrb[0].mxu0
      %v5516 = vadd.f32 0.0, %v5515
      %v5517 = vpop.f32.mrb[0].mxu0
      %5518 = vmatprep.mubr.bf16.mxu0 %v5057
      %5519 = vmatmul.mubr.bf16.gmra.mrb[0].mxu0 %v5048
      %v5520 = vpop.f32.mrb[0].mxu0
      %v5521 = vadd.f32 0.0, %v5520
      %v5522 = vpop.f32.mrb[0].mxu0
      %v5523 = vpop.f32.mrb[0].mxu0
      %v5524 = vadd.f32 0.0, %v5523
      %v5525 = vpop.f32.mrb[0].mxu0
      %5526 = vmatprep.mubr.bf16.mxu0 %v5075
      %5527 = vmatmul.mubr.bf16.gmra.mrb[0].mxu0 %v5066
      %v5528 = vpop.f32.mrb[0].mxu0
      %v5529 = vadd.f32 0.0, %v5528
      %v5530 = vpop.f32.mrb[0].mxu0
      %v5531 = vpop.f32.mrb[0].mxu0
      %v5532 = vadd.f32 0.0, %v5531
      %v5533 = vpop.f32.mrb[0].mxu0
      %5534 = vmatprep.mubr.bf16.mxu0 %v5093
      %5535 = vmatmul.mubr.bf16.gmra.mrb[0].mxu0 %v5084
      %v5536 = vpop.f32.mrb[0].mxu0
      %v5537 = vadd.f32 0.0, %v5536
      %v5538 = vpop.f32.mrb[0].mxu0
      %v5539 = vpop.f32.mrb[0].mxu0
      %v5540 = vadd.f32 0.0, %v5539
      %v5541 = vpop.f32.mrb[0].mxu0
      %5542 = vmatprep.mubr.bf16.mxu0 %v5111
      %5543 = vmatmul.mubr.bf16.gmra.mrb[0].mxu0 %v5102
      %v5544 = vpop.f32.mrb[0].mxu0
      %v5545 = vadd.f32 0.0, %v5544
      %v5546 = vpop.f32.mrb[0].mxu0
      %v5547 = vpop.f32.mrb[0].mxu0
      %v5548 = vadd.f32 0.0, %v5547
      %v5549 = vpop.f32.mrb[0].mxu0
      %5550 = vmatprep.mubr.bf16.mxu0 %v5129
      %5551 = vmatmul.mubr.bf16.gmra.mrb[0].mxu0 %v5120
      %v5552 = vpop.f32.mrb[0].mxu0
      %v5553 = vadd.f32 0.0, %v5552
      %v5554 = vpop.f32.mrb[0].mxu0
      %v5555 = vpop.f32.mrb[0].mxu0
      %v5556 = vadd.f32 0.0, %v5555
      %v5557 = vpop.f32.mrb[0].mxu0
      %5558 = vmatprep.mubr.bf16.mxu0 %v5147
      %5559 = vmatmul.mubr.bf16.gmra.mrb[0].mxu0 %v5138
      %v5560 = vpop.f32.mrb[0].mxu0
      %v5561 = vadd.f32 0.0, %v5560
      %v5562 = vpop.f32.mrb[0].mxu0
      %v5563 = vpop.f32.mrb[0].mxu0
      %v5564 = vadd.f32 0.0, %v5563
      %v5565 = vpop.f32.mrb[0].mxu0
      %5566 = vmatprep.mubr.bf16.mxu0 %v5165
      %5567 = vmatmul.mubr.bf16.gmra.mrb[0].mxu0 %v5156
      %v5568 = vpop.f32.mrb[0].mxu0
      %v5569 = vadd.f32 0.0, %v5568
      %v5570 = vpop.f32.mrb[0].mxu0
      %v5571 = vpop.f32.mrb[0].mxu0
      %v5572 = vadd.f32 0.0, %v5571
      %v5573 = vpop.f32.mrb[0].mxu0
      %5574 = vmatprep.mubr.bf16.mxu0 %v5183
      %5575 = vmatmul.mubr.bf16.gmra.mrb[0].mxu0 %v5174
      %v5576 = vpop.f32.mrb[0].mxu0
      %v5577 = vadd.f32 0.0, %v5576
      %v5578 = vpop.f32.mrb[0].mxu0
      %v5579 = vpop.f32.mrb[0].mxu0
      %v5580 = vadd.f32 0.0, %v5579
      %v5581 = vpop.f32.mrb[0].mxu0
      %5582 = vmatprep.mubr.bf16.mxu0 %v5201
      %5583 = vmatmul.mubr.bf16.gmra.mrb[0].mxu0 %v5192
      %v5584 = vpop.f32.mrb[0].mxu0
      %v5585 = vadd.f32 0.0, %v5584
      %v5586 = vpop.f32.mrb[0].mxu0
      %v5587 = vpop.f32.mrb[0].mxu0
      %v5588 = vadd.f32 0.0, %v5587
      %v5589 = vpop.f32.mrb[0].mxu0
      %5590 = vmatprep.mubr.bf16.mxu0 %v5219
      %5591 = vmatmul.mubr.bf16.gmra.mrb[0].mxu0 %v5210
      %v5592 = vpop.f32.mrb[0].mxu0
      %v5593 = vadd.f32 0.0, %v5592
      %v5594 = vpop.f32.mrb[0].mxu0
      %v5595 = vpop.f32.mrb[0].mxu0
      %v5596 = vadd.f32 0.0, %v5595
      %v5597 = vpop.f32.mrb[0].mxu0
      %5598 = vmatprep.mubr.bf16.mxu0 %v5237
      %5599 = vmatmul.mubr.bf16.gmra.mrb[0].mxu0 %v5228
      %v5600 = vpop.f32.mrb[0].mxu0
      %v5601 = vadd.f32 0.0, %v5600
      %v5602 = vpop.f32.mrb[0].mxu0
      %v5603 = vpop.f32.mrb[0].mxu0
      %v5604 = vadd.f32 0.0, %v5603
      %v5605 = vpop.f32.mrb[0].mxu0
      %5606 = vmatprep.mubr.bf16.mxu0 %v5255
      %5607 = vmatmul.mubr.bf16.gmra.mrb[0].mxu0 %v5246
      %v5608 = vpop.f32.mrb[0].mxu0
      %v5609 = vadd.f32 0.0, %v5608
      %v5610 = vpop.f32.mrb[0].mxu0
      %v5611 = vpop.f32.mrb[0].mxu0
      %v5612 = vadd.f32 0.0, %v5611
      %v5613 = vpop.f32.mrb[0].mxu0
      %5614 = vmatprep.mubr.bf16.mxu0 %v5273
      %5615 = vmatmul.mubr.bf16.gmra.mrb[0].mxu0 %v5264
      %v5616 = vpop.f32.mrb[0].mxu0
      %v5617 = vadd.f32 0.0, %v5616
      %v5618 = vpop.f32.mrb[0].mxu0
      %v5619 = vpop.f32.mrb[0].mxu0
      %v5620 = vadd.f32 0.0, %v5619
      %v5621 = vpop.f32.mrb[0].mxu0
      %5622 = vmatprep.mubr.bf16.mxu0 %v5291
      %5623 = vmatmul.mubr.bf16.gmra.mrb[0].mxu0 %v5282
      %v5624 = vpop.f32.mrb[0].mxu0
      %v5625 = vadd.f32 0.0, %v5624
      %v5626 = vpop.f32.mrb[0].mxu0
      %v5627 = vpop.f32.mrb[0].mxu0
      %v5628 = vadd.f32 0.0, %v5627
      %v5629 = vpop.f32.mrb[0].mxu0
      %5630 = vmatprep.mubr.bf16.mxu0 %v5309
      %5631 = vmatmul.mubr.bf16.gmra.mrb[0].mxu0 %v5300
      %v5632 = vpop.f32.mrb[0].mxu0
      %v5633 = vadd.f32 0.0, %v5632
      %v5634 = vpop.f32.mrb[0].mxu0
      %v5635 = vpop.f32.mrb[0].mxu0
      %v5636 = vadd.f32 0.0, %v5635
      %v5637 = vpop.f32.mrb[0].mxu0
      %5638 = vmatprep.mubr.bf16.mxu0 %v5327
      %5639 = vmatmul.mubr.bf16.gmra.mrb[0].mxu0 %v5318
      %v5640 = vpop.f32.mrb[0].mxu0
      %v5641 = vadd.f32 0.0, %v5640
      %v5642 = vpop.f32.mrb[0].mxu0
      %v5643 = vpop.f32.mrb[0].mxu0
      %v5644 = vadd.f32 0.0, %v5643
      %v5645 = vpop.f32.mrb[0].mxu0
      %5646 = vmatprep.mubr.bf16.mxu0 %v5345
      %5647 = vmatmul.mubr.bf16.gmra.mrb[0].mxu0 %v5336
      %v5648 = vpop.f32.mrb[0].mxu0
      %v5649 = vadd.f32 0.0, %v5648
      %v5650 = vpop.f32.mrb[0].mxu0
      %v5651 = vpop.f32.mrb[0].mxu0
      %v5652 = vadd.f32 0.0, %v5651
      %v5653 = vpop.f32.mrb[0].mxu0
      %5654 = vdwg.mxu0
      %v5656 = vlaneseq
      %v5657 = vshrl.u32 %v5656, 7
      %v5658 = vsub.s32 0, %v5657
      %v5659 = vrot.slane %v4935, %v5658
      %v5661 = vadd.f32 %v5659, %v5513
      %v5662 = vadd.f32 %v5659, %v5516
      %v5663 = vadd.f32 %v5659, %v5521
      %v5664 = vadd.f32 %v5659, %v5524
      %v5665 = vadd.f32 %v5659, %v5529
      %v5666 = vadd.f32 %v5659, %v5532
      %v5667 = vadd.f32 %v5659, %v5537
      %v5668 = vadd.f32 %v5659, %v5540
      %v5669 = vadd.f32 %v5659, %v5545
      %v5670 = vadd.f32 %v5659, %v5548
      %v5671 = vadd.f32 %v5659, %v5553
      %v5672 = vadd.f32 %v5659, %v5556
      %v5673 = vadd.f32 %v5659, %v5561
      %v5674 = vadd.f32 %v5659, %v5564
      %v5675 = vadd.f32 %v5659, %v5569
      %v5676 = vadd.f32 %v5659, %v5572
      %v5677 = vadd.f32 %v5659, %v5577
      %v5678 = vadd.f32 %v5659, %v5580
      %v5679 = vadd.f32 %v5659, %v5585
      %v5680 = vadd.f32 %v5659, %v5588
      %v5681 = vadd.f32 %v5659, %v5593
      %v5682 = vadd.f32 %v5659, %v5596
      %v5683 = vadd.f32 %v5659, %v5601
      %v5684 = vadd.f32 %v5659, %v5604
      %v5685 = vadd.f32 %v5659, %v5609
      %v5686 = vadd.f32 %v5659, %v5612
      %v5687 = vadd.f32 %v5659, %v5617
      %v5688 = vadd.f32 %v5659, %v5620
      %v5689 = vadd.f32 %v5659, %v5625
      %v5690 = vadd.f32 %v5659, %v5628
      %v5691 = vadd.f32 %v5659, %v5633
      %v5692 = vadd.f32 %v5659, %v5636
      %v5693 = vadd.f32 %v5659, %v5641
      %v5694 = vadd.f32 %v5659, %v5644
      %v5695 = vadd.f32 %v5659, %v5649
      %v5696 = vadd.f32 %v5659, %v5652
      %v5697 = vld [vmem:[#allocation2] sm:$0xf8]
      %v5698 = vld [vmem:[#allocation2 + $0x10] sm:$0xff]
      %v5699 = vld [vmem:[#allocation2 + $0x20] sm:$0xff]
      %v5700 = vld [vmem:[#allocation2 + $0x30] sm:$0xff]
      %v5701 = vld [vmem:[#allocation2 + $0x40] sm:$0xff]
      %v5702 = vld [vmem:[#allocation2 + $0x50] sm:$0xff]
      %v5703 = vld [vmem:[#allocation2 + $0x60] sm:$0xff]
      %v5704 = vld [vmem:[#allocation2 + $0x70] sm:$0xff]
      %v5705 = vld [vmem:[#allocation2 + $0x80] sm:$0xff]
      %v5706 = vld [vmem:[#allocation2 + $0x90] sm:$0xff]
      %v5707 = vld [vmem:[#allocation2 + $0xa0] sm:$0xff]
      %v5708 = vld [vmem:[#allocation2 + $0xb0] sm:$0xff]
      %v5709 = vld [vmem:[#allocation2 + $0xc0] sm:$0xff]
      %v5710 = vld [vmem:[#allocation2 + $0xd0] sm:$0xff]
      %v5711 = vld [vmem:[#allocation2 + $0xe0] sm:$0xff]
      %v5712 = vld [vmem:[#allocation2 + $0xf0] sm:$0xff]
      %v5713 = vld [vmem:[#allocation2 + $0x100] sm:$0xff]
      %v5714 = vld [vmem:[#allocation2 + $0x110] sm:$0xff]
      %v5715 = vld [vmem:[#allocation2 + $0x120] sm:$0xf]
      %v5716 = vld [vmem:[%s5] sm:$0xf]
      %v5717 = vld [vmem:[%s5 + $0x4] sm:$0xf]
      %v5718 = vld [vmem:[%s5 + $0x8] sm:$0xf]
      %v5719 = vld [vmem:[%s5 + $0xc] sm:$0xf]
      %v5720 = vld [vmem:[%s5 + $0x10] sm:$0xf]
      %v5721 = vld [vmem:[%s5 + $0x14] sm:$0xf]
      %v5722 = vld [vmem:[%s5 + $0x18] sm:$0xf]
      %v5723 = vld [vmem:[%s5 + $0x1c] sm:$0xf]
      %v5724 = vld [vmem:[%s5 + $0x20] sm:$0xf]
      %v5725 = vld [vmem:[%s5 + $0x24] sm:$0xf]
      %v5726 = vld [vmem:[%s5 + $0x28] sm:$0xf]
      %v5727 = vld [vmem:[%s5 + $0x2c] sm:$0xf]
      %v5728 = vld [vmem:[%s5 + $0x30] sm:$0xf]
      %v5729 = vld [vmem:[%s5 + $0x34] sm:$0xf]
      %v5730 = vld [vmem:[%s5 + $0x38] sm:$0xf]
      %v5731 = vld [vmem:[%s5 + $0x3c] sm:$0xf]
      %v5733 = vshrl.u32 %v5697, 16
      %v5735 = vrot.slane %v5733, 3
      %v5736 = vshll.u32 %v5697, 16
      %v5738 = vrot.slane %v5736, 4
      %v5739 = vor.u32 %v5735, %v5738
      %v5741 = vshrl.u32 %v5698, 16
      %v5743 = vrot.slane %v5741, 3
      %v5744 = vshll.u32 %v5698, 16
      %v5746 = vrot.slane %v5744, 4
      %v5747 = vor.u32 %v5743, %v5746
      %v5748 = vsel %vm1251, %v5739, %v5747
      %v5750 = vshrl.u32 %v5699, 16
      %v5752 = vrot.slane %v5750, 3
      %v5753 = vshll.u32 %v5699, 16
      %v5755 = vrot.slane %v5753, 4
      %v5756 = vor.u32 %v5752, %v5755
      %v5757 = vsel %vm1251, %v5747, %v5756
      %v5759 = vshrl.u32 %v5700, 16
      %v5761 = vrot.slane %v5759, 3
      %v5762 = vshll.u32 %v5700, 16
      %v5764 = vrot.slane %v5762, 4
      %v5765 = vor.u32 %v5761, %v5764
      %v5766 = vsel %vm1251, %v5756, %v5765
      %v5768 = vshrl.u32 %v5701, 16
      %v5770 = vrot.slane %v5768, 3
      %v5771 = vshll.u32 %v5701, 16
      %v5773 = vrot.slane %v5771, 4
      %v5774 = vor.u32 %v5770, %v5773
      %v5775 = vsel %vm1251, %v5765, %v5774
      %v5777 = vshrl.u32 %v5702, 16
      %v5779 = vrot.slane %v5777, 3
      %v5780 = vshll.u32 %v5702, 16
      %v5782 = vrot.slane %v5780, 4
      %v5783 = vor.u32 %v5779, %v5782
      %v5784 = vsel %vm1251, %v5774, %v5783
      %v5786 = vshrl.u32 %v5703, 16
      %v5788 = vrot.slane %v5786, 3
      %v5789 = vshll.u32 %v5703, 16
      %v5791 = vrot.slane %v5789, 4
      %v5792 = vor.u32 %v5788, %v5791
      %v5793 = vsel %vm1251, %v5783, %v5792
      %v5795 = vshrl.u32 %v5704, 16
      %v5797 = vrot.slane %v5795, 3
      %v5798 = vshll.u32 %v5704, 16
      %v5800 = vrot.slane %v5798, 4
      %v5801 = vor.u32 %v5797, %v5800
      %v5802 = vsel %vm1251, %v5792, %v5801
      %v5804 = vshrl.u32 %v5705, 16
      %v5806 = vrot.slane %v5804, 3
      %v5807 = vshll.u32 %v5705, 16
      %v5809 = vrot.slane %v5807, 4
      %v5810 = vor.u32 %v5806, %v5809
      %v5811 = vsel %vm1251, %v5801, %v5810
      %v5813 = vshrl.u32 %v5706, 16
      %v5815 = vrot.slane %v5813, 3
      %v5816 = vshll.u32 %v5706, 16
      %v5818 = vrot.slane %v5816, 4
      %v5819 = vor.u32 %v5815, %v5818
      %v5820 = vsel %vm1251, %v5810, %v5819
      %v5822 = vshrl.u32 %v5707, 16
      %v5824 = vrot.slane %v5822, 3
      %v5825 = vshll.u32 %v5707, 16
      %v5827 = vrot.slane %v5825, 4
      %v5828 = vor.u32 %v5824, %v5827
      %v5829 = vsel %vm1251, %v5819, %v5828
      %v5831 = vshrl.u32 %v5708, 16
      %v5833 = vrot.slane %v5831, 3
      %v5834 = vshll.u32 %v5708, 16
      %v5836 = vrot.slane %v5834, 4
      %v5837 = vor.u32 %v5833, %v5836
      %v5838 = vsel %vm1251, %v5828, %v5837
      %v5840 = vshrl.u32 %v5709, 16
      %v5842 = vrot.slane %v5840, 3
      %v5843 = vshll.u32 %v5709, 16
      %v5845 = vrot.slane %v5843, 4
      %v5846 = vor.u32 %v5842, %v5845
      %v5847 = vsel %vm1251, %v5837, %v5846
      %v5849 = vshrl.u32 %v5710, 16
      %v5851 = vrot.slane %v5849, 3
      %v5852 = vshll.u32 %v5710, 16
      %v5854 = vrot.slane %v5852, 4
      %v5855 = vor.u32 %v5851, %v5854
      %v5856 = vsel %vm1251, %v5846, %v5855
      %v5858 = vshrl.u32 %v5711, 16
      %v5860 = vrot.slane %v5858, 3
      %v5861 = vshll.u32 %v5711, 16
      %v5863 = vrot.slane %v5861, 4
      %v5864 = vor.u32 %v5860, %v5863
      %v5865 = vsel %vm1251, %v5855, %v5864
      %v5867 = vshrl.u32 %v5712, 16
      %v5869 = vrot.slane %v5867, 3
      %v5870 = vshll.u32 %v5712, 16
      %v5872 = vrot.slane %v5870, 4
      %v5873 = vor.u32 %v5869, %v5872
      %v5874 = vsel %vm1251, %v5864, %v5873
      %v5876 = vshrl.u32 %v5713, 16
      %v5878 = vrot.slane %v5876, 3
      %v5879 = vshll.u32 %v5713, 16
      %v5881 = vrot.slane %v5879, 4
      %v5882 = vor.u32 %v5878, %v5881
      %v5883 = vsel %vm1251, %v5873, %v5882
      %v5885 = vshrl.u32 %v5714, 16
      %v5887 = vrot.slane %v5885, 3
      %v5888 = vshll.u32 %v5714, 16
      %v5890 = vrot.slane %v5888, 4
      %v5891 = vor.u32 %v5887, %v5890
      %v5892 = vsel %vm1251, %v5882, %v5891
      %v5894 = vshrl.u32 %v5715, 16
      %v5896 = vrot.slane %v5894, 3
      %v5897 = vshll.u32 %v5715, 16
      %v5899 = vrot.slane %v5897, 4
      %v5900 = vor.u32 %v5896, %v5899
      %v5901 = vsel %vm1251, %v5891, %v5900
      %v5936 = vunpack.c.l.b16 %v5716
      %v5937 = vunpack.c.l.b16 %v5717
      %v5938 = vunpack.c.l.b16 %v5718
      %v5939 = vunpack.c.l.b16 %v5719
      %v5940 = vunpack.c.l.b16 %v5720
      %v5941 = vunpack.c.l.b16 %v5721
      %v5942 = vunpack.c.l.b16 %v5722
      %v5943 = vunpack.c.l.b16 %v5723
      %v5944 = vunpack.c.l.b16 %v5724
      %v5945 = vunpack.c.l.b16 %v5725
      %v5946 = vunpack.c.l.b16 %v5726
      %v5947 = vunpack.c.l.b16 %v5727
      %v5948 = vunpack.c.l.b16 %v5728
      %v5949 = vunpack.c.l.b16 %v5729
      %v5950 = vunpack.c.l.b16 %v5730
      %v5951 = vunpack.c.l.b16 %v5731
      %v5952 = vpack.c.b16 %v5937, %v5936
      %v5953 = vpack.c.b16 %v5939, %v5938
      %v5954 = vpack.c.b16 %v5941, %v5940
      %v5955 = vpack.c.b16 %v5943, %v5942
      %v5956 = vpack.c.b16 %v5945, %v5944
      %v5957 = vpack.c.b16 %v5947, %v5946
      %v5958 = vpack.c.b16 %v5949, %v5948
      %v5959 = vpack.c.b16 %v5951, %v5950
      %5968 = vmatprep.subr.bf16.mxu0 0
      %5969 = vmatpush1.bf16.msra.mxu0 %v5952
      %5970 = vmatprep.subr.bf16.mxu0 0
      %5971 = vmatpush1.bf16.msra.mxu0 %v5953
      %5972 = vmatprep.subr.bf16.mxu0 0
      %5973 = vmatpush1.bf16.msra.mxu0 %v5954
      %5974 = vmatprep.subr.bf16.mxu0 0
      %5975 = vmatpush1.bf16.msra.mxu0 %v5955
      %5976 = vmatprep.subr.bf16.mxu0 0
      %5977 = vmatpush1.bf16.msra.mxu0 %v5956
      %5978 = vmatprep.subr.bf16.mxu0 0
      %5979 = vmatpush1.bf16.msra.mxu0 %v5957
      %5980 = vmatprep.subr.bf16.mxu0 0
      %5981 = vmatpush1.bf16.msra.mxu0 %v5958
      %5982 = vmatprep.subr.bf16.mxu0 0
      %5983 = vmatpush1.bf16.msra.mxu0 %v5959
      %5984 = vmatprep.subr.bf16.mxu0 0
      %5985 = vmatpush1.bf16.msra.mxu0 0
      %5986 = vmatprep.subr.bf16.mxu0 0
      %5987 = vmatpush1.bf16.msra.mxu0 0
      %5988 = vmatprep.subr.bf16.mxu0 0
      %5989 = vmatpush1.bf16.msra.mxu0 0
      %5990 = vmatprep.subr.bf16.mxu0 0
      %5991 = vmatpush1.bf16.msra.mxu0 0
      %5992 = vmatprep.subr.bf16.mxu0 0
      %5993 = vmatpush1.bf16.msra.mxu0 0
      %5994 = vmatprep.subr.bf16.mxu0 0
      %5995 = vmatpush1.bf16.msra.mxu0 0
      %5996 = vmatprep.subr.bf16.mxu0 0
      %5997 = vmatpush1.bf16.msra.mxu0 0
      %5998 = vmatprep.subr.bf16.mxu0 0
      %5999 = vmatpush1.bf16.msra.mxu0 0
      %6000 = vmatprep.mubr.bf16.mxu0 0
      %6001 = vmatmul.mubr.bf16.gmra.mrb[0].mxu0 %v5748
      %v6002 = vpop.f32.mrb[0].mxu0
      %v6003 = vadd.f32 0.0, %v6002
      %v6004 = vpop.f32.mrb[0].mxu0
      %v6005 = vpop.f32.mrb[0].mxu0
      %v6006 = vadd.f32 0.0, %v6005
      %v6007 = vpop.f32.mrb[0].mxu0
      %6008 = vmatprep.mubr.bf16.mxu0 0
      %6009 = vmatmul.mubr.bf16.gmra.mrb[0].mxu0 %v5757
      %v6010 = vpop.f32.mrb[0].mxu0
      %v6011 = vadd.f32 0.0, %v6010
      %v6012 = vpop.f32.mrb[0].mxu0
      %v6013 = vpop.f32.mrb[0].mxu0
      %v6014 = vadd.f32 0.0, %v6013
      %v6015 = vpop.f32.mrb[0].mxu0
      %6016 = vmatprep.mubr.bf16.mxu0 0
      %6017 = vmatmul.mubr.bf16.gmra.mrb[0].mxu0 %v5766
      %v6018 = vpop.f32.mrb[0].mxu0
      %v6019 = vadd.f32 0.0, %v6018
      %v6020 = vpop.f32.mrb[0].mxu0
      %v6021 = vpop.f32.mrb[0].mxu0
      %v6022 = vadd.f32 0.0, %v6021
      %v6023 = vpop.f32.mrb[0].mxu0
      %6024 = vmatprep.mubr.bf16.mxu0 0
      %6025 = vmatmul.mubr.bf16.gmra.mrb[0].mxu0 %v5775
      %v6026 = vpop.f32.mrb[0].mxu0
      %v6027 = vadd.f32 0.0, %v6026
      %v6028 = vpop.f32.mrb[0].mxu0
      %v6029 = vpop.f32.mrb[0].mxu0
      %v6030 = vadd.f32 0.0, %v6029
      %v6031 = vpop.f32.mrb[0].mxu0
      %6032 = vmatprep.mubr.bf16.mxu0 0
      %6033 = vmatmul.mubr.bf16.gmra.mrb[0].mxu0 %v5784
      %v6034 = vpop.f32.mrb[0].mxu0
      %v6035 = vadd.f32 0.0, %v6034
      %v6036 = vpop.f32.mrb[0].mxu0
      %v6037 = vpop.f32.mrb[0].mxu0
      %v6038 = vadd.f32 0.0, %v6037
      %v6039 = vpop.f32.mrb[0].mxu0
      %6040 = vmatprep.mubr.bf16.mxu0 0
      %6041 = vmatmul.mubr.bf16.gmra.mrb[0].mxu0 %v5793
      %v6042 = vpop.f32.mrb[0].mxu0
      %v6043 = vadd.f32 0.0, %v6042
      %v6044 = vpop.f32.mrb[0].mxu0
      %v6045 = vpop.f32.mrb[0].mxu0
      %v6046 = vadd.f32 0.0, %v6045
      %v6047 = vpop.f32.mrb[0].mxu0
      %6048 = vmatprep.mubr.bf16.mxu0 0
      %6049 = vmatmul.mubr.bf16.gmra.mrb[0].mxu0 %v5802
      %v6050 = vpop.f32.mrb[0].mxu0
      %v6051 = vadd.f32 0.0, %v6050
      %v6052 = vpop.f32.mrb[0].mxu0
      %v6053 = vpop.f32.mrb[0].mxu0
      %v6054 = vadd.f32 0.0, %v6053
      %v6055 = vpop.f32.mrb[0].mxu0
      %6056 = vmatprep.mubr.bf16.mxu0 0
      %6057 = vmatmul.mubr.bf16.gmra.mrb[0].mxu0 %v5811
      %v6058 = vpop.f32.mrb[0].mxu0
      %v6059 = vadd.f32 0.0, %v6058
      %v6060 = vpop.f32.mrb[0].mxu0
      %v6061 = vpop.f32.mrb[0].mxu0
      %v6062 = vadd.f32 0.0, %v6061
      %v6063 = vpop.f32.mrb[0].mxu0
      %6064 = vmatprep.mubr.bf16.mxu0 0
      %6065 = vmatmul.mubr.bf16.gmra.mrb[0].mxu0 %v5820
      %v6066 = vpop.f32.mrb[0].mxu0
      %v6067 = vadd.f32 0.0, %v6066
      %v6068 = vpop.f32.mrb[0].mxu0
      %v6069 = vpop.f32.mrb[0].mxu0
      %v6070 = vadd.f32 0.0, %v6069
      %v6071 = vpop.f32.mrb[0].mxu0
      %6072 = vmatprep.mubr.bf16.mxu0 0
      %6073 = vmatmul.mubr.bf16.gmra.mrb[0].mxu0 %v5829
      %v6074 = vpop.f32.mrb[0].mxu0
      %v6075 = vadd.f32 0.0, %v6074
      %v6076 = vpop.f32.mrb[0].mxu0
      %v6077 = vpop.f32.mrb[0].mxu0
      %v6078 = vadd.f32 0.0, %v6077
      %v6079 = vpop.f32.mrb[0].mxu0
      %6080 = vmatprep.mubr.bf16.mxu0 0
      %6081 = vmatmul.mubr.bf16.gmra.mrb[0].mxu0 %v5838
      %v6082 = vpop.f32.mrb[0].mxu0
      %v6083 = vadd.f32 0.0, %v6082
      %v6084 = vpop.f32.mrb[0].mxu0
      %v6085 = vpop.f32.mrb[0].mxu0
      %v6086 = vadd.f32 0.0, %v6085
      %v6087 = vpop.f32.mrb[0].mxu0
      %6088 = vmatprep.mubr.bf16.mxu0 0
      %6089 = vmatmul.mubr.bf16.gmra.mrb[0].mxu0 %v5847
      %v6090 = vpop.f32.mrb[0].mxu0
      %v6091 = vadd.f32 0.0, %v6090
      %v6092 = vpop.f32.mrb[0].mxu0
      %v6093 = vpop.f32.mrb[0].mxu0
      %v6094 = vadd.f32 0.0, %v6093
      %v6095 = vpop.f32.mrb[0].mxu0
      %6096 = vmatprep.mubr.bf16.mxu0 0
      %6097 = vmatmul.mubr.bf16.gmra.mrb[0].mxu0 %v5856
      %v6098 = vpop.f32.mrb[0].mxu0
      %v6099 = vadd.f32 0.0, %v6098
      %v6100 = vpop.f32.mrb[0].mxu0
      %v6101 = vpop.f32.mrb[0].mxu0
      %v6102 = vadd.f32 0.0, %v6101
      %v6103 = vpop.f32.mrb[0].mxu0
      %6104 = vmatprep.mubr.bf16.mxu0 0
      %6105 = vmatmul.mubr.bf16.gmra.mrb[0].mxu0 %v5865
      %v6106 = vpop.f32.mrb[0].mxu0
      %v6107 = vadd.f32 0.0, %v6106
      %v6108 = vpop.f32.mrb[0].mxu0
      %v6109 = vpop.f32.mrb[0].mxu0
      %v6110 = vadd.f32 0.0, %v6109
      %v6111 = vpop.f32.mrb[0].mxu0
      %6112 = vmatprep.mubr.bf16.mxu0 0
      %6113 = vmatmul.mubr.bf16.gmra.mrb[0].mxu0 %v5874
      %v6114 = vpop.f32.mrb[0].mxu0
      %v6115 = vadd.f32 0.0, %v6114
      %v6116 = vpop.f32.mrb[0].mxu0
      %v6117 = vpop.f32.mrb[0].mxu0
      %v6118 = vadd.f32 0.0, %v6117
      %v6119 = vpop.f32.mrb[0].mxu0
      %6120 = vmatprep.mubr.bf16.mxu0 0
      %6121 = vmatmul.mubr.bf16.gmra.mrb[0].mxu0 %v5883
      %v6122 = vpop.f32.mrb[0].mxu0
      %v6123 = vadd.f32 0.0, %v6122
      %v6124 = vpop.f32.mrb[0].mxu0
      %v6125 = vpop.f32.mrb[0].mxu0
      %v6126 = vadd.f32 0.0, %v6125
      %v6127 = vpop.f32.mrb[0].mxu0
      %6128 = vmatprep.mubr.bf16.mxu0 0
      %6129 = vmatmul.mubr.bf16.gmra.mrb[0].mxu0 %v5892
      %v6130 = vpop.f32.mrb[0].mxu0
      %v6131 = vadd.f32 0.0, %v6130
      %v6132 = vpop.f32.mrb[0].mxu0
      %v6133 = vpop.f32.mrb[0].mxu0
      %v6134 = vadd.f32 0.0, %v6133
      %v6135 = vpop.f32.mrb[0].mxu0
      %6136 = vmatprep.mubr.bf16.mxu0 0
      %6137 = vmatmul.mubr.bf16.gmra.mrb[0].mxu0 %v5901
      %v6138 = vpop.f32.mrb[0].mxu0
      %v6139 = vadd.f32 0.0, %v6138
      %v6140 = vpop.f32.mrb[0].mxu0
      %v6141 = vpop.f32.mrb[0].mxu0
      %v6142 = vadd.f32 0.0, %v6141
      %v6143 = vpop.f32.mrb[0].mxu0
      %6144 = vdwg.mxu0
      %v6145 = vadd.f32 %v5661, %v6003
      %v6146 = vadd.f32 %v5662, %v6006
      %v6147 = vadd.f32 %v5663, %v6011
      %v6148 = vadd.f32 %v5664, %v6014
      %v6149 = vadd.f32 %v5665, %v6019
      %v6150 = vadd.f32 %v5666, %v6022
      %v6151 = vadd.f32 %v5667, %v6027
      %v6152 = vadd.f32 %v5668, %v6030
      %v6153 = vadd.f32 %v5669, %v6035
      %v6154 = vadd.f32 %v5670, %v6038
      %v6155 = vadd.f32 %v5671, %v6043
      %v6156 = vadd.f32 %v5672, %v6046
      %v6157 = vadd.f32 %v5673, %v6051
      %v6158 = vadd.f32 %v5674, %v6054
      %v6159 = vadd.f32 %v5675, %v6059
      %v6160 = vadd.f32 %v5676, %v6062
      %v6161 = vadd.f32 %v5677, %v6067
      %v6162 = vadd.f32 %v5678, %v6070
      %v6163 = vadd.f32 %v5679, %v6075
      %v6164 = vadd.f32 %v5680, %v6078
      %v6165 = vadd.f32 %v5681, %v6083
      %v6166 = vadd.f32 %v5682, %v6086
      %v6167 = vadd.f32 %v5683, %v6091
      %v6168 = vadd.f32 %v5684, %v6094
      %v6169 = vadd.f32 %v5685, %v6099
      %v6170 = vadd.f32 %v5686, %v6102
      %v6171 = vadd.f32 %v5687, %v6107
      %v6172 = vadd.f32 %v5688, %v6110
      %v6173 = vadd.f32 %v5689, %v6115
      %v6174 = vadd.f32 %v5690, %v6118
      %v6175 = vadd.f32 %v5691, %v6123
      %v6176 = vadd.f32 %v5692, %v6126
      %v6177 = vadd.f32 %v5693, %v6131
      %v6178 = vadd.f32 %v5694, %v6134
      %v6179 = vadd.f32 %v5695, %v6139
      %v6180 = vadd.f32 %v5696, %v6142
      %v6181 = vld [vmem:[#allocation2 + $0x10] sm:$0xf8]
      %v6182 = vld [vmem:[#allocation2 + $0x18] sm:$0xf8]
      %v6183 = vld [vmem:[#allocation2 + $0x20] sm:$0xff]
      %v6184 = vld [vmem:[#allocation2 + $0x28] sm:$0xff]
      %v6185 = vld [vmem:[#allocation2 + $0x30] sm:$0xff]
      %v6186 = vld [vmem:[#allocation2 + $0x38] sm:$0xff]
      %v6187 = vld [vmem:[#allocation2 + $0x40] sm:$0xff]
      %v6188 = vld [vmem:[#allocation2 + $0x48] sm:$0xff]
      %v6189 = vld [vmem:[#allocation2 + $0x50] sm:$0xff]
      %v6190 = vld [vmem:[#allocation2 + $0x58] sm:$0xff]
      %v6191 = vld [vmem:[#allocation2 + $0x60] sm:$0xff]
      %v6192 = vld [vmem:[#allocation2 + $0x68] sm:$0xff]
      %v6193 = vld [vmem:[#allocation2 + $0x70] sm:$0xff]
      %v6194 = vld [vmem:[#allocation2 + $0x78] sm:$0xff]
      %v6195 = vld [vmem:[#allocation2 + $0x80] sm:$0xff]
      %v6196 = vld [vmem:[#allocation2 + $0x88] sm:$0xff]
      %v6197 = vld [vmem:[#allocation2 + $0x90] sm:$0xff]
      %v6198 = vld [vmem:[#allocation2 + $0x98] sm:$0xff]
      %v6199 = vld [vmem:[#allocation2 + $0xa0] sm:$0xff]
      %v6200 = vld [vmem:[#allocation2 + $0xa8] sm:$0xff]
      %v6201 = vld [vmem:[#allocation2 + $0xb0] sm:$0xff]
      %v6202 = vld [vmem:[#allocation2 + $0xb8] sm:$0xff]
      %v6203 = vld [vmem:[#allocation2 + $0xc0] sm:$0xff]
      %v6204 = vld [vmem:[#allocation2 + $0xc8] sm:$0xff]
      %v6205 = vld [vmem:[#allocation2 + $0xd0] sm:$0xff]
      %v6206 = vld [vmem:[#allocation2 + $0xd8] sm:$0xff]
      %v6207 = vld [vmem:[#allocation2 + $0xe0] sm:$0xff]
      %v6208 = vld [vmem:[#allocation2 + $0xe8] sm:$0xff]
      %v6209 = vld [vmem:[#allocation2 + $0xf0] sm:$0xff]
      %v6210 = vld [vmem:[#allocation2 + $0xf8] sm:$0xff]
      %v6211 = vld [vmem:[#allocation2 + $0x100] sm:$0xff]
      %v6212 = vld [vmem:[#allocation2 + $0x108] sm:$0xff]
      %v6213 = vld [vmem:[#allocation2 + $0x110] sm:$0xff]
      %v6214 = vld [vmem:[#allocation2 + $0x118] sm:$0xff]
      %v6215 = vld [vmem:[#allocation2 + $0x120] sm:$0xff]
      %v6216 = vld [vmem:[#allocation2 + $0x128] sm:$0xff]
      %v6217 = vld [vmem:[#allocation2 + $0x130] sm:$0xf]
      %v6218 = vld [vmem:[#allocation2 + $0x138] sm:$0xf]
      %s6219 = scalar_lea.vmem %s4, 128
      %v6220 = vld [vmem:[%s6219] sm:$0xf]
      %v6221 = vld [vmem:[%s6219 + $0x4] sm:$0xf]
      %v6222 = vld [vmem:[%s6219 + $0x8] sm:$0xf]
      %v6223 = vld [vmem:[%s6219 + $0xc] sm:$0xf]
      %v6224 = vld [vmem:[%s6219 + $0x10] sm:$0xf]
      %v6225 = vld [vmem:[%s6219 + $0x14] sm:$0xf]
      %v6226 = vld [vmem:[%s6219 + $0x18] sm:$0xf]
      %v6227 = vld [vmem:[%s6219 + $0x1c] sm:$0xf]
      %v6228 = vld [vmem:[%s6219 + $0x20] sm:$0xf]
      %v6229 = vld [vmem:[%s6219 + $0x24] sm:$0xf]
      %v6230 = vld [vmem:[%s6219 + $0x28] sm:$0xf]
      %v6231 = vld [vmem:[%s6219 + $0x2c] sm:$0xf]
      %v6232 = vld [vmem:[%s6219 + $0x30] sm:$0xf]
      %v6233 = vld [vmem:[%s6219 + $0x34] sm:$0xf]
      %v6234 = vld [vmem:[%s6219 + $0x38] sm:$0xf]
      %v6235 = vld [vmem:[%s6219 + $0x3c] sm:$0xf]
      %v6236 = vld [vmem:[%s6219 + $0x40] sm:$0xf]
      %v6237 = vld [vmem:[%s6219 + $0x44] sm:$0xf]
      %v6238 = vld [vmem:[%s6219 + $0x48] sm:$0xf]
      %v6239 = vld [vmem:[%s6219 + $0x4c] sm:$0xf]
      %v6240 = vld [vmem:[%s6219 + $0x50] sm:$0xf]
      %v6241 = vld [vmem:[%s6219 + $0x54] sm:$0xf]
      %v6242 = vld [vmem:[%s6219 + $0x58] sm:$0xf]
      %v6243 = vld [vmem:[%s6219 + $0x5c] sm:$0xf]
      %v6244 = vld [vmem:[%s6219 + $0x60] sm:$0xf]
      %v6245 = vld [vmem:[%s6219 + $0x64] sm:$0xf]
      %v6246 = vld [vmem:[%s6219 + $0x68] sm:$0xf]
      %v6247 = vld [vmem:[%s6219 + $0x6c] sm:$0xf]
      %v6248 = vld [vmem:[%s6219 + $0x70] sm:$0xf]
      %v6249 = vld [vmem:[%s6219 + $0x74] sm:$0xf]
      %v6250 = vld [vmem:[%s6219 + $0x78] sm:$0xf]
      %v6251 = vld [vmem:[%s6219 + $0x7c] sm:$0xf]
      %v6253 = vshrl.u32 %v6181, 16
      %v6255 = vrot.slane %v6253, 3
      %v6256 = vshll.u32 %v6181, 16
      %v6258 = vrot.slane %v6256, 4
      %v6259 = vor.u32 %v6255, %v6258
      %v6261 = vshrl.u32 %v6183, 16
      %v6263 = vrot.slane %v6261, 3
      %v6264 = vshll.u32 %v6183, 16
      %v6266 = vrot.slane %v6264, 4
      %v6267 = vor.u32 %v6263, %v6266
      %v6268 = vsel %vm1251, %v6259, %v6267
      %v6270 = vshrl.u32 %v6182, 16
      %v6272 = vrot.slane %v6270, 3
      %v6273 = vshll.u32 %v6182, 16
      %v6275 = vrot.slane %v6273, 4
      %v6276 = vor.u32 %v6272, %v6275
      %v6278 = vshrl.u32 %v6184, 16
      %v6280 = vrot.slane %v6278, 3
      %v6281 = vshll.u32 %v6184, 16
      %v6283 = vrot.slane %v6281, 4
      %v6284 = vor.u32 %v6280, %v6283
      %v6285 = vsel %vm1251, %v6276, %v6284
      %v6287 = vshrl.u32 %v6185, 16
      %v6289 = vrot.slane %v6287, 3
      %v6290 = vshll.u32 %v6185, 16
      %v6292 = vrot.slane %v6290, 4
      %v6293 = vor.u32 %v6289, %v6292
      %v6294 = vsel %vm1251, %v6267, %v6293
      %v6296 = vshrl.u32 %v6186, 16
      %v6298 = vrot.slane %v6296, 3
      %v6299 = vshll.u32 %v6186, 16
      %v6301 = vrot.slane %v6299, 4
      %v6302 = vor.u32 %v6298, %v6301
      %v6303 = vsel %vm1251, %v6284, %v6302
      %v6305 = vshrl.u32 %v6187, 16
      %v6307 = vrot.slane %v6305, 3
      %v6308 = vshll.u32 %v6187, 16
      %v6310 = vrot.slane %v6308, 4
      %v6311 = vor.u32 %v6307, %v6310
      %v6312 = vsel %vm1251, %v6293, %v6311
      %v6314 = vshrl.u32 %v6188, 16
      %v6316 = vrot.slane %v6314, 3
      %v6317 = vshll.u32 %v6188, 16
      %v6319 = vrot.slane %v6317, 4
      %v6320 = vor.u32 %v6316, %v6319
      %v6321 = vsel %vm1251, %v6302, %v6320
      %v6323 = vshrl.u32 %v6189, 16
      %v6325 = vrot.slane %v6323, 3
      %v6326 = vshll.u32 %v6189, 16
      %v6328 = vrot.slane %v6326, 4
      %v6329 = vor.u32 %v6325, %v6328
      %v6330 = vsel %vm1251, %v6311, %v6329
      %v6332 = vshrl.u32 %v6190, 16
      %v6334 = vrot.slane %v6332, 3
      %v6335 = vshll.u32 %v6190, 16
      %v6337 = vrot.slane %v6335, 4
      %v6338 = vor.u32 %v6334, %v6337
      %v6339 = vsel %vm1251, %v6320, %v6338
      %v6341 = vshrl.u32 %v6191, 16
      %v6343 = vrot.slane %v6341, 3
      %v6344 = vshll.u32 %v6191, 16
      %v6346 = vrot.slane %v6344, 4
      %v6347 = vor.u32 %v6343, %v6346
      %v6348 = vsel %vm1251, %v6329, %v6347
      %v6350 = vshrl.u32 %v6192, 16
      %v6352 = vrot.slane %v6350, 3
      %v6353 = vshll.u32 %v6192, 16
      %v6355 = vrot.slane %v6353, 4
      %v6356 = vor.u32 %v6352, %v6355
      %v6357 = vsel %vm1251, %v6338, %v6356
      %v6359 = vshrl.u32 %v6193, 16
      %v6361 = vrot.slane %v6359, 3
      %v6362 = vshll.u32 %v6193, 16
      %v6364 = vrot.slane %v6362, 4
      %v6365 = vor.u32 %v6361, %v6364
      %v6366 = vsel %vm1251, %v6347, %v6365
      %v6368 = vshrl.u32 %v6194, 16
      %v6370 = vrot.slane %v6368, 3
      %v6371 = vshll.u32 %v6194, 16
      %v6373 = vrot.slane %v6371, 4
      %v6374 = vor.u32 %v6370, %v6373
      %v6375 = vsel %vm1251, %v6356, %v6374
      %v6377 = vshrl.u32 %v6195, 16
      %v6379 = vrot.slane %v6377, 3
      %v6380 = vshll.u32 %v6195, 16
      %v6382 = vrot.slane %v6380, 4
      %v6383 = vor.u32 %v6379, %v6382
      %v6384 = vsel %vm1251, %v6365, %v6383
      %v6386 = vshrl.u32 %v6196, 16
      %v6388 = vrot.slane %v6386, 3
      %v6389 = vshll.u32 %v6196, 16
      %v6391 = vrot.slane %v6389, 4
      %v6392 = vor.u32 %v6388, %v6391
      %v6393 = vsel %vm1251, %v6374, %v6392
      %v6395 = vshrl.u32 %v6197, 16
      %v6397 = vrot.slane %v6395, 3
      %v6398 = vshll.u32 %v6197, 16
      %v6400 = vrot.slane %v6398, 4
      %v6401 = vor.u32 %v6397, %v6400
      %v6402 = vsel %vm1251, %v6383, %v6401
      %v6404 = vshrl.u32 %v6198, 16
      %v6406 = vrot.slane %v6404, 3
      %v6407 = vshll.u32 %v6198, 16
      %v6409 = vrot.slane %v6407, 4
      %v6410 = vor.u32 %v6406, %v6409
      %v6411 = vsel %vm1251, %v6392, %v6410
      %v6413 = vshrl.u32 %v6199, 16
      %v6415 = vrot.slane %v6413, 3
      %v6416 = vshll.u32 %v6199, 16
      %v6418 = vrot.slane %v6416, 4
      %v6419 = vor.u32 %v6415, %v6418
      %v6420 = vsel %vm1251, %v6401, %v6419
      %v6422 = vshrl.u32 %v6200, 16
      %v6424 = vrot.slane %v6422, 3
      %v6425 = vshll.u32 %v6200, 16
      %v6427 = vrot.slane %v6425, 4
      %v6428 = vor.u32 %v6424, %v6427
      %v6429 = vsel %vm1251, %v6410, %v6428
      %v6431 = vshrl.u32 %v6201, 16
      %v6433 = vrot.slane %v6431, 3
      %v6434 = vshll.u32 %v6201, 16
      %v6436 = vrot.slane %v6434, 4
      %v6437 = vor.u32 %v6433, %v6436
      %v6438 = vsel %vm1251, %v6419, %v6437
      %v6440 = vshrl.u32 %v6202, 16
      %v6442 = vrot.slane %v6440, 3
      %v6443 = vshll.u32 %v6202, 16
      %v6445 = vrot.slane %v6443, 4
      %v6446 = vor.u32 %v6442, %v6445
      %v6447 = vsel %vm1251, %v6428, %v6446
      %v6449 = vshrl.u32 %v6203, 16
      %v6451 = vrot.slane %v6449, 3
      %v6452 = vshll.u32 %v6203, 16
      %v6454 = vrot.slane %v6452, 4
      %v6455 = vor.u32 %v6451, %v6454
      %v6456 = vsel %vm1251, %v6437, %v6455
      %v6458 = vshrl.u32 %v6204, 16
      %v6460 = vrot.slane %v6458, 3
      %v6461 = vshll.u32 %v6204, 16
      %v6463 = vrot.slane %v6461, 4
      %v6464 = vor.u32 %v6460, %v6463
      %v6465 = vsel %vm1251, %v6446, %v6464
      %v6467 = vshrl.u32 %v6205, 16
      %v6469 = vrot.slane %v6467, 3
      %v6470 = vshll.u32 %v6205, 16
      %v6472 = vrot.slane %v6470, 4
      %v6473 = vor.u32 %v6469, %v6472
      %v6474 = vsel %vm1251, %v6455, %v6473
      %v6476 = vshrl.u32 %v6206, 16
      %v6478 = vrot.slane %v6476, 3
      %v6479 = vshll.u32 %v6206, 16
      %v6481 = vrot.slane %v6479, 4
      %v6482 = vor.u32 %v6478, %v6481
      %v6483 = vsel %vm1251, %v6464, %v6482
      %v6485 = vshrl.u32 %v6207, 16
      %v6487 = vrot.slane %v6485, 3
      %v6488 = vshll.u32 %v6207, 16
      %v6490 = vrot.slane %v6488, 4
      %v6491 = vor.u32 %v6487, %v6490
      %v6492 = vsel %vm1251, %v6473, %v6491
      %v6494 = vshrl.u32 %v6208, 16
      %v6496 = vrot.slane %v6494, 3
      %v6497 = vshll.u32 %v6208, 16
      %v6499 = vrot.slane %v6497, 4
      %v6500 = vor.u32 %v6496, %v6499
      %v6501 = vsel %vm1251, %v6482, %v6500
      %v6503 = vshrl.u32 %v6209, 16
      %v6505 = vrot.slane %v6503, 3
      %v6506 = vshll.u32 %v6209, 16
      %v6508 = vrot.slane %v6506, 4
      %v6509 = vor.u32 %v6505, %v6508
      %v6510 = vsel %vm1251, %v6491, %v6509
      %v6512 = vshrl.u32 %v6210, 16
      %v6514 = vrot.slane %v6512, 3
      %v6515 = vshll.u32 %v6210, 16
      %v6517 = vrot.slane %v6515, 4
      %v6518 = vor.u32 %v6514, %v6517
      %v6519 = vsel %vm1251, %v6500, %v6518
      %v6521 = vshrl.u32 %v6211, 16
      %v6523 = vrot.slane %v6521, 3
      %v6524 = vshll.u32 %v6211, 16
      %v6526 = vrot.slane %v6524, 4
      %v6527 = vor.u32 %v6523, %v6526
      %v6528 = vsel %vm1251, %v6509, %v6527
      %v6530 = vshrl.u32 %v6212, 16
      %v6532 = vrot.slane %v6530, 3
      %v6533 = vshll.u32 %v6212, 16
      %v6535 = vrot.slane %v6533, 4
      %v6536 = vor.u32 %v6532, %v6535
      %v6537 = vsel %vm1251, %v6518, %v6536
      %v6539 = vshrl.u32 %v6213, 16
      %v6541 = vrot.slane %v6539, 3
      %v6542 = vshll.u32 %v6213, 16
      %v6544 = vrot.slane %v6542, 4
      %v6545 = vor.u32 %v6541, %v6544
      %v6546 = vsel %vm1251, %v6527, %v6545
      %v6548 = vshrl.u32 %v6214, 16
      %v6550 = vrot.slane %v6548, 3
      %v6551 = vshll.u32 %v6214, 16
      %v6553 = vrot.slane %v6551, 4
      %v6554 = vor.u32 %v6550, %v6553
      %v6555 = vsel %vm1251, %v6536, %v6554
      %v6557 = vshrl.u32 %v6215, 16
      %v6559 = vrot.slane %v6557, 3
      %v6560 = vshll.u32 %v6215, 16
      %v6562 = vrot.slane %v6560, 4
      %v6563 = vor.u32 %v6559, %v6562
      %v6564 = vsel %vm1251, %v6545, %v6563
      %v6566 = vshrl.u32 %v6216, 16
      %v6568 = vrot.slane %v6566, 3
      %v6569 = vshll.u32 %v6216, 16
      %v6571 = vrot.slane %v6569, 4
      %v6572 = vor.u32 %v6568, %v6571
      %v6573 = vsel %vm1251, %v6554, %v6572
      %v6575 = vshrl.u32 %v6217, 16
      %v6577 = vrot.slane %v6575, 3
      %v6578 = vshll.u32 %v6217, 16
      %v6580 = vrot.slane %v6578, 4
      %v6581 = vor.u32 %v6577, %v6580
      %v6582 = vsel %vm1251, %v6563, %v6581
      %v6584 = vshrl.u32 %v6218, 16
      %v6586 = vrot.slane %v6584, 3
      %v6587 = vshll.u32 %v6218, 16
      %v6589 = vrot.slane %v6587, 4
      %v6590 = vor.u32 %v6586, %v6589
      %v6591 = vsel %vm1251, %v6572, %v6590
      %v6660 = vunpack.c.l.b16 %v6220
      %v6661 = vunpack.c.l.b16 %v6221
      %v6662 = vunpack.c.l.b16 %v6222
      %v6663 = vunpack.c.l.b16 %v6223
      %v6664 = vunpack.c.l.b16 %v6224
      %v6665 = vunpack.c.l.b16 %v6225
      %v6666 = vunpack.c.l.b16 %v6226
      %v6667 = vunpack.c.l.b16 %v6227
      %v6668 = vunpack.c.l.b16 %v6228
      %v6669 = vunpack.c.l.b16 %v6229
      %v6670 = vunpack.c.l.b16 %v6230
      %v6671 = vunpack.c.l.b16 %v6231
      %v6672 = vunpack.c.l.b16 %v6232
      %v6673 = vunpack.c.l.b16 %v6233
      %v6674 = vunpack.c.l.b16 %v6234
      %v6675 = vunpack.c.l.b16 %v6235
      %v6676 = vunpack.c.l.b16 %v6236
      %v6677 = vunpack.c.l.b16 %v6237
      %v6678 = vunpack.c.l.b16 %v6238
      %v6679 = vunpack.c.l.b16 %v6239
      %v6680 = vunpack.c.l.b16 %v6240
      %v6681 = vunpack.c.l.b16 %v6241
      %v6682 = vunpack.c.l.b16 %v6242
      %v6683 = vunpack.c.l.b16 %v6243
      %v6684 = vunpack.c.l.b16 %v6244
      %v6685 = vunpack.c.l.b16 %v6245
      %v6686 = vunpack.c.l.b16 %v6246
      %v6687 = vunpack.c.l.b16 %v6247
      %v6688 = vunpack.c.l.b16 %v6248
      %v6689 = vunpack.c.l.b16 %v6249
      %v6690 = vunpack.c.l.b16 %v6250
      %v6691 = vunpack.c.l.b16 %v6251
      %v6692 = vpack.c.b16 %v6661, %v6660
      %v6693 = vpack.c.b16 %v6663, %v6662
      %v6694 = vpack.c.b16 %v6665, %v6664
      %v6695 = vpack.c.b16 %v6667, %v6666
      %v6696 = vpack.c.b16 %v6669, %v6668
      %v6697 = vpack.c.b16 %v6671, %v6670
      %v6698 = vpack.c.b16 %v6673, %v6672
      %v6699 = vpack.c.b16 %v6675, %v6674
      %v6700 = vpack.c.b16 %v6677, %v6676
      %v6701 = vpack.c.b16 %v6679, %v6678
      %v6702 = vpack.c.b16 %v6681, %v6680
      %v6703 = vpack.c.b16 %v6683, %v6682
      %v6704 = vpack.c.b16 %v6685, %v6684
      %v6705 = vpack.c.b16 %v6687, %v6686
      %v6706 = vpack.c.b16 %v6689, %v6688
      %v6707 = vpack.c.b16 %v6691, %v6690
      %6724 = vmatprep.subr.bf16.mxu0 0
      %6725 = vmatpush1.bf16.msra.mxu0 %v6692
      %6726 = vmatprep.subr.bf16.mxu0 0
      %6727 = vmatpush1.bf16.msra.mxu0 %v6693
      %6728 = vmatprep.subr.bf16.mxu0 0
      %6729 = vmatpush1.bf16.msra.mxu0 %v6694
      %6730 = vmatprep.subr.bf16.mxu0 0
      %6731 = vmatpush1.bf16.msra.mxu0 %v6695
      %6732 = vmatprep.subr.bf16.mxu0 0
      %6733 = vmatpush1.bf16.msra.mxu0 %v6696
      %6734 = vmatprep.subr.bf16.mxu0 0
      %6735 = vmatpush1.bf16.msra.mxu0 %v6697
      %6736 = vmatprep.subr.bf16.mxu0 0
      %6737 = vmatpush1.bf16.msra.mxu0 %v6698
      %6738 = vmatprep.subr.bf16.mxu0 0
      %6739 = vmatpush1.bf16.msra.mxu0 %v6699
      %6740 = vmatprep.subr.bf16.mxu0 0
      %6741 = vmatpush1.bf16.msra.mxu0 %v6700
      %6742 = vmatprep.subr.bf16.mxu0 0
      %6743 = vmatpush1.bf16.msra.mxu0 %v6701
      %6744 = vmatprep.subr.bf16.mxu0 0
      %6745 = vmatpush1.bf16.msra.mxu0 %v6702
      %6746 = vmatprep.subr.bf16.mxu0 0
      %6747 = vmatpush1.bf16.msra.mxu0 %v6703
      %6748 = vmatprep.subr.bf16.mxu0 0
      %6749 = vmatpush1.bf16.msra.mxu0 %v6704
      %6750 = vmatprep.subr.bf16.mxu0 0
      %6751 = vmatpush1.bf16.msra.mxu0 %v6705
      %6752 = vmatprep.subr.bf16.mxu0 0
      %6753 = vmatpush1.bf16.msra.mxu0 %v6706
      %6754 = vmatprep.subr.bf16.mxu0 0
      %6755 = vmatpush1.bf16.msra.mxu0 %v6707
      %6756 = vmatprep.mubr.bf16.mxu0 %v6285
      %6757 = vmatmul.mubr.bf16.gmra.mrb[0].mxu0 %v6268
      %v6758 = vpop.f32.mrb[0].mxu0
      %v6759 = vadd.f32 0.0, %v6758
      %v6760 = vpop.f32.mrb[0].mxu0
      %v6761 = vpop.f32.mrb[0].mxu0
      %v6762 = vadd.f32 0.0, %v6761
      %v6763 = vpop.f32.mrb[0].mxu0
      %6764 = vmatprep.mubr.bf16.mxu0 %v6303
      %6765 = vmatmul.mubr.bf16.gmra.mrb[0].mxu0 %v6294
      %v6766 = vpop.f32.mrb[0].mxu0
      %v6767 = vadd.f32 0.0, %v6766
      %v6768 = vpop.f32.mrb[0].mxu0
      %v6769 = vpop.f32.mrb[0].mxu0
      %v6770 = vadd.f32 0.0, %v6769
      %v6771 = vpop.f32.mrb[0].mxu0
      %6772 = vmatprep.mubr.bf16.mxu0 %v6321
      %6773 = vmatmul.mubr.bf16.gmra.mrb[0].mxu0 %v6312
      %v6774 = vpop.f32.mrb[0].mxu0
      %v6775 = vadd.f32 0.0, %v6774
      %v6776 = vpop.f32.mrb[0].mxu0
      %v6777 = vpop.f32.mrb[0].mxu0
      %v6778 = vadd.f32 0.0, %v6777
      %v6779 = vpop.f32.mrb[0].mxu0
      %6780 = vmatprep.mubr.bf16.mxu0 %v6339
      %6781 = vmatmul.mubr.bf16.gmra.mrb[0].mxu0 %v6330
      %v6782 = vpop.f32.mrb[0].mxu0
      %v6783 = vadd.f32 0.0, %v6782
      %v6784 = vpop.f32.mrb[0].mxu0
      %v6785 = vpop.f32.mrb[0].mxu0
      %v6786 = vadd.f32 0.0, %v6785
      %v6787 = vpop.f32.mrb[0].mxu0
      %6788 = vmatprep.mubr.bf16.mxu0 %v6357
      %6789 = vmatmul.mubr.bf16.gmra.mrb[0].mxu0 %v6348
      %v6790 = vpop.f32.mrb[0].mxu0
      %v6791 = vadd.f32 0.0, %v6790
      %v6792 = vpop.f32.mrb[0].mxu0
      %v6793 = vpop.f32.mrb[0].mxu0
      %v6794 = vadd.f32 0.0, %v6793
      %v6795 = vpop.f32.mrb[0].mxu0
      %6796 = vmatprep.mubr.bf16.mxu0 %v6375
      %6797 = vmatmul.mubr.bf16.gmra.mrb[0].mxu0 %v6366
      %v6798 = vpop.f32.mrb[0].mxu0
      %v6799 = vadd.f32 0.0, %v6798
      %v6800 = vpop.f32.mrb[0].mxu0
      %v6801 = vpop.f32.mrb[0].mxu0
      %v6802 = vadd.f32 0.0, %v6801
      %v6803 = vpop.f32.mrb[0].mxu0
      %6804 = vmatprep.mubr.bf16.mxu0 %v6393
      %6805 = vmatmul.mubr.bf16.gmra.mrb[0].mxu0 %v6384
      %v6806 = vpop.f32.mrb[0].mxu0
      %v6807 = vadd.f32 0.0, %v6806
      %v6808 = vpop.f32.mrb[0].mxu0
      %v6809 = vpop.f32.mrb[0].mxu0
      %v6810 = vadd.f32 0.0, %v6809
      %v6811 = vpop.f32.mrb[0].mxu0
      %6812 = vmatprep.mubr.bf16.mxu0 %v6411
      %6813 = vmatmul.mubr.bf16.gmra.mrb[0].mxu0 %v6402
      %v6814 = vpop.f32.mrb[0].mxu0
      %v6815 = vadd.f32 0.0, %v6814
      %v6816 = vpop.f32.mrb[0].mxu0
      %v6817 = vpop.f32.mrb[0].mxu0
      %v6818 = vadd.f32 0.0, %v6817
      %v6819 = vpop.f32.mrb[0].mxu0
      %6820 = vmatprep.mubr.bf16.mxu0 %v6429
      %6821 = vmatmul.mubr.bf16.gmra.mrb[0].mxu0 %v6420
      %v6822 = vpop.f32.mrb[0].mxu0
      %v6823 = vadd.f32 0.0, %v6822
      %v6824 = vpop.f32.mrb[0].mxu0
      %v6825 = vpop.f32.mrb[0].mxu0
      %v6826 = vadd.f32 0.0, %v6825
      %v6827 = vpop.f32.mrb[0].mxu0
      %6828 = vmatprep.mubr.bf16.mxu0 %v6447
      %6829 = vmatmul.mubr.bf16.gmra.mrb[0].mxu0 %v6438
      %v6830 = vpop.f32.mrb[0].mxu0
      %v6831 = vadd.f32 0.0, %v6830
      %v6832 = vpop.f32.mrb[0].mxu0
      %v6833 = vpop.f32.mrb[0].mxu0
      %v6834 = vadd.f32 0.0, %v6833
      %v6835 = vpop.f32.mrb[0].mxu0
      %6836 = vmatprep.mubr.bf16.mxu0 %v6465
      %6837 = vmatmul.mubr.bf16.gmra.mrb[0].mxu0 %v6456
      %v6838 = vpop.f32.mrb[0].mxu0
      %v6839 = vadd.f32 0.0, %v6838
      %v6840 = vpop.f32.mrb[0].mxu0
      %v6841 = vpop.f32.mrb[0].mxu0
      %v6842 = vadd.f32 0.0, %v6841
      %v6843 = vpop.f32.mrb[0].mxu0
      %6844 = vmatprep.mubr.bf16.mxu0 %v6483
      %6845 = vmatmul.mubr.bf16.gmra.mrb[0].mxu0 %v6474
      %v6846 = vpop.f32.mrb[0].mxu0
      %v6847 = vadd.f32 0.0, %v6846
      %v6848 = vpop.f32.mrb[0].mxu0
      %v6849 = vpop.f32.mrb[0].mxu0
      %v6850 = vadd.f32 0.0, %v6849
      %v6851 = vpop.f32.mrb[0].mxu0
      %6852 = vmatprep.mubr.bf16.mxu0 %v6501
      %6853 = vmatmul.mubr.bf16.gmra.mrb[0].mxu0 %v6492
      %v6854 = vpop.f32.mrb[0].mxu0
      %v6855 = vadd.f32 0.0, %v6854
      %v6856 = vpop.f32.mrb[0].mxu0
      %v6857 = vpop.f32.mrb[0].mxu0
      %v6858 = vadd.f32 0.0, %v6857
      %v6859 = vpop.f32.mrb[0].mxu0
      %6860 = vmatprep.mubr.bf16.mxu0 %v6519
      %6861 = vmatmul.mubr.bf16.gmra.mrb[0].mxu0 %v6510
      %v6862 = vpop.f32.mrb[0].mxu0
      %v6863 = vadd.f32 0.0, %v6862
      %v6864 = vpop.f32.mrb[0].mxu0
      %v6865 = vpop.f32.mrb[0].mxu0
      %v6866 = vadd.f32 0.0, %v6865
      %v6867 = vpop.f32.mrb[0].mxu0
      %6868 = vmatprep.mubr.bf16.mxu0 %v6537
      %6869 = vmatmul.mubr.bf16.gmra.mrb[0].mxu0 %v6528
      %v6870 = vpop.f32.mrb[0].mxu0
      %v6871 = vadd.f32 0.0, %v6870
      %v6872 = vpop.f32.mrb[0].mxu0
      %v6873 = vpop.f32.mrb[0].mxu0
      %v6874 = vadd.f32 0.0, %v6873
      %v6875 = vpop.f32.mrb[0].mxu0
      %6876 = vmatprep.mubr.bf16.mxu0 %v6555
      %6877 = vmatmul.mubr.bf16.gmra.mrb[0].mxu0 %v6546
      %v6878 = vpop.f32.mrb[0].mxu0
      %v6879 = vadd.f32 0.0, %v6878
      %v6880 = vpop.f32.mrb[0].mxu0
      %v6881 = vpop.f32.mrb[0].mxu0
      %v6882 = vadd.f32 0.0, %v6881
      %v6883 = vpop.f32.mrb[0].mxu0
      %6884 = vmatprep.mubr.bf16.mxu0 %v6573
      %6885 = vmatmul.mubr.bf16.gmra.mrb[0].mxu0 %v6564
      %v6886 = vpop.f32.mrb[0].mxu0
      %v6887 = vadd.f32 0.0, %v6886
      %v6888 = vpop.f32.mrb[0].mxu0
      %v6889 = vpop.f32.mrb[0].mxu0
      %v6890 = vadd.f32 0.0, %v6889
      %v6891 = vpop.f32.mrb[0].mxu0
      %6892 = vmatprep.mubr.bf16.mxu0 %v6591
      %6893 = vmatmul.mubr.bf16.gmra.mrb[0].mxu0 %v6582
      %v6894 = vpop.f32.mrb[0].mxu0
      %v6895 = vadd.f32 0.0, %v6894
      %v6896 = vpop.f32.mrb[0].mxu0
      %v6897 = vpop.f32.mrb[0].mxu0
      %v6898 = vadd.f32 0.0, %v6897
      %v6899 = vpop.f32.mrb[0].mxu0
      %6900 = vdwg.mxu0
      %v6901 = vadd.f32 %v6145, %v6759
      %v6902 = vadd.f32 %v6146, %v6762
      %v6903 = vadd.f32 %v6147, %v6767
      %v6904 = vadd.f32 %v6148, %v6770
      %v6905 = vadd.f32 %v6149, %v6775
      %v6906 = vadd.f32 %v6150, %v6778
      %v6907 = vadd.f32 %v6151, %v6783
      %v6908 = vadd.f32 %v6152, %v6786
      %v6909 = vadd.f32 %v6153, %v6791
      %v6910 = vadd.f32 %v6154, %v6794
      %v6911 = vadd.f32 %v6155, %v6799
      %v6912 = vadd.f32 %v6156, %v6802
      %v6913 = vadd.f32 %v6157, %v6807
      %v6914 = vadd.f32 %v6158, %v6810
      %v6915 = vadd.f32 %v6159, %v6815
      %v6916 = vadd.f32 %v6160, %v6818
      %v6917 = vadd.f32 %v6161, %v6823
      %v6918 = vadd.f32 %v6162, %v6826
      %v6919 = vadd.f32 %v6163, %v6831
      %v6920 = vadd.f32 %v6164, %v6834
      %v6921 = vadd.f32 %v6165, %v6839
      %v6922 = vadd.f32 %v6166, %v6842
      %v6923 = vadd.f32 %v6167, %v6847
      %v6924 = vadd.f32 %v6168, %v6850
      %v6925 = vadd.f32 %v6169, %v6855
      %v6926 = vadd.f32 %v6170, %v6858
      %v6927 = vadd.f32 %v6171, %v6863
      %v6928 = vadd.f32 %v6172, %v6866
      %v6929 = vadd.f32 %v6173, %v6871
      %v6930 = vadd.f32 %v6174, %v6874
      %v6931 = vadd.f32 %v6175, %v6879
      %v6932 = vadd.f32 %v6176, %v6882
      %v6933 = vadd.f32 %v6177, %v6887
      %v6934 = vadd.f32 %v6178, %v6890
      %v6935 = vadd.f32 %v6179, %v6895
      %v6936 = vadd.f32 %v6180, %v6898
      %v6937 = vld [vmem:[#allocation2 + $0x10] sm:$0xf0]
      %v6938 = vld [vmem:[#allocation2 + $0x20] sm:$0xff]
      %v6939 = vld [vmem:[#allocation2 + $0x30] sm:$0xff]
      %v6940 = vld [vmem:[#allocation2 + $0x40] sm:$0xff]
      %v6941 = vld [vmem:[#allocation2 + $0x50] sm:$0xff]
      %v6942 = vld [vmem:[#allocation2 + $0x60] sm:$0xff]
      %v6943 = vld [vmem:[#allocation2 + $0x70] sm:$0xff]
      %v6944 = vld [vmem:[#allocation2 + $0x80] sm:$0xff]
      %v6945 = vld [vmem:[#allocation2 + $0x90] sm:$0xff]
      %v6946 = vld [vmem:[#allocation2 + $0xa0] sm:$0xff]
      %v6947 = vld [vmem:[#allocation2 + $0xb0] sm:$0xff]
      %v6948 = vld [vmem:[#allocation2 + $0xc0] sm:$0xff]
      %v6949 = vld [vmem:[#allocation2 + $0xd0] sm:$0xff]
      %v6950 = vld [vmem:[#allocation2 + $0xe0] sm:$0xff]
      %v6951 = vld [vmem:[#allocation2 + $0xf0] sm:$0xff]
      %v6952 = vld [vmem:[#allocation2 + $0x100] sm:$0xff]
      %v6953 = vld [vmem:[#allocation2 + $0x110] sm:$0xff]
      %v6954 = vld [vmem:[#allocation2 + $0x120] sm:$0xff]
      %v6955 = vld [vmem:[#allocation2 + $0x130] sm:$0x1f]
      %s6956 = scalar_lea.vmem %s5, 64
      %v6957 = vld [vmem:[%s6956] sm:$0xf]
      %v6958 = vld [vmem:[%s6956 + $0x4] sm:$0xf]
      %v6959 = vld [vmem:[%s6956 + $0x8] sm:$0xf]
      %v6960 = vld [vmem:[%s6956 + $0xc] sm:$0xf]
      %v6961 = vld [vmem:[%s6956 + $0x10] sm:$0xf]
      %v6962 = vld [vmem:[%s6956 + $0x14] sm:$0xf]
      %v6963 = vld [vmem:[%s6956 + $0x18] sm:$0xf]
      %v6964 = vld [vmem:[%s6956 + $0x1c] sm:$0xf]
      %v6965 = vld [vmem:[%s6956 + $0x20] sm:$0xf]
      %v6966 = vld [vmem:[%s6956 + $0x24] sm:$0xf]
      %v6967 = vld [vmem:[%s6956 + $0x28] sm:$0xf]
      %v6968 = vld [vmem:[%s6956 + $0x2c] sm:$0xf]
      %v6969 = vld [vmem:[%s6956 + $0x30] sm:$0xf]
      %v6970 = vld [vmem:[%s6956 + $0x34] sm:$0xf]
      %v6971 = vld [vmem:[%s6956 + $0x38] sm:$0xf]
      %v6972 = vld [vmem:[%s6956 + $0x3c] sm:$0xf]
      %v6974 = vshrl.u32 %v6937, 16
      %v6976 = vrot.slane %v6974, 4
      %v6977 = vshll.u32 %v6937, 16
      %v6979 = vrot.slane %v6977, 5
      %v6980 = vor.u32 %v6976, %v6979
      %v6982 = vshrl.u32 %v6938, 16
      %v6984 = vrot.slane %v6982, 4
      %v6985 = vshll.u32 %v6938, 16
      %v6987 = vrot.slane %v6985, 5
      %v6988 = vor.u32 %v6984, %v6987
      %v6989 = vsel %vm2493, %v6980, %v6988
      %v6991 = vshrl.u32 %v6939, 16
      %v6993 = vrot.slane %v6991, 4
      %v6994 = vshll.u32 %v6939, 16
      %v6996 = vrot.slane %v6994, 5
      %v6997 = vor.u32 %v6993, %v6996
      %v6998 = vsel %vm2493, %v6988, %v6997
      %v7000 = vshrl.u32 %v6940, 16
      %v7002 = vrot.slane %v7000, 4
      %v7003 = vshll.u32 %v6940, 16
      %v7005 = vrot.slane %v7003, 5
      %v7006 = vor.u32 %v7002, %v7005
      %v7007 = vsel %vm2493, %v6997, %v7006
      %v7009 = vshrl.u32 %v6941, 16
      %v7011 = vrot.slane %v7009, 4
      %v7012 = vshll.u32 %v6941, 16
      %v7014 = vrot.slane %v7012, 5
      %v7015 = vor.u32 %v7011, %v7014
      %v7016 = vsel %vm2493, %v7006, %v7015
      %v7018 = vshrl.u32 %v6942, 16
      %v7020 = vrot.slane %v7018, 4
      %v7021 = vshll.u32 %v6942, 16
      %v7023 = vrot.slane %v7021, 5
      %v7024 = vor.u32 %v7020, %v7023
      %v7025 = vsel %vm2493, %v7015, %v7024
      %v7027 = vshrl.u32 %v6943, 16
      %v7029 = vrot.slane %v7027, 4
      %v7030 = vshll.u32 %v6943, 16
      %v7032 = vrot.slane %v7030, 5
      %v7033 = vor.u32 %v7029, %v7032
      %v7034 = vsel %vm2493, %v7024, %v7033
      %v7036 = vshrl.u32 %v6944, 16
      %v7038 = vrot.slane %v7036, 4
      %v7039 = vshll.u32 %v6944, 16
      %v7041 = vrot.slane %v7039, 5
      %v7042 = vor.u32 %v7038, %v7041
      %v7043 = vsel %vm2493, %v7033, %v7042
      %v7045 = vshrl.u32 %v6945, 16
      %v7047 = vrot.slane %v7045, 4
      %v7048 = vshll.u32 %v6945, 16
      %v7050 = vrot.slane %v7048, 5
      %v7051 = vor.u32 %v7047, %v7050
      %v7052 = vsel %vm2493, %v7042, %v7051
      %v7054 = vshrl.u32 %v6946, 16
      %v7056 = vrot.slane %v7054, 4
      %v7057 = vshll.u32 %v6946, 16
      %v7059 = vrot.slane %v7057, 5
      %v7060 = vor.u32 %v7056, %v7059
      %v7061 = vsel %vm2493, %v7051, %v7060
      %v7063 = vshrl.u32 %v6947, 16
      %v7065 = vrot.slane %v7063, 4
      %v7066 = vshll.u32 %v6947, 16
      %v7068 = vrot.slane %v7066, 5
      %v7069 = vor.u32 %v7065, %v7068
      %v7070 = vsel %vm2493, %v7060, %v7069
      %v7072 = vshrl.u32 %v6948, 16
      %v7074 = vrot.slane %v7072, 4
      %v7075 = vshll.u32 %v6948, 16
      %v7077 = vrot.slane %v7075, 5
      %v7078 = vor.u32 %v7074, %v7077
      %v7079 = vsel %vm2493, %v7069, %v7078
      %v7081 = vshrl.u32 %v6949, 16
      %v7083 = vrot.slane %v7081, 4
      %v7084 = vshll.u32 %v6949, 16
      %v7086 = vrot.slane %v7084, 5
      %v7087 = vor.u32 %v7083, %v7086
      %v7088 = vsel %vm2493, %v7078, %v7087
      %v7090 = vshrl.u32 %v6950, 16
      %v7092 = vrot.slane %v7090, 4
      %v7093 = vshll.u32 %v6950, 16
      %v7095 = vrot.slane %v7093, 5
      %v7096 = vor.u32 %v7092, %v7095
      %v7097 = vsel %vm2493, %v7087, %v7096
      %v7099 = vshrl.u32 %v6951, 16
      %v7101 = vrot.slane %v7099, 4
      %v7102 = vshll.u32 %v6951, 16
      %v7104 = vrot.slane %v7102, 5
      %v7105 = vor.u32 %v7101, %v7104
      %v7106 = vsel %vm2493, %v7096, %v7105
      %v7108 = vshrl.u32 %v6952, 16
      %v7110 = vrot.slane %v7108, 4
      %v7111 = vshll.u32 %v6952, 16
      %v7113 = vrot.slane %v7111, 5
      %v7114 = vor.u32 %v7110, %v7113
      %v7115 = vsel %vm2493, %v7105, %v7114
      %v7117 = vshrl.u32 %v6953, 16
      %v7119 = vrot.slane %v7117, 4
      %v7120 = vshll.u32 %v6953, 16
      %v7122 = vrot.slane %v7120, 5
      %v7123 = vor.u32 %v7119, %v7122
      %v7124 = vsel %vm2493, %v7114, %v7123
      %v7126 = vshrl.u32 %v6954, 16
      %v7128 = vrot.slane %v7126, 4
      %v7129 = vshll.u32 %v6954, 16
      %v7131 = vrot.slane %v7129, 5
      %v7132 = vor.u32 %v7128, %v7131
      %v7133 = vsel %vm2493, %v7123, %v7132
      %v7135 = vshrl.u32 %v6955, 16
      %v7137 = vrot.slane %v7135, 4
      %v7138 = vshll.u32 %v6955, 16
      %v7140 = vrot.slane %v7138, 5
      %v7141 = vor.u32 %v7137, %v7140
      %v7142 = vsel %vm2493, %v7132, %v7141
      %v7177 = vunpack.c.l.b16 %v6957
      %v7178 = vunpack.c.l.b16 %v6958
      %v7179 = vunpack.c.l.b16 %v6959
      %v7180 = vunpack.c.l.b16 %v6960
      %v7181 = vunpack.c.l.b16 %v6961
      %v7182 = vunpack.c.l.b16 %v6962
      %v7183 = vunpack.c.l.b16 %v6963
      %v7184 = vunpack.c.l.b16 %v6964
      %v7185 = vunpack.c.l.b16 %v6965
      %v7186 = vunpack.c.l.b16 %v6966
      %v7187 = vunpack.c.l.b16 %v6967
      %v7188 = vunpack.c.l.b16 %v6968
      %v7189 = vunpack.c.l.b16 %v6969
      %v7190 = vunpack.c.l.b16 %v6970
      %v7191 = vunpack.c.l.b16 %v6971
      %v7192 = vunpack.c.l.b16 %v6972
      %v7193 = vpack.c.b16 %v7178, %v7177
      %v7194 = vpack.c.b16 %v7180, %v7179
      %v7195 = vpack.c.b16 %v7182, %v7181
      %v7196 = vpack.c.b16 %v7184, %v7183
      %v7197 = vpack.c.b16 %v7186, %v7185
      %v7198 = vpack.c.b16 %v7188, %v7187
      %v7199 = vpack.c.b16 %v7190, %v7189
      %v7200 = vpack.c.b16 %v7192, %v7191
      %7209 = vmatprep.subr.bf16.mxu0 0
      %7210 = vmatpush1.bf16.msra.mxu0 %v7193
      %7211 = vmatprep.subr.bf16.mxu0 0
      %7212 = vmatpush1.bf16.msra.mxu0 %v7194
      %7213 = vmatprep.subr.bf16.mxu0 0
      %7214 = vmatpush1.bf16.msra.mxu0 %v7195
      %7215 = vmatprep.subr.bf16.mxu0 0
      %7216 = vmatpush1.bf16.msra.mxu0 %v7196
      %7217 = vmatprep.subr.bf16.mxu0 0
      %7218 = vmatpush1.bf16.msra.mxu0 %v7197
      %7219 = vmatprep.subr.bf16.mxu0 0
      %7220 = vmatpush1.bf16.msra.mxu0 %v7198
      %7221 = vmatprep.subr.bf16.mxu0 0
      %7222 = vmatpush1.bf16.msra.mxu0 %v7199
      %7223 = vmatprep.subr.bf16.mxu0 0
      %7224 = vmatpush1.bf16.msra.mxu0 %v7200
      %7225 = vmatprep.subr.bf16.mxu0 0
      %7226 = vmatpush1.bf16.msra.mxu0 0
      %7227 = vmatprep.subr.bf16.mxu0 0
      %7228 = vmatpush1.bf16.msra.mxu0 0
      %7229 = vmatprep.subr.bf16.mxu0 0
      %7230 = vmatpush1.bf16.msra.mxu0 0
      %7231 = vmatprep.subr.bf16.mxu0 0
      %7232 = vmatpush1.bf16.msra.mxu0 0
      %7233 = vmatprep.subr.bf16.mxu0 0
      %7234 = vmatpush1.bf16.msra.mxu0 0
      %7235 = vmatprep.subr.bf16.mxu0 0
      %7236 = vmatpush1.bf16.msra.mxu0 0
      %7237 = vmatprep.subr.bf16.mxu0 0
      %7238 = vmatpush1.bf16.msra.mxu0 0
      %7239 = vmatprep.subr.bf16.mxu0 0
      %7240 = vmatpush1.bf16.msra.mxu0 0
      %7241 = vmatprep.mubr.bf16.mxu0 0
      %7242 = vmatmul.mubr.bf16.gmra.mrb[0].mxu0 %v6989
      %v7243 = vpop.f32.mrb[0].mxu0
      %v7244 = vadd.f32 0.0, %v7243
      %v7245 = vpop.f32.mrb[0].mxu0
      %v7246 = vpop.f32.mrb[0].mxu0
      %v7247 = vadd.f32 0.0, %v7246
      %v7248 = vpop.f32.mrb[0].mxu0
      %7249 = vmatprep.mubr.bf16.mxu0 0
      %7250 = vmatmul.mubr.bf16.gmra.mrb[0].mxu0 %v6998
      %v7251 = vpop.f32.mrb[0].mxu0
      %v7252 = vadd.f32 0.0, %v7251
      %v7253 = vpop.f32.mrb[0].mxu0
      %v7254 = vpop.f32.mrb[0].mxu0
      %v7255 = vadd.f32 0.0, %v7254
      %v7256 = vpop.f32.mrb[0].mxu0
      %7257 = vmatprep.mubr.bf16.mxu0 0
      %7258 = vmatmul.mubr.bf16.gmra.mrb[0].mxu0 %v7007
      %v7259 = vpop.f32.mrb[0].mxu0
      %v7260 = vadd.f32 0.0, %v7259
      %v7261 = vpop.f32.mrb[0].mxu0
      %v7262 = vpop.f32.mrb[0].mxu0
      %v7263 = vadd.f32 0.0, %v7262
      %v7264 = vpop.f32.mrb[0].mxu0
      %7265 = vmatprep.mubr.bf16.mxu0 0
      %7266 = vmatmul.mubr.bf16.gmra.mrb[0].mxu0 %v7016
      %v7267 = vpop.f32.mrb[0].mxu0
      %v7268 = vadd.f32 0.0, %v7267
      %v7269 = vpop.f32.mrb[0].mxu0
      %v7270 = vpop.f32.mrb[0].mxu0
      %v7271 = vadd.f32 0.0, %v7270
      %v7272 = vpop.f32.mrb[0].mxu0
      %7273 = vmatprep.mubr.bf16.mxu0 0
      %7274 = vmatmul.mubr.bf16.gmra.mrb[0].mxu0 %v7025
      %v7275 = vpop.f32.mrb[0].mxu0
      %v7276 = vadd.f32 0.0, %v7275
      %v7277 = vpop.f32.mrb[0].mxu0
      %v7278 = vpop.f32.mrb[0].mxu0
      %v7279 = vadd.f32 0.0, %v7278
      %v7280 = vpop.f32.mrb[0].mxu0
      %7281 = vmatprep.mubr.bf16.mxu0 0
      %7282 = vmatmul.mubr.bf16.gmra.mrb[0].mxu0 %v7034
      %v7283 = vpop.f32.mrb[0].mxu0
      %v7284 = vadd.f32 0.0, %v7283
      %v7285 = vpop.f32.mrb[0].mxu0
      %v7286 = vpop.f32.mrb[0].mxu0
      %v7287 = vadd.f32 0.0, %v7286
      %v7288 = vpop.f32.mrb[0].mxu0
      %7289 = vmatprep.mubr.bf16.mxu0 0
      %7290 = vmatmul.mubr.bf16.gmra.mrb[0].mxu0 %v7043
      %v7291 = vpop.f32.mrb[0].mxu0
      %v7292 = vadd.f32 0.0, %v7291
      %v7293 = vpop.f32.mrb[0].mxu0
      %v7294 = vpop.f32.mrb[0].mxu0
      %v7295 = vadd.f32 0.0, %v7294
      %v7296 = vpop.f32.mrb[0].mxu0
      %7297 = vmatprep.mubr.bf16.mxu0 0
      %7298 = vmatmul.mubr.bf16.gmra.mrb[0].mxu0 %v7052
      %v7299 = vpop.f32.mrb[0].mxu0
      %v7300 = vadd.f32 0.0, %v7299
      %v7301 = vpop.f32.mrb[0].mxu0
      %v7302 = vpop.f32.mrb[0].mxu0
      %v7303 = vadd.f32 0.0, %v7302
      %v7304 = vpop.f32.mrb[0].mxu0
      %7305 = vmatprep.mubr.bf16.mxu0 0
      %7306 = vmatmul.mubr.bf16.gmra.mrb[0].mxu0 %v7061
      %v7307 = vpop.f32.mrb[0].mxu0
      %v7308 = vadd.f32 0.0, %v7307
      %v7309 = vpop.f32.mrb[0].mxu0
      %v7310 = vpop.f32.mrb[0].mxu0
      %v7311 = vadd.f32 0.0, %v7310
      %v7312 = vpop.f32.mrb[0].mxu0
      %7313 = vmatprep.mubr.bf16.mxu0 0
      %7314 = vmatmul.mubr.bf16.gmra.mrb[0].mxu0 %v7070
      %v7315 = vpop.f32.mrb[0].mxu0
      %v7316 = vadd.f32 0.0, %v7315
      %v7317 = vpop.f32.mrb[0].mxu0
      %v7318 = vpop.f32.mrb[0].mxu0
      %v7319 = vadd.f32 0.0, %v7318
      %v7320 = vpop.f32.mrb[0].mxu0
      %7321 = vmatprep.mubr.bf16.mxu0 0
      %7322 = vmatmul.mubr.bf16.gmra.mrb[0].mxu0 %v7079
      %v7323 = vpop.f32.mrb[0].mxu0
      %v7324 = vadd.f32 0.0, %v7323
      %v7325 = vpop.f32.mrb[0].mxu0
      %v7326 = vpop.f32.mrb[0].mxu0
      %v7327 = vadd.f32 0.0, %v7326
      %v7328 = vpop.f32.mrb[0].mxu0
      %7329 = vmatprep.mubr.bf16.mxu0 0
      %7330 = vmatmul.mubr.bf16.gmra.mrb[0].mxu0 %v7088
      %v7331 = vpop.f32.mrb[0].mxu0
      %v7332 = vadd.f32 0.0, %v7331
      %v7333 = vpop.f32.mrb[0].mxu0
      %v7334 = vpop.f32.mrb[0].mxu0
      %v7335 = vadd.f32 0.0, %v7334
      %v7336 = vpop.f32.mrb[0].mxu0
      %7337 = vmatprep.mubr.bf16.mxu0 0
      %7338 = vmatmul.mubr.bf16.gmra.mrb[0].mxu0 %v7097
      %v7339 = vpop.f32.mrb[0].mxu0
      %v7340 = vadd.f32 0.0, %v7339
      %v7341 = vpop.f32.mrb[0].mxu0
      %v7342 = vpop.f32.mrb[0].mxu0
      %v7343 = vadd.f32 0.0, %v7342
      %v7344 = vpop.f32.mrb[0].mxu0
      %7345 = vmatprep.mubr.bf16.mxu0 0
      %7346 = vmatmul.mubr.bf16.gmra.mrb[0].mxu0 %v7106
      %v7347 = vpop.f32.mrb[0].mxu0
      %v7348 = vadd.f32 0.0, %v7347
      %v7349 = vpop.f32.mrb[0].mxu0
      %v7350 = vpop.f32.mrb[0].mxu0
      %v7351 = vadd.f32 0.0, %v7350
      %v7352 = vpop.f32.mrb[0].mxu0
      %7353 = vmatprep.mubr.bf16.mxu0 0
      %7354 = vmatmul.mubr.bf16.gmra.mrb[0].mxu0 %v7115
      %v7355 = vpop.f32.mrb[0].mxu0
      %v7356 = vadd.f32 0.0, %v7355
      %v7357 = vpop.f32.mrb[0].mxu0
      %v7358 = vpop.f32.mrb[0].mxu0
      %v7359 = vadd.f32 0.0, %v7358
      %v7360 = vpop.f32.mrb[0].mxu0
      %7361 = vmatprep.mubr.bf16.mxu0 0
      %7362 = vmatmul.mubr.bf16.gmra.mrb[0].mxu0 %v7124
      %v7363 = vpop.f32.mrb[0].mxu0
      %v7364 = vadd.f32 0.0, %v7363
      %v7365 = vpop.f32.mrb[0].mxu0
      %v7366 = vpop.f32.mrb[0].mxu0
      %v7367 = vadd.f32 0.0, %v7366
      %v7368 = vpop.f32.mrb[0].mxu0
      %7369 = vmatprep.mubr.bf16.mxu0 0
      %7370 = vmatmul.mubr.bf16.gmra.mrb[0].mxu0 %v7133
      %v7371 = vpop.f32.mrb[0].mxu0
      %v7372 = vadd.f32 0.0, %v7371
      %v7373 = vpop.f32.mrb[0].mxu0
      %v7374 = vpop.f32.mrb[0].mxu0
      %v7375 = vadd.f32 0.0, %v7374
      %v7376 = vpop.f32.mrb[0].mxu0
      %7377 = vmatprep.mubr.bf16.mxu0 0
      %7378 = vmatmul.mubr.bf16.gmra.mrb[0].mxu0 %v7142
      %v7379 = vpop.f32.mrb[0].mxu0
      %v7380 = vadd.f32 0.0, %v7379
      %v7381 = vpop.f32.mrb[0].mxu0
      %v7382 = vpop.f32.mrb[0].mxu0
      %v7383 = vadd.f32 0.0, %v7382
      %v7384 = vpop.f32.mrb[0].mxu0
      %7385 = vdwg.mxu0
      %v7386 = vadd.f32 %v6901, %v7244
      %v7387 = vadd.f32 %v6902, %v7247
      %v7388 = vadd.f32 %v6903, %v7252
      %v7389 = vadd.f32 %v6904, %v7255
      %v7390 = vadd.f32 %v6905, %v7260
      %v7391 = vadd.f32 %v6906, %v7263
      %v7392 = vadd.f32 %v6907, %v7268
      %v7393 = vadd.f32 %v6908, %v7271
      %v7394 = vadd.f32 %v6909, %v7276
      %v7395 = vadd.f32 %v6910, %v7279
      %v7396 = vadd.f32 %v6911, %v7284
      %v7397 = vadd.f32 %v6912, %v7287
      %v7398 = vadd.f32 %v6913, %v7292
      %v7399 = vadd.f32 %v6914, %v7295
      %v7400 = vadd.f32 %v6915, %v7300
      %v7401 = vadd.f32 %v6916, %v7303
      %v7402 = vadd.f32 %v6917, %v7308
      %v7403 = vadd.f32 %v6918, %v7311
      %v7404 = vadd.f32 %v6919, %v7316
      %v7405 = vadd.f32 %v6920, %v7319
      %v7406 = vadd.f32 %v6921, %v7324
      %v7407 = vadd.f32 %v6922, %v7327
      %v7408 = vadd.f32 %v6923, %v7332
      %v7409 = vadd.f32 %v6924, %v7335
      %v7410 = vadd.f32 %v6925, %v7340
      %v7411 = vadd.f32 %v6926, %v7343
      %v7412 = vadd.f32 %v6927, %v7348
      %v7413 = vadd.f32 %v6928, %v7351
      %v7414 = vadd.f32 %v6929, %v7356
      %v7415 = vadd.f32 %v6930, %v7359
      %v7416 = vadd.f32 %v6931, %v7364
      %v7417 = vadd.f32 %v6932, %v7367
      %v7418 = vadd.f32 %v6933, %v7372
      %v7419 = vadd.f32 %v6934, %v7375
      %v7420 = vadd.f32 %v6935, %v7380
      %v7421 = vadd.f32 %v6936, %v7383
      %v7422 = vld [vmem:[#allocation2 + $0x20] sm:$0xf0]
      %v7423 = vld [vmem:[#allocation2 + $0x28] sm:$0xf0]
      %v7424 = vld [vmem:[#allocation2 + $0x30] sm:$0xff]
      %v7425 = vld [vmem:[#allocation2 + $0x38] sm:$0xff]
      %v7426 = vld [vmem:[#allocation2 + $0x40] sm:$0xff]
      %v7427 = vld [vmem:[#allocation2 + $0x48] sm:$0xff]
      %v7428 = vld [vmem:[#allocation2 + $0x50] sm:$0xff]
      %v7429 = vld [vmem:[#allocation2 + $0x58] sm:$0xff]
      %v7430 = vld [vmem:[#allocation2 + $0x60] sm:$0xff]
      %v7431 = vld [vmem:[#allocation2 + $0x68] sm:$0xff]
      %v7432 = vld [vmem:[#allocation2 + $0x70] sm:$0xff]
      %v7433 = vld [vmem:[#allocation2 + $0x78] sm:$0xff]
      %v7434 = vld [vmem:[#allocation2 + $0x80] sm:$0xff]
      %v7435 = vld [vmem:[#allocation2 + $0x88] sm:$0xff]
      %v7436 = vld [vmem:[#allocation2 + $0x90] sm:$0xff]
      %v7437 = vld [vmem:[#allocation2 + $0x98] sm:$0xff]
      %v7438 = vld [vmem:[#allocation2 + $0xa0] sm:$0xff]
      %v7439 = vld [vmem:[#allocation2 + $0xa8] sm:$0xff]
      %v7440 = vld [vmem:[#allocation2 + $0xb0] sm:$0xff]
      %v7441 = vld [vmem:[#allocation2 + $0xb8] sm:$0xff]
      %v7442 = vld [vmem:[#allocation2 + $0xc0] sm:$0xff]
      %v7443 = vld [vmem:[#allocation2 + $0xc8] sm:$0xff]
      %v7444 = vld [vmem:[#allocation2 + $0xd0] sm:$0xff]
      %v7445 = vld [vmem:[#allocation2 + $0xd8] sm:$0xff]
      %v7446 = vld [vmem:[#allocation2 + $0xe0] sm:$0xff]
      %v7447 = vld [vmem:[#allocation2 + $0xe8] sm:$0xff]
      %v7448 = vld [vmem:[#allocation2 + $0xf0] sm:$0xff]
      %v7449 = vld [vmem:[#allocation2 + $0xf8] sm:$0xff]
      %v7450 = vld [vmem:[#allocation2 + $0x100] sm:$0xff]
      %v7451 = vld [vmem:[#allocation2 + $0x108] sm:$0xff]
      %v7452 = vld [vmem:[#allocation2 + $0x110] sm:$0xff]
      %v7453 = vld [vmem:[#allocation2 + $0x118] sm:$0xff]
      %v7454 = vld [vmem:[#allocation2 + $0x120] sm:$0xff]
      %v7455 = vld [vmem:[#allocation2 + $0x128] sm:$0xff]
      %v7456 = vld [vmem:[#allocation2 + $0x130] sm:$0xff]
      %v7457 = vld [vmem:[#allocation2 + $0x138] sm:$0xff]
      %v7458 = vld [vmem:[#allocation2 + $0x140] sm:$0x1f]
      %v7459 = vld [vmem:[#allocation2 + $0x148] sm:$0x1f]
      %s7460 = scalar_lea.vmem %s4, 256
      %v7461 = vld [vmem:[%s7460] sm:$0xf]
      %v7462 = vld [vmem:[%s7460 + $0x4] sm:$0xf]
      %v7463 = vld [vmem:[%s7460 + $0x8] sm:$0xf]
      %v7464 = vld [vmem:[%s7460 + $0xc] sm:$0xf]
      %v7465 = vld [vmem:[%s7460 + $0x10] sm:$0xf]
      %v7466 = vld [vmem:[%s7460 + $0x14] sm:$0xf]
      %v7467 = vld [vmem:[%s7460 + $0x18] sm:$0xf]
      %v7468 = vld [vmem:[%s7460 + $0x1c] sm:$0xf]
      %v7469 = vld [vmem:[%s7460 + $0x20] sm:$0xf]
      %v7470 = vld [vmem:[%s7460 + $0x24] sm:$0xf]
      %v7471 = vld [vmem:[%s7460 + $0x28] sm:$0xf]
      %v7472 = vld [vmem:[%s7460 + $0x2c] sm:$0xf]
      %v7473 = vld [vmem:[%s7460 + $0x30] sm:$0xf]
      %v7474 = vld [vmem:[%s7460 + $0x34] sm:$0xf]
      %v7475 = vld [vmem:[%s7460 + $0x38] sm:$0xf]
      %v7476 = vld [vmem:[%s7460 + $0x3c] sm:$0xf]
      %v7477 = vld [vmem:[%s7460 + $0x40] sm:$0xf]
      %v7478 = vld [vmem:[%s7460 + $0x44] sm:$0xf]
      %v7479 = vld [vmem:[%s7460 + $0x48] sm:$0xf]
      %v7480 = vld [vmem:[%s7460 + $0x4c] sm:$0xf]
      %v7481 = vld [vmem:[%s7460 + $0x50] sm:$0xf]
      %v7482 = vld [vmem:[%s7460 + $0x54] sm:$0xf]
      %v7483 = vld [vmem:[%s7460 + $0x58] sm:$0xf]
      %v7484 = vld [vmem:[%s7460 + $0x5c] sm:$0xf]
      %v7485 = vld [vmem:[%s7460 + $0x60] sm:$0xf]
      %v7486 = vld [vmem:[%s7460 + $0x64] sm:$0xf]
      %v7487 = vld [vmem:[%s7460 + $0x68] sm:$0xf]
      %v7488 = vld [vmem:[%s7460 + $0x6c] sm:$0xf]
      %v7489 = vld [vmem:[%s7460 + $0x70] sm:$0xf]
      %v7490 = vld [vmem:[%s7460 + $0x74] sm:$0xf]
      %v7491 = vld [vmem:[%s7460 + $0x78] sm:$0xf]
      %v7492 = vld [vmem:[%s7460 + $0x7c] sm:$0xf]
      %v7494 = vshrl.u32 %v7422, 16
      %v7496 = vrot.slane %v7494, 4
      %v7497 = vshll.u32 %v7422, 16
      %v7499 = vrot.slane %v7497, 5
      %v7500 = vor.u32 %v7496, %v7499
      %v7502 = vshrl.u32 %v7424, 16
      %v7504 = vrot.slane %v7502, 4
      %v7505 = vshll.u32 %v7424, 16
      %v7507 = vrot.slane %v7505, 5
      %v7508 = vor.u32 %v7504, %v7507
      %v7509 = vsel %vm2493, %v7500, %v7508
      %v7511 = vshrl.u32 %v7423, 16
      %v7513 = vrot.slane %v7511, 4
      %v7514 = vshll.u32 %v7423, 16
      %v7516 = vrot.slane %v7514, 5
      %v7517 = vor.u32 %v7513, %v7516
      %v7519 = vshrl.u32 %v7425, 16
      %v7521 = vrot.slane %v7519, 4
      %v7522 = vshll.u32 %v7425, 16
      %v7524 = vrot.slane %v7522, 5
      %v7525 = vor.u32 %v7521, %v7524
      %v7526 = vsel %vm2493, %v7517, %v7525
      %v7528 = vshrl.u32 %v7426, 16
      %v7530 = vrot.slane %v7528, 4
      %v7531 = vshll.u32 %v7426, 16
      %v7533 = vrot.slane %v7531, 5
      %v7534 = vor.u32 %v7530, %v7533
      %v7535 = vsel %vm2493, %v7508, %v7534
      %v7537 = vshrl.u32 %v7427, 16
      %v7539 = vrot.slane %v7537, 4
      %v7540 = vshll.u32 %v7427, 16
      %v7542 = vrot.slane %v7540, 5
      %v7543 = vor.u32 %v7539, %v7542
      %v7544 = vsel %vm2493, %v7525, %v7543
      %v7546 = vshrl.u32 %v7428, 16
      %v7548 = vrot.slane %v7546, 4
      %v7549 = vshll.u32 %v7428, 16
      %v7551 = vrot.slane %v7549, 5
      %v7552 = vor.u32 %v7548, %v7551
      %v7553 = vsel %vm2493, %v7534, %v7552
      %v7555 = vshrl.u32 %v7429, 16
      %v7557 = vrot.slane %v7555, 4
      %v7558 = vshll.u32 %v7429, 16
      %v7560 = vrot.slane %v7558, 5
      %v7561 = vor.u32 %v7557, %v7560
      %v7562 = vsel %vm2493, %v7543, %v7561
      %v7564 = vshrl.u32 %v7430, 16
      %v7566 = vrot.slane %v7564, 4
      %v7567 = vshll.u32 %v7430, 16
      %v7569 = vrot.slane %v7567, 5
      %v7570 = vor.u32 %v7566, %v7569
      %v7571 = vsel %vm2493, %v7552, %v7570
      %v7573 = vshrl.u32 %v7431, 16
      %v7575 = vrot.slane %v7573, 4
      %v7576 = vshll.u32 %v7431, 16
      %v7578 = vrot.slane %v7576, 5
      %v7579 = vor.u32 %v7575, %v7578
      %v7580 = vsel %vm2493, %v7561, %v7579
      %v7582 = vshrl.u32 %v7432, 16
      %v7584 = vrot.slane %v7582, 4
      %v7585 = vshll.u32 %v7432, 16
      %v7587 = vrot.slane %v7585, 5
      %v7588 = vor.u32 %v7584, %v7587
      %v7589 = vsel %vm2493, %v7570, %v7588
      %v7591 = vshrl.u32 %v7433, 16
      %v7593 = vrot.slane %v7591, 4
      %v7594 = vshll.u32 %v7433, 16
      %v7596 = vrot.slane %v7594, 5
      %v7597 = vor.u32 %v7593, %v7596
      %v7598 = vsel %vm2493, %v7579, %v7597
      %v7600 = vshrl.u32 %v7434, 16
      %v7602 = vrot.slane %v7600, 4
      %v7603 = vshll.u32 %v7434, 16
      %v7605 = vrot.slane %v7603, 5
      %v7606 = vor.u32 %v7602, %v7605
      %v7607 = vsel %vm2493, %v7588, %v7606
      %v7609 = vshrl.u32 %v7435, 16
      %v7611 = vrot.slane %v7609, 4
      %v7612 = vshll.u32 %v7435, 16
      %v7614 = vrot.slane %v7612, 5
      %v7615 = vor.u32 %v7611, %v7614
      %v7616 = vsel %vm2493, %v7597, %v7615
      %v7618 = vshrl.u32 %v7436, 16
      %v7620 = vrot.slane %v7618, 4
      %v7621 = vshll.u32 %v7436, 16
      %v7623 = vrot.slane %v7621, 5
      %v7624 = vor.u32 %v7620, %v7623
      %v7625 = vsel %vm2493, %v7606, %v7624
      %v7627 = vshrl.u32 %v7437, 16
      %v7629 = vrot.slane %v7627, 4
      %v7630 = vshll.u32 %v7437, 16
      %v7632 = vrot.slane %v7630, 5
      %v7633 = vor.u32 %v7629, %v7632
      %v7634 = vsel %vm2493, %v7615, %v7633
      %v7636 = vshrl.u32 %v7438, 16
      %v7638 = vrot.slane %v7636, 4
      %v7639 = vshll.u32 %v7438, 16
      %v7641 = vrot.slane %v7639, 5
      %v7642 = vor.u32 %v7638, %v7641
      %v7643 = vsel %vm2493, %v7624, %v7642
      %v7645 = vshrl.u32 %v7439, 16
      %v7647 = vrot.slane %v7645, 4
      %v7648 = vshll.u32 %v7439, 16
      %v7650 = vrot.slane %v7648, 5
      %v7651 = vor.u32 %v7647, %v7650
      %v7652 = vsel %vm2493, %v7633, %v7651
      %v7654 = vshrl.u32 %v7440, 16
      %v7656 = vrot.slane %v7654, 4
      %v7657 = vshll.u32 %v7440, 16
      %v7659 = vrot.slane %v7657, 5
      %v7660 = vor.u32 %v7656, %v7659
      %v7661 = vsel %vm2493, %v7642, %v7660
      %v7663 = vshrl.u32 %v7441, 16
      %v7665 = vrot.slane %v7663, 4
      %v7666 = vshll.u32 %v7441, 16
      %v7668 = vrot.slane %v7666, 5
      %v7669 = vor.u32 %v7665, %v7668
      %v7670 = vsel %vm2493, %v7651, %v7669
      %v7672 = vshrl.u32 %v7442, 16
      %v7674 = vrot.slane %v7672, 4
      %v7675 = vshll.u32 %v7442, 16
      %v7677 = vrot.slane %v7675, 5
      %v7678 = vor.u32 %v7674, %v7677
      %v7679 = vsel %vm2493, %v7660, %v7678
      %v7681 = vshrl.u32 %v7443, 16
      %v7683 = vrot.slane %v7681, 4
      %v7684 = vshll.u32 %v7443, 16
      %v7686 = vrot.slane %v7684, 5
      %v7687 = vor.u32 %v7683, %v7686
      %v7688 = vsel %vm2493, %v7669, %v7687
      %v7690 = vshrl.u32 %v7444, 16
      %v7692 = vrot.slane %v7690, 4
      %v7693 = vshll.u32 %v7444, 16
      %v7695 = vrot.slane %v7693, 5
      %v7696 = vor.u32 %v7692, %v7695
      %v7697 = vsel %vm2493, %v7678, %v7696
      %v7699 = vshrl.u32 %v7445, 16
      %v7701 = vrot.slane %v7699, 4
      %v7702 = vshll.u32 %v7445, 16
      %v7704 = vrot.slane %v7702, 5
      %v7705 = vor.u32 %v7701, %v7704
      %v7706 = vsel %vm2493, %v7687, %v7705
      %v7708 = vshrl.u32 %v7446, 16
      %v7710 = vrot.slane %v7708, 4
      %v7711 = vshll.u32 %v7446, 16
      %v7713 = vrot.slane %v7711, 5
      %v7714 = vor.u32 %v7710, %v7713
      %v7715 = vsel %vm2493, %v7696, %v7714
      %v7717 = vshrl.u32 %v7447, 16
      %v7719 = vrot.slane %v7717, 4
      %v7720 = vshll.u32 %v7447, 16
      %v7722 = vrot.slane %v7720, 5
      %v7723 = vor.u32 %v7719, %v7722
      %v7724 = vsel %vm2493, %v7705, %v7723
      %v7726 = vshrl.u32 %v7448, 16
      %v7728 = vrot.slane %v7726, 4
      %v7729 = vshll.u32 %v7448, 16
      %v7731 = vrot.slane %v7729, 5
      %v7732 = vor.u32 %v7728, %v7731
      %v7733 = vsel %vm2493, %v7714, %v7732
      %v7735 = vshrl.u32 %v7449, 16
      %v7737 = vrot.slane %v7735, 4
      %v7738 = vshll.u32 %v7449, 16
      %v7740 = vrot.slane %v7738, 5
      %v7741 = vor.u32 %v7737, %v7740
      %v7742 = vsel %vm2493, %v7723, %v7741
      %v7744 = vshrl.u32 %v7450, 16
      %v7746 = vrot.slane %v7744, 4
      %v7747 = vshll.u32 %v7450, 16
      %v7749 = vrot.slane %v7747, 5
      %v7750 = vor.u32 %v7746, %v7749
      %v7751 = vsel %vm2493, %v7732, %v7750
      %v7753 = vshrl.u32 %v7451, 16
      %v7755 = vrot.slane %v7753, 4
      %v7756 = vshll.u32 %v7451, 16
      %v7758 = vrot.slane %v7756, 5
      %v7759 = vor.u32 %v7755, %v7758
      %v7760 = vsel %vm2493, %v7741, %v7759
      %v7762 = vshrl.u32 %v7452, 16
      %v7764 = vrot.slane %v7762, 4
      %v7765 = vshll.u32 %v7452, 16
      %v7767 = vrot.slane %v7765, 5
      %v7768 = vor.u32 %v7764, %v7767
      %v7769 = vsel %vm2493, %v7750, %v7768
      %v7771 = vshrl.u32 %v7453, 16
      %v7773 = vrot.slane %v7771, 4
      %v7774 = vshll.u32 %v7453, 16
      %v7776 = vrot.slane %v7774, 5
      %v7777 = vor.u32 %v7773, %v7776
      %v7778 = vsel %vm2493, %v7759, %v7777
      %v7780 = vshrl.u32 %v7454, 16
      %v7782 = vrot.slane %v7780, 4
      %v7783 = vshll.u32 %v7454, 16
      %v7785 = vrot.slane %v7783, 5
      %v7786 = vor.u32 %v7782, %v7785
      %v7787 = vsel %vm2493, %v7768, %v7786
      %v7789 = vshrl.u32 %v7455, 16
      %v7791 = vrot.slane %v7789, 4
      %v7792 = vshll.u32 %v7455, 16
      %v7794 = vrot.slane %v7792, 5
      %v7795 = vor.u32 %v7791, %v7794
      %v7796 = vsel %vm2493, %v7777, %v7795
      %v7798 = vshrl.u32 %v7456, 16
      %v7800 = vrot.slane %v7798, 4
      %v7801 = vshll.u32 %v7456, 16
      %v7803 = vrot.slane %v7801, 5
      %v7804 = vor.u32 %v7800, %v7803
      %v7805 = vsel %vm2493, %v7786, %v7804
      %v7807 = vshrl.u32 %v7457, 16
      %v7809 = vrot.slane %v7807, 4
      %v7810 = vshll.u32 %v7457, 16
      %v7812 = vrot.slane %v7810, 5
      %v7813 = vor.u32 %v7809, %v7812
      %v7814 = vsel %vm2493, %v7795, %v7813
      %v7816 = vshrl.u32 %v7458, 16
      %v7818 = vrot.slane %v7816, 4
      %v7819 = vshll.u32 %v7458, 16
      %v7821 = vrot.slane %v7819, 5
      %v7822 = vor.u32 %v7818, %v7821
      %v7823 = vsel %vm2493, %v7804, %v7822
      %v7825 = vshrl.u32 %v7459, 16
      %v7827 = vrot.slane %v7825, 4
      %v7828 = vshll.u32 %v7459, 16
      %v7830 = vrot.slane %v7828, 5
      %v7831 = vor.u32 %v7827, %v7830
      %v7832 = vsel %vm2493, %v7813, %v7831
      %v7901 = vunpack.c.l.b16 %v7461
      %v7902 = vunpack.c.l.b16 %v7462
      %v7903 = vunpack.c.l.b16 %v7463
      %v7904 = vunpack.c.l.b16 %v7464
      %v7905 = vunpack.c.l.b16 %v7465
      %v7906 = vunpack.c.l.b16 %v7466
      %v7907 = vunpack.c.l.b16 %v7467
      %v7908 = vunpack.c.l.b16 %v7468
      %v7909 = vunpack.c.l.b16 %v7469
      %v7910 = vunpack.c.l.b16 %v7470
      %v7911 = vunpack.c.l.b16 %v7471
      %v7912 = vunpack.c.l.b16 %v7472
      %v7913 = vunpack.c.l.b16 %v7473
      %v7914 = vunpack.c.l.b16 %v7474
      %v7915 = vunpack.c.l.b16 %v7475
      %v7916 = vunpack.c.l.b16 %v7476
      %v7917 = vunpack.c.l.b16 %v7477
      %v7918 = vunpack.c.l.b16 %v7478
      %v7919 = vunpack.c.l.b16 %v7479
      %v7920 = vunpack.c.l.b16 %v7480
      %v7921 = vunpack.c.l.b16 %v7481
      %v7922 = vunpack.c.l.b16 %v7482
      %v7923 = vunpack.c.l.b16 %v7483
      %v7924 = vunpack.c.l.b16 %v7484
      %v7925 = vunpack.c.l.b16 %v7485
      %v7926 = vunpack.c.l.b16 %v7486
      %v7927 = vunpack.c.l.b16 %v7487
      %v7928 = vunpack.c.l.b16 %v7488
      %v7929 = vunpack.c.l.b16 %v7489
      %v7930 = vunpack.c.l.b16 %v7490
      %v7931 = vunpack.c.l.b16 %v7491
      %v7932 = vunpack.c.l.b16 %v7492
      %v7933 = vpack.c.b16 %v7902, %v7901
      %v7934 = vpack.c.b16 %v7904, %v7903
      %v7935 = vpack.c.b16 %v7906, %v7905
      %v7936 = vpack.c.b16 %v7908, %v7907
      %v7937 = vpack.c.b16 %v7910, %v7909
      %v7938 = vpack.c.b16 %v7912, %v7911
      %v7939 = vpack.c.b16 %v7914, %v7913
      %v7940 = vpack.c.b16 %v7916, %v7915
      %v7941 = vpack.c.b16 %v7918, %v7917
      %v7942 = vpack.c.b16 %v7920, %v7919
      %v7943 = vpack.c.b16 %v7922, %v7921
      %v7944 = vpack.c.b16 %v7924, %v7923
      %v7945 = vpack.c.b16 %v7926, %v7925
      %v7946 = vpack.c.b16 %v7928, %v7927
      %v7947 = vpack.c.b16 %v7930, %v7929
      %v7948 = vpack.c.b16 %v7932, %v7931
      %7965 = vmatprep.subr.bf16.mxu0 0
      %7966 = vmatpush1.bf16.msra.mxu0 %v7933
      %7967 = vmatprep.subr.bf16.mxu0 0
      %7968 = vmatpush1.bf16.msra.mxu0 %v7934
      %7969 = vmatprep.subr.bf16.mxu0 0
      %7970 = vmatpush1.bf16.msra.mxu0 %v7935
      %7971 = vmatprep.subr.bf16.mxu0 0
      %7972 = vmatpush1.bf16.msra.mxu0 %v7936
      %7973 = vmatprep.subr.bf16.mxu0 0
      %7974 = vmatpush1.bf16.msra.mxu0 %v7937
      %7975 = vmatprep.subr.bf16.mxu0 0
      %7976 = vmatpush1.bf16.msra.mxu0 %v7938
      %7977 = vmatprep.subr.bf16.mxu0 0
      %7978 = vmatpush1.bf16.msra.mxu0 %v7939
      %7979 = vmatprep.subr.bf16.mxu0 0
      %7980 = vmatpush1.bf16.msra.mxu0 %v7940
      %7981 = vmatprep.subr.bf16.mxu0 0
      %7982 = vmatpush1.bf16.msra.mxu0 %v7941
      %7983 = vmatprep.subr.bf16.mxu0 0
      %7984 = vmatpush1.bf16.msra.mxu0 %v7942
      %7985 = vmatprep.subr.bf16.mxu0 0
      %7986 = vmatpush1.bf16.msra.mxu0 %v7943
      %7987 = vmatprep.subr.bf16.mxu0 0
      %7988 = vmatpush1.bf16.msra.mxu0 %v7944
      %7989 = vmatprep.subr.bf16.mxu0 0
      %7990 = vmatpush1.bf16.msra.mxu0 %v7945
      %7991 = vmatprep.subr.bf16.mxu0 0
      %7992 = vmatpush1.bf16.msra.mxu0 %v7946
      %7993 = vmatprep.subr.bf16.mxu0 0
      %7994 = vmatpush1.bf16.msra.mxu0 %v7947
      %7995 = vmatprep.subr.bf16.mxu0 0
      %7996 = vmatpush1.bf16.msra.mxu0 %v7948
      %7997 = vmatprep.mubr.bf16.mxu0 %v7526
      %7998 = vmatmul.mubr.bf16.gmra.mrb[0].mxu0 %v7509
      %v7999 = vpop.f32.mrb[0].mxu0
      %v8000 = vadd.f32 0.0, %v7999
      %v8001 = vpop.f32.mrb[0].mxu0
      %v8002 = vpop.f32.mrb[0].mxu0
      %v8003 = vadd.f32 0.0, %v8002
      %v8004 = vpop.f32.mrb[0].mxu0
      %8005 = vmatprep.mubr.bf16.mxu0 %v7544
      %8006 = vmatmul.mubr.bf16.gmra.mrb[0].mxu0 %v7535
      %v8007 = vpop.f32.mrb[0].mxu0
      %v8008 = vadd.f32 0.0, %v8007
      %v8009 = vpop.f32.mrb[0].mxu0
      %v8010 = vpop.f32.mrb[0].mxu0
      %v8011 = vadd.f32 0.0, %v8010
      %v8012 = vpop.f32.mrb[0].mxu0
      %8013 = vmatprep.mubr.bf16.mxu0 %v7562
      %8014 = vmatmul.mubr.bf16.gmra.mrb[0].mxu0 %v7553
      %v8015 = vpop.f32.mrb[0].mxu0
      %v8016 = vadd.f32 0.0, %v8015
      %v8017 = vpop.f32.mrb[0].mxu0
      %v8018 = vpop.f32.mrb[0].mxu0
      %v8019 = vadd.f32 0.0, %v8018
      %v8020 = vpop.f32.mrb[0].mxu0
      %8021 = vmatprep.mubr.bf16.mxu0 %v7580
      %8022 = vmatmul.mubr.bf16.gmra.mrb[0].mxu0 %v7571
      %v8023 = vpop.f32.mrb[0].mxu0
      %v8024 = vadd.f32 0.0, %v8023
      %v8025 = vpop.f32.mrb[0].mxu0
      %v8026 = vpop.f32.mrb[0].mxu0
      %v8027 = vadd.f32 0.0, %v8026
      %v8028 = vpop.f32.mrb[0].mxu0
      %8029 = vmatprep.mubr.bf16.mxu0 %v7598
      %8030 = vmatmul.mubr.bf16.gmra.mrb[0].mxu0 %v7589
      %v8031 = vpop.f32.mrb[0].mxu0
      %v8032 = vadd.f32 0.0, %v8031
      %v8033 = vpop.f32.mrb[0].mxu0
      %v8034 = vpop.f32.mrb[0].mxu0
      %v8035 = vadd.f32 0.0, %v8034
      %v8036 = vpop.f32.mrb[0].mxu0
      %8037 = vmatprep.mubr.bf16.mxu0 %v7616
      %8038 = vmatmul.mubr.bf16.gmra.mrb[0].mxu0 %v7607
      %v8039 = vpop.f32.mrb[0].mxu0
      %v8040 = vadd.f32 0.0, %v8039
      %v8041 = vpop.f32.mrb[0].mxu0
      %v8042 = vpop.f32.mrb[0].mxu0
      %v8043 = vadd.f32 0.0, %v8042
      %v8044 = vpop.f32.mrb[0].mxu0
      %8045 = vmatprep.mubr.bf16.mxu0 %v7634
      %8046 = vmatmul.mubr.bf16.gmra.mrb[0].mxu0 %v7625
      %v8047 = vpop.f32.mrb[0].mxu0
      %v8048 = vadd.f32 0.0, %v8047
      %v8049 = vpop.f32.mrb[0].mxu0
      %v8050 = vpop.f32.mrb[0].mxu0
      %v8051 = vadd.f32 0.0, %v8050
      %v8052 = vpop.f32.mrb[0].mxu0
      %8053 = vmatprep.mubr.bf16.mxu0 %v7652
      %8054 = vmatmul.mubr.bf16.gmra.mrb[0].mxu0 %v7643
      %v8055 = vpop.f32.mrb[0].mxu0
      %v8056 = vadd.f32 0.0, %v8055
      %v8057 = vpop.f32.mrb[0].mxu0
      %v8058 = vpop.f32.mrb[0].mxu0
      %v8059 = vadd.f32 0.0, %v8058
      %v8060 = vpop.f32.mrb[0].mxu0
      %8061 = vmatprep.mubr.bf16.mxu0 %v7670
      %8062 = vmatmul.mubr.bf16.gmra.mrb[0].mxu0 %v7661
      %v8063 = vpop.f32.mrb[0].mxu0
      %v8064 = vadd.f32 0.0, %v8063
      %v8065 = vpop.f32.mrb[0].mxu0
      %v8066 = vpop.f32.mrb[0].mxu0
      %v8067 = vadd.f32 0.0, %v8066
      %v8068 = vpop.f32.mrb[0].mxu0
      %8069 = vmatprep.mubr.bf16.mxu0 %v7688
      %8070 = vmatmul.mubr.bf16.gmra.mrb[0].mxu0 %v7679
      %v8071 = vpop.f32.mrb[0].mxu0
      %v8072 = vadd.f32 0.0, %v8071
      %v8073 = vpop.f32.mrb[0].mxu0
      %v8074 = vpop.f32.mrb[0].mxu0
      %v8075 = vadd.f32 0.0, %v8074
      %v8076 = vpop.f32.mrb[0].mxu0
      %8077 = vmatprep.mubr.bf16.mxu0 %v7706
      %8078 = vmatmul.mubr.bf16.gmra.mrb[0].mxu0 %v7697
      %v8079 = vpop.f32.mrb[0].mxu0
      %v8080 = vadd.f32 0.0, %v8079
      %v8081 = vpop.f32.mrb[0].mxu0
      %v8082 = vpop.f32.mrb[0].mxu0
      %v8083 = vadd.f32 0.0, %v8082
      %v8084 = vpop.f32.mrb[0].mxu0
      %8085 = vmatprep.mubr.bf16.mxu0 %v7724
      %8086 = vmatmul.mubr.bf16.gmra.mrb[0].mxu0 %v7715
      %v8087 = vpop.f32.mrb[0].mxu0
      %v8088 = vadd.f32 0.0, %v8087
      %v8089 = vpop.f32.mrb[0].mxu0
      %v8090 = vpop.f32.mrb[0].mxu0
      %v8091 = vadd.f32 0.0, %v8090
      %v8092 = vpop.f32.mrb[0].mxu0
      %8093 = vmatprep.mubr.bf16.mxu0 %v7742
      %8094 = vmatmul.mubr.bf16.gmra.mrb[0].mxu0 %v7733
      %v8095 = vpop.f32.mrb[0].mxu0
      %v8096 = vadd.f32 0.0, %v8095
      %v8097 = vpop.f32.mrb[0].mxu0
      %v8098 = vpop.f32.mrb[0].mxu0
      %v8099 = vadd.f32 0.0, %v8098
      %v8100 = vpop.f32.mrb[0].mxu0
      %8101 = vmatprep.mubr.bf16.mxu0 %v7760
      %8102 = vmatmul.mubr.bf16.gmra.mrb[0].mxu0 %v7751
      %v8103 = vpop.f32.mrb[0].mxu0
      %v8104 = vadd.f32 0.0, %v8103
      %v8105 = vpop.f32.mrb[0].mxu0
      %v8106 = vpop.f32.mrb[0].mxu0
      %v8107 = vadd.f32 0.0, %v8106
      %v8108 = vpop.f32.mrb[0].mxu0
      %8109 = vmatprep.mubr.bf16.mxu0 %v7778
      %8110 = vmatmul.mubr.bf16.gmra.mrb[0].mxu0 %v7769
      %v8111 = vpop.f32.mrb[0].mxu0
      %v8112 = vadd.f32 0.0, %v8111
      %v8113 = vpop.f32.mrb[0].mxu0
      %v8114 = vpop.f32.mrb[0].mxu0
      %v8115 = vadd.f32 0.0, %v8114
      %v8116 = vpop.f32.mrb[0].mxu0
      %8117 = vmatprep.mubr.bf16.mxu0 %v7796
      %8118 = vmatmul.mubr.bf16.gmra.mrb[0].mxu0 %v7787
      %v8119 = vpop.f32.mrb[0].mxu0
      %v8120 = vadd.f32 0.0, %v8119
      %v8121 = vpop.f32.mrb[0].mxu0
      %v8122 = vpop.f32.mrb[0].mxu0
      %v8123 = vadd.f32 0.0, %v8122
      %v8124 = vpop.f32.mrb[0].mxu0
      %8125 = vmatprep.mubr.bf16.mxu0 %v7814
      %8126 = vmatmul.mubr.bf16.gmra.mrb[0].mxu0 %v7805
      %v8127 = vpop.f32.mrb[0].mxu0
      %v8128 = vadd.f32 0.0, %v8127
      %v8129 = vpop.f32.mrb[0].mxu0
      %v8130 = vpop.f32.mrb[0].mxu0
      %v8131 = vadd.f32 0.0, %v8130
      %v8132 = vpop.f32.mrb[0].mxu0
      %8133 = vmatprep.mubr.bf16.mxu0 %v7832
      %8134 = vmatmul.mubr.bf16.gmra.mrb[0].mxu0 %v7823
      %v8135 = vpop.f32.mrb[0].mxu0
      %v8136 = vadd.f32 0.0, %v8135
      %v8137 = vpop.f32.mrb[0].mxu0
      %v8138 = vpop.f32.mrb[0].mxu0
      %v8139 = vadd.f32 0.0, %v8138
      %v8140 = vpop.f32.mrb[0].mxu0
      %8141 = vdwg.mxu0
      %v8142 = vadd.f32 %v7386, %v8000
      %v8143 = vadd.f32 %v7387, %v8003
      %v8144 = vadd.f32 %v7388, %v8008
      %v8145 = vadd.f32 %v7389, %v8011
      %v8146 = vadd.f32 %v7390, %v8016
      %v8147 = vadd.f32 %v7391, %v8019
      %v8148 = vadd.f32 %v7392, %v8024
      %v8149 = vadd.f32 %v7393, %v8027
      %v8150 = vadd.f32 %v7394, %v8032
      %v8151 = vadd.f32 %v7395, %v8035
      %v8152 = vadd.f32 %v7396, %v8040
      %v8153 = vadd.f32 %v7397, %v8043
      %v8154 = vadd.f32 %v7398, %v8048
      %v8155 = vadd.f32 %v7399, %v8051
      %v8156 = vadd.f32 %v7400, %v8056
      %v8157 = vadd.f32 %v7401, %v8059
      %v8158 = vadd.f32 %v7402, %v8064
      %v8159 = vadd.f32 %v7403, %v8067
      %v8160 = vadd.f32 %v7404, %v8072
      %v8161 = vadd.f32 %v7405, %v8075
      %v8162 = vadd.f32 %v7406, %v8080
      %v8163 = vadd.f32 %v7407, %v8083
      %v8164 = vadd.f32 %v7408, %v8088
      %v8165 = vadd.f32 %v7409, %v8091
      %v8166 = vadd.f32 %v7410, %v8096
      %v8167 = vadd.f32 %v7411, %v8099
      %v8168 = vadd.f32 %v7412, %v8104
      %v8169 = vadd.f32 %v7413, %v8107
      %v8170 = vadd.f32 %v7414, %v8112
      %v8171 = vadd.f32 %v7415, %v8115
      %v8172 = vadd.f32 %v7416, %v8120
      %v8173 = vadd.f32 %v7417, %v8123
      %v8174 = vadd.f32 %v7418, %v8128
      %v8175 = vadd.f32 %v7419, %v8131
      %v8176 = vadd.f32 %v7420, %v8136
      %v8177 = vadd.f32 %v7421, %v8139
      %v8178 = vld [vmem:[#allocation2 + $0x20] sm:$0xe0]
      %v8179 = vld [vmem:[#allocation2 + $0x30] sm:$0xff]
      %v8180 = vld [vmem:[#allocation2 + $0x40] sm:$0xff]
      %v8181 = vld [vmem:[#allocation2 + $0x50] sm:$0xff]
      %v8182 = vld [vmem:[#allocation2 + $0x60] sm:$0xff]
      %v8183 = vld [vmem:[#allocation2 + $0x70] sm:$0xff]
      %v8184 = vld [vmem:[#allocation2 + $0x80] sm:$0xff]
      %v8185 = vld [vmem:[#allocation2 + $0x90] sm:$0xff]
      %v8186 = vld [vmem:[#allocation2 + $0xa0] sm:$0xff]
      %v8187 = vld [vmem:[#allocation2 + $0xb0] sm:$0xff]
      %v8188 = vld [vmem:[#allocation2 + $0xc0] sm:$0xff]
      %v8189 = vld [vmem:[#allocation2 + $0xd0] sm:$0xff]
      %v8190 = vld [vmem:[#allocation2 + $0xe0] sm:$0xff]
      %v8191 = vld [vmem:[#allocation2 + $0xf0] sm:$0xff]
      %v8192 = vld [vmem:[#allocation2 + $0x100] sm:$0xff]
      %v8193 = vld [vmem:[#allocation2 + $0x110] sm:$0xff]
      %v8194 = vld [vmem:[#allocation2 + $0x120] sm:$0xff]
      %v8195 = vld [vmem:[#allocation2 + $0x130] sm:$0xff]
      %v8196 = vld [vmem:[#allocation2 + $0x140] sm:$0x3f]
      %s8197 = scalar_lea.vmem %s5, 128
      %v8198 = vld [vmem:[%s8197] sm:$0xf]
      %v8199 = vld [vmem:[%s8197 + $0x4] sm:$0xf]
      %v8200 = vld [vmem:[%s8197 + $0x8] sm:$0xf]
      %v8201 = vld [vmem:[%s8197 + $0xc] sm:$0xf]
      %v8202 = vld [vmem:[%s8197 + $0x10] sm:$0xf]
      %v8203 = vld [vmem:[%s8197 + $0x14] sm:$0xf]
      %v8204 = vld [vmem:[%s8197 + $0x18] sm:$0xf]
      %v8205 = vld [vmem:[%s8197 + $0x1c] sm:$0xf]
      %v8206 = vld [vmem:[%s8197 + $0x20] sm:$0xf]
      %v8207 = vld [vmem:[%s8197 + $0x24] sm:$0xf]
      %v8208 = vld [vmem:[%s8197 + $0x28] sm:$0xf]
      %v8209 = vld [vmem:[%s8197 + $0x2c] sm:$0xf]
      %v8210 = vld [vmem:[%s8197 + $0x30] sm:$0xf]
      %v8211 = vld [vmem:[%s8197 + $0x34] sm:$0xf]
      %v8212 = vld [vmem:[%s8197 + $0x38] sm:$0xf]
      %v8213 = vld [vmem:[%s8197 + $0x3c] sm:$0xf]
      %v8215 = vshrl.u32 %v8178, 16
      %v8217 = vrot.slane %v8215, 5
      %v8218 = vshll.u32 %v8178, 16
      %v8220 = vrot.slane %v8218, 6
      %v8221 = vor.u32 %v8217, %v8220
      %v8223 = vshrl.u32 %v8179, 16
      %v8225 = vrot.slane %v8223, 5
      %v8226 = vshll.u32 %v8179, 16
      %v8228 = vrot.slane %v8226, 6
      %v8229 = vor.u32 %v8225, %v8228
      %v8230 = vsel %vm3735, %v8221, %v8229
      %v8232 = vshrl.u32 %v8180, 16
      %v8234 = vrot.slane %v8232, 5
      %v8235 = vshll.u32 %v8180, 16
      %v8237 = vrot.slane %v8235, 6
      %v8238 = vor.u32 %v8234, %v8237
      %v8239 = vsel %vm3735, %v8229, %v8238
      %v8241 = vshrl.u32 %v8181, 16
      %v8243 = vrot.slane %v8241, 5
      %v8244 = vshll.u32 %v8181, 16
      %v8246 = vrot.slane %v8244, 6
      %v8247 = vor.u32 %v8243, %v8246
      %v8248 = vsel %vm3735, %v8238, %v8247
      %v8250 = vshrl.u32 %v8182, 16
      %v8252 = vrot.slane %v8250, 5
      %v8253 = vshll.u32 %v8182, 16
      %v8255 = vrot.slane %v8253, 6
      %v8256 = vor.u32 %v8252, %v8255
      %v8257 = vsel %vm3735, %v8247, %v8256
      %v8259 = vshrl.u32 %v8183, 16
      %v8261 = vrot.slane %v8259, 5
      %v8262 = vshll.u32 %v8183, 16
      %v8264 = vrot.slane %v8262, 6
      %v8265 = vor.u32 %v8261, %v8264
      %v8266 = vsel %vm3735, %v8256, %v8265
      %v8268 = vshrl.u32 %v8184, 16
      %v8270 = vrot.slane %v8268, 5
      %v8271 = vshll.u32 %v8184, 16
      %v8273 = vrot.slane %v8271, 6
      %v8274 = vor.u32 %v8270, %v8273
      %v8275 = vsel %vm3735, %v8265, %v8274
      %v8277 = vshrl.u32 %v8185, 16
      %v8279 = vrot.slane %v8277, 5
      %v8280 = vshll.u32 %v8185, 16
      %v8282 = vrot.slane %v8280, 6
      %v8283 = vor.u32 %v8279, %v8282
      %v8284 = vsel %vm3735, %v8274, %v8283
      %v8286 = vshrl.u32 %v8186, 16
      %v8288 = vrot.slane %v8286, 5
      %v8289 = vshll.u32 %v8186, 16
      %v8291 = vrot.slane %v8289, 6
      %v8292 = vor.u32 %v8288, %v8291
      %v8293 = vsel %vm3735, %v8283, %v8292
      %v8295 = vshrl.u32 %v8187, 16
      %v8297 = vrot.slane %v8295, 5
      %v8298 = vshll.u32 %v8187, 16
      %v8300 = vrot.slane %v8298, 6
      %v8301 = vor.u32 %v8297, %v8300
      %v8302 = vsel %vm3735, %v8292, %v8301
      %v8304 = vshrl.u32 %v8188, 16
      %v8306 = vrot.slane %v8304, 5
      %v8307 = vshll.u32 %v8188, 16
      %v8309 = vrot.slane %v8307, 6
      %v8310 = vor.u32 %v8306, %v8309
      %v8311 = vsel %vm3735, %v8301, %v8310
      %v8313 = vshrl.u32 %v8189, 16
      %v8315 = vrot.slane %v8313, 5
      %v8316 = vshll.u32 %v8189, 16
      %v8318 = vrot.slane %v8316, 6
      %v8319 = vor.u32 %v8315, %v8318
      %v8320 = vsel %vm3735, %v8310, %v8319
      %v8322 = vshrl.u32 %v8190, 16
      %v8324 = vrot.slane %v8322, 5
      %v8325 = vshll.u32 %v8190, 16
      %v8327 = vrot.slane %v8325, 6
      %v8328 = vor.u32 %v8324, %v8327
      %v8329 = vsel %vm3735, %v8319, %v8328
      %v8331 = vshrl.u32 %v8191, 16
      %v8333 = vrot.slane %v8331, 5
      %v8334 = vshll.u32 %v8191, 16
      %v8336 = vrot.slane %v8334, 6
      %v8337 = vor.u32 %v8333, %v8336
      %v8338 = vsel %vm3735, %v8328, %v8337
      %v8340 = vshrl.u32 %v8192, 16
      %v8342 = vrot.slane %v8340, 5
      %v8343 = vshll.u32 %v8192, 16
      %v8345 = vrot.slane %v8343, 6
      %v8346 = vor.u32 %v8342, %v8345
      %v8347 = vsel %vm3735, %v8337, %v8346
      %v8349 = vshrl.u32 %v8193, 16
      %v8351 = vrot.slane %v8349, 5
      %v8352 = vshll.u32 %v8193, 16
      %v8354 = vrot.slane %v8352, 6
      %v8355 = vor.u32 %v8351, %v8354
      %v8356 = vsel %vm3735, %v8346, %v8355
      %v8358 = vshrl.u32 %v8194, 16
      %v8360 = vrot.slane %v8358, 5
      %v8361 = vshll.u32 %v8194, 16
      %v8363 = vrot.slane %v8361, 6
      %v8364 = vor.u32 %v8360, %v8363
      %v8365 = vsel %vm3735, %v8355, %v8364
      %v8367 = vshrl.u32 %v8195, 16
      %v8369 = vrot.slane %v8367, 5
      %v8370 = vshll.u32 %v8195, 16
      %v8372 = vrot.slane %v8370, 6
      %v8373 = vor.u32 %v8369, %v8372
      %v8374 = vsel %vm3735, %v8364, %v8373
      %v8376 = vshrl.u32 %v8196, 16
      %v8378 = vrot.slane %v8376, 5
      %v8379 = vshll.u32 %v8196, 16
      %v8381 = vrot.slane %v8379, 6
      %v8382 = vor.u32 %v8378, %v8381
      %v8383 = vsel %vm3735, %v8373, %v8382
      %v8418 = vunpack.c.l.b16 %v8198
      %v8419 = vunpack.c.l.b16 %v8199
      %v8420 = vunpack.c.l.b16 %v8200
      %v8421 = vunpack.c.l.b16 %v8201
      %v8422 = vunpack.c.l.b16 %v8202
      %v8423 = vunpack.c.l.b16 %v8203
      %v8424 = vunpack.c.l.b16 %v8204
      %v8425 = vunpack.c.l.b16 %v8205
      %v8426 = vunpack.c.l.b16 %v8206
      %v8427 = vunpack.c.l.b16 %v8207
      %v8428 = vunpack.c.l.b16 %v8208
      %v8429 = vunpack.c.l.b16 %v8209
      %v8430 = vunpack.c.l.b16 %v8210
      %v8431 = vunpack.c.l.b16 %v8211
      %v8432 = vunpack.c.l.b16 %v8212
      %v8433 = vunpack.c.l.b16 %v8213
      %v8434 = vpack.c.b16 %v8419, %v8418
      %v8435 = vpack.c.b16 %v8421, %v8420
      %v8436 = vpack.c.b16 %v8423, %v8422
      %v8437 = vpack.c.b16 %v8425, %v8424
      %v8438 = vpack.c.b16 %v8427, %v8426
      %v8439 = vpack.c.b16 %v8429, %v8428
      %v8440 = vpack.c.b16 %v8431, %v8430
      %v8441 = vpack.c.b16 %v8433, %v8432
      %8450 = vmatprep.subr.bf16.mxu0 0
      %8451 = vmatpush1.bf16.msra.mxu0 %v8434
      %8452 = vmatprep.subr.bf16.mxu0 0
      %8453 = vmatpush1.bf16.msra.mxu0 %v8435
      %8454 = vmatprep.subr.bf16.mxu0 0
      %8455 = vmatpush1.bf16.msra.mxu0 %v8436
      %8456 = vmatprep.subr.bf16.mxu0 0
      %8457 = vmatpush1.bf16.msra.mxu0 %v8437
      %8458 = vmatprep.subr.bf16.mxu0 0
      %8459 = vmatpush1.bf16.msra.mxu0 %v8438
      %8460 = vmatprep.subr.bf16.mxu0 0
      %8461 = vmatpush1.bf16.msra.mxu0 %v8439
      %8462 = vmatprep.subr.bf16.mxu0 0
      %8463 = vmatpush1.bf16.msra.mxu0 %v8440
      %8464 = vmatprep.subr.bf16.mxu0 0
      %8465 = vmatpush1.bf16.msra.mxu0 %v8441
      %8466 = vmatprep.subr.bf16.mxu0 0
      %8467 = vmatpush1.bf16.msra.mxu0 0
      %8468 = vmatprep.subr.bf16.mxu0 0
      %8469 = vmatpush1.bf16.msra.mxu0 0
      %8470 = vmatprep.subr.bf16.mxu0 0
      %8471 = vmatpush1.bf16.msra.mxu0 0
      %8472 = vmatprep.subr.bf16.mxu0 0
      %8473 = vmatpush1.bf16.msra.mxu0 0
      %8474 = vmatprep.subr.bf16.mxu0 0
      %8475 = vmatpush1.bf16.msra.mxu0 0
      %8476 = vmatprep.subr.bf16.mxu0 0
      %8477 = vmatpush1.bf16.msra.mxu0 0
      %8478 = vmatprep.subr.bf16.mxu0 0
      %8479 = vmatpush1.bf16.msra.mxu0 0
      %8480 = vmatprep.subr.bf16.mxu0 0
      %8481 = vmatpush1.bf16.msra.mxu0 0
      %8482 = vmatprep.mubr.bf16.mxu0 0
      %8483 = vmatmul.mubr.bf16.gmra.mrb[0].mxu0 %v8230
      %v8484 = vpop.f32.mrb[0].mxu0
      %v8485 = vadd.f32 0.0, %v8484
      %v8486 = vpop.f32.mrb[0].mxu0
      %v8487 = vpop.f32.mrb[0].mxu0
      %v8488 = vadd.f32 0.0, %v8487
      %v8489 = vpop.f32.mrb[0].mxu0
      %8490 = vmatprep.mubr.bf16.mxu0 0
      %8491 = vmatmul.mubr.bf16.gmra.mrb[0].mxu0 %v8239
      %v8492 = vpop.f32.mrb[0].mxu0
      %v8493 = vadd.f32 0.0, %v8492
      %v8494 = vpop.f32.mrb[0].mxu0
      %v8495 = vpop.f32.mrb[0].mxu0
      %v8496 = vadd.f32 0.0, %v8495
      %v8497 = vpop.f32.mrb[0].mxu0
      %8498 = vmatprep.mubr.bf16.mxu0 0
      %8499 = vmatmul.mubr.bf16.gmra.mrb[0].mxu0 %v8248
      %v8500 = vpop.f32.mrb[0].mxu0
      %v8501 = vadd.f32 0.0, %v8500
      %v8502 = vpop.f32.mrb[0].mxu0
      %v8503 = vpop.f32.mrb[0].mxu0
      %v8504 = vadd.f32 0.0, %v8503
      %v8505 = vpop.f32.mrb[0].mxu0
      %8506 = vmatprep.mubr.bf16.mxu0 0
      %8507 = vmatmul.mubr.bf16.gmra.mrb[0].mxu0 %v8257
      %v8508 = vpop.f32.mrb[0].mxu0
      %v8509 = vadd.f32 0.0, %v8508
      %v8510 = vpop.f32.mrb[0].mxu0
      %v8511 = vpop.f32.mrb[0].mxu0
      %v8512 = vadd.f32 0.0, %v8511
      %v8513 = vpop.f32.mrb[0].mxu0
      %8514 = vmatprep.mubr.bf16.mxu0 0
      %8515 = vmatmul.mubr.bf16.gmra.mrb[0].mxu0 %v8266
      %v8516 = vpop.f32.mrb[0].mxu0
      %v8517 = vadd.f32 0.0, %v8516
      %v8518 = vpop.f32.mrb[0].mxu0
      %v8519 = vpop.f32.mrb[0].mxu0
      %v8520 = vadd.f32 0.0, %v8519
      %v8521 = vpop.f32.mrb[0].mxu0
      %8522 = vmatprep.mubr.bf16.mxu0 0
      %8523 = vmatmul.mubr.bf16.gmra.mrb[0].mxu0 %v8275
      %v8524 = vpop.f32.mrb[0].mxu0
      %v8525 = vadd.f32 0.0, %v8524
      %v8526 = vpop.f32.mrb[0].mxu0
      %v8527 = vpop.f32.mrb[0].mxu0
      %v8528 = vadd.f32 0.0, %v8527
      %v8529 = vpop.f32.mrb[0].mxu0
      %8530 = vmatprep.mubr.bf16.mxu0 0
      %8531 = vmatmul.mubr.bf16.gmra.mrb[0].mxu0 %v8284
      %v8532 = vpop.f32.mrb[0].mxu0
      %v8533 = vadd.f32 0.0, %v8532
      %v8534 = vpop.f32.mrb[0].mxu0
      %v8535 = vpop.f32.mrb[0].mxu0
      %v8536 = vadd.f32 0.0, %v8535
      %v8537 = vpop.f32.mrb[0].mxu0
      %8538 = vmatprep.mubr.bf16.mxu0 0
      %8539 = vmatmul.mubr.bf16.gmra.mrb[0].mxu0 %v8293
      %v8540 = vpop.f32.mrb[0].mxu0
      %v8541 = vadd.f32 0.0, %v8540
      %v8542 = vpop.f32.mrb[0].mxu0
      %v8543 = vpop.f32.mrb[0].mxu0
      %v8544 = vadd.f32 0.0, %v8543
      %v8545 = vpop.f32.mrb[0].mxu0
      %8546 = vmatprep.mubr.bf16.mxu0 0
      %8547 = vmatmul.mubr.bf16.gmra.mrb[0].mxu0 %v8302
      %v8548 = vpop.f32.mrb[0].mxu0
      %v8549 = vadd.f32 0.0, %v8548
      %v8550 = vpop.f32.mrb[0].mxu0
      %v8551 = vpop.f32.mrb[0].mxu0
      %v8552 = vadd.f32 0.0, %v8551
      %v8553 = vpop.f32.mrb[0].mxu0
      %8554 = vmatprep.mubr.bf16.mxu0 0
      %8555 = vmatmul.mubr.bf16.gmra.mrb[0].mxu0 %v8311
      %v8556 = vpop.f32.mrb[0].mxu0
      %v8557 = vadd.f32 0.0, %v8556
      %v8558 = vpop.f32.mrb[0].mxu0
      %v8559 = vpop.f32.mrb[0].mxu0
      %v8560 = vadd.f32 0.0, %v8559
      %v8561 = vpop.f32.mrb[0].mxu0
      %8562 = vmatprep.mubr.bf16.mxu0 0
      %8563 = vmatmul.mubr.bf16.gmra.mrb[0].mxu0 %v8320
      %v8564 = vpop.f32.mrb[0].mxu0
      %v8565 = vadd.f32 0.0, %v8564
      %v8566 = vpop.f32.mrb[0].mxu0
      %v8567 = vpop.f32.mrb[0].mxu0
      %v8568 = vadd.f32 0.0, %v8567
      %v8569 = vpop.f32.mrb[0].mxu0
      %8570 = vmatprep.mubr.bf16.mxu0 0
      %8571 = vmatmul.mubr.bf16.gmra.mrb[0].mxu0 %v8329
      %v8572 = vpop.f32.mrb[0].mxu0
      %v8573 = vadd.f32 0.0, %v8572
      %v8574 = vpop.f32.mrb[0].mxu0
      %v8575 = vpop.f32.mrb[0].mxu0
      %v8576 = vadd.f32 0.0, %v8575
      %v8577 = vpop.f32.mrb[0].mxu0
      %8578 = vmatprep.mubr.bf16.mxu0 0
      %8579 = vmatmul.mubr.bf16.gmra.mrb[0].mxu0 %v8338
      %v8580 = vpop.f32.mrb[0].mxu0
      %v8581 = vadd.f32 0.0, %v8580
      %v8582 = vpop.f32.mrb[0].mxu0
      %v8583 = vpop.f32.mrb[0].mxu0
      %v8584 = vadd.f32 0.0, %v8583
      %v8585 = vpop.f32.mrb[0].mxu0
      %8586 = vmatprep.mubr.bf16.mxu0 0
      %8587 = vmatmul.mubr.bf16.gmra.mrb[0].mxu0 %v8347
      %v8588 = vpop.f32.mrb[0].mxu0
      %v8589 = vadd.f32 0.0, %v8588
      %v8590 = vpop.f32.mrb[0].mxu0
      %v8591 = vpop.f32.mrb[0].mxu0
      %v8592 = vadd.f32 0.0, %v8591
      %v8593 = vpop.f32.mrb[0].mxu0
      %8594 = vmatprep.mubr.bf16.mxu0 0
      %8595 = vmatmul.mubr.bf16.gmra.mrb[0].mxu0 %v8356
      %v8596 = vpop.f32.mrb[0].mxu0
      %v8597 = vadd.f32 0.0, %v8596
      %v8598 = vpop.f32.mrb[0].mxu0
      %v8599 = vpop.f32.mrb[0].mxu0
      %v8600 = vadd.f32 0.0, %v8599
      %v8601 = vpop.f32.mrb[0].mxu0
      %8602 = vmatprep.mubr.bf16.mxu0 0
      %8603 = vmatmul.mubr.bf16.gmra.mrb[0].mxu0 %v8365
      %v8604 = vpop.f32.mrb[0].mxu0
      %v8605 = vadd.f32 0.0, %v8604
      %v8606 = vpop.f32.mrb[0].mxu0
      %v8607 = vpop.f32.mrb[0].mxu0
      %v8608 = vadd.f32 0.0, %v8607
      %v8609 = vpop.f32.mrb[0].mxu0
      %8610 = vmatprep.mubr.bf16.mxu0 0
      %8611 = vmatmul.mubr.bf16.gmra.mrb[0].mxu0 %v8374
      %v8612 = vpop.f32.mrb[0].mxu0
      %v8613 = vadd.f32 0.0, %v8612
      %v8614 = vpop.f32.mrb[0].mxu0
      %v8615 = vpop.f32.mrb[0].mxu0
      %v8616 = vadd.f32 0.0, %v8615
      %v8617 = vpop.f32.mrb[0].mxu0
      %8618 = vmatprep.mubr.bf16.mxu0 0
      %8619 = vmatmul.mubr.bf16.gmra.mrb[0].mxu0 %v8383
      %v8620 = vpop.f32.mrb[0].mxu0
      %v8621 = vadd.f32 0.0, %v8620
      %v8622 = vpop.f32.mrb[0].mxu0
      %v8623 = vpop.f32.mrb[0].mxu0
      %v8624 = vadd.f32 0.0, %v8623
      %v8625 = vpop.f32.mrb[0].mxu0
      %8626 = vdwg.mxu0
      %v8627 = vadd.f32 %v8142, %v8485
      %v8628 = vadd.f32 %v8143, %v8488
      %v8629 = vadd.f32 %v8144, %v8493
      %v8630 = vadd.f32 %v8145, %v8496
      %v8631 = vadd.f32 %v8146, %v8501
      %v8632 = vadd.f32 %v8147, %v8504
      %v8633 = vadd.f32 %v8148, %v8509
      %v8634 = vadd.f32 %v8149, %v8512
      %v8635 = vadd.f32 %v8150, %v8517
      %v8636 = vadd.f32 %v8151, %v8520
      %v8637 = vadd.f32 %v8152, %v8525
      %v8638 = vadd.f32 %v8153, %v8528
      %v8639 = vadd.f32 %v8154, %v8533
      %v8640 = vadd.f32 %v8155, %v8536
      %v8641 = vadd.f32 %v8156, %v8541
      %v8642 = vadd.f32 %v8157, %v8544
      %v8643 = vadd.f32 %v8158, %v8549
      %v8644 = vadd.f32 %v8159, %v8552
      %v8645 = vadd.f32 %v8160, %v8557
      %v8646 = vadd.f32 %v8161, %v8560
      %v8647 = vadd.f32 %v8162, %v8565
      %v8648 = vadd.f32 %v8163, %v8568
      %v8649 = vadd.f32 %v8164, %v8573
      %v8650 = vadd.f32 %v8165, %v8576
      %v8651 = vadd.f32 %v8166, %v8581
      %v8652 = vadd.f32 %v8167, %v8584
      %v8653 = vadd.f32 %v8168, %v8589
      %v8654 = vadd.f32 %v8169, %v8592
      %v8655 = vadd.f32 %v8170, %v8597
      %v8656 = vadd.f32 %v8171, %v8600
      %v8657 = vadd.f32 %v8172, %v8605
      %v8658 = vadd.f32 %v8173, %v8608
      %v8659 = vadd.f32 %v8174, %v8613
      %v8660 = vadd.f32 %v8175, %v8616
      %v8661 = vadd.f32 %v8176, %v8621
      %v8662 = vadd.f32 %v8177, %v8624
      %v8663 = vld [vmem:[%s273 + $0x18] sm:$0xff]
      %v8664 = vld [vmem:[%s273 + $0x20] sm:$0xff]
      %v8665 = vld [vmem:[%s273 + $0x28] sm:$0xff]
      %v8666 = vld [vmem:[%s273 + $0x30] sm:$0xff]
      %v8667 = vld [vmem:[%s273 + $0x38] sm:$0xff]
      %v8668 = vld [vmem:[%s273 + $0x40] sm:$0xff]
      %v8669 = vld [vmem:[%s273 + $0x48] sm:$0xff]
      %v8670 = vld [vmem:[%s273 + $0x50] sm:$0xff]
      %v8671 = vld [vmem:[%s273 + $0x58] sm:$0xff]
      %v8672 = vld [vmem:[%s273 + $0x60] sm:$0xff]
      %v8673 = vld [vmem:[%s273 + $0x68] sm:$0xff]
      %v8674 = vld [vmem:[%s273 + $0x70] sm:$0xff]
      %v8675 = vld [vmem:[%s273 + $0x78] sm:$0xff]
      %v8676 = vld [vmem:[%s273 + $0x80] sm:$0xff]
      %v8677 = vld [vmem:[%s273 + $0x88] sm:$0xff]
      %v8678 = vld [vmem:[%s273 + $0x90] sm:$0xff]
      %v8679 = vld [vmem:[%s273 + $0x98] sm:$0xff]
      %v8680 = vld [vmem:[%s273 + $0xa0] sm:$0xff]
      %v8681 = vld [vmem:[%s273 + $0xa8] sm:$0xff]
      %v8682 = vld [vmem:[%s273 + $0xb0] sm:$0xff]
      %v8683 = vld [vmem:[%s273 + $0xb8] sm:$0xff]
      %v8684 = vld [vmem:[%s273 + $0xc0] sm:$0xff]
      %v8685 = vld [vmem:[%s273 + $0xc8] sm:$0xff]
      %v8686 = vld [vmem:[%s273 + $0xd0] sm:$0xff]
      %v8687 = vld [vmem:[%s273 + $0xd8] sm:$0xff]
      %v8688 = vld [vmem:[%s273 + $0xe0] sm:$0xff]
      %v8689 = vld [vmem:[%s273 + $0xe8] sm:$0xff]
      %v8690 = vld [vmem:[%s273 + $0xf0] sm:$0xff]
      %v8691 = vld [vmem:[%s273 + $0xf8] sm:$0xff]
      %v8692 = vld [vmem:[%s273 + $0x100] sm:$0xff]
      %v8693 = vld [vmem:[%s273 + $0x108] sm:$0xff]
      %v8694 = vld [vmem:[%s273 + $0x110] sm:$0xff]
      %v8695 = vld [vmem:[%s273 + $0x118] sm:$0xff]
      %v8696 = vld [vmem:[%s273 + $0x120] sm:$0xff]
      %v8697 = vld [vmem:[%s273 + $0x128] sm:$0xff]
      %v8698 = vld [vmem:[%s273 + $0x130] sm:$0xff]
      %v8699 = vadd.f32 %v8627, %v8663
      %v8700 = vadd.f32 %v8628, %v8664
      %v8701 = vadd.f32 %v8629, %v8665
      %v8702 = vadd.f32 %v8630, %v8666
      %v8703 = vadd.f32 %v8631, %v8667
      %v8704 = vadd.f32 %v8632, %v8668
      %v8705 = vadd.f32 %v8633, %v8669
      %v8706 = vadd.f32 %v8634, %v8670
      %v8707 = vadd.f32 %v8635, %v8671
      %v8708 = vadd.f32 %v8636, %v8672
      %v8709 = vadd.f32 %v8637, %v8673
      %v8710 = vadd.f32 %v8638, %v8674
      %v8711 = vadd.f32 %v8639, %v8675
      %v8712 = vadd.f32 %v8640, %v8676
      %v8713 = vadd.f32 %v8641, %v8677
      %v8714 = vadd.f32 %v8642, %v8678
      %v8715 = vadd.f32 %v8643, %v8679
      %v8716 = vadd.f32 %v8644, %v8680
      %v8717 = vadd.f32 %v8645, %v8681
      %v8718 = vadd.f32 %v8646, %v8682
      %v8719 = vadd.f32 %v8647, %v8683
      %v8720 = vadd.f32 %v8648, %v8684
      %v8721 = vadd.f32 %v8649, %v8685
      %v8722 = vadd.f32 %v8650, %v8686
      %v8723 = vadd.f32 %v8651, %v8687
      %v8724 = vadd.f32 %v8652, %v8688
      %v8725 = vadd.f32 %v8653, %v8689
      %v8726 = vadd.f32 %v8654, %v8690
      %v8727 = vadd.f32 %v8655, %v8691
      %v8728 = vadd.f32 %v8656, %v8692
      %v8729 = vadd.f32 %v8657, %v8693
      %v8730 = vadd.f32 %v8658, %v8694
      %v8731 = vadd.f32 %v8659, %v8695
      %v8732 = vadd.f32 %v8660, %v8696
      %v8733 = vadd.f32 %v8661, %v8697
      %v8734 = vadd.f32 %v8662, %v8698
      %v8735 = vmax.f32 %v8699, 0.0
      %v8736 = vmax.f32 %v8700, 0.0
      %v8737 = vmax.f32 %v8701, 0.0
      %v8738 = vmax.f32 %v8702, 0.0
      %v8739 = vmax.f32 %v8703, 0.0
      %v8740 = vmax.f32 %v8704, 0.0
      %v8741 = vmax.f32 %v8705, 0.0
      %v8742 = vmax.f32 %v8706, 0.0
      %v8743 = vmax.f32 %v8707, 0.0
      %v8744 = vmax.f32 %v8708, 0.0
      %v8745 = vmax.f32 %v8709, 0.0
      %v8746 = vmax.f32 %v8710, 0.0
      %v8747 = vmax.f32 %v8711, 0.0
      %v8748 = vmax.f32 %v8712, 0.0
      %v8749 = vmax.f32 %v8713, 0.0
      %v8750 = vmax.f32 %v8714, 0.0
      %v8751 = vmax.f32 %v8715, 0.0
      %v8752 = vmax.f32 %v8716, 0.0
      %v8753 = vmax.f32 %v8717, 0.0
      %v8754 = vmax.f32 %v8718, 0.0
      %v8755 = vmax.f32 %v8719, 0.0
      %v8756 = vmax.f32 %v8720, 0.0
      %v8757 = vmax.f32 %v8721, 0.0
      %v8758 = vmax.f32 %v8722, 0.0
      %v8759 = vmax.f32 %v8723, 0.0
      %v8760 = vmax.f32 %v8724, 0.0
      %v8761 = vmax.f32 %v8725, 0.0
      %v8762 = vmax.f32 %v8726, 0.0
      %v8763 = vmax.f32 %v8727, 0.0
      %v8764 = vmax.f32 %v8728, 0.0
      %v8765 = vmax.f32 %v8729, 0.0
      %v8766 = vmax.f32 %v8730, 0.0
      %v8767 = vmax.f32 %v8731, 0.0
      %v8768 = vmax.f32 %v8732, 0.0
      %v8769 = vmax.f32 %v8733, 0.0
      %v8770 = vmax.f32 %v8734, 0.0
      %8771 = vst [vmem:[%s278] sm:$0xff] %v8735
      %8772 = vst [vmem:[%s278 + $0x8] sm:$0xff] %v8736
      %8773 = vst [vmem:[%s278 + $0x10] sm:$0xff] %v8737
      %8774 = vst [vmem:[%s278 + $0x18] sm:$0xff] %v8738
      %8775 = vst [vmem:[%s278 + $0x20] sm:$0xff] %v8739
      %8776 = vst [vmem:[%s278 + $0x28] sm:$0xff] %v8740
      %8777 = vst [vmem:[%s278 + $0x30] sm:$0xff] %v8741
      %8778 = vst [vmem:[%s278 + $0x38] sm:$0xff] %v8742
      %8779 = vst [vmem:[%s278 + $0x40] sm:$0xff] %v8743
      %8780 = vst [vmem:[%s278 + $0x48] sm:$0xff] %v8744
      %8781 = vst [vmem:[%s278 + $0x50] sm:$0xff] %v8745
      %8782 = vst [vmem:[%s278 + $0x58] sm:$0xff] %v8746
      %8783 = vst [vmem:[%s278 + $0x60] sm:$0xff] %v8747
      %8784 = vst [vmem:[%s278 + $0x68] sm:$0xff] %v8748
      %8785 = vst [vmem:[%s278 + $0x70] sm:$0xff] %v8749
      %8786 = vst [vmem:[%s278 + $0x78] sm:$0xff] %v8750
      %8787 = vst [vmem:[%s278 + $0x80] sm:$0xff] %v8751
      %8788 = vst [vmem:[%s278 + $0x88] sm:$0xff] %v8752
      %8789 = vst [vmem:[%s278 + $0x90] sm:$0xff] %v8753
      %8790 = vst [vmem:[%s278 + $0x98] sm:$0xff] %v8754
      %8791 = vst [vmem:[%s278 + $0xa0] sm:$0xff] %v8755
      %8792 = vst [vmem:[%s278 + $0xa8] sm:$0xff] %v8756
      %8793 = vst [vmem:[%s278 + $0xb0] sm:$0xff] %v8757
      %8794 = vst [vmem:[%s278 + $0xb8] sm:$0xff] %v8758
      %8795 = vst [vmem:[%s278 + $0xc0] sm:$0xff] %v8759
      %8796 = vst [vmem:[%s278 + $0xc8] sm:$0xff] %v8760
      %8797 = vst [vmem:[%s278 + $0xd0] sm:$0xff] %v8761
      %8798 = vst [vmem:[%s278 + $0xd8] sm:$0xff] %v8762
      %8799 = vst [vmem:[%s278 + $0xe0] sm:$0xff] %v8763
      %8800 = vst [vmem:[%s278 + $0xe8] sm:$0xff] %v8764
      %8801 = vst [vmem:[%s278 + $0xf0] sm:$0xff] %v8765
      %8802 = vst [vmem:[%s278 + $0xf8] sm:$0xff] %v8766
      %8803 = vst [vmem:[%s278 + $0x100] sm:$0xff] %v8767
      %8804 = vst [vmem:[%s278 + $0x108] sm:$0xff] %v8768
      %8805 = vst [vmem:[%s278 + $0x110] sm:$0xff] %v8769
      %8806 = vst [vmem:[%s278 + $0x118] sm:$0xff] %v8770
      %p8807 = scmp.lt.s32.totalorder %s18, 1
      %s8808 = scalar_select %p8807, %s18, 1
      %s8809 = smul.addr %s8808, 36
      %s8810 = smul.addr %s8809, 8
      %s8811 = scalar_lea.vmem %s7, %s8810
      // Predicated region
      $region49: #{basic_block_pallas.1} parent=47 // pred_check
        %p8812 = pneg %p188
      $region50: #{basic_block_pallas.1} parent=47 // pred_check_branch
        %8814 = sbr.rel (%p8812) target = $region52
      $region51: #{basic_block_pallas.1} parent=47 // pred_region
        _
      $region52: #{basic_block_pallas.1} parent=47 // pred_fallthru
        _
    $region48: #{basic_block_pallas.1} parent=5 // pred_fallthru
      _
    %p8815 = scmp.le.s32.totalorder 2, %s13
    // Predicated region
    $region53: #{basic_block_pallas.1} parent=5 // pred_check
      %p8816 = pneg %p8815
    $region54: #{basic_block_pallas.1} parent=5 // pred_check_branch
      %8818 = sbr.rel (%p8816) target = $region56
    $region55: #{basic_block_pallas.1} parent=5 // pred_region
      %s8819 = ssub.s32 %s13, 2
      // Predicated region
      $region57: #{basic_block_pallas.1} parent=55 // pred_check
        %p8820 = pneg %p194
      $region58: #{basic_block_pallas.1} parent=55 // pred_check_branch
        %8822 = sbr.rel (%p8820) target = $region60
      $region59: #{basic_block_pallas.1} parent=55 // pred_region
        %p8823 = scmp.lt.s32.totalorder %s19, 1
        %s8824 = scalar_select %p8823, %s19, 1
        %s8825 = smul.addr %s8824, 36
        %s8826 = smul.addr %s8825, 8
        %s8827 = scalar_lea.vmem %s7, %s8826
      $region60: #{basic_block_pallas.1} parent=55 // pred_fallthru
        _
    $region56: #{basic_block_pallas.1} parent=5 // pred_fallthru
      _
  $region6: #{basic_block_pallas.1} parent=0 // loop_footer
    %s17 = sadd.s32 1, %s13
  $region7: #{basic_block_pallas.1} parent=0 // loop_footer_branch
    %12 = sbr.rel target = $region3
  $region8: #{basic_block_pallas.1} parent=0 // loop_exit
    _

</llo_original>
